<compile_context>
chip_gen: v7x
topology: tpu7x:2x2x1
jax: 0.10.0
libtpu: 0.0.40
codegen_flags: <defaults>
</compile_context>

<pallas_src>
import functools
import math

import jax
import jax.numpy as jnp
from jax import lax
from jax.experimental import pallas as pl
from jax.experimental.pallas import tpu as pltpu


# ------------------------------------------------------------------
# Fused encoder kernel
# ------------------------------------------------------------------

def _encoder_kernel(
    x_ref, emb_w_ref, emb_b_ref,
    in_w_ref, in_b_ref, out_w_ref, out_b_ref,
    ff1_w_ref, ff1_b_ref, ff2_w_ref, ff2_b_ref,
    ln1_g_ref, ln1_b_ref, ln2_g_ref, ln2_b_ref,
    o_ref,
    qkv_ref, attn_ref,
    *, num_layers, nhead, seq, batch_tile, eps):
    """One grid step processes `batch_tile` full sequences through all layers."""
    E = emb_w_ref.shape[1]
    Dh = E // nhead
    S = seq
    scale = 1.0 / math.sqrt(Dh)

    def layer_norm(t, g, b):
        # PyTorch LayerNorm: biased variance, eps inside rsqrt. Keep f32 math.
        mu = jnp.mean(t, axis=-1, keepdims=True)
        tc = t - mu
        var = jnp.mean(tc * tc, axis=-1, keepdims=True)
        return tc * lax.rsqrt(var + eps) * g + b

    # ---- embedding: Linear(input_dim -> embed_dim) ----
    h = jnp.dot(x_ref[...], emb_w_ref[...],
                preferred_element_type=jnp.float32) + emb_b_ref[...]

    for l in range(num_layers):           # small static layer count -> unrolled
        # ---- multi-head self attention (post-LN block) ----
        qkv_ref[...] = (jnp.dot(h, in_w_ref[l],
                                preferred_element_type=jnp.float32)
                        + in_b_ref[l])                        # (Nt, 3E)

        for b in range(batch_tile):
            r0 = b * S
            for hd in range(nhead):
                c0 = hd * Dh
                # Static Ref slices: no jnp.split / transposes between kernels.
                q_bh = qkv_ref[pl.ds(r0, S), pl.ds(c0, Dh)] * scale
                k_bh = qkv_ref[pl.ds(r0, S), pl.ds(E + c0, Dh)]
                v_bh = qkv_ref[pl.ds(r0, S), pl.ds(2 * E + c0, Dh)]
                # q @ k^T without an explicit transpose (contract Dh axes).
                s_bh = lax.dot_general(
                    q_bh, k_bh, (((1,), (1,)), ((), ())),
                    preferred_element_type=jnp.float32)       # (S, S)
                s_bh = s_bh - jnp.max(s_bh, axis=-1, keepdims=True)
                p = jnp.exp(s_bh)
                inv = pl.reciprocal(jnp.sum(p, axis=-1, keepdims=True),
                                    approx=True)
                # fold the softmax normalization into the (S, Dh) result
                o_bh = jnp.dot(p, v_bh,
                               preferred_element_type=jnp.float32) * inv
                attn_ref[pl.ds(r0, S), pl.ds(c0, Dh)] = o_bh

        attn = (jnp.dot(attn_ref[...], out_w_ref[l],
                        preferred_element_type=jnp.float32) + out_b_ref[l])
        # dropout1 omitted (eval mode)
        h = layer_norm(h + attn, ln1_g_ref[l], ln1_b_ref[l])

        # ---- feed-forward block ----
        ff = jnp.maximum(
            jnp.dot(h, ff1_w_ref[l], preferred_element_type=jnp.float32)
            + ff1_b_ref[l], 0.0)
        ff = (jnp.dot(ff, ff2_w_ref[l], preferred_element_type=jnp.float32)
              + ff2_b_ref[l])
        # dropout2 omitted (eval mode)
        h = layer_norm(h + ff, ln2_g_ref[l], ln2_b_ref[l])

    o_ref[...] = h.astype(o_ref.dtype)


# ------------------------------------------------------------------
# Wrapper
# ------------------------------------------------------------------

def spectral_encoder_forward(x, params, *, nhead=8, eps=1e-5, batch_tile=1):
    """x: (seq, batch, input_dim) -> (seq, batch, embed_dim)."""
    S, B, Din = x.shape
    E = params["emb_w"].shape[1]
    L = params["in_w"].shape[0]
    F = params["ff1_w"].shape[2]
    assert E % nhead == 0
    assert B % batch_tile == 0
    Nt = batch_tile * S                      # rows per grid step (b-major layout)

    # b-major flatten so each batch tile is a contiguous, statically-sliceable
    # row block inside the kernel (row = b*S + s).
    xb = x.transpose(1, 0, 2).reshape(B * S, Din)

    kernel = functools.partial(
        _encoder_kernel, num_layers=L, nhead=nhead, seq=S,
        batch_tile=batch_tile, eps=eps)

    const2 = lambda i: (0, 0)
    const3 = lambda i: (0, 0, 0)

    out = pl.pallas_call(
        kernel,
        out_shape=jax.ShapeDtypeStruct((B * S, E), jnp.float32),
        grid=(B // batch_tile,),
        in_specs=[
            pl.BlockSpec((Nt, Din), lambda i: (i, 0)),     # x tile (per batch block)
            pl.BlockSpec((Din, E), const2),                # emb_w   (pinned)
            pl.BlockSpec((1, E), const2),                  # emb_b
            pl.BlockSpec((L, E, 3 * E), const3),           # in_proj_w (stacked)
            pl.BlockSpec((L, 1, 3 * E), const3),           # in_proj_b
            pl.BlockSpec((L, E, E), const3),               # out_proj_w
            pl.BlockSpec((L, 1, E), const3),               # out_proj_b
            pl.BlockSpec((L, E, F), const3),               # ff1_w
            pl.BlockSpec((L, 1, F), const3),               # ff1_b
            pl.BlockSpec((L, F, E), const3),               # ff2_w
            pl.BlockSpec((L, 1, E), const3),               # ff2_b
            pl.BlockSpec((L, 1, E), const3),               # ln1_g
            pl.BlockSpec((L, 1, E), const3),               # ln1_b
            pl.BlockSpec((L, 1, E), const3),               # ln2_g
            pl.BlockSpec((L, 1, E), const3),               # ln2_b
        ],
        out_specs=pl.BlockSpec((Nt, E), lambda i: (i, 0)),
        scratch_shapes=[
            pltpu.VMEM((Nt, 3 * E), jnp.float32),          # qkv scratch
            pltpu.VMEM((Nt, E), jnp.float32),              # attention scratch
        ],
        compiler_params=pltpu.CompilerParams(
            dimension_semantics=("parallel",),             # batch tiles independent
            vmem_limit_bytes=32 * 1024 * 1024),            # safe on v5e/v6e/v7x
    )(xb, params["emb_w"], params["emb_b"],
      params["in_w"], params["in_b"], params["out_w"], params["out_b"],
      params["ff1_w"], params["ff1_b"], params["ff2_w"], params["ff2_b"],
      params["ln1_g"], params["ln1_b"], params["ln2_g"], params["ln2_b"])

    return out.reshape(B, S, E).transpose(1, 0, 2)


# ------------------------------------------------------------------
# Parameters (deterministic, synthetic), stacked per layer
# ------------------------------------------------------------------

def make_params(key, input_dim, embed_dim, num_layers, dim_feedforward=2048):
    def nrm(k, shape, scale):
        return (scale * jax.random.normal(k, shape)).astype(jnp.float32)

    E, F, L = embed_dim, dim_feedforward, num_layers
    keys = jax.random.split(key, 10)
    return {
        # weights stored as (in, out); PyTorch stores (out, in) and applies x @ W^T
        "emb_w": nrm(keys[0], (input_dim, E), 1.0 / math.sqrt(input_dim)),
        "emb_b": nrm(keys[1], (1, E), 0.02),
        "in_w":  nrm(keys[2], (L, E, 3 * E), 1.0 / math.sqrt(E)),
        "in_b":  nrm(keys[3], (L, 1, 3 * E), 0.02),
        "out_w": nrm(keys[4], (L, E, E), 1.0 / math.sqrt(E)),
        "out_b": nrm(keys[5], (L, 1, E), 0.02),
        "ff1_w": nrm(keys[6], (L, E, F), 1.0 / math.sqrt(E)),
        "ff1_b": nrm(keys[7], (L, 1, F), 0.02),
        "ff2_w": nrm(keys[8], (L, F, E), 1.0 / math.sqrt(F)),
        "ff2_b": nrm(keys[9], (L, 1, E), 0.02),
        "ln1_g": jnp.ones((L, 1, E), jnp.float32),
        "ln1_b": jnp.zeros((L, 1, E), jnp.float32),
        "ln2_g": jnp.ones((L, 1, E), jnp.float32),
        "ln2_b": jnp.zeros((L, 1, E), jnp.float32),
    }


# ------------------------------------------------------------------
# Pure-JAX reference (PyTorch eval semantics) for correctness check
# ------------------------------------------------------------------

def reference_forward(x, params, *, nhead=8, eps=1e-5):
    S, B, _ = x.shape
    E = params["emb_w"].shape[1]
    H, Dh = nhead, E // nhead
    L = params["in_w"].shape[0]

    def ln(t, g, b):
        mu = t.mean(-1, keepdims=True)
        var = ((t - mu) ** 2).mean(-1, keepdims=True)
        return (t - mu) / jnp.sqrt(var + eps) * g + b

    h = jnp.einsum("sbi,ie->sbe", x, params["emb_w"]) + params["emb_b"][0]
    for l in range(L):
        qkv = jnp.einsum("sbe,ef->sbf", h, params["in_w"][l]) + params["in_b"][l, 0]
        q, k, v = jnp.split(qkv, 3, axis=-1)
        heads = lambda t: t.reshape(S, B, H, Dh).transpose(1, 2, 0, 3)
        s = jnp.einsum("bhqd,bhkd->bhqk", heads(q), heads(k)) / math.sqrt(Dh)
        p = jax.nn.softmax(s, axis=-1)
        o = jnp.einsum("bhqk,bhkd->bhqd", p, heads(v))
        o = o.transpose(2, 0, 1, 3).reshape(S, B, E)
        attn = jnp.einsum("sbe,ef->sbf", o, params["out_w"][l]) + params["out_b"][l, 0]
        h = ln(h + attn, params["ln1_g"][l, 0], params["ln1_b"][l, 0])
        ff = jax.nn.relu(
            jnp.einsum("sbe,ef->sbf", h, params["ff1_w"][l]) + params["ff1_b"][l, 0])
        ff = jnp.einsum("sbf,fe->sbe", ff, params["ff2_w"][l]) + params["ff2_b"][l, 0]
        h = ln(h + ff, params["ln2_g"][l, 0], params["ln2_b"][l, 0])
    return h


# ------------------------------------------------------------------
# Main
# ------------------------------------------------------------------

if __name__ == "__main__":
    SEQ, BATCH = 8, 2
    INPUT_DIM, EMBED_DIM = 16, 32        # embed_dim divisible by nhead=8
    NUM_LAYERS = 2
    NHEAD = 8

    key = jax.random.PRNGKey(0)
    kx, kp = jax.random.split(key)

    # layout: (seq, batch, input_dim), PyTorch batch_first=False convention.
    x = jax.random.normal(kx, (SEQ, BATCH, INPUT_DIM), dtype=jnp.float32)
    params = make_params(kp, INPUT_DIM, EMBED_DIM, NUM_LAYERS)

    out = spectral_encoder_forward(x, params, nhead=NHEAD)
    out = jax.block_until_ready(out)
    assert out.shape == (SEQ, BATCH, EMBED_DIM), out.shape
    assert bool(jnp.all(jnp.isfinite(out)))

    ref = reference_forward(x, params, nhead=NHEAD)
    max_err = float(jnp.max(jnp.abs(out - ref)))
    # loose tolerance: pl.reciprocal(approx=True) in the softmax loses a few ulps
    assert max_err < 5e-2, f"max abs err {max_err}"

    print("KERNEL_OK")
</pallas_src>

<mosaic_0001>
module attributes {stable_mosaic.version = 11 : i64} {
  func.func @_encoder_kernel(%arg0: i32, %arg1: memref<8x16xf32, #tpu.memory_space<vmem>>, %arg2: memref<16x32xf32, #tpu.memory_space<vmem>>, %arg3: memref<1x32xf32, #tpu.memory_space<vmem>>, %arg4: memref<2x32x96xf32, #tpu.memory_space<vmem>>, %arg5: memref<2x1x96xf32, #tpu.memory_space<vmem>>, %arg6: memref<2x32x32xf32, #tpu.memory_space<vmem>>, %arg7: memref<2x1x32xf32, #tpu.memory_space<vmem>>, %arg8: memref<2x32x2048xf32, #tpu.memory_space<vmem>>, %arg9: memref<2x1x2048xf32, #tpu.memory_space<vmem>>, %arg10: memref<2x2048x32xf32, #tpu.memory_space<vmem>>, %arg11: memref<2x1x32xf32, #tpu.memory_space<vmem>>, %arg12: memref<2x1x32xf32, #tpu.memory_space<vmem>>, %arg13: memref<2x1x32xf32, #tpu.memory_space<vmem>>, %arg14: memref<2x1x32xf32, #tpu.memory_space<vmem>>, %arg15: memref<2x1x32xf32, #tpu.memory_space<vmem>>, %arg16: memref<8x32xf32, #tpu.memory_space<vmem>>, %arg17: memref<8x96xf32, #tpu.memory_space<vmem>>, %arg18: memref<8x32xf32, #tpu.memory_space<vmem>>) attributes {dimension_semantics = [#tpu.dimension_semantics<parallel>], iteration_bounds = array<i64: 2>, scalar_prefetch = 0 : i64, scratch_operands = 2 : i64, tpu.core_type = #tpu.core_type<tc>, window_params = [{transform_indices = @transform_0, window_bounds = array<i64: 8, 16>}, {pipeline_mode = #tpu.pipeline_mode<synchronous>, transform_indices = @transform_1, window_bounds = array<i64: 16, 32>}, {pipeline_mode = #tpu.pipeline_mode<synchronous>, transform_indices = @transform_2, window_bounds = array<i64: 1, 32>}, {pipeline_mode = #tpu.pipeline_mode<synchronous>, transform_indices = @transform_3, window_bounds = array<i64: 2, 32, 96>}, {pipeline_mode = #tpu.pipeline_mode<synchronous>, transform_indices = @transform_4, window_bounds = array<i64: 2, 1, 96>}, {pipeline_mode = #tpu.pipeline_mode<synchronous>, transform_indices = @transform_5, window_bounds = array<i64: 2, 32, 32>}, {pipeline_mode = #tpu.pipeline_mode<synchronous>, transform_indices = @transform_6, window_bounds = array<i64: 2, 1, 32>}, {pipeline_mode = #tpu.pipeline_mode<synchronous>, transform_indices = @transform_7, window_bounds = array<i64: 2, 32, 2048>}, {pipeline_mode = #tpu.pipeline_mode<synchronous>, transform_indices = @transform_8, window_bounds = array<i64: 2, 1, 2048>}, {pipeline_mode = #tpu.pipeline_mode<synchronous>, transform_indices = @transform_9, window_bounds = array<i64: 2, 2048, 32>}, {pipeline_mode = #tpu.pipeline_mode<synchronous>, transform_indices = @transform_10, window_bounds = array<i64: 2, 1, 32>}, {pipeline_mode = #tpu.pipeline_mode<synchronous>, transform_indices = @transform_11, window_bounds = array<i64: 2, 1, 32>}, {pipeline_mode = #tpu.pipeline_mode<synchronous>, transform_indices = @transform_12, window_bounds = array<i64: 2, 1, 32>}, {pipeline_mode = #tpu.pipeline_mode<synchronous>, transform_indices = @transform_13, window_bounds = array<i64: 2, 1, 32>}, {pipeline_mode = #tpu.pipeline_mode<synchronous>, transform_indices = @transform_14, window_bounds = array<i64: 2, 1, 32>}, {transform_indices = @transform_15, window_bounds = array<i64: 8, 32>}]} {
    %c0 = arith.constant 0 : index
    %c0_0 = arith.constant 0 : index
    %0 = vector.load %arg1[%c0, %c0_0] : memref<8x16xf32, #tpu.memory_space<vmem>>, vector<8x16xf32>
    %c0_1 = arith.constant 0 : index
    %c0_2 = arith.constant 0 : index
    %1 = vector.load %arg2[%c0_1, %c0_2] : memref<16x32xf32, #tpu.memory_space<vmem>>, vector<16x32xf32>
    %cst = arith.constant dense<0.000000e+00> : vector<8x32xf32>
    %2 = tpu.matmul %0, %1, %cst {dimension_numbers = #tpu.dot_dimension_numbers<[1], [0], [0], [1], [0, 0, 1, 1], [], []>} : vector<8x16xf32>, vector<16x32xf32>, vector<8x32xf32> -> vector<8x32xf32>
    %c0_3 = arith.constant 0 : index
    %c0_4 = arith.constant 0 : index
    %3 = vector.load %arg3[%c0_3, %c0_4] : memref<1x32xf32, #tpu.memory_space<vmem>>, vector<1x32xf32>
    %4 = vector.broadcast %3 : vector<1x32xf32> to vector<8x32xf32>
    %5 = arith.addf %2, %4 : vector<8x32xf32>
    %c0_5 = arith.constant 0 : index
    %c0_6 = arith.constant 0 : index
    %c0_7 = arith.constant 0 : index
    %6 = vector.load %arg4[%c0_5, %c0_6, %c0_7] : memref<2x32x96xf32, #tpu.memory_space<vmem>>, vector<1x32x96xf32>
    %7 = vector.shape_cast %6 : vector<1x32x96xf32> to vector<32x96xf32>
    %cst_8 = arith.constant dense<0.000000e+00> : vector<8x96xf32>
    %8 = tpu.matmul %5, %7, %cst_8 {dimension_numbers = #tpu.dot_dimension_numbers<[1], [0], [0], [1], [0, 0, 1, 1], [], []>} : vector<8x32xf32>, vector<32x96xf32>, vector<8x96xf32> -> vector<8x96xf32>
    %c0_9 = arith.constant 0 : index
    %c0_10 = arith.constant 0 : index
    %c0_11 = arith.constant 0 : index
    %9 = vector.load %arg5[%c0_9, %c0_10, %c0_11] : memref<2x1x96xf32, #tpu.memory_space<vmem>>, vector<1x1x96xf32>
    %10 = vector.shape_cast %9 : vector<1x1x96xf32> to vector<1x96xf32>
    %11 = vector.broadcast %10 : vector<1x96xf32> to vector<8x96xf32>
    %12 = arith.addf %8, %11 : vector<8x96xf32>
    %c0_12 = arith.constant 0 : index
    %c0_13 = arith.constant 0 : index
    %13 = vector.load %arg17[%c0_12, %c0_13] : memref<8x96xf32, #tpu.memory_space<vmem>>, vector<8x96xf32>
    tpu.vector_store %arg17[%c0_12, %c0_13], %12 {strides = array<i32>} : memref<8x96xf32, #tpu.memory_space<vmem>>, vector<8x96xf32>,
    %c0_14 = arith.constant 0 : index
    %c0_15 = arith.constant 0 : index
    %14 = vector.load %arg17[%c0_14, %c0_15] : memref<8x96xf32, #tpu.memory_space<vmem>>, vector<8x4xf32>
    %cst_16 = arith.constant 5.000000e-01 : f32
    %15 = vector.broadcast %cst_16 : f32 to vector<8x4xf32>
    %16 = arith.mulf %14, %15 : vector<8x4xf32>
    %c0_17 = arith.constant 0 : index
    %c32 = arith.constant 32 : index
    %17 = vector.load %arg17[%c0_17, %c32] : memref<8x96xf32, #tpu.memory_space<vmem>>, vector<8x4xf32>
    %c0_18 = arith.constant 0 : index
    %c64 = arith.constant 64 : index
    %18 = vector.load %arg17[%c0_18, %c64] : memref<8x96xf32, #tpu.memory_space<vmem>>, vector<8x4xf32>
    %cst_19 = arith.constant dense<0.000000e+00> : vector<8x8xf32>
    %19 = tpu.matmul %16, %17, %cst_19 {dimension_numbers = #tpu.dot_dimension_numbers<[1], [1], [0], [0], [0, 0, 1, 0], [], []>} : vector<8x4xf32>, vector<8x4xf32>, vector<8x8xf32> -> vector<8x8xf32>
    %cst_20 = arith.constant dense<0xFF800000> : vector<8xf32>
    %20 = vector.multi_reduction <maximumf>, %19, %cst_20 [1] : vector<8x8xf32> to vector<8xf32>
    %21 = vector.shape_cast %20 : vector<8xf32> to vector<8x1xf32>
    %22 = vector.broadcast %21 : vector<8x1xf32> to vector<8x8xf32>
    %23 = arith.subf %19, %22 : vector<8x8xf32>
    %24 = math.exp %23 : vector<8x8xf32>
    %cst_21 = arith.constant dense<0.000000e+00> : vector<8xf32>
    %25 = vector.multi_reduction <add>, %24, %cst_21 [1] : vector<8x8xf32> to vector<8xf32>
    %26 = vector.shape_cast %25 : vector<8xf32> to vector<8x1xf32>
    %27 = tpu.reciprocal %26 {approx = true} : vector<8x1xf32> -> vector<8x1xf32>
    %cst_22 = arith.constant dense<0.000000e+00> : vector<8x4xf32>
    %28 = tpu.matmul %24, %18, %cst_22 {dimension_numbers = #tpu.dot_dimension_numbers<[1], [0], [0], [1], [0, 0, 1, 1], [], []>} : vector<8x8xf32>, vector<8x4xf32>, vector<8x4xf32> -> vector<8x4xf32>
    %29 = vector.broadcast %27 : vector<8x1xf32> to vector<8x4xf32>
    %30 = arith.mulf %28, %29 : vector<8x4xf32>
    %c0_23 = arith.constant 0 : index
    %c0_24 = arith.constant 0 : index
    %31 = vector.load %arg18[%c0_23, %c0_24] : memref<8x32xf32, #tpu.memory_space<vmem>>, vector<8x4xf32>
    tpu.vector_store %arg18[%c0_23, %c0_24], %30 {strides = array<i32>} : memref<8x32xf32, #tpu.memory_space<vmem>>, vector<8x4xf32>,
    %c0_25 = arith.constant 0 : index
    %c4 = arith.constant 4 : index
    %32 = vector.load %arg17[%c0_25, %c4] : memref<8x96xf32, #tpu.memory_space<vmem>>, vector<8x4xf32>
    %cst_26 = arith.constant 5.000000e-01 : f32
    %33 = vector.broadcast %cst_26 : f32 to vector<8x4xf32>
    %34 = arith.mulf %32, %33 : vector<8x4xf32>
    %c0_27 = arith.constant 0 : index
    %c36 = arith.constant 36 : index
    %35 = vector.load %arg17[%c0_27, %c36] : memref<8x96xf32, #tpu.memory_space<vmem>>, vector<8x4xf32>
    %c0_28 = arith.constant 0 : index
    %c68 = arith.constant 68 : index
    %36 = vector.load %arg17[%c0_28, %c68] : memref<8x96xf32, #tpu.memory_space<vmem>>, vector<8x4xf32>
    %cst_29 = arith.constant dense<0.000000e+00> : vector<8x8xf32>
    %37 = tpu.matmul %34, %35, %cst_29 {dimension_numbers = #tpu.dot_dimension_numbers<[1], [1], [0], [0], [0, 0, 1, 0], [], []>} : vector<8x4xf32>, vector<8x4xf32>, vector<8x8xf32> -> vector<8x8xf32>
    %cst_30 = arith.constant dense<0xFF800000> : vector<8xf32>
    %38 = vector.multi_reduction <maximumf>, %37, %cst_30 [1] : vector<8x8xf32> to vector<8xf32>
    %39 = vector.shape_cast %38 : vector<8xf32> to vector<8x1xf32>
    %40 = vector.broadcast %39 : vector<8x1xf32> to vector<8x8xf32>
    %41 = arith.subf %37, %40 : vector<8x8xf32>
    %42 = math.exp %41 : vector<8x8xf32>
    %cst_31 = arith.constant dense<0.000000e+00> : vector<8xf32>
    %43 = vector.multi_reduction <add>, %42, %cst_31 [1] : vector<8x8xf32> to vector<8xf32>
    %44 = vector.shape_cast %43 : vector<8xf32> to vector<8x1xf32>
    %45 = tpu.reciprocal %44 {approx = true} : vector<8x1xf32> -> vector<8x1xf32>
    %cst_32 = arith.constant dense<0.000000e+00> : vector<8x4xf32>
    %46 = tpu.matmul %42, %36, %cst_32 {dimension_numbers = #tpu.dot_dimension_numbers<[1], [0], [0], [1], [0, 0, 1, 1], [], []>} : vector<8x8xf32>, vector<8x4xf32>, vector<8x4xf32> -> vector<8x4xf32>
    %47 = vector.broadcast %45 : vector<8x1xf32> to vector<8x4xf32>
    %48 = arith.mulf %46, %47 : vector<8x4xf32>
    %c0_33 = arith.constant 0 : index
    %c4_34 = arith.constant 4 : index
    %49 = vector.load %arg18[%c0_33, %c4_34] : memref<8x32xf32, #tpu.memory_space<vmem>>, vector<8x4xf32>
    tpu.vector_store %arg18[%c0_33, %c4_34], %48 {strides = array<i32>} : memref<8x32xf32, #tpu.memory_space<vmem>>, vector<8x4xf32>,
    %c0_35 = arith.constant 0 : index
    %c8 = arith.constant 8 : index
    %50 = vector.load %arg17[%c0_35, %c8] : memref<8x96xf32, #tpu.memory_space<vmem>>, vector<8x4xf32>
    %cst_36 = arith.constant 5.000000e-01 : f32
    %51 = vector.broadcast %cst_36 : f32 to vector<8x4xf32>
    %52 = arith.mulf %50, %51 : vector<8x4xf32>
    %c0_37 = arith.constant 0 : index
    %c40 = arith.constant 40 : index
    %53 = vector.load %arg17[%c0_37, %c40] : memref<8x96xf32, #tpu.memory_space<vmem>>, vector<8x4xf32>
    %c0_38 = arith.constant 0 : index
    %c72 = arith.constant 72 : index
    %54 = vector.load %arg17[%c0_38, %c72] : memref<8x96xf32, #tpu.memory_space<vmem>>, vector<8x4xf32>
    %cst_39 = arith.constant dense<0.000000e+00> : vector<8x8xf32>
    %55 = tpu.matmul %52, %53, %cst_39 {dimension_numbers = #tpu.dot_dimension_numbers<[1], [1], [0], [0], [0, 0, 1, 0], [], []>} : vector<8x4xf32>, vector<8x4xf32>, vector<8x8xf32> -> vector<8x8xf32>
    %cst_40 = arith.constant dense<0xFF800000> : vector<8xf32>
    %56 = vector.multi_reduction <maximumf>, %55, %cst_40 [1] : vector<8x8xf32> to vector<8xf32>
    %57 = vector.shape_cast %56 : vector<8xf32> to vector<8x1xf32>
    %58 = vector.broadcast %57 : vector<8x1xf32> to vector<8x8xf32>
    %59 = arith.subf %55, %58 : vector<8x8xf32>
    %60 = math.exp %59 : vector<8x8xf32>
    %cst_41 = arith.constant dense<0.000000e+00> : vector<8xf32>
    %61 = vector.multi_reduction <add>, %60, %cst_41 [1] : vector<8x8xf32> to vector<8xf32>
    %62 = vector.shape_cast %61 : vector<8xf32> to vector<8x1xf32>
    %63 = tpu.reciprocal %62 {approx = true} : vector<8x1xf32> -> vector<8x1xf32>
    %cst_42 = arith.constant dense<0.000000e+00> : vector<8x4xf32>
    %64 = tpu.matmul %60, %54, %cst_42 {dimension_numbers = #tpu.dot_dimension_numbers<[1], [0], [0], [1], [0, 0, 1, 1], [], []>} : vector<8x8xf32>, vector<8x4xf32>, vector<8x4xf32> -> vector<8x4xf32>
    %65 = vector.broadcast %63 : vector<8x1xf32> to vector<8x4xf32>
    %66 = arith.mulf %64, %65 : vector<8x4xf32>
    %c0_43 = arith.constant 0 : index
    %c8_44 = arith.constant 8 : index
    %67 = vector.load %arg18[%c0_43, %c8_44] : memref<8x32xf32, #tpu.memory_space<vmem>>, vector<8x4xf32>
    tpu.vector_store %arg18[%c0_43, %c8_44], %66 {strides = array<i32>} : memref<8x32xf32, #tpu.memory_space<vmem>>, vector<8x4xf32>,
    %c0_45 = arith.constant 0 : index
    %c12 = arith.constant 12 : index
    %68 = vector.load %arg17[%c0_45, %c12] : memref<8x96xf32, #tpu.memory_space<vmem>>, vector<8x4xf32>
    %cst_46 = arith.constant 5.000000e-01 : f32
    %69 = vector.broadcast %cst_46 : f32 to vector<8x4xf32>
    %70 = arith.mulf %68, %69 : vector<8x4xf32>
    %c0_47 = arith.constant 0 : index
    %c44 = arith.constant 44 : index
    %71 = vector.load %arg17[%c0_47, %c44] : memref<8x96xf32, #tpu.memory_space<vmem>>, vector<8x4xf32>
    %c0_48 = arith.constant 0 : index
    %c76 = arith.constant 76 : index
    %72 = vector.load %arg17[%c0_48, %c76] : memref<8x96xf32, #tpu.memory_space<vmem>>, vector<8x4xf32>
    %cst_49 = arith.constant dense<0.000000e+00> : vector<8x8xf32>
    %73 = tpu.matmul %70, %71, %cst_49 {dimension_numbers = #tpu.dot_dimension_numbers<[1], [1], [0], [0], [0, 0, 1, 0], [], []>} : vector<8x4xf32>, vector<8x4xf32>, vector<8x8xf32> -> vector<8x8xf32>
    %cst_50 = arith.constant dense<0xFF800000> : vector<8xf32>
    %74 = vector.multi_reduction <maximumf>, %73, %cst_50 [1] : vector<8x8xf32> to vector<8xf32>
    %75 = vector.shape_cast %74 : vector<8xf32> to vector<8x1xf32>
    %76 = vector.broadcast %75 : vector<8x1xf32> to vector<8x8xf32>
    %77 = arith.subf %73, %76 : vector<8x8xf32>
    %78 = math.exp %77 : vector<8x8xf32>
    %cst_51 = arith.constant dense<0.000000e+00> : vector<8xf32>
    %79 = vector.multi_reduction <add>, %78, %cst_51 [1] : vector<8x8xf32> to vector<8xf32>
    %80 = vector.shape_cast %79 : vector<8xf32> to vector<8x1xf32>
    %81 = tpu.reciprocal %80 {approx = true} : vector<8x1xf32> -> vector<8x1xf32>
    %cst_52 = arith.constant dense<0.000000e+00> : vector<8x4xf32>
    %82 = tpu.matmul %78, %72, %cst_52 {dimension_numbers = #tpu.dot_dimension_numbers<[1], [0], [0], [1], [0, 0, 1, 1], [], []>} : vector<8x8xf32>, vector<8x4xf32>, vector<8x4xf32> -> vector<8x4xf32>
    %83 = vector.broadcast %81 : vector<8x1xf32> to vector<8x4xf32>
    %84 = arith.mulf %82, %83 : vector<8x4xf32>
    %c0_53 = arith.constant 0 : index
    %c12_54 = arith.constant 12 : index
    %85 = vector.load %arg18[%c0_53, %c12_54] : memref<8x32xf32, #tpu.memory_space<vmem>>, vector<8x4xf32>
    tpu.vector_store %arg18[%c0_53, %c12_54], %84 {strides = array<i32>} : memref<8x32xf32, #tpu.memory_space<vmem>>, vector<8x4xf32>,
    %c0_55 = arith.constant 0 : index
    %c16 = arith.constant 16 : index
    %86 = vector.load %arg17[%c0_55, %c16] : memref<8x96xf32, #tpu.memory_space<vmem>>, vector<8x4xf32>
    %cst_56 = arith.constant 5.000000e-01 : f32
    %87 = vector.broadcast %cst_56 : f32 to vector<8x4xf32>
    %88 = arith.mulf %86, %87 : vector<8x4xf32>
    %c0_57 = arith.constant 0 : index
    %c48 = arith.constant 48 : index
    %89 = vector.load %arg17[%c0_57, %c48] : memref<8x96xf32, #tpu.memory_space<vmem>>, vector<8x4xf32>
    %c0_58 = arith.constant 0 : index
    %c80 = arith.constant 80 : index
    %90 = vector.load %arg17[%c0_58, %c80] : memref<8x96xf32, #tpu.memory_space<vmem>>, vector<8x4xf32>
    %cst_59 = arith.constant dense<0.000000e+00> : vector<8x8xf32>
    %91 = tpu.matmul %88, %89, %cst_59 {dimension_numbers = #tpu.dot_dimension_numbers<[1], [1], [0], [0], [0, 0, 1, 0], [], []>} : vector<8x4xf32>, vector<8x4xf32>, vector<8x8xf32> -> vector<8x8xf32>
    %cst_60 = arith.constant dense<0xFF800000> : vector<8xf32>
    %92 = vector.multi_reduction <maximumf>, %91, %cst_60 [1] : vector<8x8xf32> to vector<8xf32>
    %93 = vector.shape_cast %92 : vector<8xf32> to vector<8x1xf32>
    %94 = vector.broadcast %93 : vector<8x1xf32> to vector<8x8xf32>
    %95 = arith.subf %91, %94 : vector<8x8xf32>
    %96 = math.exp %95 : vector<8x8xf32>
    %cst_61 = arith.constant dense<0.000000e+00> : vector<8xf32>
    %97 = vector.multi_reduction <add>, %96, %cst_61 [1] : vector<8x8xf32> to vector<8xf32>
    %98 = vector.shape_cast %97 : vector<8xf32> to vector<8x1xf32>
    %99 = tpu.reciprocal %98 {approx = true} : vector<8x1xf32> -> vector<8x1xf32>
    %cst_62 = arith.constant dense<0.000000e+00> : vector<8x4xf32>
    %100 = tpu.matmul %96, %90, %cst_62 {dimension_numbers = #tpu.dot_dimension_numbers<[1], [0], [0], [1], [0, 0, 1, 1], [], []>} : vector<8x8xf32>, vector<8x4xf32>, vector<8x4xf32> -> vector<8x4xf32>
    %101 = vector.broadcast %99 : vector<8x1xf32> to vector<8x4xf32>
    %102 = arith.mulf %100, %101 : vector<8x4xf32>
    %c0_63 = arith.constant 0 : index
    %c16_64 = arith.constant 16 : index
    %103 = vector.load %arg18[%c0_63, %c16_64] : memref<8x32xf32, #tpu.memory_space<vmem>>, vector<8x4xf32>
    tpu.vector_store %arg18[%c0_63, %c16_64], %102 {strides = array<i32>} : memref<8x32xf32, #tpu.memory_space<vmem>>, vector<8x4xf32>,
    %c0_65 = arith.constant 0 : index
    %c20 = arith.constant 20 : index
    %104 = vector.load %arg17[%c0_65, %c20] : memref<8x96xf32, #tpu.memory_space<vmem>>, vector<8x4xf32>
    %cst_66 = arith.constant 5.000000e-01 : f32
    %105 = vector.broadcast %cst_66 : f32 to vector<8x4xf32>
    %106 = arith.mulf %104, %105 : vector<8x4xf32>
    %c0_67 = arith.constant 0 : index
    %c52 = arith.constant 52 : index
    %107 = vector.load %arg17[%c0_67, %c52] : memref<8x96xf32, #tpu.memory_space<vmem>>, vector<8x4xf32>
    %c0_68 = arith.constant 0 : index
    %c84 = arith.constant 84 : index
    %108 = vector.load %arg17[%c0_68, %c84] : memref<8x96xf32, #tpu.memory_space<vmem>>, vector<8x4xf32>
    %cst_69 = arith.constant dense<0.000000e+00> : vector<8x8xf32>
    %109 = tpu.matmul %106, %107, %cst_69 {dimension_numbers = #tpu.dot_dimension_numbers<[1], [1], [0], [0], [0, 0, 1, 0], [], []>} : vector<8x4xf32>, vector<8x4xf32>, vector<8x8xf32> -> vector<8x8xf32>
    %cst_70 = arith.constant dense<0xFF800000> : vector<8xf32>
    %110 = vector.multi_reduction <maximumf>, %109, %cst_70 [1] : vector<8x8xf32> to vector<8xf32>
    %111 = vector.shape_cast %110 : vector<8xf32> to vector<8x1xf32>
    %112 = vector.broadcast %111 : vector<8x1xf32> to vector<8x8xf32>
    %113 = arith.subf %109, %112 : vector<8x8xf32>
    %114 = math.exp %113 : vector<8x8xf32>
    %cst_71 = arith.constant dense<0.000000e+00> : vector<8xf32>
    %115 = vector.multi_reduction <add>, %114, %cst_71 [1] : vector<8x8xf32> to vector<8xf32>
    %116 = vector.shape_cast %115 : vector<8xf32> to vector<8x1xf32>
    %117 = tpu.reciprocal %116 {approx = true} : vector<8x1xf32> -> vector<8x1xf32>
    %cst_72 = arith.constant dense<0.000000e+00> : vector<8x4xf32>
    %118 = tpu.matmul %114, %108, %cst_72 {dimension_numbers = #tpu.dot_dimension_numbers<[1], [0], [0], [1], [0, 0, 1, 1], [], []>} : vector<8x8xf32>, vector<8x4xf32>, vector<8x4xf32> -> vector<8x4xf32>
    %119 = vector.broadcast %117 : vector<8x1xf32> to vector<8x4xf32>
    %120 = arith.mulf %118, %119 : vector<8x4xf32>
    %c0_73 = arith.constant 0 : index
    %c20_74 = arith.constant 20 : index
    %121 = vector.load %arg18[%c0_73, %c20_74] : memref<8x32xf32, #tpu.memory_space<vmem>>, vector<8x4xf32>
    tpu.vector_store %arg18[%c0_73, %c20_74], %120 {strides = array<i32>} : memref<8x32xf32, #tpu.memory_space<vmem>>, vector<8x4xf32>,
    %c0_75 = arith.constant 0 : index
    %c24 = arith.constant 24 : index
    %122 = vector.load %arg17[%c0_75, %c24] : memref<8x96xf32, #tpu.memory_space<vmem>>, vector<8x4xf32>
    %cst_76 = arith.constant 5.000000e-01 : f32
    %123 = vector.broadcast %cst_76 : f32 to vector<8x4xf32>
    %124 = arith.mulf %122, %123 : vector<8x4xf32>
    %c0_77 = arith.constant 0 : index
    %c56 = arith.constant 56 : index
    %125 = vector.load %arg17[%c0_77, %c56] : memref<8x96xf32, #tpu.memory_space<vmem>>, vector<8x4xf32>
    %c0_78 = arith.constant 0 : index
    %c88 = arith.constant 88 : index
    %126 = vector.load %arg17[%c0_78, %c88] : memref<8x96xf32, #tpu.memory_space<vmem>>, vector<8x4xf32>
    %cst_79 = arith.constant dense<0.000000e+00> : vector<8x8xf32>
    %127 = tpu.matmul %124, %125, %cst_79 {dimension_numbers = #tpu.dot_dimension_numbers<[1], [1], [0], [0], [0, 0, 1, 0], [], []>} : vector<8x4xf32>, vector<8x4xf32>, vector<8x8xf32> -> vector<8x8xf32>
    %cst_80 = arith.constant dense<0xFF800000> : vector<8xf32>
    %128 = vector.multi_reduction <maximumf>, %127, %cst_80 [1] : vector<8x8xf32> to vector<8xf32>
    %129 = vector.shape_cast %128 : vector<8xf32> to vector<8x1xf32>
    %130 = vector.broadcast %129 : vector<8x1xf32> to vector<8x8xf32>
    %131 = arith.subf %127, %130 : vector<8x8xf32>
    %132 = math.exp %131 : vector<8x8xf32>
    %cst_81 = arith.constant dense<0.000000e+00> : vector<8xf32>
    %133 = vector.multi_reduction <add>, %132, %cst_81 [1] : vector<8x8xf32> to vector<8xf32>
    %134 = vector.shape_cast %133 : vector<8xf32> to vector<8x1xf32>
    %135 = tpu.reciprocal %134 {approx = true} : vector<8x1xf32> -> vector<8x1xf32>
    %cst_82 = arith.constant dense<0.000000e+00> : vector<8x4xf32>
    %136 = tpu.matmul %132, %126, %cst_82 {dimension_numbers = #tpu.dot_dimension_numbers<[1], [0], [0], [1], [0, 0, 1, 1], [], []>} : vector<8x8xf32>, vector<8x4xf32>, vector<8x4xf32> -> vector<8x4xf32>
    %137 = vector.broadcast %135 : vector<8x1xf32> to vector<8x4xf32>
    %138 = arith.mulf %136, %137 : vector<8x4xf32>
    %c0_83 = arith.constant 0 : index
    %c24_84 = arith.constant 24 : index
    %139 = vector.load %arg18[%c0_83, %c24_84] : memref<8x32xf32, #tpu.memory_space<vmem>>, vector<8x4xf32>
    tpu.vector_store %arg18[%c0_83, %c24_84], %138 {strides = array<i32>} : memref<8x32xf32, #tpu.memory_space<vmem>>, vector<8x4xf32>,
    %c0_85 = arith.constant 0 : index
    %c28 = arith.constant 28 : index
    %140 = vector.load %arg17[%c0_85, %c28] : memref<8x96xf32, #tpu.memory_space<vmem>>, vector<8x4xf32>
    %cst_86 = arith.constant 5.000000e-01 : f32
    %141 = vector.broadcast %cst_86 : f32 to vector<8x4xf32>
    %142 = arith.mulf %140, %141 : vector<8x4xf32>
    %c0_87 = arith.constant 0 : index
    %c60 = arith.constant 60 : index
    %143 = vector.load %arg17[%c0_87, %c60] : memref<8x96xf32, #tpu.memory_space<vmem>>, vector<8x4xf32>
    %c0_88 = arith.constant 0 : index
    %c92 = arith.constant 92 : index
    %144 = vector.load %arg17[%c0_88, %c92] : memref<8x96xf32, #tpu.memory_space<vmem>>, vector<8x4xf32>
    %cst_89 = arith.constant dense<0.000000e+00> : vector<8x8xf32>
    %145 = tpu.matmul %142, %143, %cst_89 {dimension_numbers = #tpu.dot_dimension_numbers<[1], [1], [0], [0], [0, 0, 1, 0], [], []>} : vector<8x4xf32>, vector<8x4xf32>, vector<8x8xf32> -> vector<8x8xf32>
    %cst_90 = arith.constant dense<0xFF800000> : vector<8xf32>
    %146 = vector.multi_reduction <maximumf>, %145, %cst_90 [1] : vector<8x8xf32> to vector<8xf32>
    %147 = vector.shape_cast %146 : vector<8xf32> to vector<8x1xf32>
    %148 = vector.broadcast %147 : vector<8x1xf32> to vector<8x8xf32>
    %149 = arith.subf %145, %148 : vector<8x8xf32>
    %150 = math.exp %149 : vector<8x8xf32>
    %cst_91 = arith.constant dense<0.000000e+00> : vector<8xf32>
    %151 = vector.multi_reduction <add>, %150, %cst_91 [1] : vector<8x8xf32> to vector<8xf32>
    %152 = vector.shape_cast %151 : vector<8xf32> to vector<8x1xf32>
    %153 = tpu.reciprocal %152 {approx = true} : vector<8x1xf32> -> vector<8x1xf32>
    %cst_92 = arith.constant dense<0.000000e+00> : vector<8x4xf32>
    %154 = tpu.matmul %150, %144, %cst_92 {dimension_numbers = #tpu.dot_dimension_numbers<[1], [0], [0], [1], [0, 0, 1, 1], [], []>} : vector<8x8xf32>, vector<8x4xf32>, vector<8x4xf32> -> vector<8x4xf32>
    %155 = vector.broadcast %153 : vector<8x1xf32> to vector<8x4xf32>
    %156 = arith.mulf %154, %155 : vector<8x4xf32>
    %c0_93 = arith.constant 0 : index
    %c28_94 = arith.constant 28 : index
    %157 = vector.load %arg18[%c0_93, %c28_94] : memref<8x32xf32, #tpu.memory_space<vmem>>, vector<8x4xf32>
    tpu.vector_store %arg18[%c0_93, %c28_94], %156 {strides = array<i32>} : memref<8x32xf32, #tpu.memory_space<vmem>>, vector<8x4xf32>,
    %c0_95 = arith.constant 0 : index
    %c0_96 = arith.constant 0 : index
    %158 = vector.load %arg18[%c0_95, %c0_96] : memref<8x32xf32, #tpu.memory_space<vmem>>, vector<8x32xf32>
    %c0_97 = arith.constant 0 : index
    %c0_98 = arith.constant 0 : index
    %c0_99 = arith.constant 0 : index
    %159 = vector.load %arg6[%c0_97, %c0_98, %c0_99] : memref<2x32x32xf32, #tpu.memory_space<vmem>>, vector<1x32x32xf32>
    %160 = vector.shape_cast %159 : vector<1x32x32xf32> to vector<32x32xf32>
    %cst_100 = arith.constant dense<0.000000e+00> : vector<8x32xf32>
    %161 = tpu.matmul %158, %160, %cst_100 {dimension_numbers = #tpu.dot_dimension_numbers<[1], [0], [0], [1], [0, 0, 1, 1], [], []>} : vector<8x32xf32>, vector<32x32xf32>, vector<8x32xf32> -> vector<8x32xf32>
    %c0_101 = arith.constant 0 : index
    %c0_102 = arith.constant 0 : index
    %c0_103 = arith.constant 0 : index
    %162 = vector.load %arg7[%c0_101, %c0_102, %c0_103] : memref<2x1x32xf32, #tpu.memory_space<vmem>>, vector<1x1x32xf32>
    %163 = vector.shape_cast %162 : vector<1x1x32xf32> to vector<1x32xf32>
    %164 = vector.broadcast %163 : vector<1x32xf32> to vector<8x32xf32>
    %165 = arith.addf %161, %164 : vector<8x32xf32>
    %166 = arith.addf %5, %165 : vector<8x32xf32>
    %c0_104 = arith.constant 0 : index
    %c0_105 = arith.constant 0 : index
    %c0_106 = arith.constant 0 : index
    %167 = vector.load %arg12[%c0_104, %c0_105, %c0_106] : memref<2x1x32xf32, #tpu.memory_space<vmem>>, vector<1x1x32xf32>
    %168 = vector.shape_cast %167 : vector<1x1x32xf32> to vector<1x32xf32>
    %c0_107 = arith.constant 0 : index
    %c0_108 = arith.constant 0 : index
    %c0_109 = arith.constant 0 : index
    %169 = vector.load %arg13[%c0_107, %c0_108, %c0_109] : memref<2x1x32xf32, #tpu.memory_space<vmem>>, vector<1x1x32xf32>
    %170 = vector.shape_cast %169 : vector<1x1x32xf32> to vector<1x32xf32>
    %cst_110 = arith.constant dense<0.000000e+00> : vector<8xf32>
    %171 = vector.multi_reduction <add>, %166, %cst_110 [1] : vector<8x32xf32> to vector<8xf32>
    %172 = vector.shape_cast %171 : vector<8xf32> to vector<8x1xf32>
    %cst_111 = arith.constant 3.200000e+01 : f32
    %173 = vector.broadcast %cst_111 : f32 to vector<8x1xf32>
    %174 = arith.divf %172, %173 : vector<8x1xf32>
    %175 = vector.broadcast %174 : vector<8x1xf32> to vector<8x32xf32>
    %176 = arith.subf %166, %175 : vector<8x32xf32>
    %177 = arith.mulf %176, %176 : vector<8x32xf32>
    %cst_112 = arith.constant dense<0.000000e+00> : vector<8xf32>
    %178 = vector.multi_reduction <add>, %177, %cst_112 [1] : vector<8x32xf32> to vector<8xf32>
    %179 = vector.shape_cast %178 : vector<8xf32> to vector<8x1xf32>
    %cst_113 = arith.constant 3.200000e+01 : f32
    %180 = vector.broadcast %cst_113 : f32 to vector<8x1xf32>
    %181 = arith.divf %179, %180 : vector<8x1xf32>
    %cst_114 = arith.constant 9.99999974E-6 : f32
    %182 = vector.broadcast %cst_114 : f32 to vector<8x1xf32>
    %183 = arith.addf %181, %182 : vector<8x1xf32>
    %184 = math.rsqrt %183 : vector<8x1xf32>
    %185 = vector.broadcast %184 : vector<8x1xf32> to vector<8x32xf32>
    %186 = arith.mulf %176, %185 : vector<8x32xf32>
    %187 = vector.broadcast %168 : vector<1x32xf32> to vector<8x32xf32>
    %188 = arith.mulf %186, %187 : vector<8x32xf32>
    %189 = vector.broadcast %170 : vector<1x32xf32> to vector<8x32xf32>
    %190 = arith.addf %188, %189 : vector<8x32xf32>
    %c0_115 = arith.constant 0 : index
    %c0_116 = arith.constant 0 : index
    %c0_117 = arith.constant 0 : index
    %191 = vector.load %arg8[%c0_115, %c0_116, %c0_117] : memref<2x32x2048xf32, #tpu.memory_space<vmem>>, vector<1x32x2048xf32>
    %192 = vector.shape_cast %191 : vector<1x32x2048xf32> to vector<32x2048xf32>
    %cst_118 = arith.constant dense<0.000000e+00> : vector<8x2048xf32>
    %193 = tpu.matmul %190, %192, %cst_118 {dimension_numbers = #tpu.dot_dimension_numbers<[1], [0], [0], [1], [0, 0, 1, 1], [], []>} : vector<8x32xf32>, vector<32x2048xf32>, vector<8x2048xf32> -> vector<8x2048xf32>
    %c0_119 = arith.constant 0 : index
    %c0_120 = arith.constant 0 : index
    %c0_121 = arith.constant 0 : index
    %194 = vector.load %arg9[%c0_119, %c0_120, %c0_121] : memref<2x1x2048xf32, #tpu.memory_space<vmem>>, vector<1x1x2048xf32>
    %195 = vector.shape_cast %194 : vector<1x1x2048xf32> to vector<1x2048xf32>
    %196 = vector.broadcast %195 : vector<1x2048xf32> to vector<8x2048xf32>
    %197 = arith.addf %193, %196 : vector<8x2048xf32>
    %cst_122 = arith.constant 0.000000e+00 : f32
    %198 = vector.broadcast %cst_122 : f32 to vector<8x2048xf32>
    %199 = arith.maximumf %197, %198 : vector<8x2048xf32>
    %c0_123 = arith.constant 0 : index
    %c0_124 = arith.constant 0 : index
    %c0_125 = arith.constant 0 : index
    %200 = vector.load %arg10[%c0_123, %c0_124, %c0_125] : memref<2x2048x32xf32, #tpu.memory_space<vmem>>, vector<1x2048x32xf32>
    %201 = vector.shape_cast %200 : vector<1x2048x32xf32> to vector<2048x32xf32>
    %cst_126 = arith.constant dense<0.000000e+00> : vector<8x32xf32>
    %202 = tpu.matmul %199, %201, %cst_126 {dimension_numbers = #tpu.dot_dimension_numbers<[1], [0], [0], [1], [0, 0, 1, 1], [], []>} : vector<8x2048xf32>, vector<2048x32xf32>, vector<8x32xf32> -> vector<8x32xf32>
    %c0_127 = arith.constant 0 : index
    %c0_128 = arith.constant 0 : index
    %c0_129 = arith.constant 0 : index
    %203 = vector.load %arg11[%c0_127, %c0_128, %c0_129] : memref<2x1x32xf32, #tpu.memory_space<vmem>>, vector<1x1x32xf32>
    %204 = vector.shape_cast %203 : vector<1x1x32xf32> to vector<1x32xf32>
    %205 = vector.broadcast %204 : vector<1x32xf32> to vector<8x32xf32>
    %206 = arith.addf %202, %205 : vector<8x32xf32>
    %207 = arith.addf %190, %206 : vector<8x32xf32>
    %c0_130 = arith.constant 0 : index
    %c0_131 = arith.constant 0 : index
    %c0_132 = arith.constant 0 : index
    %208 = vector.load %arg14[%c0_130, %c0_131, %c0_132] : memref<2x1x32xf32, #tpu.memory_space<vmem>>, vector<1x1x32xf32>
    %209 = vector.shape_cast %208 : vector<1x1x32xf32> to vector<1x32xf32>
    %c0_133 = arith.constant 0 : index
    %c0_134 = arith.constant 0 : index
    %c0_135 = arith.constant 0 : index
    %210 = vector.load %arg15[%c0_133, %c0_134, %c0_135] : memref<2x1x32xf32, #tpu.memory_space<vmem>>, vector<1x1x32xf32>
    %211 = vector.shape_cast %210 : vector<1x1x32xf32> to vector<1x32xf32>
    %cst_136 = arith.constant dense<0.000000e+00> : vector<8xf32>
    %212 = vector.multi_reduction <add>, %207, %cst_136 [1] : vector<8x32xf32> to vector<8xf32>
    %213 = vector.shape_cast %212 : vector<8xf32> to vector<8x1xf32>
    %cst_137 = arith.constant 3.200000e+01 : f32
    %214 = vector.broadcast %cst_137 : f32 to vector<8x1xf32>
    %215 = arith.divf %213, %214 : vector<8x1xf32>
    %216 = vector.broadcast %215 : vector<8x1xf32> to vector<8x32xf32>
    %217 = arith.subf %207, %216 : vector<8x32xf32>
    %218 = arith.mulf %217, %217 : vector<8x32xf32>
    %cst_138 = arith.constant dense<0.000000e+00> : vector<8xf32>
    %219 = vector.multi_reduction <add>, %218, %cst_138 [1] : vector<8x32xf32> to vector<8xf32>
    %220 = vector.shape_cast %219 : vector<8xf32> to vector<8x1xf32>
    %cst_139 = arith.constant 3.200000e+01 : f32
    %221 = vector.broadcast %cst_139 : f32 to vector<8x1xf32>
    %222 = arith.divf %220, %221 : vector<8x1xf32>
    %cst_140 = arith.constant 9.99999974E-6 : f32
    %223 = vector.broadcast %cst_140 : f32 to vector<8x1xf32>
    %224 = arith.addf %222, %223 : vector<8x1xf32>
    %225 = math.rsqrt %224 : vector<8x1xf32>
    %226 = vector.broadcast %225 : vector<8x1xf32> to vector<8x32xf32>
    %227 = arith.mulf %217, %226 : vector<8x32xf32>
    %228 = vector.broadcast %209 : vector<1x32xf32> to vector<8x32xf32>
    %229 = arith.mulf %227, %228 : vector<8x32xf32>
    %230 = vector.broadcast %211 : vector<1x32xf32> to vector<8x32xf32>
    %231 = arith.addf %229, %230 : vector<8x32xf32>
    %c1 = arith.constant 1 : index
    %c0_141 = arith.constant 0 : index
    %c0_142 = arith.constant 0 : index
    %232 = vector.load %arg4[%c1, %c0_141, %c0_142] : memref<2x32x96xf32, #tpu.memory_space<vmem>>, vector<1x32x96xf32>
    %233 = vector.shape_cast %232 : vector<1x32x96xf32> to vector<32x96xf32>
    %cst_143 = arith.constant dense<0.000000e+00> : vector<8x96xf32>
    %234 = tpu.matmul %231, %233, %cst_143 {dimension_numbers = #tpu.dot_dimension_numbers<[1], [0], [0], [1], [0, 0, 1, 1], [], []>} : vector<8x32xf32>, vector<32x96xf32>, vector<8x96xf32> -> vector<8x96xf32>
    %c1_144 = arith.constant 1 : index
    %c0_145 = arith.constant 0 : index
    %c0_146 = arith.constant 0 : index
    %235 = vector.load %arg5[%c1_144, %c0_145, %c0_146] : memref<2x1x96xf32, #tpu.memory_space<vmem>>, vector<1x1x96xf32>
    %236 = vector.shape_cast %235 : vector<1x1x96xf32> to vector<1x96xf32>
    %237 = vector.broadcast %236 : vector<1x96xf32> to vector<8x96xf32>
    %238 = arith.addf %234, %237 : vector<8x96xf32>
    %c0_147 = arith.constant 0 : index
    %c0_148 = arith.constant 0 : index
    %239 = vector.load %arg17[%c0_147, %c0_148] : memref<8x96xf32, #tpu.memory_space<vmem>>, vector<8x96xf32>
    tpu.vector_store %arg17[%c0_147, %c0_148], %238 {strides = array<i32>} : memref<8x96xf32, #tpu.memory_space<vmem>>, vector<8x96xf32>,
    %c0_149 = arith.constant 0 : index
    %c0_150 = arith.constant 0 : index
    %240 = vector.load %arg17[%c0_149, %c0_150] : memref<8x96xf32, #tpu.memory_space<vmem>>, vector<8x4xf32>
    %cst_151 = arith.constant 5.000000e-01 : f32
    %241 = vector.broadcast %cst_151 : f32 to vector<8x4xf32>
    %242 = arith.mulf %240, %241 : vector<8x4xf32>
    %c0_152 = arith.constant 0 : index
    %c32_153 = arith.constant 32 : index
    %243 = vector.load %arg17[%c0_152, %c32_153] : memref<8x96xf32, #tpu.memory_space<vmem>>, vector<8x4xf32>
    %c0_154 = arith.constant 0 : index
    %c64_155 = arith.constant 64 : index
    %244 = vector.load %arg17[%c0_154, %c64_155] : memref<8x96xf32, #tpu.memory_space<vmem>>, vector<8x4xf32>
    %cst_156 = arith.constant dense<0.000000e+00> : vector<8x8xf32>
    %245 = tpu.matmul %242, %243, %cst_156 {dimension_numbers = #tpu.dot_dimension_numbers<[1], [1], [0], [0], [0, 0, 1, 0], [], []>} : vector<8x4xf32>, vector<8x4xf32>, vector<8x8xf32> -> vector<8x8xf32>
    %cst_157 = arith.constant dense<0xFF800000> : vector<8xf32>
    %246 = vector.multi_reduction <maximumf>, %245, %cst_157 [1] : vector<8x8xf32> to vector<8xf32>
    %247 = vector.shape_cast %246 : vector<8xf32> to vector<8x1xf32>
    %248 = vector.broadcast %247 : vector<8x1xf32> to vector<8x8xf32>
    %249 = arith.subf %245, %248 : vector<8x8xf32>
    %250 = math.exp %249 : vector<8x8xf32>
    %cst_158 = arith.constant dense<0.000000e+00> : vector<8xf32>
    %251 = vector.multi_reduction <add>, %250, %cst_158 [1] : vector<8x8xf32> to vector<8xf32>
    %252 = vector.shape_cast %251 : vector<8xf32> to vector<8x1xf32>
    %253 = tpu.reciprocal %252 {approx = true} : vector<8x1xf32> -> vector<8x1xf32>
    %cst_159 = arith.constant dense<0.000000e+00> : vector<8x4xf32>
    %254 = tpu.matmul %250, %244, %cst_159 {dimension_numbers = #tpu.dot_dimension_numbers<[1], [0], [0], [1], [0, 0, 1, 1], [], []>} : vector<8x8xf32>, vector<8x4xf32>, vector<8x4xf32> -> vector<8x4xf32>
    %255 = vector.broadcast %253 : vector<8x1xf32> to vector<8x4xf32>
    %256 = arith.mulf %254, %255 : vector<8x4xf32>
    %c0_160 = arith.constant 0 : index
    %c0_161 = arith.constant 0 : index
    %257 = vector.load %arg18[%c0_160, %c0_161] : memref<8x32xf32, #tpu.memory_space<vmem>>, vector<8x4xf32>
    tpu.vector_store %arg18[%c0_160, %c0_161], %256 {strides = array<i32>} : memref<8x32xf32, #tpu.memory_space<vmem>>, vector<8x4xf32>,
    %c0_162 = arith.constant 0 : index
    %c4_163 = arith.constant 4 : index
    %258 = vector.load %arg17[%c0_162, %c4_163] : memref<8x96xf32, #tpu.memory_space<vmem>>, vector<8x4xf32>
    %cst_164 = arith.constant 5.000000e-01 : f32
    %259 = vector.broadcast %cst_164 : f32 to vector<8x4xf32>
    %260 = arith.mulf %258, %259 : vector<8x4xf32>
    %c0_165 = arith.constant 0 : index
    %c36_166 = arith.constant 36 : index
    %261 = vector.load %arg17[%c0_165, %c36_166] : memref<8x96xf32, #tpu.memory_space<vmem>>, vector<8x4xf32>
    %c0_167 = arith.constant 0 : index
    %c68_168 = arith.constant 68 : index
    %262 = vector.load %arg17[%c0_167, %c68_168] : memref<8x96xf32, #tpu.memory_space<vmem>>, vector<8x4xf32>
    %cst_169 = arith.constant dense<0.000000e+00> : vector<8x8xf32>
    %263 = tpu.matmul %260, %261, %cst_169 {dimension_numbers = #tpu.dot_dimension_numbers<[1], [1], [0], [0], [0, 0, 1, 0], [], []>} : vector<8x4xf32>, vector<8x4xf32>, vector<8x8xf32> -> vector<8x8xf32>
    %cst_170 = arith.constant dense<0xFF800000> : vector<8xf32>
    %264 = vector.multi_reduction <maximumf>, %263, %cst_170 [1] : vector<8x8xf32> to vector<8xf32>
    %265 = vector.shape_cast %264 : vector<8xf32> to vector<8x1xf32>
    %266 = vector.broadcast %265 : vector<8x1xf32> to vector<8x8xf32>
    %267 = arith.subf %263, %266 : vector<8x8xf32>
    %268 = math.exp %267 : vector<8x8xf32>
    %cst_171 = arith.constant dense<0.000000e+00> : vector<8xf32>
    %269 = vector.multi_reduction <add>, %268, %cst_171 [1] : vector<8x8xf32> to vector<8xf32>
    %270 = vector.shape_cast %269 : vector<8xf32> to vector<8x1xf32>
    %271 = tpu.reciprocal %270 {approx = true} : vector<8x1xf32> -> vector<8x1xf32>
    %cst_172 = arith.constant dense<0.000000e+00> : vector<8x4xf32>
    %272 = tpu.matmul %268, %262, %cst_172 {dimension_numbers = #tpu.dot_dimension_numbers<[1], [0], [0], [1], [0, 0, 1, 1], [], []>} : vector<8x8xf32>, vector<8x4xf32>, vector<8x4xf32> -> vector<8x4xf32>
    %273 = vector.broadcast %271 : vector<8x1xf32> to vector<8x4xf32>
    %274 = arith.mulf %272, %273 : vector<8x4xf32>
    %c0_173 = arith.constant 0 : index
    %c4_174 = arith.constant 4 : index
    %275 = vector.load %arg18[%c0_173, %c4_174] : memref<8x32xf32, #tpu.memory_space<vmem>>, vector<8x4xf32>
    tpu.vector_store %arg18[%c0_173, %c4_174], %274 {strides = array<i32>} : memref<8x32xf32, #tpu.memory_space<vmem>>, vector<8x4xf32>,
    %c0_175 = arith.constant 0 : index
    %c8_176 = arith.constant 8 : index
    %276 = vector.load %arg17[%c0_175, %c8_176] : memref<8x96xf32, #tpu.memory_space<vmem>>, vector<8x4xf32>
    %cst_177 = arith.constant 5.000000e-01 : f32
    %277 = vector.broadcast %cst_177 : f32 to vector<8x4xf32>
    %278 = arith.mulf %276, %277 : vector<8x4xf32>
    %c0_178 = arith.constant 0 : index
    %c40_179 = arith.constant 40 : index
    %279 = vector.load %arg17[%c0_178, %c40_179] : memref<8x96xf32, #tpu.memory_space<vmem>>, vector<8x4xf32>
    %c0_180 = arith.constant 0 : index
    %c72_181 = arith.constant 72 : index
    %280 = vector.load %arg17[%c0_180, %c72_181] : memref<8x96xf32, #tpu.memory_space<vmem>>, vector<8x4xf32>
    %cst_182 = arith.constant dense<0.000000e+00> : vector<8x8xf32>
    %281 = tpu.matmul %278, %279, %cst_182 {dimension_numbers = #tpu.dot_dimension_numbers<[1], [1], [0], [0], [0, 0, 1, 0], [], []>} : vector<8x4xf32>, vector<8x4xf32>, vector<8x8xf32> -> vector<8x8xf32>
    %cst_183 = arith.constant dense<0xFF800000> : vector<8xf32>
    %282 = vector.multi_reduction <maximumf>, %281, %cst_183 [1] : vector<8x8xf32> to vector<8xf32>
    %283 = vector.shape_cast %282 : vector<8xf32> to vector<8x1xf32>
    %284 = vector.broadcast %283 : vector<8x1xf32> to vector<8x8xf32>
    %285 = arith.subf %281, %284 : vector<8x8xf32>
    %286 = math.exp %285 : vector<8x8xf32>
    %cst_184 = arith.constant dense<0.000000e+00> : vector<8xf32>
    %287 = vector.multi_reduction <add>, %286, %cst_184 [1] : vector<8x8xf32> to vector<8xf32>
    %288 = vector.shape_cast %287 : vector<8xf32> to vector<8x1xf32>
    %289 = tpu.reciprocal %288 {approx = true} : vector<8x1xf32> -> vector<8x1xf32>
    %cst_185 = arith.constant dense<0.000000e+00> : vector<8x4xf32>
    %290 = tpu.matmul %286, %280, %cst_185 {dimension_numbers = #tpu.dot_dimension_numbers<[1], [0], [0], [1], [0, 0, 1, 1], [], []>} : vector<8x8xf32>, vector<8x4xf32>, vector<8x4xf32> -> vector<8x4xf32>
    %291 = vector.broadcast %289 : vector<8x1xf32> to vector<8x4xf32>
    %292 = arith.mulf %290, %291 : vector<8x4xf32>
    %c0_186 = arith.constant 0 : index
    %c8_187 = arith.constant 8 : index
    %293 = vector.load %arg18[%c0_186, %c8_187] : memref<8x32xf32, #tpu.memory_space<vmem>>, vector<8x4xf32>
    tpu.vector_store %arg18[%c0_186, %c8_187], %292 {strides = array<i32>} : memref<8x32xf32, #tpu.memory_space<vmem>>, vector<8x4xf32>,
    %c0_188 = arith.constant 0 : index
    %c12_189 = arith.constant 12 : index
    %294 = vector.load %arg17[%c0_188, %c12_189] : memref<8x96xf32, #tpu.memory_space<vmem>>, vector<8x4xf32>
    %cst_190 = arith.constant 5.000000e-01 : f32
    %295 = vector.broadcast %cst_190 : f32 to vector<8x4xf32>
    %296 = arith.mulf %294, %295 : vector<8x4xf32>
    %c0_191 = arith.constant 0 : index
    %c44_192 = arith.constant 44 : index
    %297 = vector.load %arg17[%c0_191, %c44_192] : memref<8x96xf32, #tpu.memory_space<vmem>>, vector<8x4xf32>
    %c0_193 = arith.constant 0 : index
    %c76_194 = arith.constant 76 : index
    %298 = vector.load %arg17[%c0_193, %c76_194] : memref<8x96xf32, #tpu.memory_space<vmem>>, vector<8x4xf32>
    %cst_195 = arith.constant dense<0.000000e+00> : vector<8x8xf32>
    %299 = tpu.matmul %296, %297, %cst_195 {dimension_numbers = #tpu.dot_dimension_numbers<[1], [1], [0], [0], [0, 0, 1, 0], [], []>} : vector<8x4xf32>, vector<8x4xf32>, vector<8x8xf32> -> vector<8x8xf32>
    %cst_196 = arith.constant dense<0xFF800000> : vector<8xf32>
    %300 = vector.multi_reduction <maximumf>, %299, %cst_196 [1] : vector<8x8xf32> to vector<8xf32>
    %301 = vector.shape_cast %300 : vector<8xf32> to vector<8x1xf32>
    %302 = vector.broadcast %301 : vector<8x1xf32> to vector<8x8xf32>
    %303 = arith.subf %299, %302 : vector<8x8xf32>
    %304 = math.exp %303 : vector<8x8xf32>
    %cst_197 = arith.constant dense<0.000000e+00> : vector<8xf32>
    %305 = vector.multi_reduction <add>, %304, %cst_197 [1] : vector<8x8xf32> to vector<8xf32>
    %306 = vector.shape_cast %305 : vector<8xf32> to vector<8x1xf32>
    %307 = tpu.reciprocal %306 {approx = true} : vector<8x1xf32> -> vector<8x1xf32>
    %cst_198 = arith.constant dense<0.000000e+00> : vector<8x4xf32>
    %308 = tpu.matmul %304, %298, %cst_198 {dimension_numbers = #tpu.dot_dimension_numbers<[1], [0], [0], [1], [0, 0, 1, 1], [], []>} : vector<8x8xf32>, vector<8x4xf32>, vector<8x4xf32> -> vector<8x4xf32>
    %309 = vector.broadcast %307 : vector<8x1xf32> to vector<8x4xf32>
    %310 = arith.mulf %308, %309 : vector<8x4xf32>
    %c0_199 = arith.constant 0 : index
    %c12_200 = arith.constant 12 : index
    %311 = vector.load %arg18[%c0_199, %c12_200] : memref<8x32xf32, #tpu.memory_space<vmem>>, vector<8x4xf32>
    tpu.vector_store %arg18[%c0_199, %c12_200], %310 {strides = array<i32>} : memref<8x32xf32, #tpu.memory_space<vmem>>, vector<8x4xf32>,
    %c0_201 = arith.constant 0 : index
    %c16_202 = arith.constant 16 : index
    %312 = vector.load %arg17[%c0_201, %c16_202] : memref<8x96xf32, #tpu.memory_space<vmem>>, vector<8x4xf32>
    %cst_203 = arith.constant 5.000000e-01 : f32
    %313 = vector.broadcast %cst_203 : f32 to vector<8x4xf32>
    %314 = arith.mulf %312, %313 : vector<8x4xf32>
    %c0_204 = arith.constant 0 : index
    %c48_205 = arith.constant 48 : index
    %315 = vector.load %arg17[%c0_204, %c48_205] : memref<8x96xf32, #tpu.memory_space<vmem>>, vector<8x4xf32>
    %c0_206 = arith.constant 0 : index
    %c80_207 = arith.constant 80 : index
    %316 = vector.load %arg17[%c0_206, %c80_207] : memref<8x96xf32, #tpu.memory_space<vmem>>, vector<8x4xf32>
    %cst_208 = arith.constant dense<0.000000e+00> : vector<8x8xf32>
    %317 = tpu.matmul %314, %315, %cst_208 {dimension_numbers = #tpu.dot_dimension_numbers<[1], [1], [0], [0], [0, 0, 1, 0], [], []>} : vector<8x4xf32>, vector<8x4xf32>, vector<8x8xf32> -> vector<8x8xf32>
    %cst_209 = arith.constant dense<0xFF800000> : vector<8xf32>
    %318 = vector.multi_reduction <maximumf>, %317, %cst_209 [1] : vector<8x8xf32> to vector<8xf32>
    %319 = vector.shape_cast %318 : vector<8xf32> to vector<8x1xf32>
    %320 = vector.broadcast %319 : vector<8x1xf32> to vector<8x8xf32>
    %321 = arith.subf %317, %320 : vector<8x8xf32>
    %322 = math.exp %321 : vector<8x8xf32>
    %cst_210 = arith.constant dense<0.000000e+00> : vector<8xf32>
    %323 = vector.multi_reduction <add>, %322, %cst_210 [1] : vector<8x8xf32> to vector<8xf32>
    %324 = vector.shape_cast %323 : vector<8xf32> to vector<8x1xf32>
    %325 = tpu.reciprocal %324 {approx = true} : vector<8x1xf32> -> vector<8x1xf32>
    %cst_211 = arith.constant dense<0.000000e+00> : vector<8x4xf32>
    %326 = tpu.matmul %322, %316, %cst_211 {dimension_numbers = #tpu.dot_dimension_numbers<[1], [0], [0], [1], [0, 0, 1, 1], [], []>} : vector<8x8xf32>, vector<8x4xf32>, vector<8x4xf32> -> vector<8x4xf32>
    %327 = vector.broadcast %325 : vector<8x1xf32> to vector<8x4xf32>
    %328 = arith.mulf %326, %327 : vector<8x4xf32>
    %c0_212 = arith.constant 0 : index
    %c16_213 = arith.constant 16 : index
    %329 = vector.load %arg18[%c0_212, %c16_213] : memref<8x32xf32, #tpu.memory_space<vmem>>, vector<8x4xf32>
    tpu.vector_store %arg18[%c0_212, %c16_213], %328 {strides = array<i32>} : memref<8x32xf32, #tpu.memory_space<vmem>>, vector<8x4xf32>,
    %c0_214 = arith.constant 0 : index
    %c20_215 = arith.constant 20 : index
    %330 = vector.load %arg17[%c0_214, %c20_215] : memref<8x96xf32, #tpu.memory_space<vmem>>, vector<8x4xf32>
    %cst_216 = arith.constant 5.000000e-01 : f32
    %331 = vector.broadcast %cst_216 : f32 to vector<8x4xf32>
    %332 = arith.mulf %330, %331 : vector<8x4xf32>
    %c0_217 = arith.constant 0 : index
    %c52_218 = arith.constant 52 : index
    %333 = vector.load %arg17[%c0_217, %c52_218] : memref<8x96xf32, #tpu.memory_space<vmem>>, vector<8x4xf32>
    %c0_219 = arith.constant 0 : index
    %c84_220 = arith.constant 84 : index
    %334 = vector.load %arg17[%c0_219, %c84_220] : memref<8x96xf32, #tpu.memory_space<vmem>>, vector<8x4xf32>
    %cst_221 = arith.constant dense<0.000000e+00> : vector<8x8xf32>
    %335 = tpu.matmul %332, %333, %cst_221 {dimension_numbers = #tpu.dot_dimension_numbers<[1], [1], [0], [0], [0, 0, 1, 0], [], []>} : vector<8x4xf32>, vector<8x4xf32>, vector<8x8xf32> -> vector<8x8xf32>
    %cst_222 = arith.constant dense<0xFF800000> : vector<8xf32>
    %336 = vector.multi_reduction <maximumf>, %335, %cst_222 [1] : vector<8x8xf32> to vector<8xf32>
    %337 = vector.shape_cast %336 : vector<8xf32> to vector<8x1xf32>
    %338 = vector.broadcast %337 : vector<8x1xf32> to vector<8x8xf32>
    %339 = arith.subf %335, %338 : vector<8x8xf32>
    %340 = math.exp %339 : vector<8x8xf32>
    %cst_223 = arith.constant dense<0.000000e+00> : vector<8xf32>
    %341 = vector.multi_reduction <add>, %340, %cst_223 [1] : vector<8x8xf32> to vector<8xf32>
    %342 = vector.shape_cast %341 : vector<8xf32> to vector<8x1xf32>
    %343 = tpu.reciprocal %342 {approx = true} : vector<8x1xf32> -> vector<8x1xf32>
    %cst_224 = arith.constant dense<0.000000e+00> : vector<8x4xf32>
    %344 = tpu.matmul %340, %334, %cst_224 {dimension_numbers = #tpu.dot_dimension_numbers<[1], [0], [0], [1], [0, 0, 1, 1], [], []>} : vector<8x8xf32>, vector<8x4xf32>, vector<8x4xf32> -> vector<8x4xf32>
    %345 = vector.broadcast %343 : vector<8x1xf32> to vector<8x4xf32>
    %346 = arith.mulf %344, %345 : vector<8x4xf32>
    %c0_225 = arith.constant 0 : index
    %c20_226 = arith.constant 20 : index
    %347 = vector.load %arg18[%c0_225, %c20_226] : memref<8x32xf32, #tpu.memory_space<vmem>>, vector<8x4xf32>
    tpu.vector_store %arg18[%c0_225, %c20_226], %346 {strides = array<i32>} : memref<8x32xf32, #tpu.memory_space<vmem>>, vector<8x4xf32>,
    %c0_227 = arith.constant 0 : index
    %c24_228 = arith.constant 24 : index
    %348 = vector.load %arg17[%c0_227, %c24_228] : memref<8x96xf32, #tpu.memory_space<vmem>>, vector<8x4xf32>
    %cst_229 = arith.constant 5.000000e-01 : f32
    %349 = vector.broadcast %cst_229 : f32 to vector<8x4xf32>
    %350 = arith.mulf %348, %349 : vector<8x4xf32>
    %c0_230 = arith.constant 0 : index
    %c56_231 = arith.constant 56 : index
    %351 = vector.load %arg17[%c0_230, %c56_231] : memref<8x96xf32, #tpu.memory_space<vmem>>, vector<8x4xf32>
    %c0_232 = arith.constant 0 : index
    %c88_233 = arith.constant 88 : index
    %352 = vector.load %arg17[%c0_232, %c88_233] : memref<8x96xf32, #tpu.memory_space<vmem>>, vector<8x4xf32>
    %cst_234 = arith.constant dense<0.000000e+00> : vector<8x8xf32>
    %353 = tpu.matmul %350, %351, %cst_234 {dimension_numbers = #tpu.dot_dimension_numbers<[1], [1], [0], [0], [0, 0, 1, 0], [], []>} : vector<8x4xf32>, vector<8x4xf32>, vector<8x8xf32> -> vector<8x8xf32>
    %cst_235 = arith.constant dense<0xFF800000> : vector<8xf32>
    %354 = vector.multi_reduction <maximumf>, %353, %cst_235 [1] : vector<8x8xf32> to vector<8xf32>
    %355 = vector.shape_cast %354 : vector<8xf32> to vector<8x1xf32>
    %356 = vector.broadcast %355 : vector<8x1xf32> to vector<8x8xf32>
    %357 = arith.subf %353, %356 : vector<8x8xf32>
    %358 = math.exp %357 : vector<8x8xf32>
    %cst_236 = arith.constant dense<0.000000e+00> : vector<8xf32>
    %359 = vector.multi_reduction <add>, %358, %cst_236 [1] : vector<8x8xf32> to vector<8xf32>
    %360 = vector.shape_cast %359 : vector<8xf32> to vector<8x1xf32>
    %361 = tpu.reciprocal %360 {approx = true} : vector<8x1xf32> -> vector<8x1xf32>
    %cst_237 = arith.constant dense<0.000000e+00> : vector<8x4xf32>
    %362 = tpu.matmul %358, %352, %cst_237 {dimension_numbers = #tpu.dot_dimension_numbers<[1], [0], [0], [1], [0, 0, 1, 1], [], []>} : vector<8x8xf32>, vector<8x4xf32>, vector<8x4xf32> -> vector<8x4xf32>
    %363 = vector.broadcast %361 : vector<8x1xf32> to vector<8x4xf32>
    %364 = arith.mulf %362, %363 : vector<8x4xf32>
    %c0_238 = arith.constant 0 : index
    %c24_239 = arith.constant 24 : index
    %365 = vector.load %arg18[%c0_238, %c24_239] : memref<8x32xf32, #tpu.memory_space<vmem>>, vector<8x4xf32>
    tpu.vector_store %arg18[%c0_238, %c24_239], %364 {strides = array<i32>} : memref<8x32xf32, #tpu.memory_space<vmem>>, vector<8x4xf32>,
    %c0_240 = arith.constant 0 : index
    %c28_241 = arith.constant 28 : index
    %366 = vector.load %arg17[%c0_240, %c28_241] : memref<8x96xf32, #tpu.memory_space<vmem>>, vector<8x4xf32>
    %cst_242 = arith.constant 5.000000e-01 : f32
    %367 = vector.broadcast %cst_242 : f32 to vector<8x4xf32>
    %368 = arith.mulf %366, %367 : vector<8x4xf32>
    %c0_243 = arith.constant 0 : index
    %c60_244 = arith.constant 60 : index
    %369 = vector.load %arg17[%c0_243, %c60_244] : memref<8x96xf32, #tpu.memory_space<vmem>>, vector<8x4xf32>
    %c0_245 = arith.constant 0 : index
    %c92_246 = arith.constant 92 : index
    %370 = vector.load %arg17[%c0_245, %c92_246] : memref<8x96xf32, #tpu.memory_space<vmem>>, vector<8x4xf32>
    %cst_247 = arith.constant dense<0.000000e+00> : vector<8x8xf32>
    %371 = tpu.matmul %368, %369, %cst_247 {dimension_numbers = #tpu.dot_dimension_numbers<[1], [1], [0], [0], [0, 0, 1, 0], [], []>} : vector<8x4xf32>, vector<8x4xf32>, vector<8x8xf32> -> vector<8x8xf32>
    %cst_248 = arith.constant dense<0xFF800000> : vector<8xf32>
    %372 = vector.multi_reduction <maximumf>, %371, %cst_248 [1] : vector<8x8xf32> to vector<8xf32>
    %373 = vector.shape_cast %372 : vector<8xf32> to vector<8x1xf32>
    %374 = vector.broadcast %373 : vector<8x1xf32> to vector<8x8xf32>
    %375 = arith.subf %371, %374 : vector<8x8xf32>
    %376 = math.exp %375 : vector<8x8xf32>
    %cst_249 = arith.constant dense<0.000000e+00> : vector<8xf32>
    %377 = vector.multi_reduction <add>, %376, %cst_249 [1] : vector<8x8xf32> to vector<8xf32>
    %378 = vector.shape_cast %377 : vector<8xf32> to vector<8x1xf32>
    %379 = tpu.reciprocal %378 {approx = true} : vector<8x1xf32> -> vector<8x1xf32>
    %cst_250 = arith.constant dense<0.000000e+00> : vector<8x4xf32>
    %380 = tpu.matmul %376, %370, %cst_250 {dimension_numbers = #tpu.dot_dimension_numbers<[1], [0], [0], [1], [0, 0, 1, 1], [], []>} : vector<8x8xf32>, vector<8x4xf32>, vector<8x4xf32> -> vector<8x4xf32>
    %381 = vector.broadcast %379 : vector<8x1xf32> to vector<8x4xf32>
    %382 = arith.mulf %380, %381 : vector<8x4xf32>
    %c0_251 = arith.constant 0 : index
    %c28_252 = arith.constant 28 : index
    %383 = vector.load %arg18[%c0_251, %c28_252] : memref<8x32xf32, #tpu.memory_space<vmem>>, vector<8x4xf32>
    tpu.vector_store %arg18[%c0_251, %c28_252], %382 {strides = array<i32>} : memref<8x32xf32, #tpu.memory_space<vmem>>, vector<8x4xf32>,
    %c0_253 = arith.constant 0 : index
    %c0_254 = arith.constant 0 : index
    %384 = vector.load %arg18[%c0_253, %c0_254] : memref<8x32xf32, #tpu.memory_space<vmem>>, vector<8x32xf32>
    %c1_255 = arith.constant 1 : index
    %c0_256 = arith.constant 0 : index
    %c0_257 = arith.constant 0 : index
    %385 = vector.load %arg6[%c1_255, %c0_256, %c0_257] : memref<2x32x32xf32, #tpu.memory_space<vmem>>, vector<1x32x32xf32>
    %386 = vector.shape_cast %385 : vector<1x32x32xf32> to vector<32x32xf32>
    %cst_258 = arith.constant dense<0.000000e+00> : vector<8x32xf32>
    %387 = tpu.matmul %384, %386, %cst_258 {dimension_numbers = #tpu.dot_dimension_numbers<[1], [0], [0], [1], [0, 0, 1, 1], [], []>} : vector<8x32xf32>, vector<32x32xf32>, vector<8x32xf32> -> vector<8x32xf32>
    %c1_259 = arith.constant 1 : index
    %c0_260 = arith.constant 0 : index
    %c0_261 = arith.constant 0 : index
    %388 = vector.load %arg7[%c1_259, %c0_260, %c0_261] : memref<2x1x32xf32, #tpu.memory_space<vmem>>, vector<1x1x32xf32>
    %389 = vector.shape_cast %388 : vector<1x1x32xf32> to vector<1x32xf32>
    %390 = vector.broadcast %389 : vector<1x32xf32> to vector<8x32xf32>
    %391 = arith.addf %387, %390 : vector<8x32xf32>
    %392 = arith.addf %231, %391 : vector<8x32xf32>
    %c1_262 = arith.constant 1 : index
    %c0_263 = arith.constant 0 : index
    %c0_264 = arith.constant 0 : index
    %393 = vector.load %arg12[%c1_262, %c0_263, %c0_264] : memref<2x1x32xf32, #tpu.memory_space<vmem>>, vector<1x1x32xf32>
    %394 = vector.shape_cast %393 : vector<1x1x32xf32> to vector<1x32xf32>
    %c1_265 = arith.constant 1 : index
    %c0_266 = arith.constant 0 : index
    %c0_267 = arith.constant 0 : index
    %395 = vector.load %arg13[%c1_265, %c0_266, %c0_267] : memref<2x1x32xf32, #tpu.memory_space<vmem>>, vector<1x1x32xf32>
    %396 = vector.shape_cast %395 : vector<1x1x32xf32> to vector<1x32xf32>
    %cst_268 = arith.constant dense<0.000000e+00> : vector<8xf32>
    %397 = vector.multi_reduction <add>, %392, %cst_268 [1] : vector<8x32xf32> to vector<8xf32>
    %398 = vector.shape_cast %397 : vector<8xf32> to vector<8x1xf32>
    %cst_269 = arith.constant 3.200000e+01 : f32
    %399 = vector.broadcast %cst_269 : f32 to vector<8x1xf32>
    %400 = arith.divf %398, %399 : vector<8x1xf32>
    %401 = vector.broadcast %400 : vector<8x1xf32> to vector<8x32xf32>
    %402 = arith.subf %392, %401 : vector<8x32xf32>
    %403 = arith.mulf %402, %402 : vector<8x32xf32>
    %cst_270 = arith.constant dense<0.000000e+00> : vector<8xf32>
    %404 = vector.multi_reduction <add>, %403, %cst_270 [1] : vector<8x32xf32> to vector<8xf32>
    %405 = vector.shape_cast %404 : vector<8xf32> to vector<8x1xf32>
    %cst_271 = arith.constant 3.200000e+01 : f32
    %406 = vector.broadcast %cst_271 : f32 to vector<8x1xf32>
    %407 = arith.divf %405, %406 : vector<8x1xf32>
    %cst_272 = arith.constant 9.99999974E-6 : f32
    %408 = vector.broadcast %cst_272 : f32 to vector<8x1xf32>
    %409 = arith.addf %407, %408 : vector<8x1xf32>
    %410 = math.rsqrt %409 : vector<8x1xf32>
    %411 = vector.broadcast %410 : vector<8x1xf32> to vector<8x32xf32>
    %412 = arith.mulf %402, %411 : vector<8x32xf32>
    %413 = vector.broadcast %394 : vector<1x32xf32> to vector<8x32xf32>
    %414 = arith.mulf %412, %413 : vector<8x32xf32>
    %415 = vector.broadcast %396 : vector<1x32xf32> to vector<8x32xf32>
    %416 = arith.addf %414, %415 : vector<8x32xf32>
    %c1_273 = arith.constant 1 : index
    %c0_274 = arith.constant 0 : index
    %c0_275 = arith.constant 0 : index
    %417 = vector.load %arg8[%c1_273, %c0_274, %c0_275] : memref<2x32x2048xf32, #tpu.memory_space<vmem>>, vector<1x32x2048xf32>
    %418 = vector.shape_cast %417 : vector<1x32x2048xf32> to vector<32x2048xf32>
    %cst_276 = arith.constant dense<0.000000e+00> : vector<8x2048xf32>
    %419 = tpu.matmul %416, %418, %cst_276 {dimension_numbers = #tpu.dot_dimension_numbers<[1], [0], [0], [1], [0, 0, 1, 1], [], []>} : vector<8x32xf32>, vector<32x2048xf32>, vector<8x2048xf32> -> vector<8x2048xf32>
    %c1_277 = arith.constant 1 : index
    %c0_278 = arith.constant 0 : index
    %c0_279 = arith.constant 0 : index
    %420 = vector.load %arg9[%c1_277, %c0_278, %c0_279] : memref<2x1x2048xf32, #tpu.memory_space<vmem>>, vector<1x1x2048xf32>
    %421 = vector.shape_cast %420 : vector<1x1x2048xf32> to vector<1x2048xf32>
    %422 = vector.broadcast %421 : vector<1x2048xf32> to vector<8x2048xf32>
    %423 = arith.addf %419, %422 : vector<8x2048xf32>
    %cst_280 = arith.constant 0.000000e+00 : f32
    %424 = vector.broadcast %cst_280 : f32 to vector<8x2048xf32>
    %425 = arith.maximumf %423, %424 : vector<8x2048xf32>
    %c1_281 = arith.constant 1 : index
    %c0_282 = arith.constant 0 : index
    %c0_283 = arith.constant 0 : index
    %426 = vector.load %arg10[%c1_281, %c0_282, %c0_283] : memref<2x2048x32xf32, #tpu.memory_space<vmem>>, vector<1x2048x32xf32>
    %427 = vector.shape_cast %426 : vector<1x2048x32xf32> to vector<2048x32xf32>
    %cst_284 = arith.constant dense<0.000000e+00> : vector<8x32xf32>
    %428 = tpu.matmul %425, %427, %cst_284 {dimension_numbers = #tpu.dot_dimension_numbers<[1], [0], [0], [1], [0, 0, 1, 1], [], []>} : vector<8x2048xf32>, vector<2048x32xf32>, vector<8x32xf32> -> vector<8x32xf32>
    %c1_285 = arith.constant 1 : index
    %c0_286 = arith.constant 0 : index
    %c0_287 = arith.constant 0 : index
    %429 = vector.load %arg11[%c1_285, %c0_286, %c0_287] : memref<2x1x32xf32, #tpu.memory_space<vmem>>, vector<1x1x32xf32>
    %430 = vector.shape_cast %429 : vector<1x1x32xf32> to vector<1x32xf32>
    %431 = vector.broadcast %430 : vector<1x32xf32> to vector<8x32xf32>
    %432 = arith.addf %428, %431 : vector<8x32xf32>
    %433 = arith.addf %416, %432 : vector<8x32xf32>
    %c1_288 = arith.constant 1 : index
    %c0_289 = arith.constant 0 : index
    %c0_290 = arith.constant 0 : index
    %434 = vector.load %arg14[%c1_288, %c0_289, %c0_290] : memref<2x1x32xf32, #tpu.memory_space<vmem>>, vector<1x1x32xf32>
    %435 = vector.shape_cast %434 : vector<1x1x32xf32> to vector<1x32xf32>
    %c1_291 = arith.constant 1 : index
    %c0_292 = arith.constant 0 : index
    %c0_293 = arith.constant 0 : index
    %436 = vector.load %arg15[%c1_291, %c0_292, %c0_293] : memref<2x1x32xf32, #tpu.memory_space<vmem>>, vector<1x1x32xf32>
    %437 = vector.shape_cast %436 : vector<1x1x32xf32> to vector<1x32xf32>
    %cst_294 = arith.constant dense<0.000000e+00> : vector<8xf32>
    %438 = vector.multi_reduction <add>, %433, %cst_294 [1] : vector<8x32xf32> to vector<8xf32>
    %439 = vector.shape_cast %438 : vector<8xf32> to vector<8x1xf32>
    %cst_295 = arith.constant 3.200000e+01 : f32
    %440 = vector.broadcast %cst_295 : f32 to vector<8x1xf32>
    %441 = arith.divf %439, %440 : vector<8x1xf32>
    %442 = vector.broadcast %441 : vector<8x1xf32> to vector<8x32xf32>
    %443 = arith.subf %433, %442 : vector<8x32xf32>
    %444 = arith.mulf %443, %443 : vector<8x32xf32>
    %cst_296 = arith.constant dense<0.000000e+00> : vector<8xf32>
    %445 = vector.multi_reduction <add>, %444, %cst_296 [1] : vector<8x32xf32> to vector<8xf32>
    %446 = vector.shape_cast %445 : vector<8xf32> to vector<8x1xf32>
    %cst_297 = arith.constant 3.200000e+01 : f32
    %447 = vector.broadcast %cst_297 : f32 to vector<8x1xf32>
    %448 = arith.divf %446, %447 : vector<8x1xf32>
    %cst_298 = arith.constant 9.99999974E-6 : f32
    %449 = vector.broadcast %cst_298 : f32 to vector<8x1xf32>
    %450 = arith.addf %448, %449 : vector<8x1xf32>
    %451 = math.rsqrt %450 : vector<8x1xf32>
    %452 = vector.broadcast %451 : vector<8x1xf32> to vector<8x32xf32>
    %453 = arith.mulf %443, %452 : vector<8x32xf32>
    %454 = vector.broadcast %435 : vector<1x32xf32> to vector<8x32xf32>
    %455 = arith.mulf %453, %454 : vector<8x32xf32>
    %456 = vector.broadcast %437 : vector<1x32xf32> to vector<8x32xf32>
    %457 = arith.addf %455, %456 : vector<8x32xf32>
    %c0_299 = arith.constant 0 : index
    %c0_300 = arith.constant 0 : index
    %458 = vector.load %arg16[%c0_299, %c0_300] : memref<8x32xf32, #tpu.memory_space<vmem>>, vector<8x32xf32>
    tpu.vector_store %arg16[%c0_299, %c0_300], %457 {strides = array<i32>} : memref<8x32xf32, #tpu.memory_space<vmem>>, vector<8x32xf32>,
    return
  }
  func.func @transform_0(%arg0: i32) -> (i32, i32) {
    %c0_i32 = arith.constant 0 : i32
    %c0_i32_0 = arith.constant 0 : i32
    return %arg0, %c0_i32 : i32, i32
  }
  func.func @transform_1(%arg0: i32) -> (i32, i32) {
    %c0_i32 = arith.constant 0 : i32
    %c0_i32_0 = arith.constant 0 : i32
    %c0_i32_1 = arith.constant 0 : i32
    return %c0_i32, %c0_i32_0 : i32, i32
  }
  func.func @transform_2(%arg0: i32) -> (i32, i32) {
    %c0_i32 = arith.constant 0 : i32
    %c0_i32_0 = arith.constant 0 : i32
    %c0_i32_1 = arith.constant 0 : i32
    return %c0_i32, %c0_i32_0 : i32, i32
  }
  func.func @transform_3(%arg0: i32) -> (i32, i32, i32) {
    %c0_i32 = arith.constant 0 : i32
    %c0_i32_0 = arith.constant 0 : i32
    %c0_i32_1 = arith.constant 0 : i32
    %c0_i32_2 = arith.constant 0 : i32
    return %c0_i32, %c0_i32_0, %c0_i32_1 : i32, i32, i32
  }
  func.func @transform_4(%arg0: i32) -> (i32, i32, i32) {
    %c0_i32 = arith.constant 0 : i32
    %c0_i32_0 = arith.constant 0 : i32
    %c0_i32_1 = arith.constant 0 : i32
    %c0_i32_2 = arith.constant 0 : i32
    return %c0_i32, %c0_i32_0, %c0_i32_1 : i32, i32, i32
  }
  func.func @transform_5(%arg0: i32) -> (i32, i32, i32) {
    %c0_i32 = arith.constant 0 : i32
    %c0_i32_0 = arith.constant 0 : i32
    %c0_i32_1 = arith.constant 0 : i32
    %c0_i32_2 = arith.constant 0 : i32
    return %c0_i32, %c0_i32_0, %c0_i32_1 : i32, i32, i32
  }
  func.func @transform_6(%arg0: i32) -> (i32, i32, i32) {
    %c0_i32 = arith.constant 0 : i32
    %c0_i32_0 = arith.constant 0 : i32
    %c0_i32_1 = arith.constant 0 : i32
    %c0_i32_2 = arith.constant 0 : i32
    return %c0_i32, %c0_i32_0, %c0_i32_1 : i32, i32, i32
  }
  func.func @transform_7(%arg0: i32) -> (i32, i32, i32) {
    %c0_i32 = arith.constant 0 : i32
    %c0_i32_0 = arith.constant 0 : i32
    %c0_i32_1 = arith.constant 0 : i32
    %c0_i32_2 = arith.constant 0 : i32
    return %c0_i32, %c0_i32_0, %c0_i32_1 : i32, i32, i32
  }
  func.func @transform_8(%arg0: i32) -> (i32, i32, i32) {
    %c0_i32 = arith.constant 0 : i32
    %c0_i32_0 = arith.constant 0 : i32
    %c0_i32_1 = arith.constant 0 : i32
    %c0_i32_2 = arith.constant 0 : i32
    return %c0_i32, %c0_i32_0, %c0_i32_1 : i32, i32, i32
  }
  func.func @transform_9(%arg0: i32) -> (i32, i32, i32) {
    %c0_i32 = arith.constant 0 : i32
    %c0_i32_0 = arith.constant 0 : i32
    %c0_i32_1 = arith.constant 0 : i32
    %c0_i32_2 = arith.constant 0 : i32
    return %c0_i32, %c0_i32_0, %c0_i32_1 : i32, i32, i32
  }
  func.func @transform_10(%arg0: i32) -> (i32, i32, i32) {
    %c0_i32 = arith.constant 0 : i32
    %c0_i32_0 = arith.constant 0 : i32
    %c0_i32_1 = arith.constant 0 : i32
    %c0_i32_2 = arith.constant 0 : i32
    return %c0_i32, %c0_i32_0, %c0_i32_1 : i32, i32, i32
  }
  func.func @transform_11(%arg0: i32) -> (i32, i32, i32) {
    %c0_i32 = arith.constant 0 : i32
    %c0_i32_0 = arith.constant 0 : i32
    %c0_i32_1 = arith.constant 0 : i32
    %c0_i32_2 = arith.constant 0 : i32
    return %c0_i32, %c0_i32_0, %c0_i32_1 : i32, i32, i32
  }
  func.func @transform_12(%arg0: i32) -> (i32, i32, i32) {
    %c0_i32 = arith.constant 0 : i32
    %c0_i32_0 = arith.constant 0 : i32
    %c0_i32_1 = arith.constant 0 : i32
    %c0_i32_2 = arith.constant 0 : i32
    return %c0_i32, %c0_i32_0, %c0_i32_1 : i32, i32, i32
  }
  func.func @transform_13(%arg0: i32) -> (i32, i32, i32) {
    %c0_i32 = arith.constant 0 : i32
    %c0_i32_0 = arith.constant 0 : i32
    %c0_i32_1 = arith.constant 0 : i32
    %c0_i32_2 = arith.constant 0 : i32
    return %c0_i32, %c0_i32_0, %c0_i32_1 : i32, i32, i32
  }
  func.func @transform_14(%arg0: i32) -> (i32, i32, i32) {
    %c0_i32 = arith.constant 0 : i32
    %c0_i32_0 = arith.constant 0 : i32
    %c0_i32_1 = arith.constant 0 : i32
    %c0_i32_2 = arith.constant 0 : i32
    return %c0_i32, %c0_i32_0, %c0_i32_1 : i32, i32, i32
  }
  func.func @transform_15(%arg0: i32) -> (i32, i32) {
    %c0_i32 = arith.constant 0 : i32
    %c0_i32_0 = arith.constant 0 : i32
    return %arg0, %c0_i32 : i32, i32
  }
}

</mosaic_0001>

<llo_original>
// kernel: tpu_custom_call.1
$region0: #{tpu_custom_call.1}
  #allocation0 [shape = 'u32[]', space=smem, size = 0x4, offset = 0x4, fixed_abs, tag = 'smem constant byte address 0x4 - core index']
  #allocation1 [shape = 'u32[144,128]{1,0:T(1,128)}', space=vmem, size = 0x12000, scoped, tag = 'internal scratch']
  #allocation2 [shape = 'f32[8,96]{1,0:T(8,128)}', space=vmem, size = 0x1000, scoped, tag = 'scratch operand']
  #allocation3 [shape = 'f32[8,32]{1,0:T(8,128)}', space=vmem, size = 0x1000, scoped, tag = 'scratch operand']
  %s0 = inlined_call_operand.vmem [shape: f32[16,16], index: 0, kind: input, shape index: {}]
  %s1 = inlined_call_operand.vmem [shape: f32[16,32], index: 1, kind: input, shape index: {}]
  %s2 = inlined_call_operand.vmem [shape: f32[1,32], index: 2, kind: input, shape index: {}]
  %s3 = inlined_call_operand.vmem [shape: f32[2,32,96], index: 3, kind: input, shape index: {}]
  %s4 = inlined_call_operand.vmem [shape: f32[2,1,96], index: 4, kind: input, shape index: {}]
  %s5 = inlined_call_operand.vmem [shape: f32[2,32,32], index: 5, kind: input, shape index: {}]
  %s6 = inlined_call_operand.vmem [shape: f32[2,1,32], index: 6, kind: input, shape index: {}]
  %s7 = inlined_call_operand.vmem [shape: f32[2,32,2048], index: 7, kind: input, shape index: {}]
  %s8 = inlined_call_operand.vmem [shape: f32[2,1,2048], index: 8, kind: input, shape index: {}]
  %s9 = inlined_call_operand.vmem [shape: f32[2,2048,32], index: 9, kind: input, shape index: {}]
  %s10 = inlined_call_operand.vmem [shape: f32[2,1,32], index: 10, kind: input, shape index: {}]
  %s11 = inlined_call_operand.vmem [shape: f32[2,1,32], index: 11, kind: input, shape index: {}]
  %s12 = inlined_call_operand.vmem [shape: f32[2,1,32], index: 12, kind: input, shape index: {}]
  %s13 = inlined_call_operand.vmem [shape: f32[2,1,32], index: 13, kind: input, shape index: {}]
  %s14 = inlined_call_operand.vmem [shape: f32[2,1,32], index: 14, kind: input, shape index: {}]
  %s15 = inlined_call_operand.hbm [shape: f32[16,32], index: 15, kind: output, shape index: {}]
  %s16 = sld [smem:[#allocation0]]
  $region93: #{tpu_custom_call.1} parent=0
    _
  %s18 = ssub.s32 1, %s16
  %s19 = scalar_select 0, %s18, %s16
  $region1: #{tpu_custom_call.1} parent=0
    #allocation4 [shape = 'u8[8192]{0}', space=vmem, size = 0x2000, scoped, tag = 'output window, operand 0']
    #allocation5 [shape = 's32[2]{0}', space=sflag, size = 0x8, scoped, tag = 'scoped memory for tpu_custom_call.1']
    %20 = vsyncpa [#allocation5], 0
    %s21 = scalar_lea.sflag [#allocation5], 1
    %22 = vsyncpa %s21, 0
    loop: start=0, step=1, limit=4
    $region2: #{tpu_custom_call.1} parent=1 // loop_pre_header
      _
    $region3: #{tpu_custom_call.1} parent=1 // loop_header
      %s24 = sphi 0, %s28
      %p25 = scmp.ge.s32.totalorder %s24, 4
      %s34 = sphi 0, %s36
      %s37 = sphi 0, %s34
      %s38 = sphi 0, %s37
      %s54 = sphi 0, %s38
      %s58 = sphi 0, %s58
      %s60 = sphi 0, %s58
      %s61 = sphi 0, %s60
      %s75 = sphi 0, %s61
      %s79 = sphi 0, %s79
      %s81 = sphi 0, %s79
      %s82 = sphi 0, %s81
      %s96 = sphi 0, %s82
      %s100 = sphi 0, %s100
      %s102 = sphi 0, %s100
      %s103 = sphi 0, %s102
      %s117 = sphi 0, %s103
      %s121 = sphi 0, %s121
      %s123 = sphi 0, %s121
      %s124 = sphi 0, %s123
      %s138 = sphi 0, %s124
      %s142 = sphi 0, %s142
      %s144 = sphi 0, %s142
      %s145 = sphi 0, %s144
      %s159 = sphi 0, %s145
      %s163 = sphi 0, %s163
      %s165 = sphi 0, %s163
      %s166 = sphi 0, %s165
      %s180 = sphi 0, %s166
      %s184 = sphi 0, %s184
      %s186 = sphi 0, %s184
      %s187 = sphi 0, %s186
      %s201 = sphi 0, %s187
      %s205 = sphi 0, %s205
      %s207 = sphi 0, %s205
      %s208 = sphi 0, %s207
      %s222 = sphi 0, %s208
      %s226 = sphi 0, %s226
      %s228 = sphi 0, %s226
      %s229 = sphi 0, %s228
      %s243 = sphi 0, %s229
      %s247 = sphi 0, %s247
      %s249 = sphi 0, %s247
      %s250 = sphi 0, %s249
      %s264 = sphi 0, %s250
      %s268 = sphi 0, %s268
      %s270 = sphi 0, %s268
      %s271 = sphi 0, %s270
      %s285 = sphi 0, %s271
      %s289 = sphi 0, %s289
      %s291 = sphi 0, %s289
      %s292 = sphi 0, %s291
      %s306 = sphi 0, %s292
      %s310 = sphi 0, %s310
      %s312 = sphi 0, %s310
      %s313 = sphi 0, %s312
      %s327 = sphi 0, %s313
      %s331 = sphi 0, %s331
      %s333 = sphi 0, %s331
      %s334 = sphi 0, %s333
      %s348 = sphi 0, %s334
      %s354 = sphi 0, %s356
      %s357 = sphi 0, %s354
      %s358 = sphi 0, %s357
      %s374 = sphi 0, %s358
    $region4: #{tpu_custom_call.1} parent=1 // loop_header_branch
      %27 = sbr.rel (%p25) target = $region8
    $region5: #{tpu_custom_call.1} parent=1 // loop_body
      %s29 = ssub.s32 %s24, 1
      %s30 = ssub.s32 %s24, 2
      %s31 = sadd.s32 %s24, 1
      %s32 = ssub.s32 %s24, %s31
      %p33 = scmp.eq.s32.totalorder %s32, 0
      %s35 = sadd.s32 %s34, 1
      %s36 = scalar_select %p33, %s34, %s35
      %p39 = pneg %p33
      %p40 = scmp.eq.s32.totalorder %s24, 1
      %p41 = por %p39, %p40
      %p42 = scmp.ne.s32.totalorder %s34, %s37
      %p43 = scmp.eq.s32.totalorder %s24, 0
      %p44 = por %p42, %p43
      %p45 = scmp.ne.s32.totalorder %s34, %s37
      %p46 = scmp.eq.s32.totalorder %s29, 1
      %p47 = por %p45, %p46
      %p48 = scmp.ne.s32.totalorder %s37, %s38
      %p49 = scmp.eq.s32.totalorder %s29, 0
      %p50 = por %p48, %p49
      %p51 = scmp.ne.s32.totalorder %s37, %s38
      %p52 = scmp.eq.s32.totalorder %s30, 1
      %p53 = por %p51, %p52
      %p55 = scmp.ne.s32.totalorder %s38, %s54
      %p56 = scmp.eq.s32.totalorder %s30, 0
      %p57 = por %p55, %p56
      %s59 = sadd.s32 %s58, 1
      %p62 = scmp.eq.s32.totalorder %s24, 1
      %p63 = scmp.ne.s32.totalorder %s58, %s60
      %p64 = scmp.eq.s32.totalorder %s24, 0
      %p65 = por %p63, %p64
      %p66 = scmp.ne.s32.totalorder %s58, %s60
      %p67 = scmp.eq.s32.totalorder %s29, 1
      %p68 = por %p66, %p67
      %p69 = scmp.ne.s32.totalorder %s60, %s61
      %p70 = scmp.eq.s32.totalorder %s29, 0
      %p71 = por %p69, %p70
      %p72 = scmp.ne.s32.totalorder %s60, %s61
      %p73 = scmp.eq.s32.totalorder %s30, 1
      %p74 = por %p72, %p73
      %p76 = scmp.ne.s32.totalorder %s61, %s75
      %p77 = scmp.eq.s32.totalorder %s30, 0
      %p78 = por %p76, %p77
      %s80 = sadd.s32 %s79, 1
      %p83 = scmp.eq.s32.totalorder %s24, 1
      %p84 = scmp.ne.s32.totalorder %s79, %s81
      %p85 = scmp.eq.s32.totalorder %s24, 0
      %p86 = por %p84, %p85
      %p87 = scmp.ne.s32.totalorder %s79, %s81
      %p88 = scmp.eq.s32.totalorder %s29, 1
      %p89 = por %p87, %p88
      %p90 = scmp.ne.s32.totalorder %s81, %s82
      %p91 = scmp.eq.s32.totalorder %s29, 0
      %p92 = por %p90, %p91
      %p93 = scmp.ne.s32.totalorder %s81, %s82
      %p94 = scmp.eq.s32.totalorder %s30, 1
      %p95 = por %p93, %p94
      %p97 = scmp.ne.s32.totalorder %s82, %s96
      %p98 = scmp.eq.s32.totalorder %s30, 0
      %p99 = por %p97, %p98
      %s101 = sadd.s32 %s100, 1
      %p104 = scmp.eq.s32.totalorder %s24, 1
      %p105 = scmp.ne.s32.totalorder %s100, %s102
      %p106 = scmp.eq.s32.totalorder %s24, 0
      %p107 = por %p105, %p106
      %p108 = scmp.ne.s32.totalorder %s100, %s102
      %p109 = scmp.eq.s32.totalorder %s29, 1
      %p110 = por %p108, %p109
      %p111 = scmp.ne.s32.totalorder %s102, %s103
      %p112 = scmp.eq.s32.totalorder %s29, 0
      %p113 = por %p111, %p112
      %p114 = scmp.ne.s32.totalorder %s102, %s103
      %p115 = scmp.eq.s32.totalorder %s30, 1
      %p116 = por %p114, %p115
      %p118 = scmp.ne.s32.totalorder %s103, %s117
      %p119 = scmp.eq.s32.totalorder %s30, 0
      %p120 = por %p118, %p119
      %s122 = sadd.s32 %s121, 1
      %p125 = scmp.eq.s32.totalorder %s24, 1
      %p126 = scmp.ne.s32.totalorder %s121, %s123
      %p127 = scmp.eq.s32.totalorder %s24, 0
      %p128 = por %p126, %p127
      %p129 = scmp.ne.s32.totalorder %s121, %s123
      %p130 = scmp.eq.s32.totalorder %s29, 1
      %p131 = por %p129, %p130
      %p132 = scmp.ne.s32.totalorder %s123, %s124
      %p133 = scmp.eq.s32.totalorder %s29, 0
      %p134 = por %p132, %p133
      %p135 = scmp.ne.s32.totalorder %s123, %s124
      %p136 = scmp.eq.s32.totalorder %s30, 1
      %p137 = por %p135, %p136
      %p139 = scmp.ne.s32.totalorder %s124, %s138
      %p140 = scmp.eq.s32.totalorder %s30, 0
      %p141 = por %p139, %p140
      %s143 = sadd.s32 %s142, 1
      %p146 = scmp.eq.s32.totalorder %s24, 1
      %p147 = scmp.ne.s32.totalorder %s142, %s144
      %p148 = scmp.eq.s32.totalorder %s24, 0
      %p149 = por %p147, %p148
      %p150 = scmp.ne.s32.totalorder %s142, %s144
      %p151 = scmp.eq.s32.totalorder %s29, 1
      %p152 = por %p150, %p151
      %p153 = scmp.ne.s32.totalorder %s144, %s145
      %p154 = scmp.eq.s32.totalorder %s29, 0
      %p155 = por %p153, %p154
      %p156 = scmp.ne.s32.totalorder %s144, %s145
      %p157 = scmp.eq.s32.totalorder %s30, 1
      %p158 = por %p156, %p157
      %p160 = scmp.ne.s32.totalorder %s145, %s159
      %p161 = scmp.eq.s32.totalorder %s30, 0
      %p162 = por %p160, %p161
      %s164 = sadd.s32 %s163, 1
      %p167 = scmp.eq.s32.totalorder %s24, 1
      %p168 = scmp.ne.s32.totalorder %s163, %s165
      %p169 = scmp.eq.s32.totalorder %s24, 0
      %p170 = por %p168, %p169
      %p171 = scmp.ne.s32.totalorder %s163, %s165
      %p172 = scmp.eq.s32.totalorder %s29, 1
      %p173 = por %p171, %p172
      %p174 = scmp.ne.s32.totalorder %s165, %s166
      %p175 = scmp.eq.s32.totalorder %s29, 0
      %p176 = por %p174, %p175
      %p177 = scmp.ne.s32.totalorder %s165, %s166
      %p178 = scmp.eq.s32.totalorder %s30, 1
      %p179 = por %p177, %p178
      %p181 = scmp.ne.s32.totalorder %s166, %s180
      %p182 = scmp.eq.s32.totalorder %s30, 0
      %p183 = por %p181, %p182
      %s185 = sadd.s32 %s184, 1
      %p188 = scmp.eq.s32.totalorder %s24, 1
      %p189 = scmp.ne.s32.totalorder %s184, %s186
      %p190 = scmp.eq.s32.totalorder %s24, 0
      %p191 = por %p189, %p190
      %p192 = scmp.ne.s32.totalorder %s184, %s186
      %p193 = scmp.eq.s32.totalorder %s29, 1
      %p194 = por %p192, %p193
      %p195 = scmp.ne.s32.totalorder %s186, %s187
      %p196 = scmp.eq.s32.totalorder %s29, 0
      %p197 = por %p195, %p196
      %p198 = scmp.ne.s32.totalorder %s186, %s187
      %p199 = scmp.eq.s32.totalorder %s30, 1
      %p200 = por %p198, %p199
      %p202 = scmp.ne.s32.totalorder %s187, %s201
      %p203 = scmp.eq.s32.totalorder %s30, 0
      %p204 = por %p202, %p203
      %s206 = sadd.s32 %s205, 1
      %p209 = scmp.eq.s32.totalorder %s24, 1
      %p210 = scmp.ne.s32.totalorder %s205, %s207
      %p211 = scmp.eq.s32.totalorder %s24, 0
      %p212 = por %p210, %p211
      %p213 = scmp.ne.s32.totalorder %s205, %s207
      %p214 = scmp.eq.s32.totalorder %s29, 1
      %p215 = por %p213, %p214
      %p216 = scmp.ne.s32.totalorder %s207, %s208
      %p217 = scmp.eq.s32.totalorder %s29, 0
      %p218 = por %p216, %p217
      %p219 = scmp.ne.s32.totalorder %s207, %s208
      %p220 = scmp.eq.s32.totalorder %s30, 1
      %p221 = por %p219, %p220
      %p223 = scmp.ne.s32.totalorder %s208, %s222
      %p224 = scmp.eq.s32.totalorder %s30, 0
      %p225 = por %p223, %p224
      %s227 = sadd.s32 %s226, 1
      %p230 = scmp.eq.s32.totalorder %s24, 1
      %p231 = scmp.ne.s32.totalorder %s226, %s228
      %p232 = scmp.eq.s32.totalorder %s24, 0
      %p233 = por %p231, %p232
      %p234 = scmp.ne.s32.totalorder %s226, %s228
      %p235 = scmp.eq.s32.totalorder %s29, 1
      %p236 = por %p234, %p235
      %p237 = scmp.ne.s32.totalorder %s228, %s229
      %p238 = scmp.eq.s32.totalorder %s29, 0
      %p239 = por %p237, %p238
      %p240 = scmp.ne.s32.totalorder %s228, %s229
      %p241 = scmp.eq.s32.totalorder %s30, 1
      %p242 = por %p240, %p241
      %p244 = scmp.ne.s32.totalorder %s229, %s243
      %p245 = scmp.eq.s32.totalorder %s30, 0
      %p246 = por %p244, %p245
      %s248 = sadd.s32 %s247, 1
      %p251 = scmp.eq.s32.totalorder %s24, 1
      %p252 = scmp.ne.s32.totalorder %s247, %s249
      %p253 = scmp.eq.s32.totalorder %s24, 0
      %p254 = por %p252, %p253
      %p255 = scmp.ne.s32.totalorder %s247, %s249
      %p256 = scmp.eq.s32.totalorder %s29, 1
      %p257 = por %p255, %p256
      %p258 = scmp.ne.s32.totalorder %s249, %s250
      %p259 = scmp.eq.s32.totalorder %s29, 0
      %p260 = por %p258, %p259
      %p261 = scmp.ne.s32.totalorder %s249, %s250
      %p262 = scmp.eq.s32.totalorder %s30, 1
      %p263 = por %p261, %p262
      %p265 = scmp.ne.s32.totalorder %s250, %s264
      %p266 = scmp.eq.s32.totalorder %s30, 0
      %p267 = por %p265, %p266
      %s269 = sadd.s32 %s268, 1
      %p272 = scmp.eq.s32.totalorder %s24, 1
      %p273 = scmp.ne.s32.totalorder %s268, %s270
      %p274 = scmp.eq.s32.totalorder %s24, 0
      %p275 = por %p273, %p274
      %p276 = scmp.ne.s32.totalorder %s268, %s270
      %p277 = scmp.eq.s32.totalorder %s29, 1
      %p278 = por %p276, %p277
      %p279 = scmp.ne.s32.totalorder %s270, %s271
      %p280 = scmp.eq.s32.totalorder %s29, 0
      %p281 = por %p279, %p280
      %p282 = scmp.ne.s32.totalorder %s270, %s271
      %p283 = scmp.eq.s32.totalorder %s30, 1
      %p284 = por %p282, %p283
      %p286 = scmp.ne.s32.totalorder %s271, %s285
      %p287 = scmp.eq.s32.totalorder %s30, 0
      %p288 = por %p286, %p287
      %s290 = sadd.s32 %s289, 1
      %p293 = scmp.eq.s32.totalorder %s24, 1
      %p294 = scmp.ne.s32.totalorder %s289, %s291
      %p295 = scmp.eq.s32.totalorder %s24, 0
      %p296 = por %p294, %p295
      %p297 = scmp.ne.s32.totalorder %s289, %s291
      %p298 = scmp.eq.s32.totalorder %s29, 1
      %p299 = por %p297, %p298
      %p300 = scmp.ne.s32.totalorder %s291, %s292
      %p301 = scmp.eq.s32.totalorder %s29, 0
      %p302 = por %p300, %p301
      %p303 = scmp.ne.s32.totalorder %s291, %s292
      %p304 = scmp.eq.s32.totalorder %s30, 1
      %p305 = por %p303, %p304
      %p307 = scmp.ne.s32.totalorder %s292, %s306
      %p308 = scmp.eq.s32.totalorder %s30, 0
      %p309 = por %p307, %p308
      %s311 = sadd.s32 %s310, 1
      %p314 = scmp.eq.s32.totalorder %s24, 1
      %p315 = scmp.ne.s32.totalorder %s310, %s312
      %p316 = scmp.eq.s32.totalorder %s24, 0
      %p317 = por %p315, %p316
      %p318 = scmp.ne.s32.totalorder %s310, %s312
      %p319 = scmp.eq.s32.totalorder %s29, 1
      %p320 = por %p318, %p319
      %p321 = scmp.ne.s32.totalorder %s312, %s313
      %p322 = scmp.eq.s32.totalorder %s29, 0
      %p323 = por %p321, %p322
      %p324 = scmp.ne.s32.totalorder %s312, %s313
      %p325 = scmp.eq.s32.totalorder %s30, 1
      %p326 = por %p324, %p325
      %p328 = scmp.ne.s32.totalorder %s313, %s327
      %p329 = scmp.eq.s32.totalorder %s30, 0
      %p330 = por %p328, %p329
      %s332 = sadd.s32 %s331, 1
      %p335 = scmp.eq.s32.totalorder %s24, 1
      %p336 = scmp.ne.s32.totalorder %s331, %s333
      %p337 = scmp.eq.s32.totalorder %s24, 0
      %p338 = por %p336, %p337
      %p339 = scmp.ne.s32.totalorder %s331, %s333
      %p340 = scmp.eq.s32.totalorder %s29, 1
      %p341 = por %p339, %p340
      %p342 = scmp.ne.s32.totalorder %s333, %s334
      %p343 = scmp.eq.s32.totalorder %s29, 0
      %p344 = por %p342, %p343
      %p345 = scmp.ne.s32.totalorder %s333, %s334
      %p346 = scmp.eq.s32.totalorder %s30, 1
      %p347 = por %p345, %p346
      %p349 = scmp.ne.s32.totalorder %s334, %s348
      %p350 = scmp.eq.s32.totalorder %s30, 0
      %p351 = por %p349, %p350
      %s352 = ssub.s32 %s24, %s31
      %p353 = scmp.eq.s32.totalorder %s352, 0
      %s355 = sadd.s32 %s354, 1
      %s356 = scalar_select %p353, %s354, %s355
      %p359 = pneg %p353
      %p360 = scmp.eq.s32.totalorder %s24, 1
      %p361 = por %p359, %p360
      %p362 = scmp.ne.s32.totalorder %s354, %s357
      %p363 = scmp.eq.s32.totalorder %s24, 0
      %p364 = por %p362, %p363
      %p365 = scmp.ne.s32.totalorder %s354, %s357
      %p366 = scmp.eq.s32.totalorder %s29, 1
      %p367 = por %p365, %p366
      %p368 = scmp.ne.s32.totalorder %s357, %s358
      %p369 = scmp.eq.s32.totalorder %s29, 0
      %p370 = por %p368, %p369
      %p371 = scmp.ne.s32.totalorder %s357, %s358
      %p372 = scmp.eq.s32.totalorder %s30, 1
      %p373 = por %p371, %p372
      %p375 = scmp.ne.s32.totalorder %s358, %s374
      %p376 = scmp.eq.s32.totalorder %s30, 0
      %p377 = por %p375, %p376
      %p378 = scmp.le.s32.totalorder 1, %s24
      %p379 = scmp.lt.s32.totalorder %s24, 3
      %p380 = pnand %p378, %p379
      %p381 = pneg %p380
      // Predicated region
      $region9: #{tpu_custom_call.1} parent=5 // pred_check
        _
      $region10: #{tpu_custom_call.1} parent=5 // pred_check_branch
        %383 = sbr.rel (%p380) target = $region12
      $region11: #{tpu_custom_call.1} parent=5 // pred_region
        %s384 = ssub.s32 %s24, 1
        // Predicated region
        $region13: #{tpu_custom_call.1} parent=11 // pred_check
          %p385 = pneg %p71
        $region14: #{tpu_custom_call.1} parent=11 // pred_check_branch
          %387 = sbr.rel (%p385) target = $region16
        $region15: #{tpu_custom_call.1} parent=11 // pred_region
          _
        $region16: #{tpu_custom_call.1} parent=11 // pred_fallthru
          _
        // Predicated region
        $region17: #{tpu_custom_call.1} parent=11 // pred_check
          %p388 = pneg %p92
        $region18: #{tpu_custom_call.1} parent=11 // pred_check_branch
          %390 = sbr.rel (%p388) target = $region20
        $region19: #{tpu_custom_call.1} parent=11 // pred_region
          _
        $region20: #{tpu_custom_call.1} parent=11 // pred_fallthru
          _
        // Predicated region
        $region21: #{tpu_custom_call.1} parent=11 // pred_check
          %p391 = pneg %p113
        $region22: #{tpu_custom_call.1} parent=11 // pred_check_branch
          %393 = sbr.rel (%p391) target = $region24
        $region23: #{tpu_custom_call.1} parent=11 // pred_region
          _
        $region24: #{tpu_custom_call.1} parent=11 // pred_fallthru
          _
        // Predicated region
        $region25: #{tpu_custom_call.1} parent=11 // pred_check
          %p394 = pneg %p134
        $region26: #{tpu_custom_call.1} parent=11 // pred_check_branch
          %396 = sbr.rel (%p394) target = $region28
        $region27: #{tpu_custom_call.1} parent=11 // pred_region
          _
        $region28: #{tpu_custom_call.1} parent=11 // pred_fallthru
          _
        // Predicated region
        $region29: #{tpu_custom_call.1} parent=11 // pred_check
          %p397 = pneg %p155
        $region30: #{tpu_custom_call.1} parent=11 // pred_check_branch
          %399 = sbr.rel (%p397) target = $region32
        $region31: #{tpu_custom_call.1} parent=11 // pred_region
          _
        $region32: #{tpu_custom_call.1} parent=11 // pred_fallthru
          _
        // Predicated region
        $region33: #{tpu_custom_call.1} parent=11 // pred_check
          %p400 = pneg %p176
        $region34: #{tpu_custom_call.1} parent=11 // pred_check_branch
          %402 = sbr.rel (%p400) target = $region36
        $region35: #{tpu_custom_call.1} parent=11 // pred_region
          _
        $region36: #{tpu_custom_call.1} parent=11 // pred_fallthru
          _
        // Predicated region
        $region37: #{tpu_custom_call.1} parent=11 // pred_check
          %p403 = pneg %p197
        $region38: #{tpu_custom_call.1} parent=11 // pred_check_branch
          %405 = sbr.rel (%p403) target = $region40
        $region39: #{tpu_custom_call.1} parent=11 // pred_region
          _
        $region40: #{tpu_custom_call.1} parent=11 // pred_fallthru
          _
        // Predicated region
        $region41: #{tpu_custom_call.1} parent=11 // pred_check
          %p406 = pneg %p218
        $region42: #{tpu_custom_call.1} parent=11 // pred_check_branch
          %408 = sbr.rel (%p406) target = $region44
        $region43: #{tpu_custom_call.1} parent=11 // pred_region
          _
        $region44: #{tpu_custom_call.1} parent=11 // pred_fallthru
          _
        // Predicated region
        $region45: #{tpu_custom_call.1} parent=11 // pred_check
          %p409 = pneg %p239
        $region46: #{tpu_custom_call.1} parent=11 // pred_check_branch
          %411 = sbr.rel (%p409) target = $region48
        $region47: #{tpu_custom_call.1} parent=11 // pred_region
          _
        $region48: #{tpu_custom_call.1} parent=11 // pred_fallthru
          _
        // Predicated region
        $region49: #{tpu_custom_call.1} parent=11 // pred_check
          %p412 = pneg %p260
        $region50: #{tpu_custom_call.1} parent=11 // pred_check_branch
          %414 = sbr.rel (%p412) target = $region52
        $region51: #{tpu_custom_call.1} parent=11 // pred_region
          _
        $region52: #{tpu_custom_call.1} parent=11 // pred_fallthru
          _
        // Predicated region
        $region53: #{tpu_custom_call.1} parent=11 // pred_check
          %p415 = pneg %p281
        $region54: #{tpu_custom_call.1} parent=11 // pred_check_branch
          %417 = sbr.rel (%p415) target = $region56
        $region55: #{tpu_custom_call.1} parent=11 // pred_region
          _
        $region56: #{tpu_custom_call.1} parent=11 // pred_fallthru
          _
        // Predicated region
        $region57: #{tpu_custom_call.1} parent=11 // pred_check
          %p418 = pneg %p302
        $region58: #{tpu_custom_call.1} parent=11 // pred_check_branch
          %420 = sbr.rel (%p418) target = $region60
        $region59: #{tpu_custom_call.1} parent=11 // pred_region
          _
        $region60: #{tpu_custom_call.1} parent=11 // pred_fallthru
          _
        // Predicated region
        $region61: #{tpu_custom_call.1} parent=11 // pred_check
          %p421 = pneg %p323
        $region62: #{tpu_custom_call.1} parent=11 // pred_check_branch
          %423 = sbr.rel (%p421) target = $region64
        $region63: #{tpu_custom_call.1} parent=11 // pred_region
          _
        $region64: #{tpu_custom_call.1} parent=11 // pred_fallthru
          _
        // Predicated region
        $region65: #{tpu_custom_call.1} parent=11 // pred_check
          %p424 = pneg %p344
        $region66: #{tpu_custom_call.1} parent=11 // pred_check_branch
          %426 = sbr.rel (%p424) target = $region68
        $region67: #{tpu_custom_call.1} parent=11 // pred_region
          _
        $region68: #{tpu_custom_call.1} parent=11 // pred_fallthru
          _
      $region12: #{tpu_custom_call.1} parent=5 // pred_fallthru
        _
      %p427 = scmp.lt.s32.totalorder %s24, 2
      // Predicated region
      $region69: #{tpu_custom_call.1} parent=5 // pred_check
        %p428 = pneg %p427
      $region70: #{tpu_custom_call.1} parent=5 // pred_check_branch
        %430 = sbr.rel (%p428) target = $region72
      $region71: #{tpu_custom_call.1} parent=5 // pred_region
        // Predicated region
        $region73: #{tpu_custom_call.1} parent=71 // pred_check
          %p431 = pneg %p44
        $region74: #{tpu_custom_call.1} parent=71 // pred_check_branch
          %433 = sbr.rel (%p431) target = $region76
        $region75: #{tpu_custom_call.1} parent=71 // pred_region
          %p434 = scmp.lt.s32.totalorder %s24, 1
          %s435 = scalar_select %p434, %s24, 1
          %s436 = smul.addr %s435, 8
          %s437 = scalar_lea.vmem %s0, %s436
        $region76: #{tpu_custom_call.1} parent=71 // pred_fallthru
          _
      $region72: #{tpu_custom_call.1} parent=5 // pred_fallthru
        _
      %p438 = scmp.le.s32.totalorder 1, %s24
      %p439 = scmp.lt.s32.totalorder %s24, 3
      %p440 = pnand %p438, %p439
      %p441 = pneg %p440
      // Predicated region
      $region77: #{tpu_custom_call.1} parent=5 // pred_check
        _
      $region78: #{tpu_custom_call.1} parent=5 // pred_check_branch
        %443 = sbr.rel (%p440) target = $region80
      $region79: #{tpu_custom_call.1} parent=5 // pred_region
        %s444 = ssub.s32 %s24, 1
        %p445 = scmp.lt.s32.totalorder %s29, 1
        %s446 = scalar_select %p445, %s29, 1
        %s447 = smul.addr %s446, 8
        %s448 = scalar_lea.vmem %s0, %s447
        %p449 = pneg %p50
        %p450 = pneg %p47
        %p451 = pneg %p71
        %p452 = pneg %p68
        %p453 = pneg %p92
        %p454 = pneg %p89
        %p455 = pneg %p113
        %p456 = pneg %p110
        %p457 = pneg %p134
        %p458 = pneg %p131
        %p459 = pneg %p155
        %p460 = pneg %p152
        %p461 = pneg %p176
        %p462 = pneg %p173
        %p463 = pneg %p197
        %p464 = pneg %p194
        %p465 = pneg %p218
        %p466 = pneg %p215
        %p467 = pneg %p239
        %p468 = pneg %p236
        %p469 = pneg %p260
        %p470 = pneg %p257
        %p471 = pneg %p281
        %p472 = pneg %p278
        %p473 = pneg %p302
        %p474 = pneg %p299
        %p475 = pneg %p323
        %p476 = pneg %p320
        %p477 = pneg %p344
        %p478 = pneg %p341
        %p479 = pneg %p370
        %p480 = pneg %p367
        %s481 = sand.u32 %s357, 1
        %s482 = scalar_lea.sflag [#allocation5], %s481
        %s483 = sand.u32 %s357, 1
        %s484 = smul.addr %s483, 8
        %s485 = scalar_lea.vmem [#allocation4], %s484
        %p486 = scmp.lt.s32.totalorder %s29, 1
        %s487 = scalar_select %p486, %s29, 1
        %s488 = smul.addr %s487, 8
        %s489 = scalar_lea.vmem %s0, %s488
        %v490 = vld [vmem:[%s489] sm:$0xff]
        %v491 = vld [vmem:[%s1] sm:$0xff]
        %v492 = vld [vmem:[%s1 + $0x8] sm:$0xff]
        %v493 = vld [vmem:[%s2] sm:$0x1]
        %v495 = vlaneseq
        %v496 = vshrl.u32 %v495, 7
        %v497 = vsub.s32 0, %v496
        %v498 = vrot.slane %v493, %v497
        %vm500 = vcmask 130048
        %v502 = vsel %vm500, %v490, 0
        %504 = vmatprep.subr.mxu0 0.0
        %505 = vmatpush1.msra.mxu0 %v491
        %506 = vmatprep.subr.mxu0 0.0
        %507 = vmatpush1.msra.mxu0 %v492
        %508 = vmatprep.subr.mxu0 0.0
        %509 = vmatpush1.msra.mxu0 0.0
        %510 = vmatprep.subr.mxu0 0.0
        %511 = vmatpush1.msra.mxu0 0.0
        %512 = vmatprep.subr.mxu0 0.0
        %513 = vmatpush1.msra.mxu0 0.0
        %514 = vmatprep.subr.mxu0 0.0
        %515 = vmatpush1.msra.mxu0 0.0
        %516 = vmatprep.subr.mxu0 0.0
        %517 = vmatpush1.msra.mxu0 0.0
        %518 = vmatprep.subr.mxu0 0.0
        %519 = vmatpush1.msra.mxu0 0.0
        %520 = vmatprep.subr.mxu0 0.0
        %521 = vmatpush1.msra.mxu0 0.0
        %522 = vmatprep.subr.mxu0 0.0
        %523 = vmatpush1.msra.mxu0 0.0
        %524 = vmatprep.subr.mxu0 0.0
        %525 = vmatpush1.msra.mxu0 0.0
        %526 = vmatprep.subr.mxu0 0.0
        %527 = vmatpush1.msra.mxu0 0.0
        %528 = vmatprep.subr.mxu0 0.0
        %529 = vmatpush1.msra.mxu0 0.0
        %530 = vmatprep.subr.mxu0 0.0
        %531 = vmatpush1.msra.mxu0 0.0
        %532 = vmatprep.subr.mxu0 0.0
        %533 = vmatpush1.msra.mxu0 0.0
        %534 = vmatprep.subr.mxu0 0.0
        %535 = vmatpush1.msra.mxu0 0.0
        %536 = vmatprep.subr.mxu0 0.0
        %537 = vmatpush1.msra.mxu0 0.0
        %538 = vmatprep.subr.mxu0 0.0
        %539 = vmatpush1.msra.mxu0 0.0
        %540 = vmatprep.subr.mxu0 0.0
        %541 = vmatpush1.msra.mxu0 0.0
        %542 = vmatprep.subr.mxu0 0.0
        %543 = vmatpush1.msra.mxu0 0.0
        %544 = vmatprep.subr.mxu0 0.0
        %545 = vmatpush1.msra.mxu0 0.0
        %546 = vmatprep.subr.mxu0 0.0
        %547 = vmatpush1.msra.mxu0 0.0
        %548 = vmatprep.subr.mxu0 0.0
        %549 = vmatpush1.msra.mxu0 0.0
        %550 = vmatprep.subr.mxu0 0.0
        %551 = vmatpush1.msra.mxu0 0.0
        %552 = vmatprep.subr.mxu0 0.0
        %553 = vmatpush1.msra.mxu0 0.0
        %554 = vmatprep.subr.mxu0 0.0
        %555 = vmatpush1.msra.mxu0 0.0
        %556 = vmatprep.subr.mxu0 0.0
        %557 = vmatpush1.msra.mxu0 0.0
        %558 = vmatprep.subr.mxu0 0.0
        %559 = vmatpush1.msra.mxu0 0.0
        %560 = vmatprep.subr.mxu0 0.0
        %561 = vmatpush1.msra.mxu0 0.0
        %562 = vmatprep.subr.mxu0 0.0
        %563 = vmatpush1.msra.mxu0 0.0
        %564 = vmatprep.subr.mxu0 0.0
        %565 = vmatpush1.msra.mxu0 0.0
        %566 = vmatprep.subr.mxu0 0.0
        %567 = vmatpush1.msra.mxu0 0.0
        %568 = vmatprep.mubr.f32.mxu0 0.0
        %569 = vmatmul.mubr.f32.gmra.mrb[0].mxu0 %v502
        %v570 = vpop.f32.mrb[0].mxu0
        %v571 = vadd.f32 %v498, %v570
        %v572 = vpop.f32.mrb[0].mxu0
        %573 = vdwg.mxu0
        %v574 = vld [vmem:[%s3] sm:$0xff]
        %v575 = vld [vmem:[%s3 + $0x8] sm:$0xff]
        %v576 = vld [vmem:[%s3 + $0x10] sm:$0xff]
        %v577 = vld [vmem:[%s3 + $0x18] sm:$0xff]
        %v578 = vld [vmem:[%s4] sm:$0x1]
        %v580 = vlaneseq
        %v581 = vshrl.u32 %v580, 7
        %v582 = vsub.s32 0, %v581
        %v583 = vrot.slane %v578, %v582
        %vm585 = vcmask 261120
        %v587 = vsel %vm585, %v571, 0
        %589 = vmatprep.subr.mxu0 0.0
        %590 = vmatpush1.msra.mxu0 %v574
        %591 = vmatprep.subr.mxu0 0.0
        %592 = vmatpush1.msra.mxu0 %v575
        %593 = vmatprep.subr.mxu0 0.0
        %594 = vmatpush1.msra.mxu0 %v576
        %595 = vmatprep.subr.mxu0 0.0
        %596 = vmatpush1.msra.mxu0 %v577
        %597 = vmatprep.subr.mxu0 0.0
        %598 = vmatpush1.msra.mxu0 0.0
        %599 = vmatprep.subr.mxu0 0.0
        %600 = vmatpush1.msra.mxu0 0.0
        %601 = vmatprep.subr.mxu0 0.0
        %602 = vmatpush1.msra.mxu0 0.0
        %603 = vmatprep.subr.mxu0 0.0
        %604 = vmatpush1.msra.mxu0 0.0
        %605 = vmatprep.subr.mxu0 0.0
        %606 = vmatpush1.msra.mxu0 0.0
        %607 = vmatprep.subr.mxu0 0.0
        %608 = vmatpush1.msra.mxu0 0.0
        %609 = vmatprep.subr.mxu0 0.0
        %610 = vmatpush1.msra.mxu0 0.0
        %611 = vmatprep.subr.mxu0 0.0
        %612 = vmatpush1.msra.mxu0 0.0
        %613 = vmatprep.subr.mxu0 0.0
        %614 = vmatpush1.msra.mxu0 0.0
        %615 = vmatprep.subr.mxu0 0.0
        %616 = vmatpush1.msra.mxu0 0.0
        %617 = vmatprep.subr.mxu0 0.0
        %618 = vmatpush1.msra.mxu0 0.0
        %619 = vmatprep.subr.mxu0 0.0
        %620 = vmatpush1.msra.mxu0 0.0
        %621 = vmatprep.subr.mxu0 0.0
        %622 = vmatpush1.msra.mxu0 0.0
        %623 = vmatprep.subr.mxu0 0.0
        %624 = vmatpush1.msra.mxu0 0.0
        %625 = vmatprep.subr.mxu0 0.0
        %626 = vmatpush1.msra.mxu0 0.0
        %627 = vmatprep.subr.mxu0 0.0
        %628 = vmatpush1.msra.mxu0 0.0
        %629 = vmatprep.subr.mxu0 0.0
        %630 = vmatpush1.msra.mxu0 0.0
        %631 = vmatprep.subr.mxu0 0.0
        %632 = vmatpush1.msra.mxu0 0.0
        %633 = vmatprep.subr.mxu0 0.0
        %634 = vmatpush1.msra.mxu0 0.0
        %635 = vmatprep.subr.mxu0 0.0
        %636 = vmatpush1.msra.mxu0 0.0
        %637 = vmatprep.subr.mxu0 0.0
        %638 = vmatpush1.msra.mxu0 0.0
        %639 = vmatprep.subr.mxu0 0.0
        %640 = vmatpush1.msra.mxu0 0.0
        %641 = vmatprep.subr.mxu0 0.0
        %642 = vmatpush1.msra.mxu0 0.0
        %643 = vmatprep.subr.mxu0 0.0
        %644 = vmatpush1.msra.mxu0 0.0
        %645 = vmatprep.subr.mxu0 0.0
        %646 = vmatpush1.msra.mxu0 0.0
        %647 = vmatprep.subr.mxu0 0.0
        %648 = vmatpush1.msra.mxu0 0.0
        %649 = vmatprep.subr.mxu0 0.0
        %650 = vmatpush1.msra.mxu0 0.0
        %651 = vmatprep.subr.mxu0 0.0
        %652 = vmatpush1.msra.mxu0 0.0
        %653 = vmatprep.mubr.f32.mxu0 0.0
        %654 = vmatmul.mubr.f32.gmra.mrb[0].mxu0 %v587
        %v655 = vpop.f32.mrb[0].mxu0
        %v656 = vadd.f32 %v583, %v655
        %v657 = vpop.f32.mrb[0].mxu0
        %658 = vdwg.mxu0
        %vm659 = vcmask 785408
        %660 = vst.msk [vmem:[#allocation2] sm:$0xff] %vm659, %v656
        %v661 = vld [vmem:[#allocation2] sm:$0xff]
        %v662 = vmul.f32 %v661, 0.5
        %664 = vrot.lane.b32.xlu0 %v661, 96
        %v665 = vpop.permute.xlu0 %664
        %vm666 = vcmask 31744
        %v668 = vsel %vm666, %v662, 0
        %v670 = vsel %vm666, %v665, 0
        %672 = vmatprep.subr.mxu0 0.0
        %673 = vmatpush1.xpose.msra.mxu0 %v670
        %674 = vmatprep.subr.mxu0 0.0
        %675 = vmatpush1.xpose.msra.mxu0 0.0
        %676 = vmatprep.subr.mxu0 0.0
        %677 = vmatpush1.xpose.msra.mxu0 0.0
        %678 = vmatprep.subr.mxu0 0.0
        %679 = vmatpush1.xpose.msra.mxu0 0.0
        %680 = vmatprep.subr.mxu0 0.0
        %681 = vmatpush1.xpose.msra.mxu0 0.0
        %682 = vmatprep.subr.mxu0 0.0
        %683 = vmatpush1.xpose.msra.mxu0 0.0
        %684 = vmatprep.subr.mxu0 0.0
        %685 = vmatpush1.xpose.msra.mxu0 0.0
        %686 = vmatprep.subr.mxu0 0.0
        %687 = vmatpush1.xpose.msra.mxu0 0.0
        %688 = vmatprep.subr.mxu0 0.0
        %689 = vmatpush1.xpose.msra.mxu0 0.0
        %690 = vmatprep.subr.mxu0 0.0
        %691 = vmatpush1.xpose.msra.mxu0 0.0
        %692 = vmatprep.subr.mxu0 0.0
        %693 = vmatpush1.xpose.msra.mxu0 0.0
        %694 = vmatprep.subr.mxu0 0.0
        %695 = vmatpush1.xpose.msra.mxu0 0.0
        %696 = vmatprep.subr.mxu0 0.0
        %697 = vmatpush1.xpose.msra.mxu0 0.0
        %698 = vmatprep.subr.mxu0 0.0
        %699 = vmatpush1.xpose.msra.mxu0 0.0
        %700 = vmatprep.subr.mxu0 0.0
        %701 = vmatpush1.xpose.msra.mxu0 0.0
        %702 = vmatprep.subr.mxu0 0.0
        %703 = vmatpush1.xpose.msra.mxu0 0.0
        %704 = vmatprep.subr.mxu0 0.0
        %705 = vmatpush1.xpose.msra.mxu0 0.0
        %706 = vmatprep.subr.mxu0 0.0
        %707 = vmatpush1.xpose.msra.mxu0 0.0
        %708 = vmatprep.subr.mxu0 0.0
        %709 = vmatpush1.xpose.msra.mxu0 0.0
        %710 = vmatprep.subr.mxu0 0.0
        %711 = vmatpush1.xpose.msra.mxu0 0.0
        %712 = vmatprep.subr.mxu0 0.0
        %713 = vmatpush1.xpose.msra.mxu0 0.0
        %714 = vmatprep.subr.mxu0 0.0
        %715 = vmatpush1.xpose.msra.mxu0 0.0
        %716 = vmatprep.subr.mxu0 0.0
        %717 = vmatpush1.xpose.msra.mxu0 0.0
        %718 = vmatprep.subr.mxu0 0.0
        %719 = vmatpush1.xpose.msra.mxu0 0.0
        %720 = vmatprep.subr.mxu0 0.0
        %721 = vmatpush1.xpose.msra.mxu0 0.0
        %722 = vmatprep.subr.mxu0 0.0
        %723 = vmatpush1.xpose.msra.mxu0 0.0
        %724 = vmatprep.subr.mxu0 0.0
        %725 = vmatpush1.xpose.msra.mxu0 0.0
        %726 = vmatprep.subr.mxu0 0.0
        %727 = vmatpush1.xpose.msra.mxu0 0.0
        %728 = vmatprep.subr.mxu0 0.0
        %729 = vmatpush1.xpose.msra.mxu0 0.0
        %730 = vmatprep.subr.mxu0 0.0
        %731 = vmatpush1.xpose.msra.mxu0 0.0
        %732 = vmatprep.subr.mxu0 0.0
        %733 = vmatpush1.xpose.msra.mxu0 0.0
        %734 = vmatprep.subr.mxu0 0.0
        %735 = vmatpush1.xpose.msra.mxu0 0.0
        %736 = vmatprep.mubr.f32.mxu0 0.0
        %737 = vmatmul.mubr.f32.gmra.mrb[0].mxu0 %v668
        %v738 = vpop.f32.mrb[0].mxu0
        %v739 = vadd.f32 0.0, %v738
        %v740 = vpop.f32.mrb[0].mxu0
        %741 = vdwg.mxu0
        %vm742 = vcmask 64512
        %v743 = vsel %vm742, %v739, -inf
        %744 = vmax.xlane.f32.xlu0 %v743
        %v745 = vpop.xlane.xlu0 %744
        %v746 = vsub.f32 %v739, %v745
        %v747 = vmul.f32 %v746, 1.442695
        %v748 = vpow.pop %v747
        %v749 = vsel %vm742, %v748, 0.0
        %750 = vadd.xlane.f32.xlu0 %v749
        %v751 = vpop.xlane.xlu0 %750
        %v752 = vrcp.pop %v751
        %753 = vrot.lane.b32.xlu0 %v661, 64
        %v754 = vpop.permute.xlu0 %753
        %v757 = vsel %vm742, %v748, 0
        %759 = vmatprep.subr.mxu0 0.0
        %760 = vmatpush1.msra.mxu0 %v754
        %761 = vmatprep.subr.mxu0 0.0
        %762 = vmatpush1.msra.mxu0 0.0
        %763 = vmatprep.subr.mxu0 0.0
        %764 = vmatpush1.msra.mxu0 0.0
        %765 = vmatprep.subr.mxu0 0.0
        %766 = vmatpush1.msra.mxu0 0.0
        %767 = vmatprep.subr.mxu0 0.0
        %768 = vmatpush1.msra.mxu0 0.0
        %769 = vmatprep.subr.mxu0 0.0
        %770 = vmatpush1.msra.mxu0 0.0
        %771 = vmatprep.subr.mxu0 0.0
        %772 = vmatpush1.msra.mxu0 0.0
        %773 = vmatprep.subr.mxu0 0.0
        %774 = vmatpush1.msra.mxu0 0.0
        %775 = vmatprep.subr.mxu0 0.0
        %776 = vmatpush1.msra.mxu0 0.0
        %777 = vmatprep.subr.mxu0 0.0
        %778 = vmatpush1.msra.mxu0 0.0
        %779 = vmatprep.subr.mxu0 0.0
        %780 = vmatpush1.msra.mxu0 0.0
        %781 = vmatprep.subr.mxu0 0.0
        %782 = vmatpush1.msra.mxu0 0.0
        %783 = vmatprep.subr.mxu0 0.0
        %784 = vmatpush1.msra.mxu0 0.0
        %785 = vmatprep.subr.mxu0 0.0
        %786 = vmatpush1.msra.mxu0 0.0
        %787 = vmatprep.subr.mxu0 0.0
        %788 = vmatpush1.msra.mxu0 0.0
        %789 = vmatprep.subr.mxu0 0.0
        %790 = vmatpush1.msra.mxu0 0.0
        %791 = vmatprep.subr.mxu0 0.0
        %792 = vmatpush1.msra.mxu0 0.0
        %793 = vmatprep.subr.mxu0 0.0
        %794 = vmatpush1.msra.mxu0 0.0
        %795 = vmatprep.subr.mxu0 0.0
        %796 = vmatpush1.msra.mxu0 0.0
        %797 = vmatprep.subr.mxu0 0.0
        %798 = vmatpush1.msra.mxu0 0.0
        %799 = vmatprep.subr.mxu0 0.0
        %800 = vmatpush1.msra.mxu0 0.0
        %801 = vmatprep.subr.mxu0 0.0
        %802 = vmatpush1.msra.mxu0 0.0
        %803 = vmatprep.subr.mxu0 0.0
        %804 = vmatpush1.msra.mxu0 0.0
        %805 = vmatprep.subr.mxu0 0.0
        %806 = vmatpush1.msra.mxu0 0.0
        %807 = vmatprep.subr.mxu0 0.0
        %808 = vmatpush1.msra.mxu0 0.0
        %809 = vmatprep.subr.mxu0 0.0
        %810 = vmatpush1.msra.mxu0 0.0
        %811 = vmatprep.subr.mxu0 0.0
        %812 = vmatpush1.msra.mxu0 0.0
        %813 = vmatprep.subr.mxu0 0.0
        %814 = vmatpush1.msra.mxu0 0.0
        %815 = vmatprep.subr.mxu0 0.0
        %816 = vmatpush1.msra.mxu0 0.0
        %817 = vmatprep.subr.mxu0 0.0
        %818 = vmatpush1.msra.mxu0 0.0
        %819 = vmatprep.subr.mxu0 0.0
        %820 = vmatpush1.msra.mxu0 0.0
        %821 = vmatprep.subr.mxu0 0.0
        %822 = vmatpush1.msra.mxu0 0.0
        %823 = vmatprep.mubr.f32.mxu0 0.0
        %824 = vmatmul.mubr.f32.gmra.mrb[0].mxu0 %v757
        %v825 = vpop.f32.mrb[0].mxu0
        %v826 = vadd.f32 0.0, %v825
        %v827 = vpop.f32.mrb[0].mxu0
        %828 = vdwg.mxu0
        %v829 = vmul.f32 %v826, %v752
        %830 = vst.msk [vmem:[#allocation3] sm:$0xff] %vm666, %v829
        %v831 = vld [vmem:[#allocation2] sm:$0xff]
        %v832 = vmul.f32 %v831, 0.5
        %834 = vrot.lane.b32.xlu0 %v832, 124
        %v835 = vpop.permute.xlu0 %834
        %837 = vrot.lane.b32.xlu0 %v831, 92
        %v838 = vpop.permute.xlu0 %837
        %v839 = vsel %vm666, %v835, 0
        %v841 = vsel %vm666, %v838, 0
        %843 = vmatprep.subr.mxu0 0.0
        %844 = vmatpush1.xpose.msra.mxu0 %v841
        %845 = vmatprep.subr.mxu0 0.0
        %846 = vmatpush1.xpose.msra.mxu0 0.0
        %847 = vmatprep.subr.mxu0 0.0
        %848 = vmatpush1.xpose.msra.mxu0 0.0
        %849 = vmatprep.subr.mxu0 0.0
        %850 = vmatpush1.xpose.msra.mxu0 0.0
        %851 = vmatprep.subr.mxu0 0.0
        %852 = vmatpush1.xpose.msra.mxu0 0.0
        %853 = vmatprep.subr.mxu0 0.0
        %854 = vmatpush1.xpose.msra.mxu0 0.0
        %855 = vmatprep.subr.mxu0 0.0
        %856 = vmatpush1.xpose.msra.mxu0 0.0
        %857 = vmatprep.subr.mxu0 0.0
        %858 = vmatpush1.xpose.msra.mxu0 0.0
        %859 = vmatprep.subr.mxu0 0.0
        %860 = vmatpush1.xpose.msra.mxu0 0.0
        %861 = vmatprep.subr.mxu0 0.0
        %862 = vmatpush1.xpose.msra.mxu0 0.0
        %863 = vmatprep.subr.mxu0 0.0
        %864 = vmatpush1.xpose.msra.mxu0 0.0
        %865 = vmatprep.subr.mxu0 0.0
        %866 = vmatpush1.xpose.msra.mxu0 0.0
        %867 = vmatprep.subr.mxu0 0.0
        %868 = vmatpush1.xpose.msra.mxu0 0.0
        %869 = vmatprep.subr.mxu0 0.0
        %870 = vmatpush1.xpose.msra.mxu0 0.0
        %871 = vmatprep.subr.mxu0 0.0
        %872 = vmatpush1.xpose.msra.mxu0 0.0
        %873 = vmatprep.subr.mxu0 0.0
        %874 = vmatpush1.xpose.msra.mxu0 0.0
        %875 = vmatprep.subr.mxu0 0.0
        %876 = vmatpush1.xpose.msra.mxu0 0.0
        %877 = vmatprep.subr.mxu0 0.0
        %878 = vmatpush1.xpose.msra.mxu0 0.0
        %879 = vmatprep.subr.mxu0 0.0
        %880 = vmatpush1.xpose.msra.mxu0 0.0
        %881 = vmatprep.subr.mxu0 0.0
        %882 = vmatpush1.xpose.msra.mxu0 0.0
        %883 = vmatprep.subr.mxu0 0.0
        %884 = vmatpush1.xpose.msra.mxu0 0.0
        %885 = vmatprep.subr.mxu0 0.0
        %886 = vmatpush1.xpose.msra.mxu0 0.0
        %887 = vmatprep.subr.mxu0 0.0
        %888 = vmatpush1.xpose.msra.mxu0 0.0
        %889 = vmatprep.subr.mxu0 0.0
        %890 = vmatpush1.xpose.msra.mxu0 0.0
        %891 = vmatprep.subr.mxu0 0.0
        %892 = vmatpush1.xpose.msra.mxu0 0.0
        %893 = vmatprep.subr.mxu0 0.0
        %894 = vmatpush1.xpose.msra.mxu0 0.0
        %895 = vmatprep.subr.mxu0 0.0
        %896 = vmatpush1.xpose.msra.mxu0 0.0
        %897 = vmatprep.subr.mxu0 0.0
        %898 = vmatpush1.xpose.msra.mxu0 0.0
        %899 = vmatprep.subr.mxu0 0.0
        %900 = vmatpush1.xpose.msra.mxu0 0.0
        %901 = vmatprep.subr.mxu0 0.0
        %902 = vmatpush1.xpose.msra.mxu0 0.0
        %903 = vmatprep.subr.mxu0 0.0
        %904 = vmatpush1.xpose.msra.mxu0 0.0
        %905 = vmatprep.subr.mxu0 0.0
        %906 = vmatpush1.xpose.msra.mxu0 0.0
        %907 = vmatprep.mubr.f32.mxu0 0.0
        %908 = vmatmul.mubr.f32.gmra.mrb[0].mxu0 %v839
        %v909 = vpop.f32.mrb[0].mxu0
        %v910 = vadd.f32 0.0, %v909
        %v911 = vpop.f32.mrb[0].mxu0
        %912 = vdwg.mxu0
        %v913 = vsel %vm742, %v910, -inf
        %914 = vmax.xlane.f32.xlu0 %v913
        %v915 = vpop.xlane.xlu0 %914
        %v916 = vsub.f32 %v910, %v915
        %v917 = vmul.f32 %v916, 1.442695
        %v918 = vpow.pop %v917
        %v919 = vsel %vm742, %v918, 0.0
        %920 = vadd.xlane.f32.xlu0 %v919
        %v921 = vpop.xlane.xlu0 %920
        %v922 = vrcp.pop %v921
        %923 = vrot.lane.b32.xlu0 %v831, 60
        %v924 = vpop.permute.xlu0 %923
        %v927 = vsel %vm742, %v918, 0
        %929 = vmatprep.subr.mxu0 0.0
        %930 = vmatpush1.msra.mxu0 %v924
        %931 = vmatprep.subr.mxu0 0.0
        %932 = vmatpush1.msra.mxu0 0.0
        %933 = vmatprep.subr.mxu0 0.0
        %934 = vmatpush1.msra.mxu0 0.0
        %935 = vmatprep.subr.mxu0 0.0
        %936 = vmatpush1.msra.mxu0 0.0
        %937 = vmatprep.subr.mxu0 0.0
        %938 = vmatpush1.msra.mxu0 0.0
        %939 = vmatprep.subr.mxu0 0.0
        %940 = vmatpush1.msra.mxu0 0.0
        %941 = vmatprep.subr.mxu0 0.0
        %942 = vmatpush1.msra.mxu0 0.0
        %943 = vmatprep.subr.mxu0 0.0
        %944 = vmatpush1.msra.mxu0 0.0
        %945 = vmatprep.subr.mxu0 0.0
        %946 = vmatpush1.msra.mxu0 0.0
        %947 = vmatprep.subr.mxu0 0.0
        %948 = vmatpush1.msra.mxu0 0.0
        %949 = vmatprep.subr.mxu0 0.0
        %950 = vmatpush1.msra.mxu0 0.0
        %951 = vmatprep.subr.mxu0 0.0
        %952 = vmatpush1.msra.mxu0 0.0
        %953 = vmatprep.subr.mxu0 0.0
        %954 = vmatpush1.msra.mxu0 0.0
        %955 = vmatprep.subr.mxu0 0.0
        %956 = vmatpush1.msra.mxu0 0.0
        %957 = vmatprep.subr.mxu0 0.0
        %958 = vmatpush1.msra.mxu0 0.0
        %959 = vmatprep.subr.mxu0 0.0
        %960 = vmatpush1.msra.mxu0 0.0
        %961 = vmatprep.subr.mxu0 0.0
        %962 = vmatpush1.msra.mxu0 0.0
        %963 = vmatprep.subr.mxu0 0.0
        %964 = vmatpush1.msra.mxu0 0.0
        %965 = vmatprep.subr.mxu0 0.0
        %966 = vmatpush1.msra.mxu0 0.0
        %967 = vmatprep.subr.mxu0 0.0
        %968 = vmatpush1.msra.mxu0 0.0
        %969 = vmatprep.subr.mxu0 0.0
        %970 = vmatpush1.msra.mxu0 0.0
        %971 = vmatprep.subr.mxu0 0.0
        %972 = vmatpush1.msra.mxu0 0.0
        %973 = vmatprep.subr.mxu0 0.0
        %974 = vmatpush1.msra.mxu0 0.0
        %975 = vmatprep.subr.mxu0 0.0
        %976 = vmatpush1.msra.mxu0 0.0
        %977 = vmatprep.subr.mxu0 0.0
        %978 = vmatpush1.msra.mxu0 0.0
        %979 = vmatprep.subr.mxu0 0.0
        %980 = vmatpush1.msra.mxu0 0.0
        %981 = vmatprep.subr.mxu0 0.0
        %982 = vmatpush1.msra.mxu0 0.0
        %983 = vmatprep.subr.mxu0 0.0
        %984 = vmatpush1.msra.mxu0 0.0
        %985 = vmatprep.subr.mxu0 0.0
        %986 = vmatpush1.msra.mxu0 0.0
        %987 = vmatprep.subr.mxu0 0.0
        %988 = vmatpush1.msra.mxu0 0.0
        %989 = vmatprep.subr.mxu0 0.0
        %990 = vmatpush1.msra.mxu0 0.0
        %991 = vmatprep.subr.mxu0 0.0
        %992 = vmatpush1.msra.mxu0 0.0
        %993 = vmatprep.mubr.f32.mxu0 0.0
        %994 = vmatmul.mubr.f32.gmra.mrb[0].mxu0 %v927
        %v995 = vpop.f32.mrb[0].mxu0
        %v996 = vadd.f32 0.0, %v995
        %v997 = vpop.f32.mrb[0].mxu0
        %998 = vdwg.mxu0
        %v999 = vmul.f32 %v996, %v922
        %1001 = vrot.lane.b32.xlu0 %v999, 4
        %v1002 = vpop.permute.xlu0 %1001
        %vm1004 = vcmask 64544
        %1005 = vst.msk [vmem:[#allocation3] sm:$0xff] %vm1004, %v1002
        %v1006 = vld [vmem:[#allocation2] sm:$0xff]
        %v1007 = vmul.f32 %v1006, 0.5
        %1009 = vrot.lane.b32.xlu0 %v1007, 120
        %v1010 = vpop.permute.xlu0 %1009
        %1012 = vrot.lane.b32.xlu0 %v1006, 88
        %v1013 = vpop.permute.xlu0 %1012
        %v1014 = vsel %vm666, %v1010, 0
        %v1016 = vsel %vm666, %v1013, 0
        %1018 = vmatprep.subr.mxu0 0.0
        %1019 = vmatpush1.xpose.msra.mxu0 %v1016
        %1020 = vmatprep.subr.mxu0 0.0
        %1021 = vmatpush1.xpose.msra.mxu0 0.0
        %1022 = vmatprep.subr.mxu0 0.0
        %1023 = vmatpush1.xpose.msra.mxu0 0.0
        %1024 = vmatprep.subr.mxu0 0.0
        %1025 = vmatpush1.xpose.msra.mxu0 0.0
        %1026 = vmatprep.subr.mxu0 0.0
        %1027 = vmatpush1.xpose.msra.mxu0 0.0
        %1028 = vmatprep.subr.mxu0 0.0
        %1029 = vmatpush1.xpose.msra.mxu0 0.0
        %1030 = vmatprep.subr.mxu0 0.0
        %1031 = vmatpush1.xpose.msra.mxu0 0.0
        %1032 = vmatprep.subr.mxu0 0.0
        %1033 = vmatpush1.xpose.msra.mxu0 0.0
        %1034 = vmatprep.subr.mxu0 0.0
        %1035 = vmatpush1.xpose.msra.mxu0 0.0
        %1036 = vmatprep.subr.mxu0 0.0
        %1037 = vmatpush1.xpose.msra.mxu0 0.0
        %1038 = vmatprep.subr.mxu0 0.0
        %1039 = vmatpush1.xpose.msra.mxu0 0.0
        %1040 = vmatprep.subr.mxu0 0.0
        %1041 = vmatpush1.xpose.msra.mxu0 0.0
        %1042 = vmatprep.subr.mxu0 0.0
        %1043 = vmatpush1.xpose.msra.mxu0 0.0
        %1044 = vmatprep.subr.mxu0 0.0
        %1045 = vmatpush1.xpose.msra.mxu0 0.0
        %1046 = vmatprep.subr.mxu0 0.0
        %1047 = vmatpush1.xpose.msra.mxu0 0.0
        %1048 = vmatprep.subr.mxu0 0.0
        %1049 = vmatpush1.xpose.msra.mxu0 0.0
        %1050 = vmatprep.subr.mxu0 0.0
        %1051 = vmatpush1.xpose.msra.mxu0 0.0
        %1052 = vmatprep.subr.mxu0 0.0
        %1053 = vmatpush1.xpose.msra.mxu0 0.0
        %1054 = vmatprep.subr.mxu0 0.0
        %1055 = vmatpush1.xpose.msra.mxu0 0.0
        %1056 = vmatprep.subr.mxu0 0.0
        %1057 = vmatpush1.xpose.msra.mxu0 0.0
        %1058 = vmatprep.subr.mxu0 0.0
        %1059 = vmatpush1.xpose.msra.mxu0 0.0
        %1060 = vmatprep.subr.mxu0 0.0
        %1061 = vmatpush1.xpose.msra.mxu0 0.0
        %1062 = vmatprep.subr.mxu0 0.0
        %1063 = vmatpush1.xpose.msra.mxu0 0.0
        %1064 = vmatprep.subr.mxu0 0.0
        %1065 = vmatpush1.xpose.msra.mxu0 0.0
        %1066 = vmatprep.subr.mxu0 0.0
        %1067 = vmatpush1.xpose.msra.mxu0 0.0
        %1068 = vmatprep.subr.mxu0 0.0
        %1069 = vmatpush1.xpose.msra.mxu0 0.0
        %1070 = vmatprep.subr.mxu0 0.0
        %1071 = vmatpush1.xpose.msra.mxu0 0.0
        %1072 = vmatprep.subr.mxu0 0.0
        %1073 = vmatpush1.xpose.msra.mxu0 0.0
        %1074 = vmatprep.subr.mxu0 0.0
        %1075 = vmatpush1.xpose.msra.mxu0 0.0
        %1076 = vmatprep.subr.mxu0 0.0
        %1077 = vmatpush1.xpose.msra.mxu0 0.0
        %1078 = vmatprep.subr.mxu0 0.0
        %1079 = vmatpush1.xpose.msra.mxu0 0.0
        %1080 = vmatprep.subr.mxu0 0.0
        %1081 = vmatpush1.xpose.msra.mxu0 0.0
        %1082 = vmatprep.mubr.f32.mxu0 0.0
        %1083 = vmatmul.mubr.f32.gmra.mrb[0].mxu0 %v1014
        %v1084 = vpop.f32.mrb[0].mxu0
        %v1085 = vadd.f32 0.0, %v1084
        %v1086 = vpop.f32.mrb[0].mxu0
        %1087 = vdwg.mxu0
        %v1088 = vsel %vm742, %v1085, -inf
        %1089 = vmax.xlane.f32.xlu0 %v1088
        %v1090 = vpop.xlane.xlu0 %1089
        %v1091 = vsub.f32 %v1085, %v1090
        %v1092 = vmul.f32 %v1091, 1.442695
        %v1093 = vpow.pop %v1092
        %v1094 = vsel %vm742, %v1093, 0.0
        %1095 = vadd.xlane.f32.xlu0 %v1094
        %v1096 = vpop.xlane.xlu0 %1095
        %v1097 = vrcp.pop %v1096
        %1098 = vrot.lane.b32.xlu0 %v1006, 56
        %v1099 = vpop.permute.xlu0 %1098
        %v1102 = vsel %vm742, %v1093, 0
        %1104 = vmatprep.subr.mxu0 0.0
        %1105 = vmatpush1.msra.mxu0 %v1099
        %1106 = vmatprep.subr.mxu0 0.0
        %1107 = vmatpush1.msra.mxu0 0.0
        %1108 = vmatprep.subr.mxu0 0.0
        %1109 = vmatpush1.msra.mxu0 0.0
        %1110 = vmatprep.subr.mxu0 0.0
        %1111 = vmatpush1.msra.mxu0 0.0
        %1112 = vmatprep.subr.mxu0 0.0
        %1113 = vmatpush1.msra.mxu0 0.0
        %1114 = vmatprep.subr.mxu0 0.0
        %1115 = vmatpush1.msra.mxu0 0.0
        %1116 = vmatprep.subr.mxu0 0.0
        %1117 = vmatpush1.msra.mxu0 0.0
        %1118 = vmatprep.subr.mxu0 0.0
        %1119 = vmatpush1.msra.mxu0 0.0
        %1120 = vmatprep.subr.mxu0 0.0
        %1121 = vmatpush1.msra.mxu0 0.0
        %1122 = vmatprep.subr.mxu0 0.0
        %1123 = vmatpush1.msra.mxu0 0.0
        %1124 = vmatprep.subr.mxu0 0.0
        %1125 = vmatpush1.msra.mxu0 0.0
        %1126 = vmatprep.subr.mxu0 0.0
        %1127 = vmatpush1.msra.mxu0 0.0
        %1128 = vmatprep.subr.mxu0 0.0
        %1129 = vmatpush1.msra.mxu0 0.0
        %1130 = vmatprep.subr.mxu0 0.0
        %1131 = vmatpush1.msra.mxu0 0.0
        %1132 = vmatprep.subr.mxu0 0.0
        %1133 = vmatpush1.msra.mxu0 0.0
        %1134 = vmatprep.subr.mxu0 0.0
        %1135 = vmatpush1.msra.mxu0 0.0
        %1136 = vmatprep.subr.mxu0 0.0
        %1137 = vmatpush1.msra.mxu0 0.0
        %1138 = vmatprep.subr.mxu0 0.0
        %1139 = vmatpush1.msra.mxu0 0.0
        %1140 = vmatprep.subr.mxu0 0.0
        %1141 = vmatpush1.msra.mxu0 0.0
        %1142 = vmatprep.subr.mxu0 0.0
        %1143 = vmatpush1.msra.mxu0 0.0
        %1144 = vmatprep.subr.mxu0 0.0
        %1145 = vmatpush1.msra.mxu0 0.0
        %1146 = vmatprep.subr.mxu0 0.0
        %1147 = vmatpush1.msra.mxu0 0.0
        %1148 = vmatprep.subr.mxu0 0.0
        %1149 = vmatpush1.msra.mxu0 0.0
        %1150 = vmatprep.subr.mxu0 0.0
        %1151 = vmatpush1.msra.mxu0 0.0
        %1152 = vmatprep.subr.mxu0 0.0
        %1153 = vmatpush1.msra.mxu0 0.0
        %1154 = vmatprep.subr.mxu0 0.0
        %1155 = vmatpush1.msra.mxu0 0.0
        %1156 = vmatprep.subr.mxu0 0.0
        %1157 = vmatpush1.msra.mxu0 0.0
        %1158 = vmatprep.subr.mxu0 0.0
        %1159 = vmatpush1.msra.mxu0 0.0
        %1160 = vmatprep.subr.mxu0 0.0
        %1161 = vmatpush1.msra.mxu0 0.0
        %1162 = vmatprep.subr.mxu0 0.0
        %1163 = vmatpush1.msra.mxu0 0.0
        %1164 = vmatprep.subr.mxu0 0.0
        %1165 = vmatpush1.msra.mxu0 0.0
        %1166 = vmatprep.subr.mxu0 0.0
        %1167 = vmatpush1.msra.mxu0 0.0
        %1168 = vmatprep.mubr.f32.mxu0 0.0
        %1169 = vmatmul.mubr.f32.gmra.mrb[0].mxu0 %v1102
        %v1170 = vpop.f32.mrb[0].mxu0
        %v1171 = vadd.f32 0.0, %v1170
        %v1172 = vpop.f32.mrb[0].mxu0
        %1173 = vdwg.mxu0
        %v1174 = vmul.f32 %v1171, %v1097
        %1176 = vrot.lane.b32.xlu0 %v1174, 8
        %v1177 = vpop.permute.xlu0 %1176
        %vm1179 = vcmask 97344
        %1180 = vst.msk [vmem:[#allocation3] sm:$0xff] %vm1179, %v1177
        %v1181 = vld [vmem:[#allocation2] sm:$0xff]
        %v1182 = vmul.f32 %v1181, 0.5
        %1184 = vrot.lane.b32.xlu0 %v1182, 116
        %v1185 = vpop.permute.xlu0 %1184
        %1187 = vrot.lane.b32.xlu0 %v1181, 84
        %v1188 = vpop.permute.xlu0 %1187
        %v1189 = vsel %vm666, %v1185, 0
        %v1191 = vsel %vm666, %v1188, 0
        %1193 = vmatprep.subr.mxu0 0.0
        %1194 = vmatpush1.xpose.msra.mxu0 %v1191
        %1195 = vmatprep.subr.mxu0 0.0
        %1196 = vmatpush1.xpose.msra.mxu0 0.0
        %1197 = vmatprep.subr.mxu0 0.0
        %1198 = vmatpush1.xpose.msra.mxu0 0.0
        %1199 = vmatprep.subr.mxu0 0.0
        %1200 = vmatpush1.xpose.msra.mxu0 0.0
        %1201 = vmatprep.subr.mxu0 0.0
        %1202 = vmatpush1.xpose.msra.mxu0 0.0
        %1203 = vmatprep.subr.mxu0 0.0
        %1204 = vmatpush1.xpose.msra.mxu0 0.0
        %1205 = vmatprep.subr.mxu0 0.0
        %1206 = vmatpush1.xpose.msra.mxu0 0.0
        %1207 = vmatprep.subr.mxu0 0.0
        %1208 = vmatpush1.xpose.msra.mxu0 0.0
        %1209 = vmatprep.subr.mxu0 0.0
        %1210 = vmatpush1.xpose.msra.mxu0 0.0
        %1211 = vmatprep.subr.mxu0 0.0
        %1212 = vmatpush1.xpose.msra.mxu0 0.0
        %1213 = vmatprep.subr.mxu0 0.0
        %1214 = vmatpush1.xpose.msra.mxu0 0.0
        %1215 = vmatprep.subr.mxu0 0.0
        %1216 = vmatpush1.xpose.msra.mxu0 0.0
        %1217 = vmatprep.subr.mxu0 0.0
        %1218 = vmatpush1.xpose.msra.mxu0 0.0
        %1219 = vmatprep.subr.mxu0 0.0
        %1220 = vmatpush1.xpose.msra.mxu0 0.0
        %1221 = vmatprep.subr.mxu0 0.0
        %1222 = vmatpush1.xpose.msra.mxu0 0.0
        %1223 = vmatprep.subr.mxu0 0.0
        %1224 = vmatpush1.xpose.msra.mxu0 0.0
        %1225 = vmatprep.subr.mxu0 0.0
        %1226 = vmatpush1.xpose.msra.mxu0 0.0
        %1227 = vmatprep.subr.mxu0 0.0
        %1228 = vmatpush1.xpose.msra.mxu0 0.0
        %1229 = vmatprep.subr.mxu0 0.0
        %1230 = vmatpush1.xpose.msra.mxu0 0.0
        %1231 = vmatprep.subr.mxu0 0.0
        %1232 = vmatpush1.xpose.msra.mxu0 0.0
        %1233 = vmatprep.subr.mxu0 0.0
        %1234 = vmatpush1.xpose.msra.mxu0 0.0
        %1235 = vmatprep.subr.mxu0 0.0
        %1236 = vmatpush1.xpose.msra.mxu0 0.0
        %1237 = vmatprep.subr.mxu0 0.0
        %1238 = vmatpush1.xpose.msra.mxu0 0.0
        %1239 = vmatprep.subr.mxu0 0.0
        %1240 = vmatpush1.xpose.msra.mxu0 0.0
        %1241 = vmatprep.subr.mxu0 0.0
        %1242 = vmatpush1.xpose.msra.mxu0 0.0
        %1243 = vmatprep.subr.mxu0 0.0
        %1244 = vmatpush1.xpose.msra.mxu0 0.0
        %1245 = vmatprep.subr.mxu0 0.0
        %1246 = vmatpush1.xpose.msra.mxu0 0.0
        %1247 = vmatprep.subr.mxu0 0.0
        %1248 = vmatpush1.xpose.msra.mxu0 0.0
        %1249 = vmatprep.subr.mxu0 0.0
        %1250 = vmatpush1.xpose.msra.mxu0 0.0
        %1251 = vmatprep.subr.mxu0 0.0
        %1252 = vmatpush1.xpose.msra.mxu0 0.0
        %1253 = vmatprep.subr.mxu0 0.0
        %1254 = vmatpush1.xpose.msra.mxu0 0.0
        %1255 = vmatprep.subr.mxu0 0.0
        %1256 = vmatpush1.xpose.msra.mxu0 0.0
        %1257 = vmatprep.mubr.f32.mxu0 0.0
        %1258 = vmatmul.mubr.f32.gmra.mrb[0].mxu0 %v1189
        %v1259 = vpop.f32.mrb[0].mxu0
        %v1260 = vadd.f32 0.0, %v1259
        %v1261 = vpop.f32.mrb[0].mxu0
        %1262 = vdwg.mxu0
        %v1263 = vsel %vm742, %v1260, -inf
        %1264 = vmax.xlane.f32.xlu0 %v1263
        %v1265 = vpop.xlane.xlu0 %1264
        %v1266 = vsub.f32 %v1260, %v1265
        %v1267 = vmul.f32 %v1266, 1.442695
        %v1268 = vpow.pop %v1267
        %v1269 = vsel %vm742, %v1268, 0.0
        %1270 = vadd.xlane.f32.xlu0 %v1269
        %v1271 = vpop.xlane.xlu0 %1270
        %v1272 = vrcp.pop %v1271
        %1273 = vrot.lane.b32.xlu0 %v1181, 52
        %v1274 = vpop.permute.xlu0 %1273
        %v1277 = vsel %vm742, %v1268, 0
        %1279 = vmatprep.subr.mxu0 0.0
        %1280 = vmatpush1.msra.mxu0 %v1274
        %1281 = vmatprep.subr.mxu0 0.0
        %1282 = vmatpush1.msra.mxu0 0.0
        %1283 = vmatprep.subr.mxu0 0.0
        %1284 = vmatpush1.msra.mxu0 0.0
        %1285 = vmatprep.subr.mxu0 0.0
        %1286 = vmatpush1.msra.mxu0 0.0
        %1287 = vmatprep.subr.mxu0 0.0
        %1288 = vmatpush1.msra.mxu0 0.0
        %1289 = vmatprep.subr.mxu0 0.0
        %1290 = vmatpush1.msra.mxu0 0.0
        %1291 = vmatprep.subr.mxu0 0.0
        %1292 = vmatpush1.msra.mxu0 0.0
        %1293 = vmatprep.subr.mxu0 0.0
        %1294 = vmatpush1.msra.mxu0 0.0
        %1295 = vmatprep.subr.mxu0 0.0
        %1296 = vmatpush1.msra.mxu0 0.0
        %1297 = vmatprep.subr.mxu0 0.0
        %1298 = vmatpush1.msra.mxu0 0.0
        %1299 = vmatprep.subr.mxu0 0.0
        %1300 = vmatpush1.msra.mxu0 0.0
        %1301 = vmatprep.subr.mxu0 0.0
        %1302 = vmatpush1.msra.mxu0 0.0
        %1303 = vmatprep.subr.mxu0 0.0
        %1304 = vmatpush1.msra.mxu0 0.0
        %1305 = vmatprep.subr.mxu0 0.0
        %1306 = vmatpush1.msra.mxu0 0.0
        %1307 = vmatprep.subr.mxu0 0.0
        %1308 = vmatpush1.msra.mxu0 0.0
        %1309 = vmatprep.subr.mxu0 0.0
        %1310 = vmatpush1.msra.mxu0 0.0
        %1311 = vmatprep.subr.mxu0 0.0
        %1312 = vmatpush1.msra.mxu0 0.0
        %1313 = vmatprep.subr.mxu0 0.0
        %1314 = vmatpush1.msra.mxu0 0.0
        %1315 = vmatprep.subr.mxu0 0.0
        %1316 = vmatpush1.msra.mxu0 0.0
        %1317 = vmatprep.subr.mxu0 0.0
        %1318 = vmatpush1.msra.mxu0 0.0
        %1319 = vmatprep.subr.mxu0 0.0
        %1320 = vmatpush1.msra.mxu0 0.0
        %1321 = vmatprep.subr.mxu0 0.0
        %1322 = vmatpush1.msra.mxu0 0.0
        %1323 = vmatprep.subr.mxu0 0.0
        %1324 = vmatpush1.msra.mxu0 0.0
        %1325 = vmatprep.subr.mxu0 0.0
        %1326 = vmatpush1.msra.mxu0 0.0
        %1327 = vmatprep.subr.mxu0 0.0
        %1328 = vmatpush1.msra.mxu0 0.0
        %1329 = vmatprep.subr.mxu0 0.0
        %1330 = vmatpush1.msra.mxu0 0.0
        %1331 = vmatprep.subr.mxu0 0.0
        %1332 = vmatpush1.msra.mxu0 0.0
        %1333 = vmatprep.subr.mxu0 0.0
        %1334 = vmatpush1.msra.mxu0 0.0
        %1335 = vmatprep.subr.mxu0 0.0
        %1336 = vmatpush1.msra.mxu0 0.0
        %1337 = vmatprep.subr.mxu0 0.0
        %1338 = vmatpush1.msra.mxu0 0.0
        %1339 = vmatprep.subr.mxu0 0.0
        %1340 = vmatpush1.msra.mxu0 0.0
        %1341 = vmatprep.subr.mxu0 0.0
        %1342 = vmatpush1.msra.mxu0 0.0
        %1343 = vmatprep.mubr.f32.mxu0 0.0
        %1344 = vmatmul.mubr.f32.gmra.mrb[0].mxu0 %v1277
        %v1345 = vpop.f32.mrb[0].mxu0
        %v1346 = vadd.f32 0.0, %v1345
        %v1347 = vpop.f32.mrb[0].mxu0
        %1348 = vdwg.mxu0
        %v1349 = vmul.f32 %v1346, %v1272
        %1351 = vrot.lane.b32.xlu0 %v1349, 12
        %v1352 = vpop.permute.xlu0 %1351
        %vm1354 = vcmask 130144
        %1355 = vst.msk [vmem:[#allocation3] sm:$0xff] %vm1354, %v1352
        %v1356 = vld [vmem:[#allocation2] sm:$0xff]
        %v1357 = vmul.f32 %v1356, 0.5
        %1359 = vrot.lane.b32.xlu0 %v1357, 112
        %v1360 = vpop.permute.xlu0 %1359
        %1362 = vrot.lane.b32.xlu0 %v1356, 80
        %v1363 = vpop.permute.xlu0 %1362
        %v1364 = vsel %vm666, %v1360, 0
        %v1366 = vsel %vm666, %v1363, 0
        %1368 = vmatprep.subr.mxu0 0.0
        %1369 = vmatpush1.xpose.msra.mxu0 %v1366
        %1370 = vmatprep.subr.mxu0 0.0
        %1371 = vmatpush1.xpose.msra.mxu0 0.0
        %1372 = vmatprep.subr.mxu0 0.0
        %1373 = vmatpush1.xpose.msra.mxu0 0.0
        %1374 = vmatprep.subr.mxu0 0.0
        %1375 = vmatpush1.xpose.msra.mxu0 0.0
        %1376 = vmatprep.subr.mxu0 0.0
        %1377 = vmatpush1.xpose.msra.mxu0 0.0
        %1378 = vmatprep.subr.mxu0 0.0
        %1379 = vmatpush1.xpose.msra.mxu0 0.0
        %1380 = vmatprep.subr.mxu0 0.0
        %1381 = vmatpush1.xpose.msra.mxu0 0.0
        %1382 = vmatprep.subr.mxu0 0.0
        %1383 = vmatpush1.xpose.msra.mxu0 0.0
        %1384 = vmatprep.subr.mxu0 0.0
        %1385 = vmatpush1.xpose.msra.mxu0 0.0
        %1386 = vmatprep.subr.mxu0 0.0
        %1387 = vmatpush1.xpose.msra.mxu0 0.0
        %1388 = vmatprep.subr.mxu0 0.0
        %1389 = vmatpush1.xpose.msra.mxu0 0.0
        %1390 = vmatprep.subr.mxu0 0.0
        %1391 = vmatpush1.xpose.msra.mxu0 0.0
        %1392 = vmatprep.subr.mxu0 0.0
        %1393 = vmatpush1.xpose.msra.mxu0 0.0
        %1394 = vmatprep.subr.mxu0 0.0
        %1395 = vmatpush1.xpose.msra.mxu0 0.0
        %1396 = vmatprep.subr.mxu0 0.0
        %1397 = vmatpush1.xpose.msra.mxu0 0.0
        %1398 = vmatprep.subr.mxu0 0.0
        %1399 = vmatpush1.xpose.msra.mxu0 0.0
        %1400 = vmatprep.subr.mxu0 0.0
        %1401 = vmatpush1.xpose.msra.mxu0 0.0
        %1402 = vmatprep.subr.mxu0 0.0
        %1403 = vmatpush1.xpose.msra.mxu0 0.0
        %1404 = vmatprep.subr.mxu0 0.0
        %1405 = vmatpush1.xpose.msra.mxu0 0.0
        %1406 = vmatprep.subr.mxu0 0.0
        %1407 = vmatpush1.xpose.msra.mxu0 0.0
        %1408 = vmatprep.subr.mxu0 0.0
        %1409 = vmatpush1.xpose.msra.mxu0 0.0
        %1410 = vmatprep.subr.mxu0 0.0
        %1411 = vmatpush1.xpose.msra.mxu0 0.0
        %1412 = vmatprep.subr.mxu0 0.0
        %1413 = vmatpush1.xpose.msra.mxu0 0.0
        %1414 = vmatprep.subr.mxu0 0.0
        %1415 = vmatpush1.xpose.msra.mxu0 0.0
        %1416 = vmatprep.subr.mxu0 0.0
        %1417 = vmatpush1.xpose.msra.mxu0 0.0
        %1418 = vmatprep.subr.mxu0 0.0
        %1419 = vmatpush1.xpose.msra.mxu0 0.0
        %1420 = vmatprep.subr.mxu0 0.0
        %1421 = vmatpush1.xpose.msra.mxu0 0.0
        %1422 = vmatprep.subr.mxu0 0.0
        %1423 = vmatpush1.xpose.msra.mxu0 0.0
        %1424 = vmatprep.subr.mxu0 0.0
        %1425 = vmatpush1.xpose.msra.mxu0 0.0
        %1426 = vmatprep.subr.mxu0 0.0
        %1427 = vmatpush1.xpose.msra.mxu0 0.0
        %1428 = vmatprep.subr.mxu0 0.0
        %1429 = vmatpush1.xpose.msra.mxu0 0.0
        %1430 = vmatprep.subr.mxu0 0.0
        %1431 = vmatpush1.xpose.msra.mxu0 0.0
        %1432 = vmatprep.mubr.f32.mxu0 0.0
        %1433 = vmatmul.mubr.f32.gmra.mrb[0].mxu0 %v1364
        %v1434 = vpop.f32.mrb[0].mxu0
        %v1435 = vadd.f32 0.0, %v1434
        %v1436 = vpop.f32.mrb[0].mxu0
        %1437 = vdwg.mxu0
        %v1438 = vsel %vm742, %v1435, -inf
        %1439 = vmax.xlane.f32.xlu0 %v1438
        %v1440 = vpop.xlane.xlu0 %1439
        %v1441 = vsub.f32 %v1435, %v1440
        %v1442 = vmul.f32 %v1441, 1.442695
        %v1443 = vpow.pop %v1442
        %v1444 = vsel %vm742, %v1443, 0.0
        %1445 = vadd.xlane.f32.xlu0 %v1444
        %v1446 = vpop.xlane.xlu0 %1445
        %v1447 = vrcp.pop %v1446
        %1448 = vrot.lane.b32.xlu0 %v1356, 48
        %v1449 = vpop.permute.xlu0 %1448
        %v1452 = vsel %vm742, %v1443, 0
        %1454 = vmatprep.subr.mxu0 0.0
        %1455 = vmatpush1.msra.mxu0 %v1449
        %1456 = vmatprep.subr.mxu0 0.0
        %1457 = vmatpush1.msra.mxu0 0.0
        %1458 = vmatprep.subr.mxu0 0.0
        %1459 = vmatpush1.msra.mxu0 0.0
        %1460 = vmatprep.subr.mxu0 0.0
        %1461 = vmatpush1.msra.mxu0 0.0
        %1462 = vmatprep.subr.mxu0 0.0
        %1463 = vmatpush1.msra.mxu0 0.0
        %1464 = vmatprep.subr.mxu0 0.0
        %1465 = vmatpush1.msra.mxu0 0.0
        %1466 = vmatprep.subr.mxu0 0.0
        %1467 = vmatpush1.msra.mxu0 0.0
        %1468 = vmatprep.subr.mxu0 0.0
        %1469 = vmatpush1.msra.mxu0 0.0
        %1470 = vmatprep.subr.mxu0 0.0
        %1471 = vmatpush1.msra.mxu0 0.0
        %1472 = vmatprep.subr.mxu0 0.0
        %1473 = vmatpush1.msra.mxu0 0.0
        %1474 = vmatprep.subr.mxu0 0.0
        %1475 = vmatpush1.msra.mxu0 0.0
        %1476 = vmatprep.subr.mxu0 0.0
        %1477 = vmatpush1.msra.mxu0 0.0
        %1478 = vmatprep.subr.mxu0 0.0
        %1479 = vmatpush1.msra.mxu0 0.0
        %1480 = vmatprep.subr.mxu0 0.0
        %1481 = vmatpush1.msra.mxu0 0.0
        %1482 = vmatprep.subr.mxu0 0.0
        %1483 = vmatpush1.msra.mxu0 0.0
        %1484 = vmatprep.subr.mxu0 0.0
        %1485 = vmatpush1.msra.mxu0 0.0
        %1486 = vmatprep.subr.mxu0 0.0
        %1487 = vmatpush1.msra.mxu0 0.0
        %1488 = vmatprep.subr.mxu0 0.0
        %1489 = vmatpush1.msra.mxu0 0.0
        %1490 = vmatprep.subr.mxu0 0.0
        %1491 = vmatpush1.msra.mxu0 0.0
        %1492 = vmatprep.subr.mxu0 0.0
        %1493 = vmatpush1.msra.mxu0 0.0
        %1494 = vmatprep.subr.mxu0 0.0
        %1495 = vmatpush1.msra.mxu0 0.0
        %1496 = vmatprep.subr.mxu0 0.0
        %1497 = vmatpush1.msra.mxu0 0.0
        %1498 = vmatprep.subr.mxu0 0.0
        %1499 = vmatpush1.msra.mxu0 0.0
        %1500 = vmatprep.subr.mxu0 0.0
        %1501 = vmatpush1.msra.mxu0 0.0
        %1502 = vmatprep.subr.mxu0 0.0
        %1503 = vmatpush1.msra.mxu0 0.0
        %1504 = vmatprep.subr.mxu0 0.0
        %1505 = vmatpush1.msra.mxu0 0.0
        %1506 = vmatprep.subr.mxu0 0.0
        %1507 = vmatpush1.msra.mxu0 0.0
        %1508 = vmatprep.subr.mxu0 0.0
        %1509 = vmatpush1.msra.mxu0 0.0
        %1510 = vmatprep.subr.mxu0 0.0
        %1511 = vmatpush1.msra.mxu0 0.0
        %1512 = vmatprep.subr.mxu0 0.0
        %1513 = vmatpush1.msra.mxu0 0.0
        %1514 = vmatprep.subr.mxu0 0.0
        %1515 = vmatpush1.msra.mxu0 0.0
        %1516 = vmatprep.subr.mxu0 0.0
        %1517 = vmatpush1.msra.mxu0 0.0
        %1518 = vmatprep.mubr.f32.mxu0 0.0
        %1519 = vmatmul.mubr.f32.gmra.mrb[0].mxu0 %v1452
        %v1520 = vpop.f32.mrb[0].mxu0
        %v1521 = vadd.f32 0.0, %v1520
        %v1522 = vpop.f32.mrb[0].mxu0
        %1523 = vdwg.mxu0
        %v1524 = vmul.f32 %v1521, %v1447
        %1526 = vrot.lane.b32.xlu0 %v1524, 16
        %v1527 = vpop.permute.xlu0 %1526
        %vm1529 = vcmask 162944
        %1530 = vst.msk [vmem:[#allocation3] sm:$0xff] %vm1529, %v1527
        %v1531 = vld [vmem:[#allocation2] sm:$0xff]
        %v1532 = vmul.f32 %v1531, 0.5
        %1534 = vrot.lane.b32.xlu0 %v1532, 108
        %v1535 = vpop.permute.xlu0 %1534
        %1537 = vrot.lane.b32.xlu0 %v1531, 76
        %v1538 = vpop.permute.xlu0 %1537
        %v1539 = vsel %vm666, %v1535, 0
        %v1541 = vsel %vm666, %v1538, 0
        %1543 = vmatprep.subr.mxu0 0.0
        %1544 = vmatpush1.xpose.msra.mxu0 %v1541
        %1545 = vmatprep.subr.mxu0 0.0
        %1546 = vmatpush1.xpose.msra.mxu0 0.0
        %1547 = vmatprep.subr.mxu0 0.0
        %1548 = vmatpush1.xpose.msra.mxu0 0.0
        %1549 = vmatprep.subr.mxu0 0.0
        %1550 = vmatpush1.xpose.msra.mxu0 0.0
        %1551 = vmatprep.subr.mxu0 0.0
        %1552 = vmatpush1.xpose.msra.mxu0 0.0
        %1553 = vmatprep.subr.mxu0 0.0
        %1554 = vmatpush1.xpose.msra.mxu0 0.0
        %1555 = vmatprep.subr.mxu0 0.0
        %1556 = vmatpush1.xpose.msra.mxu0 0.0
        %1557 = vmatprep.subr.mxu0 0.0
        %1558 = vmatpush1.xpose.msra.mxu0 0.0
        %1559 = vmatprep.subr.mxu0 0.0
        %1560 = vmatpush1.xpose.msra.mxu0 0.0
        %1561 = vmatprep.subr.mxu0 0.0
        %1562 = vmatpush1.xpose.msra.mxu0 0.0
        %1563 = vmatprep.subr.mxu0 0.0
        %1564 = vmatpush1.xpose.msra.mxu0 0.0
        %1565 = vmatprep.subr.mxu0 0.0
        %1566 = vmatpush1.xpose.msra.mxu0 0.0
        %1567 = vmatprep.subr.mxu0 0.0
        %1568 = vmatpush1.xpose.msra.mxu0 0.0
        %1569 = vmatprep.subr.mxu0 0.0
        %1570 = vmatpush1.xpose.msra.mxu0 0.0
        %1571 = vmatprep.subr.mxu0 0.0
        %1572 = vmatpush1.xpose.msra.mxu0 0.0
        %1573 = vmatprep.subr.mxu0 0.0
        %1574 = vmatpush1.xpose.msra.mxu0 0.0
        %1575 = vmatprep.subr.mxu0 0.0
        %1576 = vmatpush1.xpose.msra.mxu0 0.0
        %1577 = vmatprep.subr.mxu0 0.0
        %1578 = vmatpush1.xpose.msra.mxu0 0.0
        %1579 = vmatprep.subr.mxu0 0.0
        %1580 = vmatpush1.xpose.msra.mxu0 0.0
        %1581 = vmatprep.subr.mxu0 0.0
        %1582 = vmatpush1.xpose.msra.mxu0 0.0
        %1583 = vmatprep.subr.mxu0 0.0
        %1584 = vmatpush1.xpose.msra.mxu0 0.0
        %1585 = vmatprep.subr.mxu0 0.0
        %1586 = vmatpush1.xpose.msra.mxu0 0.0
        %1587 = vmatprep.subr.mxu0 0.0
        %1588 = vmatpush1.xpose.msra.mxu0 0.0
        %1589 = vmatprep.subr.mxu0 0.0
        %1590 = vmatpush1.xpose.msra.mxu0 0.0
        %1591 = vmatprep.subr.mxu0 0.0
        %1592 = vmatpush1.xpose.msra.mxu0 0.0
        %1593 = vmatprep.subr.mxu0 0.0
        %1594 = vmatpush1.xpose.msra.mxu0 0.0
        %1595 = vmatprep.subr.mxu0 0.0
        %1596 = vmatpush1.xpose.msra.mxu0 0.0
        %1597 = vmatprep.subr.mxu0 0.0
        %1598 = vmatpush1.xpose.msra.mxu0 0.0
        %1599 = vmatprep.subr.mxu0 0.0
        %1600 = vmatpush1.xpose.msra.mxu0 0.0
        %1601 = vmatprep.subr.mxu0 0.0
        %1602 = vmatpush1.xpose.msra.mxu0 0.0
        %1603 = vmatprep.subr.mxu0 0.0
        %1604 = vmatpush1.xpose.msra.mxu0 0.0
        %1605 = vmatprep.subr.mxu0 0.0
        %1606 = vmatpush1.xpose.msra.mxu0 0.0
        %1607 = vmatprep.mubr.f32.mxu0 0.0
        %1608 = vmatmul.mubr.f32.gmra.mrb[0].mxu0 %v1539
        %v1609 = vpop.f32.mrb[0].mxu0
        %v1610 = vadd.f32 0.0, %v1609
        %v1611 = vpop.f32.mrb[0].mxu0
        %1612 = vdwg.mxu0
        %v1613 = vsel %vm742, %v1610, -inf
        %1614 = vmax.xlane.f32.xlu0 %v1613
        %v1615 = vpop.xlane.xlu0 %1614
        %v1616 = vsub.f32 %v1610, %v1615
        %v1617 = vmul.f32 %v1616, 1.442695
        %v1618 = vpow.pop %v1617
        %v1619 = vsel %vm742, %v1618, 0.0
        %1620 = vadd.xlane.f32.xlu0 %v1619
        %v1621 = vpop.xlane.xlu0 %1620
        %v1622 = vrcp.pop %v1621
        %1623 = vrot.lane.b32.xlu0 %v1531, 44
        %v1624 = vpop.permute.xlu0 %1623
        %v1627 = vsel %vm742, %v1618, 0
        %1629 = vmatprep.subr.mxu0 0.0
        %1630 = vmatpush1.msra.mxu0 %v1624
        %1631 = vmatprep.subr.mxu0 0.0
        %1632 = vmatpush1.msra.mxu0 0.0
        %1633 = vmatprep.subr.mxu0 0.0
        %1634 = vmatpush1.msra.mxu0 0.0
        %1635 = vmatprep.subr.mxu0 0.0
        %1636 = vmatpush1.msra.mxu0 0.0
        %1637 = vmatprep.subr.mxu0 0.0
        %1638 = vmatpush1.msra.mxu0 0.0
        %1639 = vmatprep.subr.mxu0 0.0
        %1640 = vmatpush1.msra.mxu0 0.0
        %1641 = vmatprep.subr.mxu0 0.0
        %1642 = vmatpush1.msra.mxu0 0.0
        %1643 = vmatprep.subr.mxu0 0.0
        %1644 = vmatpush1.msra.mxu0 0.0
        %1645 = vmatprep.subr.mxu0 0.0
        %1646 = vmatpush1.msra.mxu0 0.0
        %1647 = vmatprep.subr.mxu0 0.0
        %1648 = vmatpush1.msra.mxu0 0.0
        %1649 = vmatprep.subr.mxu0 0.0
        %1650 = vmatpush1.msra.mxu0 0.0
        %1651 = vmatprep.subr.mxu0 0.0
        %1652 = vmatpush1.msra.mxu0 0.0
        %1653 = vmatprep.subr.mxu0 0.0
        %1654 = vmatpush1.msra.mxu0 0.0
        %1655 = vmatprep.subr.mxu0 0.0
        %1656 = vmatpush1.msra.mxu0 0.0
        %1657 = vmatprep.subr.mxu0 0.0
        %1658 = vmatpush1.msra.mxu0 0.0
        %1659 = vmatprep.subr.mxu0 0.0
        %1660 = vmatpush1.msra.mxu0 0.0
        %1661 = vmatprep.subr.mxu0 0.0
        %1662 = vmatpush1.msra.mxu0 0.0
        %1663 = vmatprep.subr.mxu0 0.0
        %1664 = vmatpush1.msra.mxu0 0.0
        %1665 = vmatprep.subr.mxu0 0.0
        %1666 = vmatpush1.msra.mxu0 0.0
        %1667 = vmatprep.subr.mxu0 0.0
        %1668 = vmatpush1.msra.mxu0 0.0
        %1669 = vmatprep.subr.mxu0 0.0
        %1670 = vmatpush1.msra.mxu0 0.0
        %1671 = vmatprep.subr.mxu0 0.0
        %1672 = vmatpush1.msra.mxu0 0.0
        %1673 = vmatprep.subr.mxu0 0.0
        %1674 = vmatpush1.msra.mxu0 0.0
        %1675 = vmatprep.subr.mxu0 0.0
        %1676 = vmatpush1.msra.mxu0 0.0
        %1677 = vmatprep.subr.mxu0 0.0
        %1678 = vmatpush1.msra.mxu0 0.0
        %1679 = vmatprep.subr.mxu0 0.0
        %1680 = vmatpush1.msra.mxu0 0.0
        %1681 = vmatprep.subr.mxu0 0.0
        %1682 = vmatpush1.msra.mxu0 0.0
        %1683 = vmatprep.subr.mxu0 0.0
        %1684 = vmatpush1.msra.mxu0 0.0
        %1685 = vmatprep.subr.mxu0 0.0
        %1686 = vmatpush1.msra.mxu0 0.0
        %1687 = vmatprep.subr.mxu0 0.0
        %1688 = vmatpush1.msra.mxu0 0.0
        %1689 = vmatprep.subr.mxu0 0.0
        %1690 = vmatpush1.msra.mxu0 0.0
        %1691 = vmatprep.subr.mxu0 0.0
        %1692 = vmatpush1.msra.mxu0 0.0
        %1693 = vmatprep.mubr.f32.mxu0 0.0
        %1694 = vmatmul.mubr.f32.gmra.mrb[0].mxu0 %v1627
        %v1695 = vpop.f32.mrb[0].mxu0
        %v1696 = vadd.f32 0.0, %v1695
        %v1697 = vpop.f32.mrb[0].mxu0
        %1698 = vdwg.mxu0
        %v1699 = vmul.f32 %v1696, %v1622
        %1701 = vrot.lane.b32.xlu0 %v1699, 20
        %v1702 = vpop.permute.xlu0 %1701
        %vm1704 = vcmask 195744
        %1705 = vst.msk [vmem:[#allocation3] sm:$0xff] %vm1704, %v1702
        %v1706 = vld [vmem:[#allocation2] sm:$0xff]
        %v1707 = vmul.f32 %v1706, 0.5
        %1709 = vrot.lane.b32.xlu0 %v1707, 104
        %v1710 = vpop.permute.xlu0 %1709
        %1712 = vrot.lane.b32.xlu0 %v1706, 72
        %v1713 = vpop.permute.xlu0 %1712
        %v1714 = vsel %vm666, %v1710, 0
        %v1716 = vsel %vm666, %v1713, 0
        %1718 = vmatprep.subr.mxu0 0.0
        %1719 = vmatpush1.xpose.msra.mxu0 %v1716
        %1720 = vmatprep.subr.mxu0 0.0
        %1721 = vmatpush1.xpose.msra.mxu0 0.0
        %1722 = vmatprep.subr.mxu0 0.0
        %1723 = vmatpush1.xpose.msra.mxu0 0.0
        %1724 = vmatprep.subr.mxu0 0.0
        %1725 = vmatpush1.xpose.msra.mxu0 0.0
        %1726 = vmatprep.subr.mxu0 0.0
        %1727 = vmatpush1.xpose.msra.mxu0 0.0
        %1728 = vmatprep.subr.mxu0 0.0
        %1729 = vmatpush1.xpose.msra.mxu0 0.0
        %1730 = vmatprep.subr.mxu0 0.0
        %1731 = vmatpush1.xpose.msra.mxu0 0.0
        %1732 = vmatprep.subr.mxu0 0.0
        %1733 = vmatpush1.xpose.msra.mxu0 0.0
        %1734 = vmatprep.subr.mxu0 0.0
        %1735 = vmatpush1.xpose.msra.mxu0 0.0
        %1736 = vmatprep.subr.mxu0 0.0
        %1737 = vmatpush1.xpose.msra.mxu0 0.0
        %1738 = vmatprep.subr.mxu0 0.0
        %1739 = vmatpush1.xpose.msra.mxu0 0.0
        %1740 = vmatprep.subr.mxu0 0.0
        %1741 = vmatpush1.xpose.msra.mxu0 0.0
        %1742 = vmatprep.subr.mxu0 0.0
        %1743 = vmatpush1.xpose.msra.mxu0 0.0
        %1744 = vmatprep.subr.mxu0 0.0
        %1745 = vmatpush1.xpose.msra.mxu0 0.0
        %1746 = vmatprep.subr.mxu0 0.0
        %1747 = vmatpush1.xpose.msra.mxu0 0.0
        %1748 = vmatprep.subr.mxu0 0.0
        %1749 = vmatpush1.xpose.msra.mxu0 0.0
        %1750 = vmatprep.subr.mxu0 0.0
        %1751 = vmatpush1.xpose.msra.mxu0 0.0
        %1752 = vmatprep.subr.mxu0 0.0
        %1753 = vmatpush1.xpose.msra.mxu0 0.0
        %1754 = vmatprep.subr.mxu0 0.0
        %1755 = vmatpush1.xpose.msra.mxu0 0.0
        %1756 = vmatprep.subr.mxu0 0.0
        %1757 = vmatpush1.xpose.msra.mxu0 0.0
        %1758 = vmatprep.subr.mxu0 0.0
        %1759 = vmatpush1.xpose.msra.mxu0 0.0
        %1760 = vmatprep.subr.mxu0 0.0
        %1761 = vmatpush1.xpose.msra.mxu0 0.0
        %1762 = vmatprep.subr.mxu0 0.0
        %1763 = vmatpush1.xpose.msra.mxu0 0.0
        %1764 = vmatprep.subr.mxu0 0.0
        %1765 = vmatpush1.xpose.msra.mxu0 0.0
        %1766 = vmatprep.subr.mxu0 0.0
        %1767 = vmatpush1.xpose.msra.mxu0 0.0
        %1768 = vmatprep.subr.mxu0 0.0
        %1769 = vmatpush1.xpose.msra.mxu0 0.0
        %1770 = vmatprep.subr.mxu0 0.0
        %1771 = vmatpush1.xpose.msra.mxu0 0.0
        %1772 = vmatprep.subr.mxu0 0.0
        %1773 = vmatpush1.xpose.msra.mxu0 0.0
        %1774 = vmatprep.subr.mxu0 0.0
        %1775 = vmatpush1.xpose.msra.mxu0 0.0
        %1776 = vmatprep.subr.mxu0 0.0
        %1777 = vmatpush1.xpose.msra.mxu0 0.0
        %1778 = vmatprep.subr.mxu0 0.0
        %1779 = vmatpush1.xpose.msra.mxu0 0.0
        %1780 = vmatprep.subr.mxu0 0.0
        %1781 = vmatpush1.xpose.msra.mxu0 0.0
        %1782 = vmatprep.mubr.f32.mxu0 0.0
        %1783 = vmatmul.mubr.f32.gmra.mrb[0].mxu0 %v1714
        %v1784 = vpop.f32.mrb[0].mxu0
        %v1785 = vadd.f32 0.0, %v1784
        %v1786 = vpop.f32.mrb[0].mxu0
        %1787 = vdwg.mxu0
        %v1788 = vsel %vm742, %v1785, -inf
        %1789 = vmax.xlane.f32.xlu0 %v1788
        %v1790 = vpop.xlane.xlu0 %1789
        %v1791 = vsub.f32 %v1785, %v1790
        %v1792 = vmul.f32 %v1791, 1.442695
        %v1793 = vpow.pop %v1792
        %v1794 = vsel %vm742, %v1793, 0.0
        %1795 = vadd.xlane.f32.xlu0 %v1794
        %v1796 = vpop.xlane.xlu0 %1795
        %v1797 = vrcp.pop %v1796
        %1798 = vrot.lane.b32.xlu0 %v1706, 40
        %v1799 = vpop.permute.xlu0 %1798
        %v1802 = vsel %vm742, %v1793, 0
        %1804 = vmatprep.subr.mxu0 0.0
        %1805 = vmatpush1.msra.mxu0 %v1799
        %1806 = vmatprep.subr.mxu0 0.0
        %1807 = vmatpush1.msra.mxu0 0.0
        %1808 = vmatprep.subr.mxu0 0.0
        %1809 = vmatpush1.msra.mxu0 0.0
        %1810 = vmatprep.subr.mxu0 0.0
        %1811 = vmatpush1.msra.mxu0 0.0
        %1812 = vmatprep.subr.mxu0 0.0
        %1813 = vmatpush1.msra.mxu0 0.0
        %1814 = vmatprep.subr.mxu0 0.0
        %1815 = vmatpush1.msra.mxu0 0.0
        %1816 = vmatprep.subr.mxu0 0.0
        %1817 = vmatpush1.msra.mxu0 0.0
        %1818 = vmatprep.subr.mxu0 0.0
        %1819 = vmatpush1.msra.mxu0 0.0
        %1820 = vmatprep.subr.mxu0 0.0
        %1821 = vmatpush1.msra.mxu0 0.0
        %1822 = vmatprep.subr.mxu0 0.0
        %1823 = vmatpush1.msra.mxu0 0.0
        %1824 = vmatprep.subr.mxu0 0.0
        %1825 = vmatpush1.msra.mxu0 0.0
        %1826 = vmatprep.subr.mxu0 0.0
        %1827 = vmatpush1.msra.mxu0 0.0
        %1828 = vmatprep.subr.mxu0 0.0
        %1829 = vmatpush1.msra.mxu0 0.0
        %1830 = vmatprep.subr.mxu0 0.0
        %1831 = vmatpush1.msra.mxu0 0.0
        %1832 = vmatprep.subr.mxu0 0.0
        %1833 = vmatpush1.msra.mxu0 0.0
        %1834 = vmatprep.subr.mxu0 0.0
        %1835 = vmatpush1.msra.mxu0 0.0
        %1836 = vmatprep.subr.mxu0 0.0
        %1837 = vmatpush1.msra.mxu0 0.0
        %1838 = vmatprep.subr.mxu0 0.0
        %1839 = vmatpush1.msra.mxu0 0.0
        %1840 = vmatprep.subr.mxu0 0.0
        %1841 = vmatpush1.msra.mxu0 0.0
        %1842 = vmatprep.subr.mxu0 0.0
        %1843 = vmatpush1.msra.mxu0 0.0
        %1844 = vmatprep.subr.mxu0 0.0
        %1845 = vmatpush1.msra.mxu0 0.0
        %1846 = vmatprep.subr.mxu0 0.0
        %1847 = vmatpush1.msra.mxu0 0.0
        %1848 = vmatprep.subr.mxu0 0.0
        %1849 = vmatpush1.msra.mxu0 0.0
        %1850 = vmatprep.subr.mxu0 0.0
        %1851 = vmatpush1.msra.mxu0 0.0
        %1852 = vmatprep.subr.mxu0 0.0
        %1853 = vmatpush1.msra.mxu0 0.0
        %1854 = vmatprep.subr.mxu0 0.0
        %1855 = vmatpush1.msra.mxu0 0.0
        %1856 = vmatprep.subr.mxu0 0.0
        %1857 = vmatpush1.msra.mxu0 0.0
        %1858 = vmatprep.subr.mxu0 0.0
        %1859 = vmatpush1.msra.mxu0 0.0
        %1860 = vmatprep.subr.mxu0 0.0
        %1861 = vmatpush1.msra.mxu0 0.0
        %1862 = vmatprep.subr.mxu0 0.0
        %1863 = vmatpush1.msra.mxu0 0.0
        %1864 = vmatprep.subr.mxu0 0.0
        %1865 = vmatpush1.msra.mxu0 0.0
        %1866 = vmatprep.subr.mxu0 0.0
        %1867 = vmatpush1.msra.mxu0 0.0
        %1868 = vmatprep.mubr.f32.mxu0 0.0
        %1869 = vmatmul.mubr.f32.gmra.mrb[0].mxu0 %v1802
        %v1870 = vpop.f32.mrb[0].mxu0
        %v1871 = vadd.f32 0.0, %v1870
        %v1872 = vpop.f32.mrb[0].mxu0
        %1873 = vdwg.mxu0
        %v1874 = vmul.f32 %v1871, %v1797
        %1876 = vrot.lane.b32.xlu0 %v1874, 24
        %v1877 = vpop.permute.xlu0 %1876
        %vm1879 = vcmask 228544
        %1880 = vst.msk [vmem:[#allocation3] sm:$0xff] %vm1879, %v1877
        %v1881 = vld [vmem:[#allocation2] sm:$0xff]
        %v1882 = vmul.f32 %v1881, 0.5
        %1884 = vrot.lane.b32.xlu0 %v1882, 100
        %v1885 = vpop.permute.xlu0 %1884
        %1887 = vrot.lane.b32.xlu0 %v1881, 68
        %v1888 = vpop.permute.xlu0 %1887
        %v1889 = vsel %vm666, %v1885, 0
        %v1891 = vsel %vm666, %v1888, 0
        %1893 = vmatprep.subr.mxu0 0.0
        %1894 = vmatpush1.xpose.msra.mxu0 %v1891
        %1895 = vmatprep.subr.mxu0 0.0
        %1896 = vmatpush1.xpose.msra.mxu0 0.0
        %1897 = vmatprep.subr.mxu0 0.0
        %1898 = vmatpush1.xpose.msra.mxu0 0.0
        %1899 = vmatprep.subr.mxu0 0.0
        %1900 = vmatpush1.xpose.msra.mxu0 0.0
        %1901 = vmatprep.subr.mxu0 0.0
        %1902 = vmatpush1.xpose.msra.mxu0 0.0
        %1903 = vmatprep.subr.mxu0 0.0
        %1904 = vmatpush1.xpose.msra.mxu0 0.0
        %1905 = vmatprep.subr.mxu0 0.0
        %1906 = vmatpush1.xpose.msra.mxu0 0.0
        %1907 = vmatprep.subr.mxu0 0.0
        %1908 = vmatpush1.xpose.msra.mxu0 0.0
        %1909 = vmatprep.subr.mxu0 0.0
        %1910 = vmatpush1.xpose.msra.mxu0 0.0
        %1911 = vmatprep.subr.mxu0 0.0
        %1912 = vmatpush1.xpose.msra.mxu0 0.0
        %1913 = vmatprep.subr.mxu0 0.0
        %1914 = vmatpush1.xpose.msra.mxu0 0.0
        %1915 = vmatprep.subr.mxu0 0.0
        %1916 = vmatpush1.xpose.msra.mxu0 0.0
        %1917 = vmatprep.subr.mxu0 0.0
        %1918 = vmatpush1.xpose.msra.mxu0 0.0
        %1919 = vmatprep.subr.mxu0 0.0
        %1920 = vmatpush1.xpose.msra.mxu0 0.0
        %1921 = vmatprep.subr.mxu0 0.0
        %1922 = vmatpush1.xpose.msra.mxu0 0.0
        %1923 = vmatprep.subr.mxu0 0.0
        %1924 = vmatpush1.xpose.msra.mxu0 0.0
        %1925 = vmatprep.subr.mxu0 0.0
        %1926 = vmatpush1.xpose.msra.mxu0 0.0
        %1927 = vmatprep.subr.mxu0 0.0
        %1928 = vmatpush1.xpose.msra.mxu0 0.0
        %1929 = vmatprep.subr.mxu0 0.0
        %1930 = vmatpush1.xpose.msra.mxu0 0.0
        %1931 = vmatprep.subr.mxu0 0.0
        %1932 = vmatpush1.xpose.msra.mxu0 0.0
        %1933 = vmatprep.subr.mxu0 0.0
        %1934 = vmatpush1.xpose.msra.mxu0 0.0
        %1935 = vmatprep.subr.mxu0 0.0
        %1936 = vmatpush1.xpose.msra.mxu0 0.0
        %1937 = vmatprep.subr.mxu0 0.0
        %1938 = vmatpush1.xpose.msra.mxu0 0.0
        %1939 = vmatprep.subr.mxu0 0.0
        %1940 = vmatpush1.xpose.msra.mxu0 0.0
        %1941 = vmatprep.subr.mxu0 0.0
        %1942 = vmatpush1.xpose.msra.mxu0 0.0
        %1943 = vmatprep.subr.mxu0 0.0
        %1944 = vmatpush1.xpose.msra.mxu0 0.0
        %1945 = vmatprep.subr.mxu0 0.0
        %1946 = vmatpush1.xpose.msra.mxu0 0.0
        %1947 = vmatprep.subr.mxu0 0.0
        %1948 = vmatpush1.xpose.msra.mxu0 0.0
        %1949 = vmatprep.subr.mxu0 0.0
        %1950 = vmatpush1.xpose.msra.mxu0 0.0
        %1951 = vmatprep.subr.mxu0 0.0
        %1952 = vmatpush1.xpose.msra.mxu0 0.0
        %1953 = vmatprep.subr.mxu0 0.0
        %1954 = vmatpush1.xpose.msra.mxu0 0.0
        %1955 = vmatprep.subr.mxu0 0.0
        %1956 = vmatpush1.xpose.msra.mxu0 0.0
        %1957 = vmatprep.mubr.f32.mxu0 0.0
        %1958 = vmatmul.mubr.f32.gmra.mrb[0].mxu0 %v1889
        %v1959 = vpop.f32.mrb[0].mxu0
        %v1960 = vadd.f32 0.0, %v1959
        %v1961 = vpop.f32.mrb[0].mxu0
        %1962 = vdwg.mxu0
        %v1963 = vsel %vm742, %v1960, -inf
        %1964 = vmax.xlane.f32.xlu0 %v1963
        %v1965 = vpop.xlane.xlu0 %1964
        %v1966 = vsub.f32 %v1960, %v1965
        %v1967 = vmul.f32 %v1966, 1.442695
        %v1968 = vpow.pop %v1967
        %v1969 = vsel %vm742, %v1968, 0.0
        %1970 = vadd.xlane.f32.xlu0 %v1969
        %v1971 = vpop.xlane.xlu0 %1970
        %v1972 = vrcp.pop %v1971
        %1973 = vrot.lane.b32.xlu0 %v1881, 36
        %v1974 = vpop.permute.xlu0 %1973
        %v1977 = vsel %vm742, %v1968, 0
        %1979 = vmatprep.subr.mxu0 0.0
        %1980 = vmatpush1.msra.mxu0 %v1974
        %1981 = vmatprep.subr.mxu0 0.0
        %1982 = vmatpush1.msra.mxu0 0.0
        %1983 = vmatprep.subr.mxu0 0.0
        %1984 = vmatpush1.msra.mxu0 0.0
        %1985 = vmatprep.subr.mxu0 0.0
        %1986 = vmatpush1.msra.mxu0 0.0
        %1987 = vmatprep.subr.mxu0 0.0
        %1988 = vmatpush1.msra.mxu0 0.0
        %1989 = vmatprep.subr.mxu0 0.0
        %1990 = vmatpush1.msra.mxu0 0.0
        %1991 = vmatprep.subr.mxu0 0.0
        %1992 = vmatpush1.msra.mxu0 0.0
        %1993 = vmatprep.subr.mxu0 0.0
        %1994 = vmatpush1.msra.mxu0 0.0
        %1995 = vmatprep.subr.mxu0 0.0
        %1996 = vmatpush1.msra.mxu0 0.0
        %1997 = vmatprep.subr.mxu0 0.0
        %1998 = vmatpush1.msra.mxu0 0.0
        %1999 = vmatprep.subr.mxu0 0.0
        %2000 = vmatpush1.msra.mxu0 0.0
        %2001 = vmatprep.subr.mxu0 0.0
        %2002 = vmatpush1.msra.mxu0 0.0
        %2003 = vmatprep.subr.mxu0 0.0
        %2004 = vmatpush1.msra.mxu0 0.0
        %2005 = vmatprep.subr.mxu0 0.0
        %2006 = vmatpush1.msra.mxu0 0.0
        %2007 = vmatprep.subr.mxu0 0.0
        %2008 = vmatpush1.msra.mxu0 0.0
        %2009 = vmatprep.subr.mxu0 0.0
        %2010 = vmatpush1.msra.mxu0 0.0
        %2011 = vmatprep.subr.mxu0 0.0
        %2012 = vmatpush1.msra.mxu0 0.0
        %2013 = vmatprep.subr.mxu0 0.0
        %2014 = vmatpush1.msra.mxu0 0.0
        %2015 = vmatprep.subr.mxu0 0.0
        %2016 = vmatpush1.msra.mxu0 0.0
        %2017 = vmatprep.subr.mxu0 0.0
        %2018 = vmatpush1.msra.mxu0 0.0
        %2019 = vmatprep.subr.mxu0 0.0
        %2020 = vmatpush1.msra.mxu0 0.0
        %2021 = vmatprep.subr.mxu0 0.0
        %2022 = vmatpush1.msra.mxu0 0.0
        %2023 = vmatprep.subr.mxu0 0.0
        %2024 = vmatpush1.msra.mxu0 0.0
        %2025 = vmatprep.subr.mxu0 0.0
        %2026 = vmatpush1.msra.mxu0 0.0
        %2027 = vmatprep.subr.mxu0 0.0
        %2028 = vmatpush1.msra.mxu0 0.0
        %2029 = vmatprep.subr.mxu0 0.0
        %2030 = vmatpush1.msra.mxu0 0.0
        %2031 = vmatprep.subr.mxu0 0.0
        %2032 = vmatpush1.msra.mxu0 0.0
        %2033 = vmatprep.subr.mxu0 0.0
        %2034 = vmatpush1.msra.mxu0 0.0
        %2035 = vmatprep.subr.mxu0 0.0
        %2036 = vmatpush1.msra.mxu0 0.0
        %2037 = vmatprep.subr.mxu0 0.0
        %2038 = vmatpush1.msra.mxu0 0.0
        %2039 = vmatprep.subr.mxu0 0.0
        %2040 = vmatpush1.msra.mxu0 0.0
        %2041 = vmatprep.subr.mxu0 0.0
        %2042 = vmatpush1.msra.mxu0 0.0
        %2043 = vmatprep.mubr.f32.mxu0 0.0
        %2044 = vmatmul.mubr.f32.gmra.mrb[0].mxu0 %v1977
        %v2045 = vpop.f32.mrb[0].mxu0
        %v2046 = vadd.f32 0.0, %v2045
        %v2047 = vpop.f32.mrb[0].mxu0
        %2048 = vdwg.mxu0
        %v2049 = vmul.f32 %v2046, %v1972
        %2051 = vrot.lane.b32.xlu0 %v2049, 28
        %v2052 = vpop.permute.xlu0 %2051
        %vm2054 = vcmask 261344
        %2055 = vst.msk [vmem:[#allocation3] sm:$0xff] %vm2054, %v2052
        %v2056 = vld [vmem:[#allocation3] sm:$0xff]
        %v2057 = vld [vmem:[%s5] sm:$0xff]
        %v2058 = vld [vmem:[%s5 + $0x8] sm:$0xff]
        %v2059 = vld [vmem:[%s5 + $0x10] sm:$0xff]
        %v2060 = vld [vmem:[%s5 + $0x18] sm:$0xff]
        %v2061 = vld [vmem:[%s6] sm:$0x1]
        %v2063 = vlaneseq
        %v2064 = vshrl.u32 %v2063, 7
        %v2065 = vsub.s32 0, %v2064
        %v2066 = vrot.slane %v2061, %v2065
        %v2069 = vsel %vm585, %v2056, 0
        %2071 = vmatprep.subr.mxu0 0.0
        %2072 = vmatpush1.msra.mxu0 %v2057
        %2073 = vmatprep.subr.mxu0 0.0
        %2074 = vmatpush1.msra.mxu0 %v2058
        %2075 = vmatprep.subr.mxu0 0.0
        %2076 = vmatpush1.msra.mxu0 %v2059
        %2077 = vmatprep.subr.mxu0 0.0
        %2078 = vmatpush1.msra.mxu0 %v2060
        %2079 = vmatprep.subr.mxu0 0.0
        %2080 = vmatpush1.msra.mxu0 0.0
        %2081 = vmatprep.subr.mxu0 0.0
        %2082 = vmatpush1.msra.mxu0 0.0
        %2083 = vmatprep.subr.mxu0 0.0
        %2084 = vmatpush1.msra.mxu0 0.0
        %2085 = vmatprep.subr.mxu0 0.0
        %2086 = vmatpush1.msra.mxu0 0.0
        %2087 = vmatprep.subr.mxu0 0.0
        %2088 = vmatpush1.msra.mxu0 0.0
        %2089 = vmatprep.subr.mxu0 0.0
        %2090 = vmatpush1.msra.mxu0 0.0
        %2091 = vmatprep.subr.mxu0 0.0
        %2092 = vmatpush1.msra.mxu0 0.0
        %2093 = vmatprep.subr.mxu0 0.0
        %2094 = vmatpush1.msra.mxu0 0.0
        %2095 = vmatprep.subr.mxu0 0.0
        %2096 = vmatpush1.msra.mxu0 0.0
        %2097 = vmatprep.subr.mxu0 0.0
        %2098 = vmatpush1.msra.mxu0 0.0
        %2099 = vmatprep.subr.mxu0 0.0
        %2100 = vmatpush1.msra.mxu0 0.0
        %2101 = vmatprep.subr.mxu0 0.0
        %2102 = vmatpush1.msra.mxu0 0.0
        %2103 = vmatprep.subr.mxu0 0.0
        %2104 = vmatpush1.msra.mxu0 0.0
        %2105 = vmatprep.subr.mxu0 0.0
        %2106 = vmatpush1.msra.mxu0 0.0
        %2107 = vmatprep.subr.mxu0 0.0
        %2108 = vmatpush1.msra.mxu0 0.0
        %2109 = vmatprep.subr.mxu0 0.0
        %2110 = vmatpush1.msra.mxu0 0.0
        %2111 = vmatprep.subr.mxu0 0.0
        %2112 = vmatpush1.msra.mxu0 0.0
        %2113 = vmatprep.subr.mxu0 0.0
        %2114 = vmatpush1.msra.mxu0 0.0
        %2115 = vmatprep.subr.mxu0 0.0
        %2116 = vmatpush1.msra.mxu0 0.0
        %2117 = vmatprep.subr.mxu0 0.0
        %2118 = vmatpush1.msra.mxu0 0.0
        %2119 = vmatprep.subr.mxu0 0.0
        %2120 = vmatpush1.msra.mxu0 0.0
        %2121 = vmatprep.subr.mxu0 0.0
        %2122 = vmatpush1.msra.mxu0 0.0
        %2123 = vmatprep.subr.mxu0 0.0
        %2124 = vmatpush1.msra.mxu0 0.0
        %2125 = vmatprep.subr.mxu0 0.0
        %2126 = vmatpush1.msra.mxu0 0.0
        %2127 = vmatprep.subr.mxu0 0.0
        %2128 = vmatpush1.msra.mxu0 0.0
        %2129 = vmatprep.subr.mxu0 0.0
        %2130 = vmatpush1.msra.mxu0 0.0
        %2131 = vmatprep.subr.mxu0 0.0
        %2132 = vmatpush1.msra.mxu0 0.0
        %2133 = vmatprep.subr.mxu0 0.0
        %2134 = vmatpush1.msra.mxu0 0.0
        %2135 = vmatprep.mubr.f32.mxu0 0.0
        %2136 = vmatmul.mubr.f32.gmra.mrb[0].mxu0 %v2069
        %v2137 = vpop.f32.mrb[0].mxu0
        %v2138 = vadd.f32 %v2066, %v2137
        %v2139 = vpop.f32.mrb[0].mxu0
        %2140 = vdwg.mxu0
        %v2141 = vadd.f32 %v571, %v2138
        %v2142 = vld [vmem:[%s11] sm:$0x1]
        %v2143 = vld [vmem:[%s12] sm:$0x1]
        %v2144 = vsel %vm585, %v2141, 0.0
        %2145 = vadd.xlane.f32.xlu0 %v2144
        %v2146 = vpop.xlane.xlu0 %2145
        %v2147 = vrcp.pop 32.0
        %v2148 = vmul.f32 %v2146, %v2147
        %v2149 = vsub.f32 %v2141, %v2148
        %v2150 = vmul.f32 %v2149, %v2149
        %v2151 = vsel %vm585, %v2150, 0.0
        %2152 = vadd.xlane.f32.xlu0 %v2151
        %v2153 = vpop.xlane.xlu0 %2152
        %v2154 = vmul.f32 %v2153, %v2147
        %v2155 = vadd.f32 %v2154, 1e-05
        %v2156 = vrsqrt.pop %v2155
        %v2157 = vmul.f32 %v2149, %v2156
        %v2159 = vlaneseq
        %v2160 = vshrl.u32 %v2159, 7
        %v2161 = vsub.s32 0, %v2160
        %v2162 = vrot.slane %v2142, %v2161
        %v2164 = vmul.f32 %v2157, %v2162
        %v2166 = vlaneseq
        %v2167 = vshrl.u32 %v2166, 7
        %v2168 = vsub.s32 0, %v2167
        %v2169 = vrot.slane %v2143, %v2168
        %v2171 = vadd.f32 %v2164, %v2169
        %v2172 = vld [vmem:[%s7] sm:$0xff]
        %v2173 = vld [vmem:[%s7 + $0x8] sm:$0xff]
        %v2174 = vld [vmem:[%s7 + $0x10] sm:$0xff]
        %v2175 = vld [vmem:[%s7 + $0x18] sm:$0xff]
        %v2176 = vld [vmem:[%s7 + $0x20] sm:$0xff]
        %v2177 = vld [vmem:[%s7 + $0x28] sm:$0xff]
        %v2178 = vld [vmem:[%s7 + $0x30] sm:$0xff]
        %v2179 = vld [vmem:[%s7 + $0x38] sm:$0xff]
        %v2180 = vld [vmem:[%s7 + $0x40] sm:$0xff]
        %v2181 = vld [vmem:[%s7 + $0x48] sm:$0xff]
        %v2182 = vld [vmem:[%s7 + $0x50] sm:$0xff]
        %v2183 = vld [vmem:[%s7 + $0x58] sm:$0xff]
        %v2184 = vld [vmem:[%s7 + $0x60] sm:$0xff]
        %v2185 = vld [vmem:[%s7 + $0x68] sm:$0xff]
        %v2186 = vld [vmem:[%s7 + $0x70] sm:$0xff]
        %v2187 = vld [vmem:[%s7 + $0x78] sm:$0xff]
        %v2188 = vld [vmem:[%s7 + $0x80] sm:$0xff]
        %v2189 = vld [vmem:[%s7 + $0x88] sm:$0xff]
        %v2190 = vld [vmem:[%s7 + $0x90] sm:$0xff]
        %v2191 = vld [vmem:[%s7 + $0x98] sm:$0xff]
        %v2192 = vld [vmem:[%s7 + $0xa0] sm:$0xff]
        %v2193 = vld [vmem:[%s7 + $0xa8] sm:$0xff]
        %v2194 = vld [vmem:[%s7 + $0xb0] sm:$0xff]
        %v2195 = vld [vmem:[%s7 + $0xb8] sm:$0xff]
        %v2196 = vld [vmem:[%s7 + $0xc0] sm:$0xff]
        %v2197 = vld [vmem:[%s7 + $0xc8] sm:$0xff]
        %v2198 = vld [vmem:[%s7 + $0xd0] sm:$0xff]
        %v2199 = vld [vmem:[%s7 + $0xd8] sm:$0xff]
        %v2200 = vld [vmem:[%s7 + $0xe0] sm:$0xff]
        %v2201 = vld [vmem:[%s7 + $0xe8] sm:$0xff]
        %v2202 = vld [vmem:[%s7 + $0xf0] sm:$0xff]
        %v2203 = vld [vmem:[%s7 + $0xf8] sm:$0xff]
        %v2204 = vld [vmem:[%s7 + $0x100] sm:$0xff]
        %v2205 = vld [vmem:[%s7 + $0x108] sm:$0xff]
        %v2206 = vld [vmem:[%s7 + $0x110] sm:$0xff]
        %v2207 = vld [vmem:[%s7 + $0x118] sm:$0xff]
        %v2208 = vld [vmem:[%s7 + $0x120] sm:$0xff]
        %v2209 = vld [vmem:[%s7 + $0x128] sm:$0xff]
        %v2210 = vld [vmem:[%s7 + $0x130] sm:$0xff]
        %v2211 = vld [vmem:[%s7 + $0x138] sm:$0xff]
        %v2212 = vld [vmem:[%s7 + $0x140] sm:$0xff]
        %v2213 = vld [vmem:[%s7 + $0x148] sm:$0xff]
        %v2214 = vld [vmem:[%s7 + $0x150] sm:$0xff]
        %v2215 = vld [vmem:[%s7 + $0x158] sm:$0xff]
        %v2216 = vld [vmem:[%s7 + $0x160] sm:$0xff]
        %v2217 = vld [vmem:[%s7 + $0x168] sm:$0xff]
        %v2218 = vld [vmem:[%s7 + $0x170] sm:$0xff]
        %v2219 = vld [vmem:[%s7 + $0x178] sm:$0xff]
        %v2220 = vld [vmem:[%s7 + $0x180] sm:$0xff]
        %v2221 = vld [vmem:[%s7 + $0x188] sm:$0xff]
        %v2222 = vld [vmem:[%s7 + $0x190] sm:$0xff]
        %v2223 = vld [vmem:[%s7 + $0x198] sm:$0xff]
        %v2224 = vld [vmem:[%s7 + $0x1a0] sm:$0xff]
        %v2225 = vld [vmem:[%s7 + $0x1a8] sm:$0xff]
        %v2226 = vld [vmem:[%s7 + $0x1b0] sm:$0xff]
        %v2227 = vld [vmem:[%s7 + $0x1b8] sm:$0xff]
        %v2228 = vld [vmem:[%s7 + $0x1c0] sm:$0xff]
        %v2229 = vld [vmem:[%s7 + $0x1c8] sm:$0xff]
        %v2230 = vld [vmem:[%s7 + $0x1d0] sm:$0xff]
        %v2231 = vld [vmem:[%s7 + $0x1d8] sm:$0xff]
        %v2232 = vld [vmem:[%s7 + $0x1e0] sm:$0xff]
        %v2233 = vld [vmem:[%s7 + $0x1e8] sm:$0xff]
        %v2234 = vld [vmem:[%s7 + $0x1f0] sm:$0xff]
        %v2235 = vld [vmem:[%s7 + $0x1f8] sm:$0xff]
        %v2236 = vld [vmem:[%s8] sm:$0xff]
        %v2237 = vld [vmem:[%s8 + $0x8] sm:$0xff]
        %v2240 = vlaneseq
        %v2241 = vshrl.u32 %v2240, 7
        %v2242 = vsub.s32 0, %v2241
        %v2243 = vrot.slane %v2236, %v2242
        %v2244 = vlaneseq
        %v2245 = vshrl.u32 %v2244, 7
        %v2246 = vsub.s32 1, %v2245
        %v2247 = vrot.slane %v2236, %v2246
        %v2248 = vlaneseq
        %v2249 = vshrl.u32 %v2248, 7
        %v2250 = vsub.s32 2, %v2249
        %v2251 = vrot.slane %v2236, %v2250
        %v2252 = vlaneseq
        %v2253 = vshrl.u32 %v2252, 7
        %v2254 = vsub.s32 3, %v2253
        %v2255 = vrot.slane %v2236, %v2254
        %v2256 = vlaneseq
        %v2257 = vshrl.u32 %v2256, 7
        %v2258 = vsub.s32 4, %v2257
        %v2259 = vrot.slane %v2236, %v2258
        %v2260 = vlaneseq
        %v2261 = vshrl.u32 %v2260, 7
        %v2262 = vsub.s32 5, %v2261
        %v2263 = vrot.slane %v2236, %v2262
        %v2264 = vlaneseq
        %v2265 = vshrl.u32 %v2264, 7
        %v2266 = vsub.s32 6, %v2265
        %v2267 = vrot.slane %v2236, %v2266
        %v2268 = vlaneseq
        %v2269 = vshrl.u32 %v2268, 7
        %v2270 = vsub.s32 7, %v2269
        %v2271 = vrot.slane %v2236, %v2270
        %v2272 = vlaneseq
        %v2273 = vshrl.u32 %v2272, 7
        %v2274 = vsub.s32 0, %v2273
        %v2275 = vrot.slane %v2237, %v2274
        %v2276 = vlaneseq
        %v2277 = vshrl.u32 %v2276, 7
        %v2278 = vsub.s32 1, %v2277
        %v2279 = vrot.slane %v2237, %v2278
        %v2280 = vlaneseq
        %v2281 = vshrl.u32 %v2280, 7
        %v2282 = vsub.s32 2, %v2281
        %v2283 = vrot.slane %v2237, %v2282
        %v2284 = vlaneseq
        %v2285 = vshrl.u32 %v2284, 7
        %v2286 = vsub.s32 3, %v2285
        %v2287 = vrot.slane %v2237, %v2286
        %v2288 = vlaneseq
        %v2289 = vshrl.u32 %v2288, 7
        %v2290 = vsub.s32 4, %v2289
        %v2291 = vrot.slane %v2237, %v2290
        %v2292 = vlaneseq
        %v2293 = vshrl.u32 %v2292, 7
        %v2294 = vsub.s32 5, %v2293
        %v2295 = vrot.slane %v2237, %v2294
        %v2296 = vlaneseq
        %v2297 = vshrl.u32 %v2296, 7
        %v2298 = vsub.s32 6, %v2297
        %v2299 = vrot.slane %v2237, %v2298
        %v2300 = vlaneseq
        %v2301 = vshrl.u32 %v2300, 7
        %v2302 = vsub.s32 7, %v2301
        %v2303 = vrot.slane %v2237, %v2302
        %v2321 = vsel %vm585, %v2171, 0
        %2323 = vmatprep.subr.mxu0 %v2173
        %2324 = vmatpush1.msra.mxu0 %v2172
        %2325 = vmatprep.subr.mxu0 %v2189
        %2326 = vmatpush1.msra.mxu0 %v2188
        %2327 = vmatprep.subr.mxu0 %v2205
        %2328 = vmatpush1.msra.mxu0 %v2204
        %2329 = vmatprep.subr.mxu0 %v2221
        %2330 = vmatpush1.msra.mxu0 %v2220
        %2331 = vmatprep.subr.mxu0 0.0
        %2332 = vmatpush1.msra.mxu0 0.0
        %2333 = vmatprep.subr.mxu0 0.0
        %2334 = vmatpush1.msra.mxu0 0.0
        %2335 = vmatprep.subr.mxu0 0.0
        %2336 = vmatpush1.msra.mxu0 0.0
        %2337 = vmatprep.subr.mxu0 0.0
        %2338 = vmatpush1.msra.mxu0 0.0
        %2339 = vmatprep.subr.mxu0 0.0
        %2340 = vmatpush1.msra.mxu0 0.0
        %2341 = vmatprep.subr.mxu0 0.0
        %2342 = vmatpush1.msra.mxu0 0.0
        %2343 = vmatprep.subr.mxu0 0.0
        %2344 = vmatpush1.msra.mxu0 0.0
        %2345 = vmatprep.subr.mxu0 0.0
        %2346 = vmatpush1.msra.mxu0 0.0
        %2347 = vmatprep.subr.mxu0 0.0
        %2348 = vmatpush1.msra.mxu0 0.0
        %2349 = vmatprep.subr.mxu0 0.0
        %2350 = vmatpush1.msra.mxu0 0.0
        %2351 = vmatprep.subr.mxu0 0.0
        %2352 = vmatpush1.msra.mxu0 0.0
        %2353 = vmatprep.subr.mxu0 0.0
        %2354 = vmatpush1.msra.mxu0 0.0
        %2355 = vmatprep.subr.mxu0 0.0
        %2356 = vmatpush1.msra.mxu0 0.0
        %2357 = vmatprep.subr.mxu0 0.0
        %2358 = vmatpush1.msra.mxu0 0.0
        %2359 = vmatprep.subr.mxu0 0.0
        %2360 = vmatpush1.msra.mxu0 0.0
        %2361 = vmatprep.subr.mxu0 0.0
        %2362 = vmatpush1.msra.mxu0 0.0
        %2363 = vmatprep.subr.mxu0 0.0
        %2364 = vmatpush1.msra.mxu0 0.0
        %2365 = vmatprep.subr.mxu0 0.0
        %2366 = vmatpush1.msra.mxu0 0.0
        %2367 = vmatprep.subr.mxu0 0.0
        %2368 = vmatpush1.msra.mxu0 0.0
        %2369 = vmatprep.subr.mxu0 0.0
        %2370 = vmatpush1.msra.mxu0 0.0
        %2371 = vmatprep.subr.mxu0 0.0
        %2372 = vmatpush1.msra.mxu0 0.0
        %2373 = vmatprep.subr.mxu0 0.0
        %2374 = vmatpush1.msra.mxu0 0.0
        %2375 = vmatprep.subr.mxu0 0.0
        %2376 = vmatpush1.msra.mxu0 0.0
        %2377 = vmatprep.subr.mxu0 0.0
        %2378 = vmatpush1.msra.mxu0 0.0
        %2379 = vmatprep.subr.mxu0 0.0
        %2380 = vmatpush1.msra.mxu0 0.0
        %2381 = vmatprep.subr.mxu0 0.0
        %2382 = vmatpush1.msra.mxu0 0.0
        %2383 = vmatprep.subr.mxu0 0.0
        %2384 = vmatpush1.msra.mxu0 0.0
        %2385 = vmatprep.subr.mxu0 0.0
        %2386 = vmatpush1.msra.mxu0 0.0
        %2387 = vmatprep.mubr.f32.mxu0 0.0
        %2388 = vmatmul.mubr.f32.gmra.mrb[0].mxu0 %v2321
        %v2389 = vpop.f32.mrb[0].mxu0
        %v2390 = vadd.f32 %v2243, %v2389
        %v2391 = vpop.f32.mrb[0].mxu0
        %v2392 = vadd.f32 %v2247, %v2391
        %2393 = vdwg.mxu0
        %2394 = vmatprep.subr.mxu0 %v2175
        %2395 = vmatpush1.msra.mxu0 %v2174
        %2396 = vmatprep.subr.mxu0 %v2191
        %2397 = vmatpush1.msra.mxu0 %v2190
        %2398 = vmatprep.subr.mxu0 %v2207
        %2399 = vmatpush1.msra.mxu0 %v2206
        %2400 = vmatprep.subr.mxu0 %v2223
        %2401 = vmatpush1.msra.mxu0 %v2222
        %2402 = vmatprep.subr.mxu0 0.0
        %2403 = vmatpush1.msra.mxu0 0.0
        %2404 = vmatprep.subr.mxu0 0.0
        %2405 = vmatpush1.msra.mxu0 0.0
        %2406 = vmatprep.subr.mxu0 0.0
        %2407 = vmatpush1.msra.mxu0 0.0
        %2408 = vmatprep.subr.mxu0 0.0
        %2409 = vmatpush1.msra.mxu0 0.0
        %2410 = vmatprep.subr.mxu0 0.0
        %2411 = vmatpush1.msra.mxu0 0.0
        %2412 = vmatprep.subr.mxu0 0.0
        %2413 = vmatpush1.msra.mxu0 0.0
        %2414 = vmatprep.subr.mxu0 0.0
        %2415 = vmatpush1.msra.mxu0 0.0
        %2416 = vmatprep.subr.mxu0 0.0
        %2417 = vmatpush1.msra.mxu0 0.0
        %2418 = vmatprep.subr.mxu0 0.0
        %2419 = vmatpush1.msra.mxu0 0.0
        %2420 = vmatprep.subr.mxu0 0.0
        %2421 = vmatpush1.msra.mxu0 0.0
        %2422 = vmatprep.subr.mxu0 0.0
        %2423 = vmatpush1.msra.mxu0 0.0
        %2424 = vmatprep.subr.mxu0 0.0
        %2425 = vmatpush1.msra.mxu0 0.0
        %2426 = vmatprep.subr.mxu0 0.0
        %2427 = vmatpush1.msra.mxu0 0.0
        %2428 = vmatprep.subr.mxu0 0.0
        %2429 = vmatpush1.msra.mxu0 0.0
        %2430 = vmatprep.subr.mxu0 0.0
        %2431 = vmatpush1.msra.mxu0 0.0
        %2432 = vmatprep.subr.mxu0 0.0
        %2433 = vmatpush1.msra.mxu0 0.0
        %2434 = vmatprep.subr.mxu0 0.0
        %2435 = vmatpush1.msra.mxu0 0.0
        %2436 = vmatprep.subr.mxu0 0.0
        %2437 = vmatpush1.msra.mxu0 0.0
        %2438 = vmatprep.subr.mxu0 0.0
        %2439 = vmatpush1.msra.mxu0 0.0
        %2440 = vmatprep.subr.mxu0 0.0
        %2441 = vmatpush1.msra.mxu0 0.0
        %2442 = vmatprep.subr.mxu0 0.0
        %2443 = vmatpush1.msra.mxu0 0.0
        %2444 = vmatprep.subr.mxu0 0.0
        %2445 = vmatpush1.msra.mxu0 0.0
        %2446 = vmatprep.subr.mxu0 0.0
        %2447 = vmatpush1.msra.mxu0 0.0
        %2448 = vmatprep.subr.mxu0 0.0
        %2449 = vmatpush1.msra.mxu0 0.0
        %2450 = vmatprep.subr.mxu0 0.0
        %2451 = vmatpush1.msra.mxu0 0.0
        %2452 = vmatprep.subr.mxu0 0.0
        %2453 = vmatpush1.msra.mxu0 0.0
        %2454 = vmatprep.subr.mxu0 0.0
        %2455 = vmatpush1.msra.mxu0 0.0
        %2456 = vmatprep.subr.mxu0 0.0
        %2457 = vmatpush1.msra.mxu0 0.0
        %2458 = vmatprep.mubr.f32.mxu0 0.0
        %2459 = vmatmul.mubr.f32.gmra.mrb[0].mxu0 %v2321
        %v2460 = vpop.f32.mrb[0].mxu0
        %v2461 = vadd.f32 %v2251, %v2460
        %v2462 = vpop.f32.mrb[0].mxu0
        %v2463 = vadd.f32 %v2255, %v2462
        %2464 = vdwg.mxu0
        %2465 = vmatprep.subr.mxu0 %v2177
        %2466 = vmatpush1.msra.mxu0 %v2176
        %2467 = vmatprep.subr.mxu0 %v2193
        %2468 = vmatpush1.msra.mxu0 %v2192
        %2469 = vmatprep.subr.mxu0 %v2209
        %2470 = vmatpush1.msra.mxu0 %v2208
        %2471 = vmatprep.subr.mxu0 %v2225
        %2472 = vmatpush1.msra.mxu0 %v2224
        %2473 = vmatprep.subr.mxu0 0.0
        %2474 = vmatpush1.msra.mxu0 0.0
        %2475 = vmatprep.subr.mxu0 0.0
        %2476 = vmatpush1.msra.mxu0 0.0
        %2477 = vmatprep.subr.mxu0 0.0
        %2478 = vmatpush1.msra.mxu0 0.0
        %2479 = vmatprep.subr.mxu0 0.0
        %2480 = vmatpush1.msra.mxu0 0.0
        %2481 = vmatprep.subr.mxu0 0.0
        %2482 = vmatpush1.msra.mxu0 0.0
        %2483 = vmatprep.subr.mxu0 0.0
        %2484 = vmatpush1.msra.mxu0 0.0
        %2485 = vmatprep.subr.mxu0 0.0
        %2486 = vmatpush1.msra.mxu0 0.0
        %2487 = vmatprep.subr.mxu0 0.0
        %2488 = vmatpush1.msra.mxu0 0.0
        %2489 = vmatprep.subr.mxu0 0.0
        %2490 = vmatpush1.msra.mxu0 0.0
        %2491 = vmatprep.subr.mxu0 0.0
        %2492 = vmatpush1.msra.mxu0 0.0
        %2493 = vmatprep.subr.mxu0 0.0
        %2494 = vmatpush1.msra.mxu0 0.0
        %2495 = vmatprep.subr.mxu0 0.0
        %2496 = vmatpush1.msra.mxu0 0.0
        %2497 = vmatprep.subr.mxu0 0.0
        %2498 = vmatpush1.msra.mxu0 0.0
        %2499 = vmatprep.subr.mxu0 0.0
        %2500 = vmatpush1.msra.mxu0 0.0
        %2501 = vmatprep.subr.mxu0 0.0
        %2502 = vmatpush1.msra.mxu0 0.0
        %2503 = vmatprep.subr.mxu0 0.0
        %2504 = vmatpush1.msra.mxu0 0.0
        %2505 = vmatprep.subr.mxu0 0.0
        %2506 = vmatpush1.msra.mxu0 0.0
        %2507 = vmatprep.subr.mxu0 0.0
        %2508 = vmatpush1.msra.mxu0 0.0
        %2509 = vmatprep.subr.mxu0 0.0
        %2510 = vmatpush1.msra.mxu0 0.0
        %2511 = vmatprep.subr.mxu0 0.0
        %2512 = vmatpush1.msra.mxu0 0.0
        %2513 = vmatprep.subr.mxu0 0.0
        %2514 = vmatpush1.msra.mxu0 0.0
        %2515 = vmatprep.subr.mxu0 0.0
        %2516 = vmatpush1.msra.mxu0 0.0
        %2517 = vmatprep.subr.mxu0 0.0
        %2518 = vmatpush1.msra.mxu0 0.0
        %2519 = vmatprep.subr.mxu0 0.0
        %2520 = vmatpush1.msra.mxu0 0.0
        %2521 = vmatprep.subr.mxu0 0.0
        %2522 = vmatpush1.msra.mxu0 0.0
        %2523 = vmatprep.subr.mxu0 0.0
        %2524 = vmatpush1.msra.mxu0 0.0
        %2525 = vmatprep.subr.mxu0 0.0
        %2526 = vmatpush1.msra.mxu0 0.0
        %2527 = vmatprep.subr.mxu0 0.0
        %2528 = vmatpush1.msra.mxu0 0.0
        %2529 = vmatprep.mubr.f32.mxu0 0.0
        %2530 = vmatmul.mubr.f32.gmra.mrb[0].mxu0 %v2321
        %v2531 = vpop.f32.mrb[0].mxu0
        %v2532 = vadd.f32 %v2259, %v2531
        %v2533 = vpop.f32.mrb[0].mxu0
        %v2534 = vadd.f32 %v2263, %v2533
        %2535 = vdwg.mxu0
        %2536 = vmatprep.subr.mxu0 %v2179
        %2537 = vmatpush1.msra.mxu0 %v2178
        %2538 = vmatprep.subr.mxu0 %v2195
        %2539 = vmatpush1.msra.mxu0 %v2194
        %2540 = vmatprep.subr.mxu0 %v2211
        %2541 = vmatpush1.msra.mxu0 %v2210
        %2542 = vmatprep.subr.mxu0 %v2227
        %2543 = vmatpush1.msra.mxu0 %v2226
        %2544 = vmatprep.subr.mxu0 0.0
        %2545 = vmatpush1.msra.mxu0 0.0
        %2546 = vmatprep.subr.mxu0 0.0
        %2547 = vmatpush1.msra.mxu0 0.0
        %2548 = vmatprep.subr.mxu0 0.0
        %2549 = vmatpush1.msra.mxu0 0.0
        %2550 = vmatprep.subr.mxu0 0.0
        %2551 = vmatpush1.msra.mxu0 0.0
        %2552 = vmatprep.subr.mxu0 0.0
        %2553 = vmatpush1.msra.mxu0 0.0
        %2554 = vmatprep.subr.mxu0 0.0
        %2555 = vmatpush1.msra.mxu0 0.0
        %2556 = vmatprep.subr.mxu0 0.0
        %2557 = vmatpush1.msra.mxu0 0.0
        %2558 = vmatprep.subr.mxu0 0.0
        %2559 = vmatpush1.msra.mxu0 0.0
        %2560 = vmatprep.subr.mxu0 0.0
        %2561 = vmatpush1.msra.mxu0 0.0
        %2562 = vmatprep.subr.mxu0 0.0
        %2563 = vmatpush1.msra.mxu0 0.0
        %2564 = vmatprep.subr.mxu0 0.0
        %2565 = vmatpush1.msra.mxu0 0.0
        %2566 = vmatprep.subr.mxu0 0.0
        %2567 = vmatpush1.msra.mxu0 0.0
        %2568 = vmatprep.subr.mxu0 0.0
        %2569 = vmatpush1.msra.mxu0 0.0
        %2570 = vmatprep.subr.mxu0 0.0
        %2571 = vmatpush1.msra.mxu0 0.0
        %2572 = vmatprep.subr.mxu0 0.0
        %2573 = vmatpush1.msra.mxu0 0.0
        %2574 = vmatprep.subr.mxu0 0.0
        %2575 = vmatpush1.msra.mxu0 0.0
        %2576 = vmatprep.subr.mxu0 0.0
        %2577 = vmatpush1.msra.mxu0 0.0
        %2578 = vmatprep.subr.mxu0 0.0
        %2579 = vmatpush1.msra.mxu0 0.0
        %2580 = vmatprep.subr.mxu0 0.0
        %2581 = vmatpush1.msra.mxu0 0.0
        %2582 = vmatprep.subr.mxu0 0.0
        %2583 = vmatpush1.msra.mxu0 0.0
        %2584 = vmatprep.subr.mxu0 0.0
        %2585 = vmatpush1.msra.mxu0 0.0
        %2586 = vmatprep.subr.mxu0 0.0
        %2587 = vmatpush1.msra.mxu0 0.0
        %2588 = vmatprep.subr.mxu0 0.0
        %2589 = vmatpush1.msra.mxu0 0.0
        %2590 = vmatprep.subr.mxu0 0.0
        %2591 = vmatpush1.msra.mxu0 0.0
        %2592 = vmatprep.subr.mxu0 0.0
        %2593 = vmatpush1.msra.mxu0 0.0
        %2594 = vmatprep.subr.mxu0 0.0
        %2595 = vmatpush1.msra.mxu0 0.0
        %2596 = vmatprep.subr.mxu0 0.0
        %2597 = vmatpush1.msra.mxu0 0.0
        %2598 = vmatprep.subr.mxu0 0.0
        %2599 = vmatpush1.msra.mxu0 0.0
        %2600 = vmatprep.mubr.f32.mxu0 0.0
        %2601 = vmatmul.mubr.f32.gmra.mrb[0].mxu0 %v2321
        %v2602 = vpop.f32.mrb[0].mxu0
        %v2603 = vadd.f32 %v2267, %v2602
        %v2604 = vpop.f32.mrb[0].mxu0
        %v2605 = vadd.f32 %v2271, %v2604
        %2606 = vdwg.mxu0
        %2607 = vmatprep.subr.mxu0 %v2181
        %2608 = vmatpush1.msra.mxu0 %v2180
        %2609 = vmatprep.subr.mxu0 %v2197
        %2610 = vmatpush1.msra.mxu0 %v2196
        %2611 = vmatprep.subr.mxu0 %v2213
        %2612 = vmatpush1.msra.mxu0 %v2212
        %2613 = vmatprep.subr.mxu0 %v2229
        %2614 = vmatpush1.msra.mxu0 %v2228
        %2615 = vmatprep.subr.mxu0 0.0
        %2616 = vmatpush1.msra.mxu0 0.0
        %2617 = vmatprep.subr.mxu0 0.0
        %2618 = vmatpush1.msra.mxu0 0.0
        %2619 = vmatprep.subr.mxu0 0.0
        %2620 = vmatpush1.msra.mxu0 0.0
        %2621 = vmatprep.subr.mxu0 0.0
        %2622 = vmatpush1.msra.mxu0 0.0
        %2623 = vmatprep.subr.mxu0 0.0
        %2624 = vmatpush1.msra.mxu0 0.0
        %2625 = vmatprep.subr.mxu0 0.0
        %2626 = vmatpush1.msra.mxu0 0.0
        %2627 = vmatprep.subr.mxu0 0.0
        %2628 = vmatpush1.msra.mxu0 0.0
        %2629 = vmatprep.subr.mxu0 0.0
        %2630 = vmatpush1.msra.mxu0 0.0
        %2631 = vmatprep.subr.mxu0 0.0
        %2632 = vmatpush1.msra.mxu0 0.0
        %2633 = vmatprep.subr.mxu0 0.0
        %2634 = vmatpush1.msra.mxu0 0.0
        %2635 = vmatprep.subr.mxu0 0.0
        %2636 = vmatpush1.msra.mxu0 0.0
        %2637 = vmatprep.subr.mxu0 0.0
        %2638 = vmatpush1.msra.mxu0 0.0
        %2639 = vmatprep.subr.mxu0 0.0
        %2640 = vmatpush1.msra.mxu0 0.0
        %2641 = vmatprep.subr.mxu0 0.0
        %2642 = vmatpush1.msra.mxu0 0.0
        %2643 = vmatprep.subr.mxu0 0.0
        %2644 = vmatpush1.msra.mxu0 0.0
        %2645 = vmatprep.subr.mxu0 0.0
        %2646 = vmatpush1.msra.mxu0 0.0
        %2647 = vmatprep.subr.mxu0 0.0
        %2648 = vmatpush1.msra.mxu0 0.0
        %2649 = vmatprep.subr.mxu0 0.0
        %2650 = vmatpush1.msra.mxu0 0.0
        %2651 = vmatprep.subr.mxu0 0.0
        %2652 = vmatpush1.msra.mxu0 0.0
        %2653 = vmatprep.subr.mxu0 0.0
        %2654 = vmatpush1.msra.mxu0 0.0
        %2655 = vmatprep.subr.mxu0 0.0
        %2656 = vmatpush1.msra.mxu0 0.0
        %2657 = vmatprep.subr.mxu0 0.0
        %2658 = vmatpush1.msra.mxu0 0.0
        %2659 = vmatprep.subr.mxu0 0.0
        %2660 = vmatpush1.msra.mxu0 0.0
        %2661 = vmatprep.subr.mxu0 0.0
        %2662 = vmatpush1.msra.mxu0 0.0
        %2663 = vmatprep.subr.mxu0 0.0
        %2664 = vmatpush1.msra.mxu0 0.0
        %2665 = vmatprep.subr.mxu0 0.0
        %2666 = vmatpush1.msra.mxu0 0.0
        %2667 = vmatprep.subr.mxu0 0.0
        %2668 = vmatpush1.msra.mxu0 0.0
        %2669 = vmatprep.subr.mxu0 0.0
        %2670 = vmatpush1.msra.mxu0 0.0
        %2671 = vmatprep.mubr.f32.mxu0 0.0
        %2672 = vmatmul.mubr.f32.gmra.mrb[0].mxu0 %v2321
        %v2673 = vpop.f32.mrb[0].mxu0
        %v2674 = vadd.f32 %v2275, %v2673
        %v2675 = vpop.f32.mrb[0].mxu0
        %v2676 = vadd.f32 %v2279, %v2675
        %2677 = vdwg.mxu0
        %2678 = vmatprep.subr.mxu0 %v2183
        %2679 = vmatpush1.msra.mxu0 %v2182
        %2680 = vmatprep.subr.mxu0 %v2199
        %2681 = vmatpush1.msra.mxu0 %v2198
        %2682 = vmatprep.subr.mxu0 %v2215
        %2683 = vmatpush1.msra.mxu0 %v2214
        %2684 = vmatprep.subr.mxu0 %v2231
        %2685 = vmatpush1.msra.mxu0 %v2230
        %2686 = vmatprep.subr.mxu0 0.0
        %2687 = vmatpush1.msra.mxu0 0.0
        %2688 = vmatprep.subr.mxu0 0.0
        %2689 = vmatpush1.msra.mxu0 0.0
        %2690 = vmatprep.subr.mxu0 0.0
        %2691 = vmatpush1.msra.mxu0 0.0
        %2692 = vmatprep.subr.mxu0 0.0
        %2693 = vmatpush1.msra.mxu0 0.0
        %2694 = vmatprep.subr.mxu0 0.0
        %2695 = vmatpush1.msra.mxu0 0.0
        %2696 = vmatprep.subr.mxu0 0.0
        %2697 = vmatpush1.msra.mxu0 0.0
        %2698 = vmatprep.subr.mxu0 0.0
        %2699 = vmatpush1.msra.mxu0 0.0
        %2700 = vmatprep.subr.mxu0 0.0
        %2701 = vmatpush1.msra.mxu0 0.0
        %2702 = vmatprep.subr.mxu0 0.0
        %2703 = vmatpush1.msra.mxu0 0.0
        %2704 = vmatprep.subr.mxu0 0.0
        %2705 = vmatpush1.msra.mxu0 0.0
        %2706 = vmatprep.subr.mxu0 0.0
        %2707 = vmatpush1.msra.mxu0 0.0
        %2708 = vmatprep.subr.mxu0 0.0
        %2709 = vmatpush1.msra.mxu0 0.0
        %2710 = vmatprep.subr.mxu0 0.0
        %2711 = vmatpush1.msra.mxu0 0.0
        %2712 = vmatprep.subr.mxu0 0.0
        %2713 = vmatpush1.msra.mxu0 0.0
        %2714 = vmatprep.subr.mxu0 0.0
        %2715 = vmatpush1.msra.mxu0 0.0
        %2716 = vmatprep.subr.mxu0 0.0
        %2717 = vmatpush1.msra.mxu0 0.0
        %2718 = vmatprep.subr.mxu0 0.0
        %2719 = vmatpush1.msra.mxu0 0.0
        %2720 = vmatprep.subr.mxu0 0.0
        %2721 = vmatpush1.msra.mxu0 0.0
        %2722 = vmatprep.subr.mxu0 0.0
        %2723 = vmatpush1.msra.mxu0 0.0
        %2724 = vmatprep.subr.mxu0 0.0
        %2725 = vmatpush1.msra.mxu0 0.0
        %2726 = vmatprep.subr.mxu0 0.0
        %2727 = vmatpush1.msra.mxu0 0.0
        %2728 = vmatprep.subr.mxu0 0.0
        %2729 = vmatpush1.msra.mxu0 0.0
        %2730 = vmatprep.subr.mxu0 0.0
        %2731 = vmatpush1.msra.mxu0 0.0
        %2732 = vmatprep.subr.mxu0 0.0
        %2733 = vmatpush1.msra.mxu0 0.0
        %2734 = vmatprep.subr.mxu0 0.0
        %2735 = vmatpush1.msra.mxu0 0.0
        %2736 = vmatprep.subr.mxu0 0.0
        %2737 = vmatpush1.msra.mxu0 0.0
        %2738 = vmatprep.subr.mxu0 0.0
        %2739 = vmatpush1.msra.mxu0 0.0
        %2740 = vmatprep.subr.mxu0 0.0
        %2741 = vmatpush1.msra.mxu0 0.0
        %2742 = vmatprep.mubr.f32.mxu0 0.0
        %2743 = vmatmul.mubr.f32.gmra.mrb[0].mxu0 %v2321
        %v2744 = vpop.f32.mrb[0].mxu0
        %v2745 = vadd.f32 %v2283, %v2744
        %v2746 = vpop.f32.mrb[0].mxu0
        %v2747 = vadd.f32 %v2287, %v2746
        %2748 = vdwg.mxu0
        %2749 = vmatprep.subr.mxu0 %v2185
        %2750 = vmatpush1.msra.mxu0 %v2184
        %2751 = vmatprep.subr.mxu0 %v2201
        %2752 = vmatpush1.msra.mxu0 %v2200
        %2753 = vmatprep.subr.mxu0 %v2217
        %2754 = vmatpush1.msra.mxu0 %v2216
        %2755 = vmatprep.subr.mxu0 %v2233
        %2756 = vmatpush1.msra.mxu0 %v2232
        %2757 = vmatprep.subr.mxu0 0.0
        %2758 = vmatpush1.msra.mxu0 0.0
        %2759 = vmatprep.subr.mxu0 0.0
        %2760 = vmatpush1.msra.mxu0 0.0
        %2761 = vmatprep.subr.mxu0 0.0
        %2762 = vmatpush1.msra.mxu0 0.0
        %2763 = vmatprep.subr.mxu0 0.0
        %2764 = vmatpush1.msra.mxu0 0.0
        %2765 = vmatprep.subr.mxu0 0.0
        %2766 = vmatpush1.msra.mxu0 0.0
        %2767 = vmatprep.subr.mxu0 0.0
        %2768 = vmatpush1.msra.mxu0 0.0
        %2769 = vmatprep.subr.mxu0 0.0
        %2770 = vmatpush1.msra.mxu0 0.0
        %2771 = vmatprep.subr.mxu0 0.0
        %2772 = vmatpush1.msra.mxu0 0.0
        %2773 = vmatprep.subr.mxu0 0.0
        %2774 = vmatpush1.msra.mxu0 0.0
        %2775 = vmatprep.subr.mxu0 0.0
        %2776 = vmatpush1.msra.mxu0 0.0
        %2777 = vmatprep.subr.mxu0 0.0
        %2778 = vmatpush1.msra.mxu0 0.0
        %2779 = vmatprep.subr.mxu0 0.0
        %2780 = vmatpush1.msra.mxu0 0.0
        %2781 = vmatprep.subr.mxu0 0.0
        %2782 = vmatpush1.msra.mxu0 0.0
        %2783 = vmatprep.subr.mxu0 0.0
        %2784 = vmatpush1.msra.mxu0 0.0
        %2785 = vmatprep.subr.mxu0 0.0
        %2786 = vmatpush1.msra.mxu0 0.0
        %2787 = vmatprep.subr.mxu0 0.0
        %2788 = vmatpush1.msra.mxu0 0.0
        %2789 = vmatprep.subr.mxu0 0.0
        %2790 = vmatpush1.msra.mxu0 0.0
        %2791 = vmatprep.subr.mxu0 0.0
        %2792 = vmatpush1.msra.mxu0 0.0
        %2793 = vmatprep.subr.mxu0 0.0
        %2794 = vmatpush1.msra.mxu0 0.0
        %2795 = vmatprep.subr.mxu0 0.0
        %2796 = vmatpush1.msra.mxu0 0.0
        %2797 = vmatprep.subr.mxu0 0.0
        %2798 = vmatpush1.msra.mxu0 0.0
        %2799 = vmatprep.subr.mxu0 0.0
        %2800 = vmatpush1.msra.mxu0 0.0
        %2801 = vmatprep.subr.mxu0 0.0
        %2802 = vmatpush1.msra.mxu0 0.0
        %2803 = vmatprep.subr.mxu0 0.0
        %2804 = vmatpush1.msra.mxu0 0.0
        %2805 = vmatprep.subr.mxu0 0.0
        %2806 = vmatpush1.msra.mxu0 0.0
        %2807 = vmatprep.subr.mxu0 0.0
        %2808 = vmatpush1.msra.mxu0 0.0
        %2809 = vmatprep.subr.mxu0 0.0
        %2810 = vmatpush1.msra.mxu0 0.0
        %2811 = vmatprep.subr.mxu0 0.0
        %2812 = vmatpush1.msra.mxu0 0.0
        %2813 = vmatprep.mubr.f32.mxu0 0.0
        %2814 = vmatmul.mubr.f32.gmra.mrb[0].mxu0 %v2321
        %v2815 = vpop.f32.mrb[0].mxu0
        %v2816 = vadd.f32 %v2291, %v2815
        %v2817 = vpop.f32.mrb[0].mxu0
        %v2818 = vadd.f32 %v2295, %v2817
        %2819 = vdwg.mxu0
        %2820 = vmatprep.subr.mxu0 %v2187
        %2821 = vmatpush1.msra.mxu0 %v2186
        %2822 = vmatprep.subr.mxu0 %v2203
        %2823 = vmatpush1.msra.mxu0 %v2202
        %2824 = vmatprep.subr.mxu0 %v2219
        %2825 = vmatpush1.msra.mxu0 %v2218
        %2826 = vmatprep.subr.mxu0 %v2235
        %2827 = vmatpush1.msra.mxu0 %v2234
        %2828 = vmatprep.subr.mxu0 0.0
        %2829 = vmatpush1.msra.mxu0 0.0
        %2830 = vmatprep.subr.mxu0 0.0
        %2831 = vmatpush1.msra.mxu0 0.0
        %2832 = vmatprep.subr.mxu0 0.0
        %2833 = vmatpush1.msra.mxu0 0.0
        %2834 = vmatprep.subr.mxu0 0.0
        %2835 = vmatpush1.msra.mxu0 0.0
        %2836 = vmatprep.subr.mxu0 0.0
        %2837 = vmatpush1.msra.mxu0 0.0
        %2838 = vmatprep.subr.mxu0 0.0
        %2839 = vmatpush1.msra.mxu0 0.0
        %2840 = vmatprep.subr.mxu0 0.0
        %2841 = vmatpush1.msra.mxu0 0.0
        %2842 = vmatprep.subr.mxu0 0.0
        %2843 = vmatpush1.msra.mxu0 0.0
        %2844 = vmatprep.subr.mxu0 0.0
        %2845 = vmatpush1.msra.mxu0 0.0
        %2846 = vmatprep.subr.mxu0 0.0
        %2847 = vmatpush1.msra.mxu0 0.0
        %2848 = vmatprep.subr.mxu0 0.0
        %2849 = vmatpush1.msra.mxu0 0.0
        %2850 = vmatprep.subr.mxu0 0.0
        %2851 = vmatpush1.msra.mxu0 0.0
        %2852 = vmatprep.subr.mxu0 0.0
        %2853 = vmatpush1.msra.mxu0 0.0
        %2854 = vmatprep.subr.mxu0 0.0
        %2855 = vmatpush1.msra.mxu0 0.0
        %2856 = vmatprep.subr.mxu0 0.0
        %2857 = vmatpush1.msra.mxu0 0.0
        %2858 = vmatprep.subr.mxu0 0.0
        %2859 = vmatpush1.msra.mxu0 0.0
        %2860 = vmatprep.subr.mxu0 0.0
        %2861 = vmatpush1.msra.mxu0 0.0
        %2862 = vmatprep.subr.mxu0 0.0
        %2863 = vmatpush1.msra.mxu0 0.0
        %2864 = vmatprep.subr.mxu0 0.0
        %2865 = vmatpush1.msra.mxu0 0.0
        %2866 = vmatprep.subr.mxu0 0.0
        %2867 = vmatpush1.msra.mxu0 0.0
        %2868 = vmatprep.subr.mxu0 0.0
        %2869 = vmatpush1.msra.mxu0 0.0
        %2870 = vmatprep.subr.mxu0 0.0
        %2871 = vmatpush1.msra.mxu0 0.0
        %2872 = vmatprep.subr.mxu0 0.0
        %2873 = vmatpush1.msra.mxu0 0.0
        %2874 = vmatprep.subr.mxu0 0.0
        %2875 = vmatpush1.msra.mxu0 0.0
        %2876 = vmatprep.subr.mxu0 0.0
        %2877 = vmatpush1.msra.mxu0 0.0
        %2878 = vmatprep.subr.mxu0 0.0
        %2879 = vmatpush1.msra.mxu0 0.0
        %2880 = vmatprep.subr.mxu0 0.0
        %2881 = vmatpush1.msra.mxu0 0.0
        %2882 = vmatprep.subr.mxu0 0.0
        %2883 = vmatpush1.msra.mxu0 0.0
        %2884 = vmatprep.mubr.f32.mxu0 0.0
        %2885 = vmatmul.mubr.f32.gmra.mrb[0].mxu0 %v2321
        %v2886 = vpop.f32.mrb[0].mxu0
        %v2887 = vadd.f32 %v2299, %v2886
        %v2888 = vpop.f32.mrb[0].mxu0
        %v2889 = vadd.f32 %v2303, %v2888
        %2890 = vdwg.mxu0
        %v2891 = vmax.f32 %v2390, 0.0
        %v2892 = vmax.f32 %v2392, 0.0
        %v2893 = vmax.f32 %v2461, 0.0
        %v2894 = vmax.f32 %v2463, 0.0
        %v2895 = vmax.f32 %v2532, 0.0
        %v2896 = vmax.f32 %v2534, 0.0
        %v2897 = vmax.f32 %v2603, 0.0
        %v2898 = vmax.f32 %v2605, 0.0
        %v2899 = vmax.f32 %v2674, 0.0
        %v2900 = vmax.f32 %v2676, 0.0
        %v2901 = vmax.f32 %v2745, 0.0
        %v2902 = vmax.f32 %v2747, 0.0
        %v2903 = vmax.f32 %v2816, 0.0
        %v2904 = vmax.f32 %v2818, 0.0
        %v2905 = vmax.f32 %v2887, 0.0
        %v2906 = vmax.f32 %v2889, 0.0
        %v2907 = vld [vmem:[%s9] sm:$0xff]
        %v2908 = vld [vmem:[%s9 + $0x8] sm:$0xff]
        %v2909 = vld [vmem:[%s9 + $0x10] sm:$0xff]
        %v2910 = vld [vmem:[%s9 + $0x18] sm:$0xff]
        %v2911 = vld [vmem:[%s9 + $0x20] sm:$0xff]
        %v2912 = vld [vmem:[%s9 + $0x28] sm:$0xff]
        %v2913 = vld [vmem:[%s9 + $0x30] sm:$0xff]
        %v2914 = vld [vmem:[%s9 + $0x38] sm:$0xff]
        %v2915 = vld [vmem:[%s9 + $0x40] sm:$0xff]
        %v2916 = vld [vmem:[%s9 + $0x48] sm:$0xff]
        %v2917 = vld [vmem:[%s9 + $0x50] sm:$0xff]
        %v2918 = vld [vmem:[%s9 + $0x58] sm:$0xff]
        %v2919 = vld [vmem:[%s9 + $0x60] sm:$0xff]
        %v2920 = vld [vmem:[%s9 + $0x68] sm:$0xff]
        %v2921 = vld [vmem:[%s9 + $0x70] sm:$0xff]
        %v2922 = vld [vmem:[%s9 + $0x78] sm:$0xff]
        %v2923 = vld [vmem:[%s9 + $0x80] sm:$0xff]
        %v2924 = vld [vmem:[%s9 + $0x88] sm:$0xff]
        %v2925 = vld [vmem:[%s9 + $0x90] sm:$0xff]
        %v2926 = vld [vmem:[%s9 + $0x98] sm:$0xff]
        %v2927 = vld [vmem:[%s9 + $0xa0] sm:$0xff]
        %v2928 = vld [vmem:[%s9 + $0xa8] sm:$0xff]
        %v2929 = vld [vmem:[%s9 + $0xb0] sm:$0xff]
        %v2930 = vld [vmem:[%s9 + $0xb8] sm:$0xff]
        %v2931 = vld [vmem:[%s9 + $0xc0] sm:$0xff]
        %v2932 = vld [vmem:[%s9 + $0xc8] sm:$0xff]
        %v2933 = vld [vmem:[%s9 + $0xd0] sm:$0xff]
        %v2934 = vld [vmem:[%s9 + $0xd8] sm:$0xff]
        %v2935 = vld [vmem:[%s9 + $0xe0] sm:$0xff]
        %v2936 = vld [vmem:[%s9 + $0xe8] sm:$0xff]
        %v2937 = vld [vmem:[%s9 + $0xf0] sm:$0xff]
        %v2938 = vld [vmem:[%s9 + $0xf8] sm:$0xff]
        %v2939 = vld [vmem:[%s9 + $0x100] sm:$0xff]
        %v2940 = vld [vmem:[%s9 + $0x108] sm:$0xff]
        %v2941 = vld [vmem:[%s9 + $0x110] sm:$0xff]
        %v2942 = vld [vmem:[%s9 + $0x118] sm:$0xff]
        %v2943 = vld [vmem:[%s9 + $0x120] sm:$0xff]
        %v2944 = vld [vmem:[%s9 + $0x128] sm:$0xff]
        %v2945 = vld [vmem:[%s9 + $0x130] sm:$0xff]
        %v2946 = vld [vmem:[%s9 + $0x138] sm:$0xff]
        %v2947 = vld [vmem:[%s9 + $0x140] sm:$0xff]
        %v2948 = vld [vmem:[%s9 + $0x148] sm:$0xff]
        %v2949 = vld [vmem:[%s9 + $0x150] sm:$0xff]
        %v2950 = vld [vmem:[%s9 + $0x158] sm:$0xff]
        %v2951 = vld [vmem:[%s9 + $0x160] sm:$0xff]
        %v2952 = vld [vmem:[%s9 + $0x168] sm:$0xff]
        %v2953 = vld [vmem:[%s9 + $0x170] sm:$0xff]
        %v2954 = vld [vmem:[%s9 + $0x178] sm:$0xff]
        %v2955 = vld [vmem:[%s9 + $0x180] sm:$0xff]
        %v2956 = vld [vmem:[%s9 + $0x188] sm:$0xff]
        %v2957 = vld [vmem:[%s9 + $0x190] sm:$0xff]
        %v2958 = vld [vmem:[%s9 + $0x198] sm:$0xff]
        %v2959 = vld [vmem:[%s9 + $0x1a0] sm:$0xff]
        %v2960 = vld [vmem:[%s9 + $0x1a8] sm:$0xff]
        %v2961 = vld [vmem:[%s9 + $0x1b0] sm:$0xff]
        %v2962 = vld [vmem:[%s9 + $0x1b8] sm:$0xff]
        %v2963 = vld [vmem:[%s9 + $0x1c0] sm:$0xff]
        %v2964 = vld [vmem:[%s9 + $0x1c8] sm:$0xff]
        %v2965 = vld [vmem:[%s9 + $0x1d0] sm:$0xff]
        %v2966 = vld [vmem:[%s9 + $0x1d8] sm:$0xff]
        %v2967 = vld [vmem:[%s9 + $0x1e0] sm:$0xff]
        %v2968 = vld [vmem:[%s9 + $0x1e8] sm:$0xff]
        %v2969 = vld [vmem:[%s9 + $0x1f0] sm:$0xff]
        %v2970 = vld [vmem:[%s9 + $0x1f8] sm:$0xff]
        %v2971 = vld [vmem:[%s9 + $0x200] sm:$0xff]
        %v2972 = vld [vmem:[%s9 + $0x208] sm:$0xff]
        %v2973 = vld [vmem:[%s9 + $0x210] sm:$0xff]
        %v2974 = vld [vmem:[%s9 + $0x218] sm:$0xff]
        %v2975 = vld [vmem:[%s9 + $0x220] sm:$0xff]
        %v2976 = vld [vmem:[%s9 + $0x228] sm:$0xff]
        %v2977 = vld [vmem:[%s9 + $0x230] sm:$0xff]
        %v2978 = vld [vmem:[%s9 + $0x238] sm:$0xff]
        %v2979 = vld [vmem:[%s9 + $0x240] sm:$0xff]
        %v2980 = vld [vmem:[%s9 + $0x248] sm:$0xff]
        %v2981 = vld [vmem:[%s9 + $0x250] sm:$0xff]
        %v2982 = vld [vmem:[%s9 + $0x258] sm:$0xff]
        %v2983 = vld [vmem:[%s9 + $0x260] sm:$0xff]
        %v2984 = vld [vmem:[%s9 + $0x268] sm:$0xff]
        %v2985 = vld [vmem:[%s9 + $0x270] sm:$0xff]
        %v2986 = vld [vmem:[%s9 + $0x278] sm:$0xff]
        %v2987 = vld [vmem:[%s9 + $0x280] sm:$0xff]
        %v2988 = vld [vmem:[%s9 + $0x288] sm:$0xff]
        %v2989 = vld [vmem:[%s9 + $0x290] sm:$0xff]
        %v2990 = vld [vmem:[%s9 + $0x298] sm:$0xff]
        %v2991 = vld [vmem:[%s9 + $0x2a0] sm:$0xff]
        %v2992 = vld [vmem:[%s9 + $0x2a8] sm:$0xff]
        %v2993 = vld [vmem:[%s9 + $0x2b0] sm:$0xff]
        %v2994 = vld [vmem:[%s9 + $0x2b8] sm:$0xff]
        %v2995 = vld [vmem:[%s9 + $0x2c0] sm:$0xff]
        %v2996 = vld [vmem:[%s9 + $0x2c8] sm:$0xff]
        %v2997 = vld [vmem:[%s9 + $0x2d0] sm:$0xff]
        %v2998 = vld [vmem:[%s9 + $0x2d8] sm:$0xff]
        %v2999 = vld [vmem:[%s9 + $0x2e0] sm:$0xff]
        %v3000 = vld [vmem:[%s9 + $0x2e8] sm:$0xff]
        %v3001 = vld [vmem:[%s9 + $0x2f0] sm:$0xff]
        %v3002 = vld [vmem:[%s9 + $0x2f8] sm:$0xff]
        %v3003 = vld [vmem:[%s9 + $0x300] sm:$0xff]
        %v3004 = vld [vmem:[%s9 + $0x308] sm:$0xff]
        %v3005 = vld [vmem:[%s9 + $0x310] sm:$0xff]
        %v3006 = vld [vmem:[%s9 + $0x318] sm:$0xff]
        %v3007 = vld [vmem:[%s9 + $0x320] sm:$0xff]
        %v3008 = vld [vmem:[%s9 + $0x328] sm:$0xff]
        %v3009 = vld [vmem:[%s9 + $0x330] sm:$0xff]
        %v3010 = vld [vmem:[%s9 + $0x338] sm:$0xff]
        %v3011 = vld [vmem:[%s9 + $0x340] sm:$0xff]
        %v3012 = vld [vmem:[%s9 + $0x348] sm:$0xff]
        %v3013 = vld [vmem:[%s9 + $0x350] sm:$0xff]
        %v3014 = vld [vmem:[%s9 + $0x358] sm:$0xff]
        %v3015 = vld [vmem:[%s9 + $0x360] sm:$0xff]
        %v3016 = vld [vmem:[%s9 + $0x368] sm:$0xff]
        %v3017 = vld [vmem:[%s9 + $0x370] sm:$0xff]
        %v3018 = vld [vmem:[%s9 + $0x378] sm:$0xff]
        %v3019 = vld [vmem:[%s9 + $0x380] sm:$0xff]
        %v3020 = vld [vmem:[%s9 + $0x388] sm:$0xff]
        %v3021 = vld [vmem:[%s9 + $0x390] sm:$0xff]
        %v3022 = vld [vmem:[%s9 + $0x398] sm:$0xff]
        %v3023 = vld [vmem:[%s9 + $0x3a0] sm:$0xff]
        %v3024 = vld [vmem:[%s9 + $0x3a8] sm:$0xff]
        %v3025 = vld [vmem:[%s9 + $0x3b0] sm:$0xff]
        %v3026 = vld [vmem:[%s9 + $0x3b8] sm:$0xff]
        %v3027 = vld [vmem:[%s9 + $0x3c0] sm:$0xff]
        %v3028 = vld [vmem:[%s9 + $0x3c8] sm:$0xff]
        %v3029 = vld [vmem:[%s9 + $0x3d0] sm:$0xff]
        %v3030 = vld [vmem:[%s9 + $0x3d8] sm:$0xff]
        %v3031 = vld [vmem:[%s9 + $0x3e0] sm:$0xff]
        %v3032 = vld [vmem:[%s9 + $0x3e8] sm:$0xff]
        %v3033 = vld [vmem:[%s9 + $0x3f0] sm:$0xff]
        %v3034 = vld [vmem:[%s9 + $0x3f8] sm:$0xff]
        %v3035 = vld [vmem:[%s9 + $0x400] sm:$0xff]
        %v3036 = vld [vmem:[%s9 + $0x408] sm:$0xff]
        %v3037 = vld [vmem:[%s9 + $0x410] sm:$0xff]
        %v3038 = vld [vmem:[%s9 + $0x418] sm:$0xff]
        %v3039 = vld [vmem:[%s9 + $0x420] sm:$0xff]
        %v3040 = vld [vmem:[%s9 + $0x428] sm:$0xff]
        %v3041 = vld [vmem:[%s9 + $0x430] sm:$0xff]
        %v3042 = vld [vmem:[%s9 + $0x438] sm:$0xff]
        %v3043 = vld [vmem:[%s9 + $0x440] sm:$0xff]
        %v3044 = vld [vmem:[%s9 + $0x448] sm:$0xff]
        %v3045 = vld [vmem:[%s9 + $0x450] sm:$0xff]
        %v3046 = vld [vmem:[%s9 + $0x458] sm:$0xff]
        %v3047 = vld [vmem:[%s9 + $0x460] sm:$0xff]
        %v3048 = vld [vmem:[%s9 + $0x468] sm:$0xff]
        %v3049 = vld [vmem:[%s9 + $0x470] sm:$0xff]
        %v3050 = vld [vmem:[%s9 + $0x478] sm:$0xff]
        %v3051 = vld [vmem:[%s9 + $0x480] sm:$0xff]
        %v3052 = vld [vmem:[%s9 + $0x488] sm:$0xff]
        %v3053 = vld [vmem:[%s9 + $0x490] sm:$0xff]
        %v3054 = vld [vmem:[%s9 + $0x498] sm:$0xff]
        %v3055 = vld [vmem:[%s9 + $0x4a0] sm:$0xff]
        %v3056 = vld [vmem:[%s9 + $0x4a8] sm:$0xff]
        %v3057 = vld [vmem:[%s9 + $0x4b0] sm:$0xff]
        %v3058 = vld [vmem:[%s9 + $0x4b8] sm:$0xff]
        %v3059 = vld [vmem:[%s9 + $0x4c0] sm:$0xff]
        %v3060 = vld [vmem:[%s9 + $0x4c8] sm:$0xff]
        %v3061 = vld [vmem:[%s9 + $0x4d0] sm:$0xff]
        %v3062 = vld [vmem:[%s9 + $0x4d8] sm:$0xff]
        %v3063 = vld [vmem:[%s9 + $0x4e0] sm:$0xff]
        %v3064 = vld [vmem:[%s9 + $0x4e8] sm:$0xff]
        %v3065 = vld [vmem:[%s9 + $0x4f0] sm:$0xff]
        %v3066 = vld [vmem:[%s9 + $0x4f8] sm:$0xff]
        %v3067 = vld [vmem:[%s9 + $0x500] sm:$0xff]
        %v3068 = vld [vmem:[%s9 + $0x508] sm:$0xff]
        %v3069 = vld [vmem:[%s9 + $0x510] sm:$0xff]
        %v3070 = vld [vmem:[%s9 + $0x518] sm:$0xff]
        %v3071 = vld [vmem:[%s9 + $0x520] sm:$0xff]
        %v3072 = vld [vmem:[%s9 + $0x528] sm:$0xff]
        %v3073 = vld [vmem:[%s9 + $0x530] sm:$0xff]
        %v3074 = vld [vmem:[%s9 + $0x538] sm:$0xff]
        %v3075 = vld [vmem:[%s9 + $0x540] sm:$0xff]
        %v3076 = vld [vmem:[%s9 + $0x548] sm:$0xff]
        %v3077 = vld [vmem:[%s9 + $0x550] sm:$0xff]
        %v3078 = vld [vmem:[%s9 + $0x558] sm:$0xff]
        %v3079 = vld [vmem:[%s9 + $0x560] sm:$0xff]
        %v3080 = vld [vmem:[%s9 + $0x568] sm:$0xff]
        %v3081 = vld [vmem:[%s9 + $0x570] sm:$0xff]
        %v3082 = vld [vmem:[%s9 + $0x578] sm:$0xff]
        %v3083 = vld [vmem:[%s9 + $0x580] sm:$0xff]
        %v3084 = vld [vmem:[%s9 + $0x588] sm:$0xff]
        %v3085 = vld [vmem:[%s9 + $0x590] sm:$0xff]
        %v3086 = vld [vmem:[%s9 + $0x598] sm:$0xff]
        %v3087 = vld [vmem:[%s9 + $0x5a0] sm:$0xff]
        %v3088 = vld [vmem:[%s9 + $0x5a8] sm:$0xff]
        %v3089 = vld [vmem:[%s9 + $0x5b0] sm:$0xff]
        %v3090 = vld [vmem:[%s9 + $0x5b8] sm:$0xff]
        %v3091 = vld [vmem:[%s9 + $0x5c0] sm:$0xff]
        %v3092 = vld [vmem:[%s9 + $0x5c8] sm:$0xff]
        %v3093 = vld [vmem:[%s9 + $0x5d0] sm:$0xff]
        %v3094 = vld [vmem:[%s9 + $0x5d8] sm:$0xff]
        %v3095 = vld [vmem:[%s9 + $0x5e0] sm:$0xff]
        %v3096 = vld [vmem:[%s9 + $0x5e8] sm:$0xff]
        %v3097 = vld [vmem:[%s9 + $0x5f0] sm:$0xff]
        %v3098 = vld [vmem:[%s9 + $0x5f8] sm:$0xff]
        %v3099 = vld [vmem:[%s9 + $0x600] sm:$0xff]
        %v3100 = vld [vmem:[%s9 + $0x608] sm:$0xff]
        %v3101 = vld [vmem:[%s9 + $0x610] sm:$0xff]
        %v3102 = vld [vmem:[%s9 + $0x618] sm:$0xff]
        %v3103 = vld [vmem:[%s9 + $0x620] sm:$0xff]
        %v3104 = vld [vmem:[%s9 + $0x628] sm:$0xff]
        %v3105 = vld [vmem:[%s9 + $0x630] sm:$0xff]
        %v3106 = vld [vmem:[%s9 + $0x638] sm:$0xff]
        %v3107 = vld [vmem:[%s9 + $0x640] sm:$0xff]
        %v3108 = vld [vmem:[%s9 + $0x648] sm:$0xff]
        %v3109 = vld [vmem:[%s9 + $0x650] sm:$0xff]
        %v3110 = vld [vmem:[%s9 + $0x658] sm:$0xff]
        %v3111 = vld [vmem:[%s9 + $0x660] sm:$0xff]
        %v3112 = vld [vmem:[%s9 + $0x668] sm:$0xff]
        %v3113 = vld [vmem:[%s9 + $0x670] sm:$0xff]
        %v3114 = vld [vmem:[%s9 + $0x678] sm:$0xff]
        %v3115 = vld [vmem:[%s9 + $0x680] sm:$0xff]
        %v3116 = vld [vmem:[%s9 + $0x688] sm:$0xff]
        %v3117 = vld [vmem:[%s9 + $0x690] sm:$0xff]
        %v3118 = vld [vmem:[%s9 + $0x698] sm:$0xff]
        %v3119 = vld [vmem:[%s9 + $0x6a0] sm:$0xff]
        %v3120 = vld [vmem:[%s9 + $0x6a8] sm:$0xff]
        %v3121 = vld [vmem:[%s9 + $0x6b0] sm:$0xff]
        %v3122 = vld [vmem:[%s9 + $0x6b8] sm:$0xff]
        %v3123 = vld [vmem:[%s9 + $0x6c0] sm:$0xff]
        %v3124 = vld [vmem:[%s9 + $0x6c8] sm:$0xff]
        %v3125 = vld [vmem:[%s9 + $0x6d0] sm:$0xff]
        %v3126 = vld [vmem:[%s9 + $0x6d8] sm:$0xff]
        %v3127 = vld [vmem:[%s9 + $0x6e0] sm:$0xff]
        %v3128 = vld [vmem:[%s9 + $0x6e8] sm:$0xff]
        %v3129 = vld [vmem:[%s9 + $0x6f0] sm:$0xff]
        %v3130 = vld [vmem:[%s9 + $0x6f8] sm:$0xff]
        %v3131 = vld [vmem:[%s9 + $0x700] sm:$0xff]
        %v3132 = vld [vmem:[%s9 + $0x708] sm:$0xff]
        %v3133 = vld [vmem:[%s9 + $0x710] sm:$0xff]
        %v3134 = vld [vmem:[%s9 + $0x718] sm:$0xff]
        %v3135 = vld [vmem:[%s9 + $0x720] sm:$0xff]
        %v3136 = vld [vmem:[%s9 + $0x728] sm:$0xff]
        %v3137 = vld [vmem:[%s9 + $0x730] sm:$0xff]
        %v3138 = vld [vmem:[%s9 + $0x738] sm:$0xff]
        %v3139 = vld [vmem:[%s9 + $0x740] sm:$0xff]
        %v3140 = vld [vmem:[%s9 + $0x748] sm:$0xff]
        %v3141 = vld [vmem:[%s9 + $0x750] sm:$0xff]
        %v3142 = vld [vmem:[%s9 + $0x758] sm:$0xff]
        %v3143 = vld [vmem:[%s9 + $0x760] sm:$0xff]
        %v3144 = vld [vmem:[%s9 + $0x768] sm:$0xff]
        %v3145 = vld [vmem:[%s9 + $0x770] sm:$0xff]
        %v3146 = vld [vmem:[%s9 + $0x778] sm:$0xff]
        %v3147 = vld [vmem:[%s9 + $0x780] sm:$0xff]
        %v3148 = vld [vmem:[%s9 + $0x788] sm:$0xff]
        %v3149 = vld [vmem:[%s9 + $0x790] sm:$0xff]
        %v3150 = vld [vmem:[%s9 + $0x798] sm:$0xff]
        %v3151 = vld [vmem:[%s9 + $0x7a0] sm:$0xff]
        %v3152 = vld [vmem:[%s9 + $0x7a8] sm:$0xff]
        %v3153 = vld [vmem:[%s9 + $0x7b0] sm:$0xff]
        %v3154 = vld [vmem:[%s9 + $0x7b8] sm:$0xff]
        %v3155 = vld [vmem:[%s9 + $0x7c0] sm:$0xff]
        %v3156 = vld [vmem:[%s9 + $0x7c8] sm:$0xff]
        %v3157 = vld [vmem:[%s9 + $0x7d0] sm:$0xff]
        %v3158 = vld [vmem:[%s9 + $0x7d8] sm:$0xff]
        %v3159 = vld [vmem:[%s9 + $0x7e0] sm:$0xff]
        %v3160 = vld [vmem:[%s9 + $0x7e8] sm:$0xff]
        %v3161 = vld [vmem:[%s9 + $0x7f0] sm:$0xff]
        %v3162 = vld [vmem:[%s9 + $0x7f8] sm:$0xff]
        %v3163 = vld [vmem:[%s10] sm:$0x1]
        %v3165 = vlaneseq
        %v3166 = vshrl.u32 %v3165, 7
        %v3167 = vsub.s32 0, %v3166
        %v3168 = vrot.slane %v3163, %v3167
        %3170 = vmatprep.subr.mxu0 0.0
        %3171 = vmatpush1.msra.mxu0 %v2907
        %3172 = vmatprep.subr.mxu0 0.0
        %3173 = vmatpush1.msra.mxu0 %v2908
        %3174 = vmatprep.subr.mxu0 0.0
        %3175 = vmatpush1.msra.mxu0 %v2909
        %3176 = vmatprep.subr.mxu0 0.0
        %3177 = vmatpush1.msra.mxu0 %v2910
        %3178 = vmatprep.subr.mxu0 0.0
        %3179 = vmatpush1.msra.mxu0 %v2911
        %3180 = vmatprep.subr.mxu0 0.0
        %3181 = vmatpush1.msra.mxu0 %v2912
        %3182 = vmatprep.subr.mxu0 0.0
        %3183 = vmatpush1.msra.mxu0 %v2913
        %3184 = vmatprep.subr.mxu0 0.0
        %3185 = vmatpush1.msra.mxu0 %v2914
        %3186 = vmatprep.subr.mxu0 0.0
        %3187 = vmatpush1.msra.mxu0 %v2915
        %3188 = vmatprep.subr.mxu0 0.0
        %3189 = vmatpush1.msra.mxu0 %v2916
        %3190 = vmatprep.subr.mxu0 0.0
        %3191 = vmatpush1.msra.mxu0 %v2917
        %3192 = vmatprep.subr.mxu0 0.0
        %3193 = vmatpush1.msra.mxu0 %v2918
        %3194 = vmatprep.subr.mxu0 0.0
        %3195 = vmatpush1.msra.mxu0 %v2919
        %3196 = vmatprep.subr.mxu0 0.0
        %3197 = vmatpush1.msra.mxu0 %v2920
        %3198 = vmatprep.subr.mxu0 0.0
        %3199 = vmatpush1.msra.mxu0 %v2921
        %3200 = vmatprep.subr.mxu0 0.0
        %3201 = vmatpush1.msra.mxu0 %v2922
        %3202 = vmatprep.subr.mxu0 0.0
        %3203 = vmatpush1.msra.mxu0 %v2923
        %3204 = vmatprep.subr.mxu0 0.0
        %3205 = vmatpush1.msra.mxu0 %v2924
        %3206 = vmatprep.subr.mxu0 0.0
        %3207 = vmatpush1.msra.mxu0 %v2925
        %3208 = vmatprep.subr.mxu0 0.0
        %3209 = vmatpush1.msra.mxu0 %v2926
        %3210 = vmatprep.subr.mxu0 0.0
        %3211 = vmatpush1.msra.mxu0 %v2927
        %3212 = vmatprep.subr.mxu0 0.0
        %3213 = vmatpush1.msra.mxu0 %v2928
        %3214 = vmatprep.subr.mxu0 0.0
        %3215 = vmatpush1.msra.mxu0 %v2929
        %3216 = vmatprep.subr.mxu0 0.0
        %3217 = vmatpush1.msra.mxu0 %v2930
        %3218 = vmatprep.subr.mxu0 0.0
        %3219 = vmatpush1.msra.mxu0 %v2931
        %3220 = vmatprep.subr.mxu0 0.0
        %3221 = vmatpush1.msra.mxu0 %v2932
        %3222 = vmatprep.subr.mxu0 0.0
        %3223 = vmatpush1.msra.mxu0 %v2933
        %3224 = vmatprep.subr.mxu0 0.0
        %3225 = vmatpush1.msra.mxu0 %v2934
        %3226 = vmatprep.subr.mxu0 0.0
        %3227 = vmatpush1.msra.mxu0 %v2935
        %3228 = vmatprep.subr.mxu0 0.0
        %3229 = vmatpush1.msra.mxu0 %v2936
        %3230 = vmatprep.subr.mxu0 0.0
        %3231 = vmatpush1.msra.mxu0 %v2937
        %3232 = vmatprep.subr.mxu0 0.0
        %3233 = vmatpush1.msra.mxu0 %v2938
        %3234 = vmatprep.mubr.f32.mxu0 %v2892
        %3235 = vmatmul.mubr.f32.gmra.mrb[0].mxu0 %v2891
        %v3236 = vpop.f32.mrb[0].mxu0
        %v3237 = vadd.f32 %v3168, %v3236
        %v3238 = vpop.f32.mrb[0].mxu0
        %3239 = vdwg.mxu0
        %3240 = vmatprep.subr.mxu0 0.0
        %3241 = vmatpush1.msra.mxu0 %v2939
        %3242 = vmatprep.subr.mxu0 0.0
        %3243 = vmatpush1.msra.mxu0 %v2940
        %3244 = vmatprep.subr.mxu0 0.0
        %3245 = vmatpush1.msra.mxu0 %v2941
        %3246 = vmatprep.subr.mxu0 0.0
        %3247 = vmatpush1.msra.mxu0 %v2942
        %3248 = vmatprep.subr.mxu0 0.0
        %3249 = vmatpush1.msra.mxu0 %v2943
        %3250 = vmatprep.subr.mxu0 0.0
        %3251 = vmatpush1.msra.mxu0 %v2944
        %3252 = vmatprep.subr.mxu0 0.0
        %3253 = vmatpush1.msra.mxu0 %v2945
        %3254 = vmatprep.subr.mxu0 0.0
        %3255 = vmatpush1.msra.mxu0 %v2946
        %3256 = vmatprep.subr.mxu0 0.0
        %3257 = vmatpush1.msra.mxu0 %v2947
        %3258 = vmatprep.subr.mxu0 0.0
        %3259 = vmatpush1.msra.mxu0 %v2948
        %3260 = vmatprep.subr.mxu0 0.0
        %3261 = vmatpush1.msra.mxu0 %v2949
        %3262 = vmatprep.subr.mxu0 0.0
        %3263 = vmatpush1.msra.mxu0 %v2950
        %3264 = vmatprep.subr.mxu0 0.0
        %3265 = vmatpush1.msra.mxu0 %v2951
        %3266 = vmatprep.subr.mxu0 0.0
        %3267 = vmatpush1.msra.mxu0 %v2952
        %3268 = vmatprep.subr.mxu0 0.0
        %3269 = vmatpush1.msra.mxu0 %v2953
        %3270 = vmatprep.subr.mxu0 0.0
        %3271 = vmatpush1.msra.mxu0 %v2954
        %3272 = vmatprep.subr.mxu0 0.0
        %3273 = vmatpush1.msra.mxu0 %v2955
        %3274 = vmatprep.subr.mxu0 0.0
        %3275 = vmatpush1.msra.mxu0 %v2956
        %3276 = vmatprep.subr.mxu0 0.0
        %3277 = vmatpush1.msra.mxu0 %v2957
        %3278 = vmatprep.subr.mxu0 0.0
        %3279 = vmatpush1.msra.mxu0 %v2958
        %3280 = vmatprep.subr.mxu0 0.0
        %3281 = vmatpush1.msra.mxu0 %v2959
        %3282 = vmatprep.subr.mxu0 0.0
        %3283 = vmatpush1.msra.mxu0 %v2960
        %3284 = vmatprep.subr.mxu0 0.0
        %3285 = vmatpush1.msra.mxu0 %v2961
        %3286 = vmatprep.subr.mxu0 0.0
        %3287 = vmatpush1.msra.mxu0 %v2962
        %3288 = vmatprep.subr.mxu0 0.0
        %3289 = vmatpush1.msra.mxu0 %v2963
        %3290 = vmatprep.subr.mxu0 0.0
        %3291 = vmatpush1.msra.mxu0 %v2964
        %3292 = vmatprep.subr.mxu0 0.0
        %3293 = vmatpush1.msra.mxu0 %v2965
        %3294 = vmatprep.subr.mxu0 0.0
        %3295 = vmatpush1.msra.mxu0 %v2966
        %3296 = vmatprep.subr.mxu0 0.0
        %3297 = vmatpush1.msra.mxu0 %v2967
        %3298 = vmatprep.subr.mxu0 0.0
        %3299 = vmatpush1.msra.mxu0 %v2968
        %3300 = vmatprep.subr.mxu0 0.0
        %3301 = vmatpush1.msra.mxu0 %v2969
        %3302 = vmatprep.subr.mxu0 0.0
        %3303 = vmatpush1.msra.mxu0 %v2970
        %3304 = vmatprep.mubr.f32.mxu0 %v2894
        %3305 = vmatmul.mubr.f32.gmra.mrb[0].mxu0 %v2893
        %v3306 = vpop.f32.mrb[0].mxu0
        %v3307 = vadd.f32 %v3237, %v3306
        %v3308 = vpop.f32.mrb[0].mxu0
        %3309 = vdwg.mxu0
        %3310 = vmatprep.subr.mxu0 0.0
        %3311 = vmatpush1.msra.mxu0 %v2971
        %3312 = vmatprep.subr.mxu0 0.0
        %3313 = vmatpush1.msra.mxu0 %v2972
        %3314 = vmatprep.subr.mxu0 0.0
        %3315 = vmatpush1.msra.mxu0 %v2973
        %3316 = vmatprep.subr.mxu0 0.0
        %3317 = vmatpush1.msra.mxu0 %v2974
        %3318 = vmatprep.subr.mxu0 0.0
        %3319 = vmatpush1.msra.mxu0 %v2975
        %3320 = vmatprep.subr.mxu0 0.0
        %3321 = vmatpush1.msra.mxu0 %v2976
        %3322 = vmatprep.subr.mxu0 0.0
        %3323 = vmatpush1.msra.mxu0 %v2977
        %3324 = vmatprep.subr.mxu0 0.0
        %3325 = vmatpush1.msra.mxu0 %v2978
        %3326 = vmatprep.subr.mxu0 0.0
        %3327 = vmatpush1.msra.mxu0 %v2979
        %3328 = vmatprep.subr.mxu0 0.0
        %3329 = vmatpush1.msra.mxu0 %v2980
        %3330 = vmatprep.subr.mxu0 0.0
        %3331 = vmatpush1.msra.mxu0 %v2981
        %3332 = vmatprep.subr.mxu0 0.0
        %3333 = vmatpush1.msra.mxu0 %v2982
        %3334 = vmatprep.subr.mxu0 0.0
        %3335 = vmatpush1.msra.mxu0 %v2983
        %3336 = vmatprep.subr.mxu0 0.0
        %3337 = vmatpush1.msra.mxu0 %v2984
        %3338 = vmatprep.subr.mxu0 0.0
        %3339 = vmatpush1.msra.mxu0 %v2985
        %3340 = vmatprep.subr.mxu0 0.0
        %3341 = vmatpush1.msra.mxu0 %v2986
        %3342 = vmatprep.subr.mxu0 0.0
        %3343 = vmatpush1.msra.mxu0 %v2987
        %3344 = vmatprep.subr.mxu0 0.0
        %3345 = vmatpush1.msra.mxu0 %v2988
        %3346 = vmatprep.subr.mxu0 0.0
        %3347 = vmatpush1.msra.mxu0 %v2989
        %3348 = vmatprep.subr.mxu0 0.0
        %3349 = vmatpush1.msra.mxu0 %v2990
        %3350 = vmatprep.subr.mxu0 0.0
        %3351 = vmatpush1.msra.mxu0 %v2991
        %3352 = vmatprep.subr.mxu0 0.0
        %3353 = vmatpush1.msra.mxu0 %v2992
        %3354 = vmatprep.subr.mxu0 0.0
        %3355 = vmatpush1.msra.mxu0 %v2993
        %3356 = vmatprep.subr.mxu0 0.0
        %3357 = vmatpush1.msra.mxu0 %v2994
        %3358 = vmatprep.subr.mxu0 0.0
        %3359 = vmatpush1.msra.mxu0 %v2995
        %3360 = vmatprep.subr.mxu0 0.0
        %3361 = vmatpush1.msra.mxu0 %v2996
        %3362 = vmatprep.subr.mxu0 0.0
        %3363 = vmatpush1.msra.mxu0 %v2997
        %3364 = vmatprep.subr.mxu0 0.0
        %3365 = vmatpush1.msra.mxu0 %v2998
        %3366 = vmatprep.subr.mxu0 0.0
        %3367 = vmatpush1.msra.mxu0 %v2999
        %3368 = vmatprep.subr.mxu0 0.0
        %3369 = vmatpush1.msra.mxu0 %v3000
        %3370 = vmatprep.subr.mxu0 0.0
        %3371 = vmatpush1.msra.mxu0 %v3001
        %3372 = vmatprep.subr.mxu0 0.0
        %3373 = vmatpush1.msra.mxu0 %v3002
        %3374 = vmatprep.mubr.f32.mxu0 %v2896
        %3375 = vmatmul.mubr.f32.gmra.mrb[0].mxu0 %v2895
        %v3376 = vpop.f32.mrb[0].mxu0
        %v3377 = vadd.f32 %v3307, %v3376
        %v3378 = vpop.f32.mrb[0].mxu0
        %3379 = vdwg.mxu0
        %3380 = vmatprep.subr.mxu0 0.0
        %3381 = vmatpush1.msra.mxu0 %v3003
        %3382 = vmatprep.subr.mxu0 0.0
        %3383 = vmatpush1.msra.mxu0 %v3004
        %3384 = vmatprep.subr.mxu0 0.0
        %3385 = vmatpush1.msra.mxu0 %v3005
        %3386 = vmatprep.subr.mxu0 0.0
        %3387 = vmatpush1.msra.mxu0 %v3006
        %3388 = vmatprep.subr.mxu0 0.0
        %3389 = vmatpush1.msra.mxu0 %v3007
        %3390 = vmatprep.subr.mxu0 0.0
        %3391 = vmatpush1.msra.mxu0 %v3008
        %3392 = vmatprep.subr.mxu0 0.0
        %3393 = vmatpush1.msra.mxu0 %v3009
        %3394 = vmatprep.subr.mxu0 0.0
        %3395 = vmatpush1.msra.mxu0 %v3010
        %3396 = vmatprep.subr.mxu0 0.0
        %3397 = vmatpush1.msra.mxu0 %v3011
        %3398 = vmatprep.subr.mxu0 0.0
        %3399 = vmatpush1.msra.mxu0 %v3012
        %3400 = vmatprep.subr.mxu0 0.0
        %3401 = vmatpush1.msra.mxu0 %v3013
        %3402 = vmatprep.subr.mxu0 0.0
        %3403 = vmatpush1.msra.mxu0 %v3014
        %3404 = vmatprep.subr.mxu0 0.0
        %3405 = vmatpush1.msra.mxu0 %v3015
        %3406 = vmatprep.subr.mxu0 0.0
        %3407 = vmatpush1.msra.mxu0 %v3016
        %3408 = vmatprep.subr.mxu0 0.0
        %3409 = vmatpush1.msra.mxu0 %v3017
        %3410 = vmatprep.subr.mxu0 0.0
        %3411 = vmatpush1.msra.mxu0 %v3018
        %3412 = vmatprep.subr.mxu0 0.0
        %3413 = vmatpush1.msra.mxu0 %v3019
        %3414 = vmatprep.subr.mxu0 0.0
        %3415 = vmatpush1.msra.mxu0 %v3020
        %3416 = vmatprep.subr.mxu0 0.0
        %3417 = vmatpush1.msra.mxu0 %v3021
        %3418 = vmatprep.subr.mxu0 0.0
        %3419 = vmatpush1.msra.mxu0 %v3022
        %3420 = vmatprep.subr.mxu0 0.0
        %3421 = vmatpush1.msra.mxu0 %v3023
        %3422 = vmatprep.subr.mxu0 0.0
        %3423 = vmatpush1.msra.mxu0 %v3024
        %3424 = vmatprep.subr.mxu0 0.0
        %3425 = vmatpush1.msra.mxu0 %v3025
        %3426 = vmatprep.subr.mxu0 0.0
        %3427 = vmatpush1.msra.mxu0 %v3026
        %3428 = vmatprep.subr.mxu0 0.0
        %3429 = vmatpush1.msra.mxu0 %v3027
        %3430 = vmatprep.subr.mxu0 0.0
        %3431 = vmatpush1.msra.mxu0 %v3028
        %3432 = vmatprep.subr.mxu0 0.0
        %3433 = vmatpush1.msra.mxu0 %v3029
        %3434 = vmatprep.subr.mxu0 0.0
        %3435 = vmatpush1.msra.mxu0 %v3030
        %3436 = vmatprep.subr.mxu0 0.0
        %3437 = vmatpush1.msra.mxu0 %v3031
        %3438 = vmatprep.subr.mxu0 0.0
        %3439 = vmatpush1.msra.mxu0 %v3032
        %3440 = vmatprep.subr.mxu0 0.0
        %3441 = vmatpush1.msra.mxu0 %v3033
        %3442 = vmatprep.subr.mxu0 0.0
        %3443 = vmatpush1.msra.mxu0 %v3034
        %3444 = vmatprep.mubr.f32.mxu0 %v2898
        %3445 = vmatmul.mubr.f32.gmra.mrb[0].mxu0 %v2897
        %v3446 = vpop.f32.mrb[0].mxu0
        %v3447 = vadd.f32 %v3377, %v3446
        %v3448 = vpop.f32.mrb[0].mxu0
        %3449 = vdwg.mxu0
        %3450 = vmatprep.subr.mxu0 0.0
        %3451 = vmatpush1.msra.mxu0 %v3035
        %3452 = vmatprep.subr.mxu0 0.0
        %3453 = vmatpush1.msra.mxu0 %v3036
        %3454 = vmatprep.subr.mxu0 0.0
        %3455 = vmatpush1.msra.mxu0 %v3037
        %3456 = vmatprep.subr.mxu0 0.0
        %3457 = vmatpush1.msra.mxu0 %v3038
        %3458 = vmatprep.subr.mxu0 0.0
        %3459 = vmatpush1.msra.mxu0 %v3039
        %3460 = vmatprep.subr.mxu0 0.0
        %3461 = vmatpush1.msra.mxu0 %v3040
        %3462 = vmatprep.subr.mxu0 0.0
        %3463 = vmatpush1.msra.mxu0 %v3041
        %3464 = vmatprep.subr.mxu0 0.0
        %3465 = vmatpush1.msra.mxu0 %v3042
        %3466 = vmatprep.subr.mxu0 0.0
        %3467 = vmatpush1.msra.mxu0 %v3043
        %3468 = vmatprep.subr.mxu0 0.0
        %3469 = vmatpush1.msra.mxu0 %v3044
        %3470 = vmatprep.subr.mxu0 0.0
        %3471 = vmatpush1.msra.mxu0 %v3045
        %3472 = vmatprep.subr.mxu0 0.0
        %3473 = vmatpush1.msra.mxu0 %v3046
        %3474 = vmatprep.subr.mxu0 0.0
        %3475 = vmatpush1.msra.mxu0 %v3047
        %3476 = vmatprep.subr.mxu0 0.0
        %3477 = vmatpush1.msra.mxu0 %v3048
        %3478 = vmatprep.subr.mxu0 0.0
        %3479 = vmatpush1.msra.mxu0 %v3049
        %3480 = vmatprep.subr.mxu0 0.0
        %3481 = vmatpush1.msra.mxu0 %v3050
        %3482 = vmatprep.subr.mxu0 0.0
        %3483 = vmatpush1.msra.mxu0 %v3051
        %3484 = vmatprep.subr.mxu0 0.0
        %3485 = vmatpush1.msra.mxu0 %v3052
        %3486 = vmatprep.subr.mxu0 0.0
        %3487 = vmatpush1.msra.mxu0 %v3053
        %3488 = vmatprep.subr.mxu0 0.0
        %3489 = vmatpush1.msra.mxu0 %v3054
        %3490 = vmatprep.subr.mxu0 0.0
        %3491 = vmatpush1.msra.mxu0 %v3055
        %3492 = vmatprep.subr.mxu0 0.0
        %3493 = vmatpush1.msra.mxu0 %v3056
        %3494 = vmatprep.subr.mxu0 0.0
        %3495 = vmatpush1.msra.mxu0 %v3057
        %3496 = vmatprep.subr.mxu0 0.0
        %3497 = vmatpush1.msra.mxu0 %v3058
        %3498 = vmatprep.subr.mxu0 0.0
        %3499 = vmatpush1.msra.mxu0 %v3059
        %3500 = vmatprep.subr.mxu0 0.0
        %3501 = vmatpush1.msra.mxu0 %v3060
        %3502 = vmatprep.subr.mxu0 0.0
        %3503 = vmatpush1.msra.mxu0 %v3061
        %3504 = vmatprep.subr.mxu0 0.0
        %3505 = vmatpush1.msra.mxu0 %v3062
        %3506 = vmatprep.subr.mxu0 0.0
        %3507 = vmatpush1.msra.mxu0 %v3063
        %3508 = vmatprep.subr.mxu0 0.0
        %3509 = vmatpush1.msra.mxu0 %v3064
        %3510 = vmatprep.subr.mxu0 0.0
        %3511 = vmatpush1.msra.mxu0 %v3065
        %3512 = vmatprep.subr.mxu0 0.0
        %3513 = vmatpush1.msra.mxu0 %v3066
        %3514 = vmatprep.mubr.f32.mxu0 %v2900
        %3515 = vmatmul.mubr.f32.gmra.mrb[0].mxu0 %v2899
        %v3516 = vpop.f32.mrb[0].mxu0
        %v3517 = vadd.f32 %v3447, %v3516
        %v3518 = vpop.f32.mrb[0].mxu0
        %3519 = vdwg.mxu0
        %3520 = vmatprep.subr.mxu0 0.0
        %3521 = vmatpush1.msra.mxu0 %v3067
        %3522 = vmatprep.subr.mxu0 0.0
        %3523 = vmatpush1.msra.mxu0 %v3068
        %3524 = vmatprep.subr.mxu0 0.0
        %3525 = vmatpush1.msra.mxu0 %v3069
        %3526 = vmatprep.subr.mxu0 0.0
        %3527 = vmatpush1.msra.mxu0 %v3070
        %3528 = vmatprep.subr.mxu0 0.0
        %3529 = vmatpush1.msra.mxu0 %v3071
        %3530 = vmatprep.subr.mxu0 0.0
        %3531 = vmatpush1.msra.mxu0 %v3072
        %3532 = vmatprep.subr.mxu0 0.0
        %3533 = vmatpush1.msra.mxu0 %v3073
        %3534 = vmatprep.subr.mxu0 0.0
        %3535 = vmatpush1.msra.mxu0 %v3074
        %3536 = vmatprep.subr.mxu0 0.0
        %3537 = vmatpush1.msra.mxu0 %v3075
        %3538 = vmatprep.subr.mxu0 0.0
        %3539 = vmatpush1.msra.mxu0 %v3076
        %3540 = vmatprep.subr.mxu0 0.0
        %3541 = vmatpush1.msra.mxu0 %v3077
        %3542 = vmatprep.subr.mxu0 0.0
        %3543 = vmatpush1.msra.mxu0 %v3078
        %3544 = vmatprep.subr.mxu0 0.0
        %3545 = vmatpush1.msra.mxu0 %v3079
        %3546 = vmatprep.subr.mxu0 0.0
        %3547 = vmatpush1.msra.mxu0 %v3080
        %3548 = vmatprep.subr.mxu0 0.0
        %3549 = vmatpush1.msra.mxu0 %v3081
        %3550 = vmatprep.subr.mxu0 0.0
        %3551 = vmatpush1.msra.mxu0 %v3082
        %3552 = vmatprep.subr.mxu0 0.0
        %3553 = vmatpush1.msra.mxu0 %v3083
        %3554 = vmatprep.subr.mxu0 0.0
        %3555 = vmatpush1.msra.mxu0 %v3084
        %3556 = vmatprep.subr.mxu0 0.0
        %3557 = vmatpush1.msra.mxu0 %v3085
        %3558 = vmatprep.subr.mxu0 0.0
        %3559 = vmatpush1.msra.mxu0 %v3086
        %3560 = vmatprep.subr.mxu0 0.0
        %3561 = vmatpush1.msra.mxu0 %v3087
        %3562 = vmatprep.subr.mxu0 0.0
        %3563 = vmatpush1.msra.mxu0 %v3088
        %3564 = vmatprep.subr.mxu0 0.0
        %3565 = vmatpush1.msra.mxu0 %v3089
        %3566 = vmatprep.subr.mxu0 0.0
        %3567 = vmatpush1.msra.mxu0 %v3090
        %3568 = vmatprep.subr.mxu0 0.0
        %3569 = vmatpush1.msra.mxu0 %v3091
        %3570 = vmatprep.subr.mxu0 0.0
        %3571 = vmatpush1.msra.mxu0 %v3092
        %3572 = vmatprep.subr.mxu0 0.0
        %3573 = vmatpush1.msra.mxu0 %v3093
        %3574 = vmatprep.subr.mxu0 0.0
        %3575 = vmatpush1.msra.mxu0 %v3094
        %3576 = vmatprep.subr.mxu0 0.0
        %3577 = vmatpush1.msra.mxu0 %v3095
        %3578 = vmatprep.subr.mxu0 0.0
        %3579 = vmatpush1.msra.mxu0 %v3096
        %3580 = vmatprep.subr.mxu0 0.0
        %3581 = vmatpush1.msra.mxu0 %v3097
        %3582 = vmatprep.subr.mxu0 0.0
        %3583 = vmatpush1.msra.mxu0 %v3098
        %3584 = vmatprep.mubr.f32.mxu0 %v2902
        %3585 = vmatmul.mubr.f32.gmra.mrb[0].mxu0 %v2901
        %v3586 = vpop.f32.mrb[0].mxu0
        %v3587 = vadd.f32 %v3517, %v3586
        %v3588 = vpop.f32.mrb[0].mxu0
        %3589 = vdwg.mxu0
        %3590 = vmatprep.subr.mxu0 0.0
        %3591 = vmatpush1.msra.mxu0 %v3099
        %3592 = vmatprep.subr.mxu0 0.0
        %3593 = vmatpush1.msra.mxu0 %v3100
        %3594 = vmatprep.subr.mxu0 0.0
        %3595 = vmatpush1.msra.mxu0 %v3101
        %3596 = vmatprep.subr.mxu0 0.0
        %3597 = vmatpush1.msra.mxu0 %v3102
        %3598 = vmatprep.subr.mxu0 0.0
        %3599 = vmatpush1.msra.mxu0 %v3103
        %3600 = vmatprep.subr.mxu0 0.0
        %3601 = vmatpush1.msra.mxu0 %v3104
        %3602 = vmatprep.subr.mxu0 0.0
        %3603 = vmatpush1.msra.mxu0 %v3105
        %3604 = vmatprep.subr.mxu0 0.0
        %3605 = vmatpush1.msra.mxu0 %v3106
        %3606 = vmatprep.subr.mxu0 0.0
        %3607 = vmatpush1.msra.mxu0 %v3107
        %3608 = vmatprep.subr.mxu0 0.0
        %3609 = vmatpush1.msra.mxu0 %v3108
        %3610 = vmatprep.subr.mxu0 0.0
        %3611 = vmatpush1.msra.mxu0 %v3109
        %3612 = vmatprep.subr.mxu0 0.0
        %3613 = vmatpush1.msra.mxu0 %v3110
        %3614 = vmatprep.subr.mxu0 0.0
        %3615 = vmatpush1.msra.mxu0 %v3111
        %3616 = vmatprep.subr.mxu0 0.0
        %3617 = vmatpush1.msra.mxu0 %v3112
        %3618 = vmatprep.subr.mxu0 0.0
        %3619 = vmatpush1.msra.mxu0 %v3113
        %3620 = vmatprep.subr.mxu0 0.0
        %3621 = vmatpush1.msra.mxu0 %v3114
        %3622 = vmatprep.subr.mxu0 0.0
        %3623 = vmatpush1.msra.mxu0 %v3115
        %3624 = vmatprep.subr.mxu0 0.0
        %3625 = vmatpush1.msra.mxu0 %v3116
        %3626 = vmatprep.subr.mxu0 0.0
        %3627 = vmatpush1.msra.mxu0 %v3117
        %3628 = vmatprep.subr.mxu0 0.0
        %3629 = vmatpush1.msra.mxu0 %v3118
        %3630 = vmatprep.subr.mxu0 0.0
        %3631 = vmatpush1.msra.mxu0 %v3119
        %3632 = vmatprep.subr.mxu0 0.0
        %3633 = vmatpush1.msra.mxu0 %v3120
        %3634 = vmatprep.subr.mxu0 0.0
        %3635 = vmatpush1.msra.mxu0 %v3121
        %3636 = vmatprep.subr.mxu0 0.0
        %3637 = vmatpush1.msra.mxu0 %v3122
        %3638 = vmatprep.subr.mxu0 0.0
        %3639 = vmatpush1.msra.mxu0 %v3123
        %3640 = vmatprep.subr.mxu0 0.0
        %3641 = vmatpush1.msra.mxu0 %v3124
        %3642 = vmatprep.subr.mxu0 0.0
        %3643 = vmatpush1.msra.mxu0 %v3125
        %3644 = vmatprep.subr.mxu0 0.0
        %3645 = vmatpush1.msra.mxu0 %v3126
        %3646 = vmatprep.subr.mxu0 0.0
        %3647 = vmatpush1.msra.mxu0 %v3127
        %3648 = vmatprep.subr.mxu0 0.0
        %3649 = vmatpush1.msra.mxu0 %v3128
        %3650 = vmatprep.subr.mxu0 0.0
        %3651 = vmatpush1.msra.mxu0 %v3129
        %3652 = vmatprep.subr.mxu0 0.0
        %3653 = vmatpush1.msra.mxu0 %v3130
        %3654 = vmatprep.mubr.f32.mxu0 %v2904
        %3655 = vmatmul.mubr.f32.gmra.mrb[0].mxu0 %v2903
        %v3656 = vpop.f32.mrb[0].mxu0
        %v3657 = vadd.f32 %v3587, %v3656
        %v3658 = vpop.f32.mrb[0].mxu0
        %3659 = vdwg.mxu0
        %3660 = vmatprep.subr.mxu0 0.0
        %3661 = vmatpush1.msra.mxu0 %v3131
        %3662 = vmatprep.subr.mxu0 0.0
        %3663 = vmatpush1.msra.mxu0 %v3132
        %3664 = vmatprep.subr.mxu0 0.0
        %3665 = vmatpush1.msra.mxu0 %v3133
        %3666 = vmatprep.subr.mxu0 0.0
        %3667 = vmatpush1.msra.mxu0 %v3134
        %3668 = vmatprep.subr.mxu0 0.0
        %3669 = vmatpush1.msra.mxu0 %v3135
        %3670 = vmatprep.subr.mxu0 0.0
        %3671 = vmatpush1.msra.mxu0 %v3136
        %3672 = vmatprep.subr.mxu0 0.0
        %3673 = vmatpush1.msra.mxu0 %v3137
        %3674 = vmatprep.subr.mxu0 0.0
        %3675 = vmatpush1.msra.mxu0 %v3138
        %3676 = vmatprep.subr.mxu0 0.0
        %3677 = vmatpush1.msra.mxu0 %v3139
        %3678 = vmatprep.subr.mxu0 0.0
        %3679 = vmatpush1.msra.mxu0 %v3140
        %3680 = vmatprep.subr.mxu0 0.0
        %3681 = vmatpush1.msra.mxu0 %v3141
        %3682 = vmatprep.subr.mxu0 0.0
        %3683 = vmatpush1.msra.mxu0 %v3142
        %3684 = vmatprep.subr.mxu0 0.0
        %3685 = vmatpush1.msra.mxu0 %v3143
        %3686 = vmatprep.subr.mxu0 0.0
        %3687 = vmatpush1.msra.mxu0 %v3144
        %3688 = vmatprep.subr.mxu0 0.0
        %3689 = vmatpush1.msra.mxu0 %v3145
        %3690 = vmatprep.subr.mxu0 0.0
        %3691 = vmatpush1.msra.mxu0 %v3146
        %3692 = vmatprep.subr.mxu0 0.0
        %3693 = vmatpush1.msra.mxu0 %v3147
        %3694 = vmatprep.subr.mxu0 0.0
        %3695 = vmatpush1.msra.mxu0 %v3148
        %3696 = vmatprep.subr.mxu0 0.0
        %3697 = vmatpush1.msra.mxu0 %v3149
        %3698 = vmatprep.subr.mxu0 0.0
        %3699 = vmatpush1.msra.mxu0 %v3150
        %3700 = vmatprep.subr.mxu0 0.0
        %3701 = vmatpush1.msra.mxu0 %v3151
        %3702 = vmatprep.subr.mxu0 0.0
        %3703 = vmatpush1.msra.mxu0 %v3152
        %3704 = vmatprep.subr.mxu0 0.0
        %3705 = vmatpush1.msra.mxu0 %v3153
        %3706 = vmatprep.subr.mxu0 0.0
        %3707 = vmatpush1.msra.mxu0 %v3154
        %3708 = vmatprep.subr.mxu0 0.0
        %3709 = vmatpush1.msra.mxu0 %v3155
        %3710 = vmatprep.subr.mxu0 0.0
        %3711 = vmatpush1.msra.mxu0 %v3156
        %3712 = vmatprep.subr.mxu0 0.0
        %3713 = vmatpush1.msra.mxu0 %v3157
        %3714 = vmatprep.subr.mxu0 0.0
        %3715 = vmatpush1.msra.mxu0 %v3158
        %3716 = vmatprep.subr.mxu0 0.0
        %3717 = vmatpush1.msra.mxu0 %v3159
        %3718 = vmatprep.subr.mxu0 0.0
        %3719 = vmatpush1.msra.mxu0 %v3160
        %3720 = vmatprep.subr.mxu0 0.0
        %3721 = vmatpush1.msra.mxu0 %v3161
        %3722 = vmatprep.subr.mxu0 0.0
        %3723 = vmatpush1.msra.mxu0 %v3162
        %3724 = vmatprep.mubr.f32.mxu0 %v2906
        %3725 = vmatmul.mubr.f32.gmra.mrb[0].mxu0 %v2905
        %v3726 = vpop.f32.mrb[0].mxu0
        %v3727 = vadd.f32 %v3657, %v3726
        %v3728 = vpop.f32.mrb[0].mxu0
        %3729 = vdwg.mxu0
        %v3730 = vadd.f32 %v2171, %v3727
        %v3731 = vld [vmem:[%s13] sm:$0x1]
        %v3732 = vld [vmem:[%s14] sm:$0x1]
        %v3733 = vsel %vm585, %v3730, 0.0
        %3734 = vadd.xlane.f32.xlu0 %v3733
        %v3735 = vpop.xlane.xlu0 %3734
        %v3736 = vmul.f32 %v3735, %v2147
        %v3737 = vsub.f32 %v3730, %v3736
        %v3738 = vmul.f32 %v3737, %v3737
        %v3739 = vsel %vm585, %v3738, 0.0
        %3740 = vadd.xlane.f32.xlu0 %v3739
        %v3741 = vpop.xlane.xlu0 %3740
        %v3742 = vmul.f32 %v3741, %v2147
        %v3743 = vadd.f32 %v3742, 1e-05
        %v3744 = vrsqrt.pop %v3743
        %v3745 = vmul.f32 %v3737, %v3744
        %v3747 = vlaneseq
        %v3748 = vshrl.u32 %v3747, 7
        %v3749 = vsub.s32 0, %v3748
        %v3750 = vrot.slane %v3731, %v3749
        %v3752 = vmul.f32 %v3745, %v3750
        %v3754 = vlaneseq
        %v3755 = vshrl.u32 %v3754, 7
        %v3756 = vsub.s32 0, %v3755
        %v3757 = vrot.slane %v3732, %v3756
        %v3759 = vadd.f32 %v3752, %v3757
        %s3760 = scalar_lea.vmem %s3, 32
        %v3761 = vld [vmem:[%s3760] sm:$0xff]
        %v3762 = vld [vmem:[%s3760 + $0x8] sm:$0xff]
        %v3763 = vld [vmem:[%s3760 + $0x10] sm:$0xff]
        %v3764 = vld [vmem:[%s3760 + $0x18] sm:$0xff]
        %s3765 = scalar_lea.vmem %s4, 1
        %v3766 = vld [vmem:[%s3765] sm:$0x1]
        %v3768 = vlaneseq
        %v3769 = vshrl.u32 %v3768, 7
        %v3770 = vsub.s32 0, %v3769
        %v3771 = vrot.slane %v3766, %v3770
        %v3774 = vsel %vm585, %v3759, 0
        %3776 = vmatprep.subr.mxu0 0.0
        %3777 = vmatpush1.msra.mxu0 %v3761
        %3778 = vmatprep.subr.mxu0 0.0
        %3779 = vmatpush1.msra.mxu0 %v3762
        %3780 = vmatprep.subr.mxu0 0.0
        %3781 = vmatpush1.msra.mxu0 %v3763
        %3782 = vmatprep.subr.mxu0 0.0
        %3783 = vmatpush1.msra.mxu0 %v3764
        %3784 = vmatprep.subr.mxu0 0.0
        %3785 = vmatpush1.msra.mxu0 0.0
        %3786 = vmatprep.subr.mxu0 0.0
        %3787 = vmatpush1.msra.mxu0 0.0
        %3788 = vmatprep.subr.mxu0 0.0
        %3789 = vmatpush1.msra.mxu0 0.0
        %3790 = vmatprep.subr.mxu0 0.0
        %3791 = vmatpush1.msra.mxu0 0.0
        %3792 = vmatprep.subr.mxu0 0.0
        %3793 = vmatpush1.msra.mxu0 0.0
        %3794 = vmatprep.subr.mxu0 0.0
        %3795 = vmatpush1.msra.mxu0 0.0
        %3796 = vmatprep.subr.mxu0 0.0
        %3797 = vmatpush1.msra.mxu0 0.0
        %3798 = vmatprep.subr.mxu0 0.0
        %3799 = vmatpush1.msra.mxu0 0.0
        %3800 = vmatprep.subr.mxu0 0.0
        %3801 = vmatpush1.msra.mxu0 0.0
        %3802 = vmatprep.subr.mxu0 0.0
        %3803 = vmatpush1.msra.mxu0 0.0
        %3804 = vmatprep.subr.mxu0 0.0
        %3805 = vmatpush1.msra.mxu0 0.0
        %3806 = vmatprep.subr.mxu0 0.0
        %3807 = vmatpush1.msra.mxu0 0.0
        %3808 = vmatprep.subr.mxu0 0.0
        %3809 = vmatpush1.msra.mxu0 0.0
        %3810 = vmatprep.subr.mxu0 0.0
        %3811 = vmatpush1.msra.mxu0 0.0
        %3812 = vmatprep.subr.mxu0 0.0
        %3813 = vmatpush1.msra.mxu0 0.0
        %3814 = vmatprep.subr.mxu0 0.0
        %3815 = vmatpush1.msra.mxu0 0.0
        %3816 = vmatprep.subr.mxu0 0.0
        %3817 = vmatpush1.msra.mxu0 0.0
        %3818 = vmatprep.subr.mxu0 0.0
        %3819 = vmatpush1.msra.mxu0 0.0
        %3820 = vmatprep.subr.mxu0 0.0
        %3821 = vmatpush1.msra.mxu0 0.0
        %3822 = vmatprep.subr.mxu0 0.0
        %3823 = vmatpush1.msra.mxu0 0.0
        %3824 = vmatprep.subr.mxu0 0.0
        %3825 = vmatpush1.msra.mxu0 0.0
        %3826 = vmatprep.subr.mxu0 0.0
        %3827 = vmatpush1.msra.mxu0 0.0
        %3828 = vmatprep.subr.mxu0 0.0
        %3829 = vmatpush1.msra.mxu0 0.0
        %3830 = vmatprep.subr.mxu0 0.0
        %3831 = vmatpush1.msra.mxu0 0.0
        %3832 = vmatprep.subr.mxu0 0.0
        %3833 = vmatpush1.msra.mxu0 0.0
        %3834 = vmatprep.subr.mxu0 0.0
        %3835 = vmatpush1.msra.mxu0 0.0
        %3836 = vmatprep.subr.mxu0 0.0
        %3837 = vmatpush1.msra.mxu0 0.0
        %3838 = vmatprep.subr.mxu0 0.0
        %3839 = vmatpush1.msra.mxu0 0.0
        %3840 = vmatprep.mubr.f32.mxu0 0.0
        %3841 = vmatmul.mubr.f32.gmra.mrb[0].mxu0 %v3774
        %v3842 = vpop.f32.mrb[0].mxu0
        %v3843 = vadd.f32 %v3771, %v3842
        %v3844 = vpop.f32.mrb[0].mxu0
        %3845 = vdwg.mxu0
        %3846 = vst.msk [vmem:[#allocation2] sm:$0xff] %vm659, %v3843
        %v3847 = vld [vmem:[#allocation2] sm:$0xff]
        %v3848 = vmul.f32 %v3847, 0.5
        %3850 = vrot.lane.b32.xlu0 %v3847, 96
        %v3851 = vpop.permute.xlu0 %3850
        %v3853 = vsel %vm666, %v3848, 0
        %v3855 = vsel %vm666, %v3851, 0
        %3857 = vmatprep.subr.mxu0 0.0
        %3858 = vmatpush1.xpose.msra.mxu0 %v3855
        %3859 = vmatprep.subr.mxu0 0.0
        %3860 = vmatpush1.xpose.msra.mxu0 0.0
        %3861 = vmatprep.subr.mxu0 0.0
        %3862 = vmatpush1.xpose.msra.mxu0 0.0
        %3863 = vmatprep.subr.mxu0 0.0
        %3864 = vmatpush1.xpose.msra.mxu0 0.0
        %3865 = vmatprep.subr.mxu0 0.0
        %3866 = vmatpush1.xpose.msra.mxu0 0.0
        %3867 = vmatprep.subr.mxu0 0.0
        %3868 = vmatpush1.xpose.msra.mxu0 0.0
        %3869 = vmatprep.subr.mxu0 0.0
        %3870 = vmatpush1.xpose.msra.mxu0 0.0
        %3871 = vmatprep.subr.mxu0 0.0
        %3872 = vmatpush1.xpose.msra.mxu0 0.0
        %3873 = vmatprep.subr.mxu0 0.0
        %3874 = vmatpush1.xpose.msra.mxu0 0.0
        %3875 = vmatprep.subr.mxu0 0.0
        %3876 = vmatpush1.xpose.msra.mxu0 0.0
        %3877 = vmatprep.subr.mxu0 0.0
        %3878 = vmatpush1.xpose.msra.mxu0 0.0
        %3879 = vmatprep.subr.mxu0 0.0
        %3880 = vmatpush1.xpose.msra.mxu0 0.0
        %3881 = vmatprep.subr.mxu0 0.0
        %3882 = vmatpush1.xpose.msra.mxu0 0.0
        %3883 = vmatprep.subr.mxu0 0.0
        %3884 = vmatpush1.xpose.msra.mxu0 0.0
        %3885 = vmatprep.subr.mxu0 0.0
        %3886 = vmatpush1.xpose.msra.mxu0 0.0
        %3887 = vmatprep.subr.mxu0 0.0
        %3888 = vmatpush1.xpose.msra.mxu0 0.0
        %3889 = vmatprep.subr.mxu0 0.0
        %3890 = vmatpush1.xpose.msra.mxu0 0.0
        %3891 = vmatprep.subr.mxu0 0.0
        %3892 = vmatpush1.xpose.msra.mxu0 0.0
        %3893 = vmatprep.subr.mxu0 0.0
        %3894 = vmatpush1.xpose.msra.mxu0 0.0
        %3895 = vmatprep.subr.mxu0 0.0
        %3896 = vmatpush1.xpose.msra.mxu0 0.0
        %3897 = vmatprep.subr.mxu0 0.0
        %3898 = vmatpush1.xpose.msra.mxu0 0.0
        %3899 = vmatprep.subr.mxu0 0.0
        %3900 = vmatpush1.xpose.msra.mxu0 0.0
        %3901 = vmatprep.subr.mxu0 0.0
        %3902 = vmatpush1.xpose.msra.mxu0 0.0
        %3903 = vmatprep.subr.mxu0 0.0
        %3904 = vmatpush1.xpose.msra.mxu0 0.0
        %3905 = vmatprep.subr.mxu0 0.0
        %3906 = vmatpush1.xpose.msra.mxu0 0.0
        %3907 = vmatprep.subr.mxu0 0.0
        %3908 = vmatpush1.xpose.msra.mxu0 0.0
        %3909 = vmatprep.subr.mxu0 0.0
        %3910 = vmatpush1.xpose.msra.mxu0 0.0
        %3911 = vmatprep.subr.mxu0 0.0
        %3912 = vmatpush1.xpose.msra.mxu0 0.0
        %3913 = vmatprep.subr.mxu0 0.0
        %3914 = vmatpush1.xpose.msra.mxu0 0.0
        %3915 = vmatprep.subr.mxu0 0.0
        %3916 = vmatpush1.xpose.msra.mxu0 0.0
        %3917 = vmatprep.subr.mxu0 0.0
        %3918 = vmatpush1.xpose.msra.mxu0 0.0
        %3919 = vmatprep.subr.mxu0 0.0
        %3920 = vmatpush1.xpose.msra.mxu0 0.0
        %3921 = vmatprep.mubr.f32.mxu0 0.0
        %3922 = vmatmul.mubr.f32.gmra.mrb[0].mxu0 %v3853
        %v3923 = vpop.f32.mrb[0].mxu0
        %v3924 = vadd.f32 0.0, %v3923
        %v3925 = vpop.f32.mrb[0].mxu0
        %3926 = vdwg.mxu0
        %v3927 = vsel %vm742, %v3924, -inf
        %3928 = vmax.xlane.f32.xlu0 %v3927
        %v3929 = vpop.xlane.xlu0 %3928
        %v3930 = vsub.f32 %v3924, %v3929
        %v3931 = vmul.f32 %v3930, 1.442695
        %v3932 = vpow.pop %v3931
        %v3933 = vsel %vm742, %v3932, 0.0
        %3934 = vadd.xlane.f32.xlu0 %v3933
        %v3935 = vpop.xlane.xlu0 %3934
        %v3936 = vrcp.pop %v3935
        %3937 = vrot.lane.b32.xlu0 %v3847, 64
        %v3938 = vpop.permute.xlu0 %3937
        %v3941 = vsel %vm742, %v3932, 0
        %3943 = vmatprep.subr.mxu0 0.0
        %3944 = vmatpush1.msra.mxu0 %v3938
        %3945 = vmatprep.subr.mxu0 0.0
        %3946 = vmatpush1.msra.mxu0 0.0
        %3947 = vmatprep.subr.mxu0 0.0
        %3948 = vmatpush1.msra.mxu0 0.0
        %3949 = vmatprep.subr.mxu0 0.0
        %3950 = vmatpush1.msra.mxu0 0.0
        %3951 = vmatprep.subr.mxu0 0.0
        %3952 = vmatpush1.msra.mxu0 0.0
        %3953 = vmatprep.subr.mxu0 0.0
        %3954 = vmatpush1.msra.mxu0 0.0
        %3955 = vmatprep.subr.mxu0 0.0
        %3956 = vmatpush1.msra.mxu0 0.0
        %3957 = vmatprep.subr.mxu0 0.0
        %3958 = vmatpush1.msra.mxu0 0.0
        %3959 = vmatprep.subr.mxu0 0.0
        %3960 = vmatpush1.msra.mxu0 0.0
        %3961 = vmatprep.subr.mxu0 0.0
        %3962 = vmatpush1.msra.mxu0 0.0
        %3963 = vmatprep.subr.mxu0 0.0
        %3964 = vmatpush1.msra.mxu0 0.0
        %3965 = vmatprep.subr.mxu0 0.0
        %3966 = vmatpush1.msra.mxu0 0.0
        %3967 = vmatprep.subr.mxu0 0.0
        %3968 = vmatpush1.msra.mxu0 0.0
        %3969 = vmatprep.subr.mxu0 0.0
        %3970 = vmatpush1.msra.mxu0 0.0
        %3971 = vmatprep.subr.mxu0 0.0
        %3972 = vmatpush1.msra.mxu0 0.0
        %3973 = vmatprep.subr.mxu0 0.0
        %3974 = vmatpush1.msra.mxu0 0.0
        %3975 = vmatprep.subr.mxu0 0.0
        %3976 = vmatpush1.msra.mxu0 0.0
        %3977 = vmatprep.subr.mxu0 0.0
        %3978 = vmatpush1.msra.mxu0 0.0
        %3979 = vmatprep.subr.mxu0 0.0
        %3980 = vmatpush1.msra.mxu0 0.0
        %3981 = vmatprep.subr.mxu0 0.0
        %3982 = vmatpush1.msra.mxu0 0.0
        %3983 = vmatprep.subr.mxu0 0.0
        %3984 = vmatpush1.msra.mxu0 0.0
        %3985 = vmatprep.subr.mxu0 0.0
        %3986 = vmatpush1.msra.mxu0 0.0
        %3987 = vmatprep.subr.mxu0 0.0
        %3988 = vmatpush1.msra.mxu0 0.0
        %3989 = vmatprep.subr.mxu0 0.0
        %3990 = vmatpush1.msra.mxu0 0.0
        %3991 = vmatprep.subr.mxu0 0.0
        %3992 = vmatpush1.msra.mxu0 0.0
        %3993 = vmatprep.subr.mxu0 0.0
        %3994 = vmatpush1.msra.mxu0 0.0
        %3995 = vmatprep.subr.mxu0 0.0
        %3996 = vmatpush1.msra.mxu0 0.0
        %3997 = vmatprep.subr.mxu0 0.0
        %3998 = vmatpush1.msra.mxu0 0.0
        %3999 = vmatprep.subr.mxu0 0.0
        %4000 = vmatpush1.msra.mxu0 0.0
        %4001 = vmatprep.subr.mxu0 0.0
        %4002 = vmatpush1.msra.mxu0 0.0
        %4003 = vmatprep.subr.mxu0 0.0
        %4004 = vmatpush1.msra.mxu0 0.0
        %4005 = vmatprep.subr.mxu0 0.0
        %4006 = vmatpush1.msra.mxu0 0.0
        %4007 = vmatprep.mubr.f32.mxu0 0.0
        %4008 = vmatmul.mubr.f32.gmra.mrb[0].mxu0 %v3941
        %v4009 = vpop.f32.mrb[0].mxu0
        %v4010 = vadd.f32 0.0, %v4009
        %v4011 = vpop.f32.mrb[0].mxu0
        %4012 = vdwg.mxu0
        %v4013 = vmul.f32 %v4010, %v3936
        %4014 = vst.msk [vmem:[#allocation3] sm:$0xff] %vm666, %v4013
        %v4015 = vld [vmem:[#allocation2] sm:$0xff]
        %v4016 = vmul.f32 %v4015, 0.5
        %4018 = vrot.lane.b32.xlu0 %v4016, 124
        %v4019 = vpop.permute.xlu0 %4018
        %4021 = vrot.lane.b32.xlu0 %v4015, 92
        %v4022 = vpop.permute.xlu0 %4021
        %v4023 = vsel %vm666, %v4019, 0
        %v4025 = vsel %vm666, %v4022, 0
        %4027 = vmatprep.subr.mxu0 0.0
        %4028 = vmatpush1.xpose.msra.mxu0 %v4025
        %4029 = vmatprep.subr.mxu0 0.0
        %4030 = vmatpush1.xpose.msra.mxu0 0.0
        %4031 = vmatprep.subr.mxu0 0.0
        %4032 = vmatpush1.xpose.msra.mxu0 0.0
        %4033 = vmatprep.subr.mxu0 0.0
        %4034 = vmatpush1.xpose.msra.mxu0 0.0
        %4035 = vmatprep.subr.mxu0 0.0
        %4036 = vmatpush1.xpose.msra.mxu0 0.0
        %4037 = vmatprep.subr.mxu0 0.0
        %4038 = vmatpush1.xpose.msra.mxu0 0.0
        %4039 = vmatprep.subr.mxu0 0.0
        %4040 = vmatpush1.xpose.msra.mxu0 0.0
        %4041 = vmatprep.subr.mxu0 0.0
        %4042 = vmatpush1.xpose.msra.mxu0 0.0
        %4043 = vmatprep.subr.mxu0 0.0
        %4044 = vmatpush1.xpose.msra.mxu0 0.0
        %4045 = vmatprep.subr.mxu0 0.0
        %4046 = vmatpush1.xpose.msra.mxu0 0.0
        %4047 = vmatprep.subr.mxu0 0.0
        %4048 = vmatpush1.xpose.msra.mxu0 0.0
        %4049 = vmatprep.subr.mxu0 0.0
        %4050 = vmatpush1.xpose.msra.mxu0 0.0
        %4051 = vmatprep.subr.mxu0 0.0
        %4052 = vmatpush1.xpose.msra.mxu0 0.0
        %4053 = vmatprep.subr.mxu0 0.0
        %4054 = vmatpush1.xpose.msra.mxu0 0.0
        %4055 = vmatprep.subr.mxu0 0.0
        %4056 = vmatpush1.xpose.msra.mxu0 0.0
        %4057 = vmatprep.subr.mxu0 0.0
        %4058 = vmatpush1.xpose.msra.mxu0 0.0
        %4059 = vmatprep.subr.mxu0 0.0
        %4060 = vmatpush1.xpose.msra.mxu0 0.0
        %4061 = vmatprep.subr.mxu0 0.0
        %4062 = vmatpush1.xpose.msra.mxu0 0.0
        %4063 = vmatprep.subr.mxu0 0.0
        %4064 = vmatpush1.xpose.msra.mxu0 0.0
        %4065 = vmatprep.subr.mxu0 0.0
        %4066 = vmatpush1.xpose.msra.mxu0 0.0
        %4067 = vmatprep.subr.mxu0 0.0
        %4068 = vmatpush1.xpose.msra.mxu0 0.0
        %4069 = vmatprep.subr.mxu0 0.0
        %4070 = vmatpush1.xpose.msra.mxu0 0.0
        %4071 = vmatprep.subr.mxu0 0.0
        %4072 = vmatpush1.xpose.msra.mxu0 0.0
        %4073 = vmatprep.subr.mxu0 0.0
        %4074 = vmatpush1.xpose.msra.mxu0 0.0
        %4075 = vmatprep.subr.mxu0 0.0
        %4076 = vmatpush1.xpose.msra.mxu0 0.0
        %4077 = vmatprep.subr.mxu0 0.0
        %4078 = vmatpush1.xpose.msra.mxu0 0.0
        %4079 = vmatprep.subr.mxu0 0.0
        %4080 = vmatpush1.xpose.msra.mxu0 0.0
        %4081 = vmatprep.subr.mxu0 0.0
        %4082 = vmatpush1.xpose.msra.mxu0 0.0
        %4083 = vmatprep.subr.mxu0 0.0
        %4084 = vmatpush1.xpose.msra.mxu0 0.0
        %4085 = vmatprep.subr.mxu0 0.0
        %4086 = vmatpush1.xpose.msra.mxu0 0.0
        %4087 = vmatprep.subr.mxu0 0.0
        %4088 = vmatpush1.xpose.msra.mxu0 0.0
        %4089 = vmatprep.subr.mxu0 0.0
        %4090 = vmatpush1.xpose.msra.mxu0 0.0
        %4091 = vmatprep.mubr.f32.mxu0 0.0
        %4092 = vmatmul.mubr.f32.gmra.mrb[0].mxu0 %v4023
        %v4093 = vpop.f32.mrb[0].mxu0
        %v4094 = vadd.f32 0.0, %v4093
        %v4095 = vpop.f32.mrb[0].mxu0
        %4096 = vdwg.mxu0
        %v4097 = vsel %vm742, %v4094, -inf
        %4098 = vmax.xlane.f32.xlu0 %v4097
        %v4099 = vpop.xlane.xlu0 %4098
        %v4100 = vsub.f32 %v4094, %v4099
        %v4101 = vmul.f32 %v4100, 1.442695
        %v4102 = vpow.pop %v4101
        %v4103 = vsel %vm742, %v4102, 0.0
        %4104 = vadd.xlane.f32.xlu0 %v4103
        %v4105 = vpop.xlane.xlu0 %4104
        %v4106 = vrcp.pop %v4105
        %4107 = vrot.lane.b32.xlu0 %v4015, 60
        %v4108 = vpop.permute.xlu0 %4107
        %v4111 = vsel %vm742, %v4102, 0
        %4113 = vmatprep.subr.mxu0 0.0
        %4114 = vmatpush1.msra.mxu0 %v4108
        %4115 = vmatprep.subr.mxu0 0.0
        %4116 = vmatpush1.msra.mxu0 0.0
        %4117 = vmatprep.subr.mxu0 0.0
        %4118 = vmatpush1.msra.mxu0 0.0
        %4119 = vmatprep.subr.mxu0 0.0
        %4120 = vmatpush1.msra.mxu0 0.0
        %4121 = vmatprep.subr.mxu0 0.0
        %4122 = vmatpush1.msra.mxu0 0.0
        %4123 = vmatprep.subr.mxu0 0.0
        %4124 = vmatpush1.msra.mxu0 0.0
        %4125 = vmatprep.subr.mxu0 0.0
        %4126 = vmatpush1.msra.mxu0 0.0
        %4127 = vmatprep.subr.mxu0 0.0
        %4128 = vmatpush1.msra.mxu0 0.0
        %4129 = vmatprep.subr.mxu0 0.0
        %4130 = vmatpush1.msra.mxu0 0.0
        %4131 = vmatprep.subr.mxu0 0.0
        %4132 = vmatpush1.msra.mxu0 0.0
        %4133 = vmatprep.subr.mxu0 0.0
        %4134 = vmatpush1.msra.mxu0 0.0
        %4135 = vmatprep.subr.mxu0 0.0
        %4136 = vmatpush1.msra.mxu0 0.0
        %4137 = vmatprep.subr.mxu0 0.0
        %4138 = vmatpush1.msra.mxu0 0.0
        %4139 = vmatprep.subr.mxu0 0.0
        %4140 = vmatpush1.msra.mxu0 0.0
        %4141 = vmatprep.subr.mxu0 0.0
        %4142 = vmatpush1.msra.mxu0 0.0
        %4143 = vmatprep.subr.mxu0 0.0
        %4144 = vmatpush1.msra.mxu0 0.0
        %4145 = vmatprep.subr.mxu0 0.0
        %4146 = vmatpush1.msra.mxu0 0.0
        %4147 = vmatprep.subr.mxu0 0.0
        %4148 = vmatpush1.msra.mxu0 0.0
        %4149 = vmatprep.subr.mxu0 0.0
        %4150 = vmatpush1.msra.mxu0 0.0
        %4151 = vmatprep.subr.mxu0 0.0
        %4152 = vmatpush1.msra.mxu0 0.0
        %4153 = vmatprep.subr.mxu0 0.0
        %4154 = vmatpush1.msra.mxu0 0.0
        %4155 = vmatprep.subr.mxu0 0.0
        %4156 = vmatpush1.msra.mxu0 0.0
        %4157 = vmatprep.subr.mxu0 0.0
        %4158 = vmatpush1.msra.mxu0 0.0
        %4159 = vmatprep.subr.mxu0 0.0
        %4160 = vmatpush1.msra.mxu0 0.0
        %4161 = vmatprep.subr.mxu0 0.0
        %4162 = vmatpush1.msra.mxu0 0.0
        %4163 = vmatprep.subr.mxu0 0.0
        %4164 = vmatpush1.msra.mxu0 0.0
        %4165 = vmatprep.subr.mxu0 0.0
        %4166 = vmatpush1.msra.mxu0 0.0
        %4167 = vmatprep.subr.mxu0 0.0
        %4168 = vmatpush1.msra.mxu0 0.0
        %4169 = vmatprep.subr.mxu0 0.0
        %4170 = vmatpush1.msra.mxu0 0.0
        %4171 = vmatprep.subr.mxu0 0.0
        %4172 = vmatpush1.msra.mxu0 0.0
        %4173 = vmatprep.subr.mxu0 0.0
        %4174 = vmatpush1.msra.mxu0 0.0
        %4175 = vmatprep.subr.mxu0 0.0
        %4176 = vmatpush1.msra.mxu0 0.0
        %4177 = vmatprep.mubr.f32.mxu0 0.0
        %4178 = vmatmul.mubr.f32.gmra.mrb[0].mxu0 %v4111
        %v4179 = vpop.f32.mrb[0].mxu0
        %v4180 = vadd.f32 0.0, %v4179
        %v4181 = vpop.f32.mrb[0].mxu0
        %4182 = vdwg.mxu0
        %v4183 = vmul.f32 %v4180, %v4106
        %4185 = vrot.lane.b32.xlu0 %v4183, 4
        %v4186 = vpop.permute.xlu0 %4185
        %4188 = vst.msk [vmem:[#allocation3] sm:$0xff] %vm1004, %v4186
        %v4189 = vld [vmem:[#allocation2] sm:$0xff]
        %v4190 = vmul.f32 %v4189, 0.5
        %4192 = vrot.lane.b32.xlu0 %v4190, 120
        %v4193 = vpop.permute.xlu0 %4192
        %4195 = vrot.lane.b32.xlu0 %v4189, 88
        %v4196 = vpop.permute.xlu0 %4195
        %v4197 = vsel %vm666, %v4193, 0
        %v4199 = vsel %vm666, %v4196, 0
        %4201 = vmatprep.subr.mxu0 0.0
        %4202 = vmatpush1.xpose.msra.mxu0 %v4199
        %4203 = vmatprep.subr.mxu0 0.0
        %4204 = vmatpush1.xpose.msra.mxu0 0.0
        %4205 = vmatprep.subr.mxu0 0.0
        %4206 = vmatpush1.xpose.msra.mxu0 0.0
        %4207 = vmatprep.subr.mxu0 0.0
        %4208 = vmatpush1.xpose.msra.mxu0 0.0
        %4209 = vmatprep.subr.mxu0 0.0
        %4210 = vmatpush1.xpose.msra.mxu0 0.0
        %4211 = vmatprep.subr.mxu0 0.0
        %4212 = vmatpush1.xpose.msra.mxu0 0.0
        %4213 = vmatprep.subr.mxu0 0.0
        %4214 = vmatpush1.xpose.msra.mxu0 0.0
        %4215 = vmatprep.subr.mxu0 0.0
        %4216 = vmatpush1.xpose.msra.mxu0 0.0
        %4217 = vmatprep.subr.mxu0 0.0
        %4218 = vmatpush1.xpose.msra.mxu0 0.0
        %4219 = vmatprep.subr.mxu0 0.0
        %4220 = vmatpush1.xpose.msra.mxu0 0.0
        %4221 = vmatprep.subr.mxu0 0.0
        %4222 = vmatpush1.xpose.msra.mxu0 0.0
        %4223 = vmatprep.subr.mxu0 0.0
        %4224 = vmatpush1.xpose.msra.mxu0 0.0
        %4225 = vmatprep.subr.mxu0 0.0
        %4226 = vmatpush1.xpose.msra.mxu0 0.0
        %4227 = vmatprep.subr.mxu0 0.0
        %4228 = vmatpush1.xpose.msra.mxu0 0.0
        %4229 = vmatprep.subr.mxu0 0.0
        %4230 = vmatpush1.xpose.msra.mxu0 0.0
        %4231 = vmatprep.subr.mxu0 0.0
        %4232 = vmatpush1.xpose.msra.mxu0 0.0
        %4233 = vmatprep.subr.mxu0 0.0
        %4234 = vmatpush1.xpose.msra.mxu0 0.0
        %4235 = vmatprep.subr.mxu0 0.0
        %4236 = vmatpush1.xpose.msra.mxu0 0.0
        %4237 = vmatprep.subr.mxu0 0.0
        %4238 = vmatpush1.xpose.msra.mxu0 0.0
        %4239 = vmatprep.subr.mxu0 0.0
        %4240 = vmatpush1.xpose.msra.mxu0 0.0
        %4241 = vmatprep.subr.mxu0 0.0
        %4242 = vmatpush1.xpose.msra.mxu0 0.0
        %4243 = vmatprep.subr.mxu0 0.0
        %4244 = vmatpush1.xpose.msra.mxu0 0.0
        %4245 = vmatprep.subr.mxu0 0.0
        %4246 = vmatpush1.xpose.msra.mxu0 0.0
        %4247 = vmatprep.subr.mxu0 0.0
        %4248 = vmatpush1.xpose.msra.mxu0 0.0
        %4249 = vmatprep.subr.mxu0 0.0
        %4250 = vmatpush1.xpose.msra.mxu0 0.0
        %4251 = vmatprep.subr.mxu0 0.0
        %4252 = vmatpush1.xpose.msra.mxu0 0.0
        %4253 = vmatprep.subr.mxu0 0.0
        %4254 = vmatpush1.xpose.msra.mxu0 0.0
        %4255 = vmatprep.subr.mxu0 0.0
        %4256 = vmatpush1.xpose.msra.mxu0 0.0
        %4257 = vmatprep.subr.mxu0 0.0
        %4258 = vmatpush1.xpose.msra.mxu0 0.0
        %4259 = vmatprep.subr.mxu0 0.0
        %4260 = vmatpush1.xpose.msra.mxu0 0.0
        %4261 = vmatprep.subr.mxu0 0.0
        %4262 = vmatpush1.xpose.msra.mxu0 0.0
        %4263 = vmatprep.subr.mxu0 0.0
        %4264 = vmatpush1.xpose.msra.mxu0 0.0
        %4265 = vmatprep.mubr.f32.mxu0 0.0
        %4266 = vmatmul.mubr.f32.gmra.mrb[0].mxu0 %v4197
        %v4267 = vpop.f32.mrb[0].mxu0
        %v4268 = vadd.f32 0.0, %v4267
        %v4269 = vpop.f32.mrb[0].mxu0
        %4270 = vdwg.mxu0
        %v4271 = vsel %vm742, %v4268, -inf
        %4272 = vmax.xlane.f32.xlu0 %v4271
        %v4273 = vpop.xlane.xlu0 %4272
        %v4274 = vsub.f32 %v4268, %v4273
        %v4275 = vmul.f32 %v4274, 1.442695
        %v4276 = vpow.pop %v4275
        %v4277 = vsel %vm742, %v4276, 0.0
        %4278 = vadd.xlane.f32.xlu0 %v4277
        %v4279 = vpop.xlane.xlu0 %4278
        %v4280 = vrcp.pop %v4279
        %4281 = vrot.lane.b32.xlu0 %v4189, 56
        %v4282 = vpop.permute.xlu0 %4281
        %v4285 = vsel %vm742, %v4276, 0
        %4287 = vmatprep.subr.mxu0 0.0
        %4288 = vmatpush1.msra.mxu0 %v4282
        %4289 = vmatprep.subr.mxu0 0.0
        %4290 = vmatpush1.msra.mxu0 0.0
        %4291 = vmatprep.subr.mxu0 0.0
        %4292 = vmatpush1.msra.mxu0 0.0
        %4293 = vmatprep.subr.mxu0 0.0
        %4294 = vmatpush1.msra.mxu0 0.0
        %4295 = vmatprep.subr.mxu0 0.0
        %4296 = vmatpush1.msra.mxu0 0.0
        %4297 = vmatprep.subr.mxu0 0.0
        %4298 = vmatpush1.msra.mxu0 0.0
        %4299 = vmatprep.subr.mxu0 0.0
        %4300 = vmatpush1.msra.mxu0 0.0
        %4301 = vmatprep.subr.mxu0 0.0
        %4302 = vmatpush1.msra.mxu0 0.0
        %4303 = vmatprep.subr.mxu0 0.0
        %4304 = vmatpush1.msra.mxu0 0.0
        %4305 = vmatprep.subr.mxu0 0.0
        %4306 = vmatpush1.msra.mxu0 0.0
        %4307 = vmatprep.subr.mxu0 0.0
        %4308 = vmatpush1.msra.mxu0 0.0
        %4309 = vmatprep.subr.mxu0 0.0
        %4310 = vmatpush1.msra.mxu0 0.0
        %4311 = vmatprep.subr.mxu0 0.0
        %4312 = vmatpush1.msra.mxu0 0.0
        %4313 = vmatprep.subr.mxu0 0.0
        %4314 = vmatpush1.msra.mxu0 0.0
        %4315 = vmatprep.subr.mxu0 0.0
        %4316 = vmatpush1.msra.mxu0 0.0
        %4317 = vmatprep.subr.mxu0 0.0
        %4318 = vmatpush1.msra.mxu0 0.0
        %4319 = vmatprep.subr.mxu0 0.0
        %4320 = vmatpush1.msra.mxu0 0.0
        %4321 = vmatprep.subr.mxu0 0.0
        %4322 = vmatpush1.msra.mxu0 0.0
        %4323 = vmatprep.subr.mxu0 0.0
        %4324 = vmatpush1.msra.mxu0 0.0
        %4325 = vmatprep.subr.mxu0 0.0
        %4326 = vmatpush1.msra.mxu0 0.0
        %4327 = vmatprep.subr.mxu0 0.0
        %4328 = vmatpush1.msra.mxu0 0.0
        %4329 = vmatprep.subr.mxu0 0.0
        %4330 = vmatpush1.msra.mxu0 0.0
        %4331 = vmatprep.subr.mxu0 0.0
        %4332 = vmatpush1.msra.mxu0 0.0
        %4333 = vmatprep.subr.mxu0 0.0
        %4334 = vmatpush1.msra.mxu0 0.0
        %4335 = vmatprep.subr.mxu0 0.0
        %4336 = vmatpush1.msra.mxu0 0.0
        %4337 = vmatprep.subr.mxu0 0.0
        %4338 = vmatpush1.msra.mxu0 0.0
        %4339 = vmatprep.subr.mxu0 0.0
        %4340 = vmatpush1.msra.mxu0 0.0
        %4341 = vmatprep.subr.mxu0 0.0
        %4342 = vmatpush1.msra.mxu0 0.0
        %4343 = vmatprep.subr.mxu0 0.0
        %4344 = vmatpush1.msra.mxu0 0.0
        %4345 = vmatprep.subr.mxu0 0.0
        %4346 = vmatpush1.msra.mxu0 0.0
        %4347 = vmatprep.subr.mxu0 0.0
        %4348 = vmatpush1.msra.mxu0 0.0
        %4349 = vmatprep.subr.mxu0 0.0
        %4350 = vmatpush1.msra.mxu0 0.0
        %4351 = vmatprep.mubr.f32.mxu0 0.0
        %4352 = vmatmul.mubr.f32.gmra.mrb[0].mxu0 %v4285
        %v4353 = vpop.f32.mrb[0].mxu0
        %v4354 = vadd.f32 0.0, %v4353
        %v4355 = vpop.f32.mrb[0].mxu0
        %4356 = vdwg.mxu0
        %v4357 = vmul.f32 %v4354, %v4280
        %4359 = vrot.lane.b32.xlu0 %v4357, 8
        %v4360 = vpop.permute.xlu0 %4359
        %4362 = vst.msk [vmem:[#allocation3] sm:$0xff] %vm1179, %v4360
        %v4363 = vld [vmem:[#allocation2] sm:$0xff]
        %v4364 = vmul.f32 %v4363, 0.5
        %4366 = vrot.lane.b32.xlu0 %v4364, 116
        %v4367 = vpop.permute.xlu0 %4366
        %4369 = vrot.lane.b32.xlu0 %v4363, 84
        %v4370 = vpop.permute.xlu0 %4369
        %v4371 = vsel %vm666, %v4367, 0
        %v4373 = vsel %vm666, %v4370, 0
        %4375 = vmatprep.subr.mxu0 0.0
        %4376 = vmatpush1.xpose.msra.mxu0 %v4373
        %4377 = vmatprep.subr.mxu0 0.0
        %4378 = vmatpush1.xpose.msra.mxu0 0.0
        %4379 = vmatprep.subr.mxu0 0.0
        %4380 = vmatpush1.xpose.msra.mxu0 0.0
        %4381 = vmatprep.subr.mxu0 0.0
        %4382 = vmatpush1.xpose.msra.mxu0 0.0
        %4383 = vmatprep.subr.mxu0 0.0
        %4384 = vmatpush1.xpose.msra.mxu0 0.0
        %4385 = vmatprep.subr.mxu0 0.0
        %4386 = vmatpush1.xpose.msra.mxu0 0.0
        %4387 = vmatprep.subr.mxu0 0.0
        %4388 = vmatpush1.xpose.msra.mxu0 0.0
        %4389 = vmatprep.subr.mxu0 0.0
        %4390 = vmatpush1.xpose.msra.mxu0 0.0
        %4391 = vmatprep.subr.mxu0 0.0
        %4392 = vmatpush1.xpose.msra.mxu0 0.0
        %4393 = vmatprep.subr.mxu0 0.0
        %4394 = vmatpush1.xpose.msra.mxu0 0.0
        %4395 = vmatprep.subr.mxu0 0.0
        %4396 = vmatpush1.xpose.msra.mxu0 0.0
        %4397 = vmatprep.subr.mxu0 0.0
        %4398 = vmatpush1.xpose.msra.mxu0 0.0
        %4399 = vmatprep.subr.mxu0 0.0
        %4400 = vmatpush1.xpose.msra.mxu0 0.0
        %4401 = vmatprep.subr.mxu0 0.0
        %4402 = vmatpush1.xpose.msra.mxu0 0.0
        %4403 = vmatprep.subr.mxu0 0.0
        %4404 = vmatpush1.xpose.msra.mxu0 0.0
        %4405 = vmatprep.subr.mxu0 0.0
        %4406 = vmatpush1.xpose.msra.mxu0 0.0
        %4407 = vmatprep.subr.mxu0 0.0
        %4408 = vmatpush1.xpose.msra.mxu0 0.0
        %4409 = vmatprep.subr.mxu0 0.0
        %4410 = vmatpush1.xpose.msra.mxu0 0.0
        %4411 = vmatprep.subr.mxu0 0.0
        %4412 = vmatpush1.xpose.msra.mxu0 0.0
        %4413 = vmatprep.subr.mxu0 0.0
        %4414 = vmatpush1.xpose.msra.mxu0 0.0
        %4415 = vmatprep.subr.mxu0 0.0
        %4416 = vmatpush1.xpose.msra.mxu0 0.0
        %4417 = vmatprep.subr.mxu0 0.0
        %4418 = vmatpush1.xpose.msra.mxu0 0.0
        %4419 = vmatprep.subr.mxu0 0.0
        %4420 = vmatpush1.xpose.msra.mxu0 0.0
        %4421 = vmatprep.subr.mxu0 0.0
        %4422 = vmatpush1.xpose.msra.mxu0 0.0
        %4423 = vmatprep.subr.mxu0 0.0
        %4424 = vmatpush1.xpose.msra.mxu0 0.0
        %4425 = vmatprep.subr.mxu0 0.0
        %4426 = vmatpush1.xpose.msra.mxu0 0.0
        %4427 = vmatprep.subr.mxu0 0.0
        %4428 = vmatpush1.xpose.msra.mxu0 0.0
        %4429 = vmatprep.subr.mxu0 0.0
        %4430 = vmatpush1.xpose.msra.mxu0 0.0
        %4431 = vmatprep.subr.mxu0 0.0
        %4432 = vmatpush1.xpose.msra.mxu0 0.0
        %4433 = vmatprep.subr.mxu0 0.0
        %4434 = vmatpush1.xpose.msra.mxu0 0.0
        %4435 = vmatprep.subr.mxu0 0.0
        %4436 = vmatpush1.xpose.msra.mxu0 0.0
        %4437 = vmatprep.subr.mxu0 0.0
        %4438 = vmatpush1.xpose.msra.mxu0 0.0
        %4439 = vmatprep.mubr.f32.mxu0 0.0
        %4440 = vmatmul.mubr.f32.gmra.mrb[0].mxu0 %v4371
        %v4441 = vpop.f32.mrb[0].mxu0
        %v4442 = vadd.f32 0.0, %v4441
        %v4443 = vpop.f32.mrb[0].mxu0
        %4444 = vdwg.mxu0
        %v4445 = vsel %vm742, %v4442, -inf
        %4446 = vmax.xlane.f32.xlu0 %v4445
        %v4447 = vpop.xlane.xlu0 %4446
        %v4448 = vsub.f32 %v4442, %v4447
        %v4449 = vmul.f32 %v4448, 1.442695
        %v4450 = vpow.pop %v4449
        %v4451 = vsel %vm742, %v4450, 0.0
        %4452 = vadd.xlane.f32.xlu0 %v4451
        %v4453 = vpop.xlane.xlu0 %4452
        %v4454 = vrcp.pop %v4453
        %4455 = vrot.lane.b32.xlu0 %v4363, 52
        %v4456 = vpop.permute.xlu0 %4455
        %v4459 = vsel %vm742, %v4450, 0
        %4461 = vmatprep.subr.mxu0 0.0
        %4462 = vmatpush1.msra.mxu0 %v4456
        %4463 = vmatprep.subr.mxu0 0.0
        %4464 = vmatpush1.msra.mxu0 0.0
        %4465 = vmatprep.subr.mxu0 0.0
        %4466 = vmatpush1.msra.mxu0 0.0
        %4467 = vmatprep.subr.mxu0 0.0
        %4468 = vmatpush1.msra.mxu0 0.0
        %4469 = vmatprep.subr.mxu0 0.0
        %4470 = vmatpush1.msra.mxu0 0.0
        %4471 = vmatprep.subr.mxu0 0.0
        %4472 = vmatpush1.msra.mxu0 0.0
        %4473 = vmatprep.subr.mxu0 0.0
        %4474 = vmatpush1.msra.mxu0 0.0
        %4475 = vmatprep.subr.mxu0 0.0
        %4476 = vmatpush1.msra.mxu0 0.0
        %4477 = vmatprep.subr.mxu0 0.0
        %4478 = vmatpush1.msra.mxu0 0.0
        %4479 = vmatprep.subr.mxu0 0.0
        %4480 = vmatpush1.msra.mxu0 0.0
        %4481 = vmatprep.subr.mxu0 0.0
        %4482 = vmatpush1.msra.mxu0 0.0
        %4483 = vmatprep.subr.mxu0 0.0
        %4484 = vmatpush1.msra.mxu0 0.0
        %4485 = vmatprep.subr.mxu0 0.0
        %4486 = vmatpush1.msra.mxu0 0.0
        %4487 = vmatprep.subr.mxu0 0.0
        %4488 = vmatpush1.msra.mxu0 0.0
        %4489 = vmatprep.subr.mxu0 0.0
        %4490 = vmatpush1.msra.mxu0 0.0
        %4491 = vmatprep.subr.mxu0 0.0
        %4492 = vmatpush1.msra.mxu0 0.0
        %4493 = vmatprep.subr.mxu0 0.0
        %4494 = vmatpush1.msra.mxu0 0.0
        %4495 = vmatprep.subr.mxu0 0.0
        %4496 = vmatpush1.msra.mxu0 0.0
        %4497 = vmatprep.subr.mxu0 0.0
        %4498 = vmatpush1.msra.mxu0 0.0
        %4499 = vmatprep.subr.mxu0 0.0
        %4500 = vmatpush1.msra.mxu0 0.0
        %4501 = vmatprep.subr.mxu0 0.0
        %4502 = vmatpush1.msra.mxu0 0.0
        %4503 = vmatprep.subr.mxu0 0.0
        %4504 = vmatpush1.msra.mxu0 0.0
        %4505 = vmatprep.subr.mxu0 0.0
        %4506 = vmatpush1.msra.mxu0 0.0
        %4507 = vmatprep.subr.mxu0 0.0
        %4508 = vmatpush1.msra.mxu0 0.0
        %4509 = vmatprep.subr.mxu0 0.0
        %4510 = vmatpush1.msra.mxu0 0.0
        %4511 = vmatprep.subr.mxu0 0.0
        %4512 = vmatpush1.msra.mxu0 0.0
        %4513 = vmatprep.subr.mxu0 0.0
        %4514 = vmatpush1.msra.mxu0 0.0
        %4515 = vmatprep.subr.mxu0 0.0
        %4516 = vmatpush1.msra.mxu0 0.0
        %4517 = vmatprep.subr.mxu0 0.0
        %4518 = vmatpush1.msra.mxu0 0.0
        %4519 = vmatprep.subr.mxu0 0.0
        %4520 = vmatpush1.msra.mxu0 0.0
        %4521 = vmatprep.subr.mxu0 0.0
        %4522 = vmatpush1.msra.mxu0 0.0
        %4523 = vmatprep.subr.mxu0 0.0
        %4524 = vmatpush1.msra.mxu0 0.0
        %4525 = vmatprep.mubr.f32.mxu0 0.0
        %4526 = vmatmul.mubr.f32.gmra.mrb[0].mxu0 %v4459
        %v4527 = vpop.f32.mrb[0].mxu0
        %v4528 = vadd.f32 0.0, %v4527
        %v4529 = vpop.f32.mrb[0].mxu0
        %4530 = vdwg.mxu0
        %v4531 = vmul.f32 %v4528, %v4454
        %4533 = vrot.lane.b32.xlu0 %v4531, 12
        %v4534 = vpop.permute.xlu0 %4533
        %4536 = vst.msk [vmem:[#allocation3] sm:$0xff] %vm1354, %v4534
        %v4537 = vld [vmem:[#allocation2] sm:$0xff]
        %v4538 = vmul.f32 %v4537, 0.5
        %4540 = vrot.lane.b32.xlu0 %v4538, 112
        %v4541 = vpop.permute.xlu0 %4540
        %4543 = vrot.lane.b32.xlu0 %v4537, 80
        %v4544 = vpop.permute.xlu0 %4543
        %v4545 = vsel %vm666, %v4541, 0
        %v4547 = vsel %vm666, %v4544, 0
        %4549 = vmatprep.subr.mxu0 0.0
        %4550 = vmatpush1.xpose.msra.mxu0 %v4547
        %4551 = vmatprep.subr.mxu0 0.0
        %4552 = vmatpush1.xpose.msra.mxu0 0.0
        %4553 = vmatprep.subr.mxu0 0.0
        %4554 = vmatpush1.xpose.msra.mxu0 0.0
        %4555 = vmatprep.subr.mxu0 0.0
        %4556 = vmatpush1.xpose.msra.mxu0 0.0
        %4557 = vmatprep.subr.mxu0 0.0
        %4558 = vmatpush1.xpose.msra.mxu0 0.0
        %4559 = vmatprep.subr.mxu0 0.0
        %4560 = vmatpush1.xpose.msra.mxu0 0.0
        %4561 = vmatprep.subr.mxu0 0.0
        %4562 = vmatpush1.xpose.msra.mxu0 0.0
        %4563 = vmatprep.subr.mxu0 0.0
        %4564 = vmatpush1.xpose.msra.mxu0 0.0
        %4565 = vmatprep.subr.mxu0 0.0
        %4566 = vmatpush1.xpose.msra.mxu0 0.0
        %4567 = vmatprep.subr.mxu0 0.0
        %4568 = vmatpush1.xpose.msra.mxu0 0.0
        %4569 = vmatprep.subr.mxu0 0.0
        %4570 = vmatpush1.xpose.msra.mxu0 0.0
        %4571 = vmatprep.subr.mxu0 0.0
        %4572 = vmatpush1.xpose.msra.mxu0 0.0
        %4573 = vmatprep.subr.mxu0 0.0
        %4574 = vmatpush1.xpose.msra.mxu0 0.0
        %4575 = vmatprep.subr.mxu0 0.0
        %4576 = vmatpush1.xpose.msra.mxu0 0.0
        %4577 = vmatprep.subr.mxu0 0.0
        %4578 = vmatpush1.xpose.msra.mxu0 0.0
        %4579 = vmatprep.subr.mxu0 0.0
        %4580 = vmatpush1.xpose.msra.mxu0 0.0
        %4581 = vmatprep.subr.mxu0 0.0
        %4582 = vmatpush1.xpose.msra.mxu0 0.0
        %4583 = vmatprep.subr.mxu0 0.0
        %4584 = vmatpush1.xpose.msra.mxu0 0.0
        %4585 = vmatprep.subr.mxu0 0.0
        %4586 = vmatpush1.xpose.msra.mxu0 0.0
        %4587 = vmatprep.subr.mxu0 0.0
        %4588 = vmatpush1.xpose.msra.mxu0 0.0
        %4589 = vmatprep.subr.mxu0 0.0
        %4590 = vmatpush1.xpose.msra.mxu0 0.0
        %4591 = vmatprep.subr.mxu0 0.0
        %4592 = vmatpush1.xpose.msra.mxu0 0.0
        %4593 = vmatprep.subr.mxu0 0.0
        %4594 = vmatpush1.xpose.msra.mxu0 0.0
        %4595 = vmatprep.subr.mxu0 0.0
        %4596 = vmatpush1.xpose.msra.mxu0 0.0
        %4597 = vmatprep.subr.mxu0 0.0
        %4598 = vmatpush1.xpose.msra.mxu0 0.0
        %4599 = vmatprep.subr.mxu0 0.0
        %4600 = vmatpush1.xpose.msra.mxu0 0.0
        %4601 = vmatprep.subr.mxu0 0.0
        %4602 = vmatpush1.xpose.msra.mxu0 0.0
        %4603 = vmatprep.subr.mxu0 0.0
        %4604 = vmatpush1.xpose.msra.mxu0 0.0
        %4605 = vmatprep.subr.mxu0 0.0
        %4606 = vmatpush1.xpose.msra.mxu0 0.0
        %4607 = vmatprep.subr.mxu0 0.0
        %4608 = vmatpush1.xpose.msra.mxu0 0.0
        %4609 = vmatprep.subr.mxu0 0.0
        %4610 = vmatpush1.xpose.msra.mxu0 0.0
        %4611 = vmatprep.subr.mxu0 0.0
        %4612 = vmatpush1.xpose.msra.mxu0 0.0
        %4613 = vmatprep.mubr.f32.mxu0 0.0
        %4614 = vmatmul.mubr.f32.gmra.mrb[0].mxu0 %v4545
        %v4615 = vpop.f32.mrb[0].mxu0
        %v4616 = vadd.f32 0.0, %v4615
        %v4617 = vpop.f32.mrb[0].mxu0
        %4618 = vdwg.mxu0
        %v4619 = vsel %vm742, %v4616, -inf
        %4620 = vmax.xlane.f32.xlu0 %v4619
        %v4621 = vpop.xlane.xlu0 %4620
        %v4622 = vsub.f32 %v4616, %v4621
        %v4623 = vmul.f32 %v4622, 1.442695
        %v4624 = vpow.pop %v4623
        %v4625 = vsel %vm742, %v4624, 0.0
        %4626 = vadd.xlane.f32.xlu0 %v4625
        %v4627 = vpop.xlane.xlu0 %4626
        %v4628 = vrcp.pop %v4627
        %4629 = vrot.lane.b32.xlu0 %v4537, 48
        %v4630 = vpop.permute.xlu0 %4629
        %v4633 = vsel %vm742, %v4624, 0
        %4635 = vmatprep.subr.mxu0 0.0
        %4636 = vmatpush1.msra.mxu0 %v4630
        %4637 = vmatprep.subr.mxu0 0.0
        %4638 = vmatpush1.msra.mxu0 0.0
        %4639 = vmatprep.subr.mxu0 0.0
        %4640 = vmatpush1.msra.mxu0 0.0
        %4641 = vmatprep.subr.mxu0 0.0
        %4642 = vmatpush1.msra.mxu0 0.0
        %4643 = vmatprep.subr.mxu0 0.0
        %4644 = vmatpush1.msra.mxu0 0.0
        %4645 = vmatprep.subr.mxu0 0.0
        %4646 = vmatpush1.msra.mxu0 0.0
        %4647 = vmatprep.subr.mxu0 0.0
        %4648 = vmatpush1.msra.mxu0 0.0
        %4649 = vmatprep.subr.mxu0 0.0
        %4650 = vmatpush1.msra.mxu0 0.0
        %4651 = vmatprep.subr.mxu0 0.0
        %4652 = vmatpush1.msra.mxu0 0.0
        %4653 = vmatprep.subr.mxu0 0.0
        %4654 = vmatpush1.msra.mxu0 0.0
        %4655 = vmatprep.subr.mxu0 0.0
        %4656 = vmatpush1.msra.mxu0 0.0
        %4657 = vmatprep.subr.mxu0 0.0
        %4658 = vmatpush1.msra.mxu0 0.0
        %4659 = vmatprep.subr.mxu0 0.0
        %4660 = vmatpush1.msra.mxu0 0.0
        %4661 = vmatprep.subr.mxu0 0.0
        %4662 = vmatpush1.msra.mxu0 0.0
        %4663 = vmatprep.subr.mxu0 0.0
        %4664 = vmatpush1.msra.mxu0 0.0
        %4665 = vmatprep.subr.mxu0 0.0
        %4666 = vmatpush1.msra.mxu0 0.0
        %4667 = vmatprep.subr.mxu0 0.0
        %4668 = vmatpush1.msra.mxu0 0.0
        %4669 = vmatprep.subr.mxu0 0.0
        %4670 = vmatpush1.msra.mxu0 0.0
        %4671 = vmatprep.subr.mxu0 0.0
        %4672 = vmatpush1.msra.mxu0 0.0
        %4673 = vmatprep.subr.mxu0 0.0
        %4674 = vmatpush1.msra.mxu0 0.0
        %4675 = vmatprep.subr.mxu0 0.0
        %4676 = vmatpush1.msra.mxu0 0.0
        %4677 = vmatprep.subr.mxu0 0.0
        %4678 = vmatpush1.msra.mxu0 0.0
        %4679 = vmatprep.subr.mxu0 0.0
        %4680 = vmatpush1.msra.mxu0 0.0
        %4681 = vmatprep.subr.mxu0 0.0
        %4682 = vmatpush1.msra.mxu0 0.0
        %4683 = vmatprep.subr.mxu0 0.0
        %4684 = vmatpush1.msra.mxu0 0.0
        %4685 = vmatprep.subr.mxu0 0.0
        %4686 = vmatpush1.msra.mxu0 0.0
        %4687 = vmatprep.subr.mxu0 0.0
        %4688 = vmatpush1.msra.mxu0 0.0
        %4689 = vmatprep.subr.mxu0 0.0
        %4690 = vmatpush1.msra.mxu0 0.0
        %4691 = vmatprep.subr.mxu0 0.0
        %4692 = vmatpush1.msra.mxu0 0.0
        %4693 = vmatprep.subr.mxu0 0.0
        %4694 = vmatpush1.msra.mxu0 0.0
        %4695 = vmatprep.subr.mxu0 0.0
        %4696 = vmatpush1.msra.mxu0 0.0
        %4697 = vmatprep.subr.mxu0 0.0
        %4698 = vmatpush1.msra.mxu0 0.0
        %4699 = vmatprep.mubr.f32.mxu0 0.0
        %4700 = vmatmul.mubr.f32.gmra.mrb[0].mxu0 %v4633
        %v4701 = vpop.f32.mrb[0].mxu0
        %v4702 = vadd.f32 0.0, %v4701
        %v4703 = vpop.f32.mrb[0].mxu0
        %4704 = vdwg.mxu0
        %v4705 = vmul.f32 %v4702, %v4628
        %4707 = vrot.lane.b32.xlu0 %v4705, 16
        %v4708 = vpop.permute.xlu0 %4707
        %4710 = vst.msk [vmem:[#allocation3] sm:$0xff] %vm1529, %v4708
        %v4711 = vld [vmem:[#allocation2] sm:$0xff]
        %v4712 = vmul.f32 %v4711, 0.5
        %4714 = vrot.lane.b32.xlu0 %v4712, 108
        %v4715 = vpop.permute.xlu0 %4714
        %4717 = vrot.lane.b32.xlu0 %v4711, 76
        %v4718 = vpop.permute.xlu0 %4717
        %v4719 = vsel %vm666, %v4715, 0
        %v4721 = vsel %vm666, %v4718, 0
        %4723 = vmatprep.subr.mxu0 0.0
        %4724 = vmatpush1.xpose.msra.mxu0 %v4721
        %4725 = vmatprep.subr.mxu0 0.0
        %4726 = vmatpush1.xpose.msra.mxu0 0.0
        %4727 = vmatprep.subr.mxu0 0.0
        %4728 = vmatpush1.xpose.msra.mxu0 0.0
        %4729 = vmatprep.subr.mxu0 0.0
        %4730 = vmatpush1.xpose.msra.mxu0 0.0
        %4731 = vmatprep.subr.mxu0 0.0
        %4732 = vmatpush1.xpose.msra.mxu0 0.0
        %4733 = vmatprep.subr.mxu0 0.0
        %4734 = vmatpush1.xpose.msra.mxu0 0.0
        %4735 = vmatprep.subr.mxu0 0.0
        %4736 = vmatpush1.xpose.msra.mxu0 0.0
        %4737 = vmatprep.subr.mxu0 0.0
        %4738 = vmatpush1.xpose.msra.mxu0 0.0
        %4739 = vmatprep.subr.mxu0 0.0
        %4740 = vmatpush1.xpose.msra.mxu0 0.0
        %4741 = vmatprep.subr.mxu0 0.0
        %4742 = vmatpush1.xpose.msra.mxu0 0.0
        %4743 = vmatprep.subr.mxu0 0.0
        %4744 = vmatpush1.xpose.msra.mxu0 0.0
        %4745 = vmatprep.subr.mxu0 0.0
        %4746 = vmatpush1.xpose.msra.mxu0 0.0
        %4747 = vmatprep.subr.mxu0 0.0
        %4748 = vmatpush1.xpose.msra.mxu0 0.0
        %4749 = vmatprep.subr.mxu0 0.0
        %4750 = vmatpush1.xpose.msra.mxu0 0.0
        %4751 = vmatprep.subr.mxu0 0.0
        %4752 = vmatpush1.xpose.msra.mxu0 0.0
        %4753 = vmatprep.subr.mxu0 0.0
        %4754 = vmatpush1.xpose.msra.mxu0 0.0
        %4755 = vmatprep.subr.mxu0 0.0
        %4756 = vmatpush1.xpose.msra.mxu0 0.0
        %4757 = vmatprep.subr.mxu0 0.0
        %4758 = vmatpush1.xpose.msra.mxu0 0.0
        %4759 = vmatprep.subr.mxu0 0.0
        %4760 = vmatpush1.xpose.msra.mxu0 0.0
        %4761 = vmatprep.subr.mxu0 0.0
        %4762 = vmatpush1.xpose.msra.mxu0 0.0
        %4763 = vmatprep.subr.mxu0 0.0
        %4764 = vmatpush1.xpose.msra.mxu0 0.0
        %4765 = vmatprep.subr.mxu0 0.0
        %4766 = vmatpush1.xpose.msra.mxu0 0.0
        %4767 = vmatprep.subr.mxu0 0.0
        %4768 = vmatpush1.xpose.msra.mxu0 0.0
        %4769 = vmatprep.subr.mxu0 0.0
        %4770 = vmatpush1.xpose.msra.mxu0 0.0
        %4771 = vmatprep.subr.mxu0 0.0
        %4772 = vmatpush1.xpose.msra.mxu0 0.0
        %4773 = vmatprep.subr.mxu0 0.0
        %4774 = vmatpush1.xpose.msra.mxu0 0.0
        %4775 = vmatprep.subr.mxu0 0.0
        %4776 = vmatpush1.xpose.msra.mxu0 0.0
        %4777 = vmatprep.subr.mxu0 0.0
        %4778 = vmatpush1.xpose.msra.mxu0 0.0
        %4779 = vmatprep.subr.mxu0 0.0
        %4780 = vmatpush1.xpose.msra.mxu0 0.0
        %4781 = vmatprep.subr.mxu0 0.0
        %4782 = vmatpush1.xpose.msra.mxu0 0.0
        %4783 = vmatprep.subr.mxu0 0.0
        %4784 = vmatpush1.xpose.msra.mxu0 0.0
        %4785 = vmatprep.subr.mxu0 0.0
        %4786 = vmatpush1.xpose.msra.mxu0 0.0
        %4787 = vmatprep.mubr.f32.mxu0 0.0
        %4788 = vmatmul.mubr.f32.gmra.mrb[0].mxu0 %v4719
        %v4789 = vpop.f32.mrb[0].mxu0
        %v4790 = vadd.f32 0.0, %v4789
        %v4791 = vpop.f32.mrb[0].mxu0
        %4792 = vdwg.mxu0
        %v4793 = vsel %vm742, %v4790, -inf
        %4794 = vmax.xlane.f32.xlu0 %v4793
        %v4795 = vpop.xlane.xlu0 %4794
        %v4796 = vsub.f32 %v4790, %v4795
        %v4797 = vmul.f32 %v4796, 1.442695
        %v4798 = vpow.pop %v4797
        %v4799 = vsel %vm742, %v4798, 0.0
        %4800 = vadd.xlane.f32.xlu0 %v4799
        %v4801 = vpop.xlane.xlu0 %4800
        %v4802 = vrcp.pop %v4801
        %4803 = vrot.lane.b32.xlu0 %v4711, 44
        %v4804 = vpop.permute.xlu0 %4803
        %v4807 = vsel %vm742, %v4798, 0
        %4809 = vmatprep.subr.mxu0 0.0
        %4810 = vmatpush1.msra.mxu0 %v4804
        %4811 = vmatprep.subr.mxu0 0.0
        %4812 = vmatpush1.msra.mxu0 0.0
        %4813 = vmatprep.subr.mxu0 0.0
        %4814 = vmatpush1.msra.mxu0 0.0
        %4815 = vmatprep.subr.mxu0 0.0
        %4816 = vmatpush1.msra.mxu0 0.0
        %4817 = vmatprep.subr.mxu0 0.0
        %4818 = vmatpush1.msra.mxu0 0.0
        %4819 = vmatprep.subr.mxu0 0.0
        %4820 = vmatpush1.msra.mxu0 0.0
        %4821 = vmatprep.subr.mxu0 0.0
        %4822 = vmatpush1.msra.mxu0 0.0
        %4823 = vmatprep.subr.mxu0 0.0
        %4824 = vmatpush1.msra.mxu0 0.0
        %4825 = vmatprep.subr.mxu0 0.0
        %4826 = vmatpush1.msra.mxu0 0.0
        %4827 = vmatprep.subr.mxu0 0.0
        %4828 = vmatpush1.msra.mxu0 0.0
        %4829 = vmatprep.subr.mxu0 0.0
        %4830 = vmatpush1.msra.mxu0 0.0
        %4831 = vmatprep.subr.mxu0 0.0
        %4832 = vmatpush1.msra.mxu0 0.0
        %4833 = vmatprep.subr.mxu0 0.0
        %4834 = vmatpush1.msra.mxu0 0.0
        %4835 = vmatprep.subr.mxu0 0.0
        %4836 = vmatpush1.msra.mxu0 0.0
        %4837 = vmatprep.subr.mxu0 0.0
        %4838 = vmatpush1.msra.mxu0 0.0
        %4839 = vmatprep.subr.mxu0 0.0
        %4840 = vmatpush1.msra.mxu0 0.0
        %4841 = vmatprep.subr.mxu0 0.0
        %4842 = vmatpush1.msra.mxu0 0.0
        %4843 = vmatprep.subr.mxu0 0.0
        %4844 = vmatpush1.msra.mxu0 0.0
        %4845 = vmatprep.subr.mxu0 0.0
        %4846 = vmatpush1.msra.mxu0 0.0
        %4847 = vmatprep.subr.mxu0 0.0
        %4848 = vmatpush1.msra.mxu0 0.0
        %4849 = vmatprep.subr.mxu0 0.0
        %4850 = vmatpush1.msra.mxu0 0.0
        %4851 = vmatprep.subr.mxu0 0.0
        %4852 = vmatpush1.msra.mxu0 0.0
        %4853 = vmatprep.subr.mxu0 0.0
        %4854 = vmatpush1.msra.mxu0 0.0
        %4855 = vmatprep.subr.mxu0 0.0
        %4856 = vmatpush1.msra.mxu0 0.0
        %4857 = vmatprep.subr.mxu0 0.0
        %4858 = vmatpush1.msra.mxu0 0.0
        %4859 = vmatprep.subr.mxu0 0.0
        %4860 = vmatpush1.msra.mxu0 0.0
        %4861 = vmatprep.subr.mxu0 0.0
        %4862 = vmatpush1.msra.mxu0 0.0
        %4863 = vmatprep.subr.mxu0 0.0
        %4864 = vmatpush1.msra.mxu0 0.0
        %4865 = vmatprep.subr.mxu0 0.0
        %4866 = vmatpush1.msra.mxu0 0.0
        %4867 = vmatprep.subr.mxu0 0.0
        %4868 = vmatpush1.msra.mxu0 0.0
        %4869 = vmatprep.subr.mxu0 0.0
        %4870 = vmatpush1.msra.mxu0 0.0
        %4871 = vmatprep.subr.mxu0 0.0
        %4872 = vmatpush1.msra.mxu0 0.0
        %4873 = vmatprep.mubr.f32.mxu0 0.0
        %4874 = vmatmul.mubr.f32.gmra.mrb[0].mxu0 %v4807
        %v4875 = vpop.f32.mrb[0].mxu0
        %v4876 = vadd.f32 0.0, %v4875
        %v4877 = vpop.f32.mrb[0].mxu0
        %4878 = vdwg.mxu0
        %v4879 = vmul.f32 %v4876, %v4802
        %4881 = vrot.lane.b32.xlu0 %v4879, 20
        %v4882 = vpop.permute.xlu0 %4881
        %4884 = vst.msk [vmem:[#allocation3] sm:$0xff] %vm1704, %v4882
        %v4885 = vld [vmem:[#allocation2] sm:$0xff]
        %v4886 = vmul.f32 %v4885, 0.5
        %4888 = vrot.lane.b32.xlu0 %v4886, 104
        %v4889 = vpop.permute.xlu0 %4888
        %4891 = vrot.lane.b32.xlu0 %v4885, 72
        %v4892 = vpop.permute.xlu0 %4891
        %v4893 = vsel %vm666, %v4889, 0
        %v4895 = vsel %vm666, %v4892, 0
        %4897 = vmatprep.subr.mxu0 0.0
        %4898 = vmatpush1.xpose.msra.mxu0 %v4895
        %4899 = vmatprep.subr.mxu0 0.0
        %4900 = vmatpush1.xpose.msra.mxu0 0.0
        %4901 = vmatprep.subr.mxu0 0.0
        %4902 = vmatpush1.xpose.msra.mxu0 0.0
        %4903 = vmatprep.subr.mxu0 0.0
        %4904 = vmatpush1.xpose.msra.mxu0 0.0
        %4905 = vmatprep.subr.mxu0 0.0
        %4906 = vmatpush1.xpose.msra.mxu0 0.0
        %4907 = vmatprep.subr.mxu0 0.0
        %4908 = vmatpush1.xpose.msra.mxu0 0.0
        %4909 = vmatprep.subr.mxu0 0.0
        %4910 = vmatpush1.xpose.msra.mxu0 0.0
        %4911 = vmatprep.subr.mxu0 0.0
        %4912 = vmatpush1.xpose.msra.mxu0 0.0
        %4913 = vmatprep.subr.mxu0 0.0
        %4914 = vmatpush1.xpose.msra.mxu0 0.0
        %4915 = vmatprep.subr.mxu0 0.0
        %4916 = vmatpush1.xpose.msra.mxu0 0.0
        %4917 = vmatprep.subr.mxu0 0.0
        %4918 = vmatpush1.xpose.msra.mxu0 0.0
        %4919 = vmatprep.subr.mxu0 0.0
        %4920 = vmatpush1.xpose.msra.mxu0 0.0
        %4921 = vmatprep.subr.mxu0 0.0
        %4922 = vmatpush1.xpose.msra.mxu0 0.0
        %4923 = vmatprep.subr.mxu0 0.0
        %4924 = vmatpush1.xpose.msra.mxu0 0.0
        %4925 = vmatprep.subr.mxu0 0.0
        %4926 = vmatpush1.xpose.msra.mxu0 0.0
        %4927 = vmatprep.subr.mxu0 0.0
        %4928 = vmatpush1.xpose.msra.mxu0 0.0
        %4929 = vmatprep.subr.mxu0 0.0
        %4930 = vmatpush1.xpose.msra.mxu0 0.0
        %4931 = vmatprep.subr.mxu0 0.0
        %4932 = vmatpush1.xpose.msra.mxu0 0.0
        %4933 = vmatprep.subr.mxu0 0.0
        %4934 = vmatpush1.xpose.msra.mxu0 0.0
        %4935 = vmatprep.subr.mxu0 0.0
        %4936 = vmatpush1.xpose.msra.mxu0 0.0
        %4937 = vmatprep.subr.mxu0 0.0
        %4938 = vmatpush1.xpose.msra.mxu0 0.0
        %4939 = vmatprep.subr.mxu0 0.0
        %4940 = vmatpush1.xpose.msra.mxu0 0.0
        %4941 = vmatprep.subr.mxu0 0.0
        %4942 = vmatpush1.xpose.msra.mxu0 0.0
        %4943 = vmatprep.subr.mxu0 0.0
        %4944 = vmatpush1.xpose.msra.mxu0 0.0
        %4945 = vmatprep.subr.mxu0 0.0
        %4946 = vmatpush1.xpose.msra.mxu0 0.0
        %4947 = vmatprep.subr.mxu0 0.0
        %4948 = vmatpush1.xpose.msra.mxu0 0.0
        %4949 = vmatprep.subr.mxu0 0.0
        %4950 = vmatpush1.xpose.msra.mxu0 0.0
        %4951 = vmatprep.subr.mxu0 0.0
        %4952 = vmatpush1.xpose.msra.mxu0 0.0
        %4953 = vmatprep.subr.mxu0 0.0
        %4954 = vmatpush1.xpose.msra.mxu0 0.0
        %4955 = vmatprep.subr.mxu0 0.0
        %4956 = vmatpush1.xpose.msra.mxu0 0.0
        %4957 = vmatprep.subr.mxu0 0.0
        %4958 = vmatpush1.xpose.msra.mxu0 0.0
        %4959 = vmatprep.subr.mxu0 0.0
        %4960 = vmatpush1.xpose.msra.mxu0 0.0
        %4961 = vmatprep.mubr.f32.mxu0 0.0
        %4962 = vmatmul.mubr.f32.gmra.mrb[0].mxu0 %v4893
        %v4963 = vpop.f32.mrb[0].mxu0
        %v4964 = vadd.f32 0.0, %v4963
        %v4965 = vpop.f32.mrb[0].mxu0
        %4966 = vdwg.mxu0
        %v4967 = vsel %vm742, %v4964, -inf
        %4968 = vmax.xlane.f32.xlu0 %v4967
        %v4969 = vpop.xlane.xlu0 %4968
        %v4970 = vsub.f32 %v4964, %v4969
        %v4971 = vmul.f32 %v4970, 1.442695
        %v4972 = vpow.pop %v4971
        %v4973 = vsel %vm742, %v4972, 0.0
        %4974 = vadd.xlane.f32.xlu0 %v4973
        %v4975 = vpop.xlane.xlu0 %4974
        %v4976 = vrcp.pop %v4975
        %4977 = vrot.lane.b32.xlu0 %v4885, 40
        %v4978 = vpop.permute.xlu0 %4977
        %v4981 = vsel %vm742, %v4972, 0
        %4983 = vmatprep.subr.mxu0 0.0
        %4984 = vmatpush1.msra.mxu0 %v4978
        %4985 = vmatprep.subr.mxu0 0.0
        %4986 = vmatpush1.msra.mxu0 0.0
        %4987 = vmatprep.subr.mxu0 0.0
        %4988 = vmatpush1.msra.mxu0 0.0
        %4989 = vmatprep.subr.mxu0 0.0
        %4990 = vmatpush1.msra.mxu0 0.0
        %4991 = vmatprep.subr.mxu0 0.0
        %4992 = vmatpush1.msra.mxu0 0.0
        %4993 = vmatprep.subr.mxu0 0.0
        %4994 = vmatpush1.msra.mxu0 0.0
        %4995 = vmatprep.subr.mxu0 0.0
        %4996 = vmatpush1.msra.mxu0 0.0
        %4997 = vmatprep.subr.mxu0 0.0
        %4998 = vmatpush1.msra.mxu0 0.0
        %4999 = vmatprep.subr.mxu0 0.0
        %5000 = vmatpush1.msra.mxu0 0.0
        %5001 = vmatprep.subr.mxu0 0.0
        %5002 = vmatpush1.msra.mxu0 0.0
        %5003 = vmatprep.subr.mxu0 0.0
        %5004 = vmatpush1.msra.mxu0 0.0
        %5005 = vmatprep.subr.mxu0 0.0
        %5006 = vmatpush1.msra.mxu0 0.0
        %5007 = vmatprep.subr.mxu0 0.0
        %5008 = vmatpush1.msra.mxu0 0.0
        %5009 = vmatprep.subr.mxu0 0.0
        %5010 = vmatpush1.msra.mxu0 0.0
        %5011 = vmatprep.subr.mxu0 0.0
        %5012 = vmatpush1.msra.mxu0 0.0
        %5013 = vmatprep.subr.mxu0 0.0
        %5014 = vmatpush1.msra.mxu0 0.0
        %5015 = vmatprep.subr.mxu0 0.0
        %5016 = vmatpush1.msra.mxu0 0.0
        %5017 = vmatprep.subr.mxu0 0.0
        %5018 = vmatpush1.msra.mxu0 0.0
        %5019 = vmatprep.subr.mxu0 0.0
        %5020 = vmatpush1.msra.mxu0 0.0
        %5021 = vmatprep.subr.mxu0 0.0
        %5022 = vmatpush1.msra.mxu0 0.0
        %5023 = vmatprep.subr.mxu0 0.0
        %5024 = vmatpush1.msra.mxu0 0.0
        %5025 = vmatprep.subr.mxu0 0.0
        %5026 = vmatpush1.msra.mxu0 0.0
        %5027 = vmatprep.subr.mxu0 0.0
        %5028 = vmatpush1.msra.mxu0 0.0
        %5029 = vmatprep.subr.mxu0 0.0
        %5030 = vmatpush1.msra.mxu0 0.0
        %5031 = vmatprep.subr.mxu0 0.0
        %5032 = vmatpush1.msra.mxu0 0.0
        %5033 = vmatprep.subr.mxu0 0.0
        %5034 = vmatpush1.msra.mxu0 0.0
        %5035 = vmatprep.subr.mxu0 0.0
        %5036 = vmatpush1.msra.mxu0 0.0
        %5037 = vmatprep.subr.mxu0 0.0
        %5038 = vmatpush1.msra.mxu0 0.0
        %5039 = vmatprep.subr.mxu0 0.0
        %5040 = vmatpush1.msra.mxu0 0.0
        %5041 = vmatprep.subr.mxu0 0.0
        %5042 = vmatpush1.msra.mxu0 0.0
        %5043 = vmatprep.subr.mxu0 0.0
        %5044 = vmatpush1.msra.mxu0 0.0
        %5045 = vmatprep.subr.mxu0 0.0
        %5046 = vmatpush1.msra.mxu0 0.0
        %5047 = vmatprep.mubr.f32.mxu0 0.0
        %5048 = vmatmul.mubr.f32.gmra.mrb[0].mxu0 %v4981
        %v5049 = vpop.f32.mrb[0].mxu0
        %v5050 = vadd.f32 0.0, %v5049
        %v5051 = vpop.f32.mrb[0].mxu0
        %5052 = vdwg.mxu0
        %v5053 = vmul.f32 %v5050, %v4976
        %5055 = vrot.lane.b32.xlu0 %v5053, 24
        %v5056 = vpop.permute.xlu0 %5055
        %5058 = vst.msk [vmem:[#allocation3] sm:$0xff] %vm1879, %v5056
        %v5059 = vld [vmem:[#allocation2] sm:$0xff]
        %v5060 = vmul.f32 %v5059, 0.5
        %5062 = vrot.lane.b32.xlu0 %v5060, 100
        %v5063 = vpop.permute.xlu0 %5062
        %5065 = vrot.lane.b32.xlu0 %v5059, 68
        %v5066 = vpop.permute.xlu0 %5065
        %v5067 = vsel %vm666, %v5063, 0
        %v5069 = vsel %vm666, %v5066, 0
        %5071 = vmatprep.subr.mxu0 0.0
        %5072 = vmatpush1.xpose.msra.mxu0 %v5069
        %5073 = vmatprep.subr.mxu0 0.0
        %5074 = vmatpush1.xpose.msra.mxu0 0.0
        %5075 = vmatprep.subr.mxu0 0.0
        %5076 = vmatpush1.xpose.msra.mxu0 0.0
        %5077 = vmatprep.subr.mxu0 0.0
        %5078 = vmatpush1.xpose.msra.mxu0 0.0
        %5079 = vmatprep.subr.mxu0 0.0
        %5080 = vmatpush1.xpose.msra.mxu0 0.0
        %5081 = vmatprep.subr.mxu0 0.0
        %5082 = vmatpush1.xpose.msra.mxu0 0.0
        %5083 = vmatprep.subr.mxu0 0.0
        %5084 = vmatpush1.xpose.msra.mxu0 0.0
        %5085 = vmatprep.subr.mxu0 0.0
        %5086 = vmatpush1.xpose.msra.mxu0 0.0
        %5087 = vmatprep.subr.mxu0 0.0
        %5088 = vmatpush1.xpose.msra.mxu0 0.0
        %5089 = vmatprep.subr.mxu0 0.0
        %5090 = vmatpush1.xpose.msra.mxu0 0.0
        %5091 = vmatprep.subr.mxu0 0.0
        %5092 = vmatpush1.xpose.msra.mxu0 0.0
        %5093 = vmatprep.subr.mxu0 0.0
        %5094 = vmatpush1.xpose.msra.mxu0 0.0
        %5095 = vmatprep.subr.mxu0 0.0
        %5096 = vmatpush1.xpose.msra.mxu0 0.0
        %5097 = vmatprep.subr.mxu0 0.0
        %5098 = vmatpush1.xpose.msra.mxu0 0.0
        %5099 = vmatprep.subr.mxu0 0.0
        %5100 = vmatpush1.xpose.msra.mxu0 0.0
        %5101 = vmatprep.subr.mxu0 0.0
        %5102 = vmatpush1.xpose.msra.mxu0 0.0
        %5103 = vmatprep.subr.mxu0 0.0
        %5104 = vmatpush1.xpose.msra.mxu0 0.0
        %5105 = vmatprep.subr.mxu0 0.0
        %5106 = vmatpush1.xpose.msra.mxu0 0.0
        %5107 = vmatprep.subr.mxu0 0.0
        %5108 = vmatpush1.xpose.msra.mxu0 0.0
        %5109 = vmatprep.subr.mxu0 0.0
        %5110 = vmatpush1.xpose.msra.mxu0 0.0
        %5111 = vmatprep.subr.mxu0 0.0
        %5112 = vmatpush1.xpose.msra.mxu0 0.0
        %5113 = vmatprep.subr.mxu0 0.0
        %5114 = vmatpush1.xpose.msra.mxu0 0.0
        %5115 = vmatprep.subr.mxu0 0.0
        %5116 = vmatpush1.xpose.msra.mxu0 0.0
        %5117 = vmatprep.subr.mxu0 0.0
        %5118 = vmatpush1.xpose.msra.mxu0 0.0
        %5119 = vmatprep.subr.mxu0 0.0
        %5120 = vmatpush1.xpose.msra.mxu0 0.0
        %5121 = vmatprep.subr.mxu0 0.0
        %5122 = vmatpush1.xpose.msra.mxu0 0.0
        %5123 = vmatprep.subr.mxu0 0.0
        %5124 = vmatpush1.xpose.msra.mxu0 0.0
        %5125 = vmatprep.subr.mxu0 0.0
        %5126 = vmatpush1.xpose.msra.mxu0 0.0
        %5127 = vmatprep.subr.mxu0 0.0
        %5128 = vmatpush1.xpose.msra.mxu0 0.0
        %5129 = vmatprep.subr.mxu0 0.0
        %5130 = vmatpush1.xpose.msra.mxu0 0.0
        %5131 = vmatprep.subr.mxu0 0.0
        %5132 = vmatpush1.xpose.msra.mxu0 0.0
        %5133 = vmatprep.subr.mxu0 0.0
        %5134 = vmatpush1.xpose.msra.mxu0 0.0
        %5135 = vmatprep.mubr.f32.mxu0 0.0
        %5136 = vmatmul.mubr.f32.gmra.mrb[0].mxu0 %v5067
        %v5137 = vpop.f32.mrb[0].mxu0
        %v5138 = vadd.f32 0.0, %v5137
        %v5139 = vpop.f32.mrb[0].mxu0
        %5140 = vdwg.mxu0
        %v5141 = vsel %vm742, %v5138, -inf
        %5142 = vmax.xlane.f32.xlu0 %v5141
        %v5143 = vpop.xlane.xlu0 %5142
        %v5144 = vsub.f32 %v5138, %v5143
        %v5145 = vmul.f32 %v5144, 1.442695
        %v5146 = vpow.pop %v5145
        %v5147 = vsel %vm742, %v5146, 0.0
        %5148 = vadd.xlane.f32.xlu0 %v5147
        %v5149 = vpop.xlane.xlu0 %5148
        %v5150 = vrcp.pop %v5149
        %5151 = vrot.lane.b32.xlu0 %v5059, 36
        %v5152 = vpop.permute.xlu0 %5151
        %v5155 = vsel %vm742, %v5146, 0
        %5157 = vmatprep.subr.mxu0 0.0
        %5158 = vmatpush1.msra.mxu0 %v5152
        %5159 = vmatprep.subr.mxu0 0.0
        %5160 = vmatpush1.msra.mxu0 0.0
        %5161 = vmatprep.subr.mxu0 0.0
        %5162 = vmatpush1.msra.mxu0 0.0
        %5163 = vmatprep.subr.mxu0 0.0
        %5164 = vmatpush1.msra.mxu0 0.0
        %5165 = vmatprep.subr.mxu0 0.0
        %5166 = vmatpush1.msra.mxu0 0.0
        %5167 = vmatprep.subr.mxu0 0.0
        %5168 = vmatpush1.msra.mxu0 0.0
        %5169 = vmatprep.subr.mxu0 0.0
        %5170 = vmatpush1.msra.mxu0 0.0
        %5171 = vmatprep.subr.mxu0 0.0
        %5172 = vmatpush1.msra.mxu0 0.0
        %5173 = vmatprep.subr.mxu0 0.0
        %5174 = vmatpush1.msra.mxu0 0.0
        %5175 = vmatprep.subr.mxu0 0.0
        %5176 = vmatpush1.msra.mxu0 0.0
        %5177 = vmatprep.subr.mxu0 0.0
        %5178 = vmatpush1.msra.mxu0 0.0
        %5179 = vmatprep.subr.mxu0 0.0
        %5180 = vmatpush1.msra.mxu0 0.0
        %5181 = vmatprep.subr.mxu0 0.0
        %5182 = vmatpush1.msra.mxu0 0.0
        %5183 = vmatprep.subr.mxu0 0.0
        %5184 = vmatpush1.msra.mxu0 0.0
        %5185 = vmatprep.subr.mxu0 0.0
        %5186 = vmatpush1.msra.mxu0 0.0
        %5187 = vmatprep.subr.mxu0 0.0
        %5188 = vmatpush1.msra.mxu0 0.0
        %5189 = vmatprep.subr.mxu0 0.0
        %5190 = vmatpush1.msra.mxu0 0.0
        %5191 = vmatprep.subr.mxu0 0.0
        %5192 = vmatpush1.msra.mxu0 0.0
        %5193 = vmatprep.subr.mxu0 0.0
        %5194 = vmatpush1.msra.mxu0 0.0
        %5195 = vmatprep.subr.mxu0 0.0
        %5196 = vmatpush1.msra.mxu0 0.0
        %5197 = vmatprep.subr.mxu0 0.0
        %5198 = vmatpush1.msra.mxu0 0.0
        %5199 = vmatprep.subr.mxu0 0.0
        %5200 = vmatpush1.msra.mxu0 0.0
        %5201 = vmatprep.subr.mxu0 0.0
        %5202 = vmatpush1.msra.mxu0 0.0
        %5203 = vmatprep.subr.mxu0 0.0
        %5204 = vmatpush1.msra.mxu0 0.0
        %5205 = vmatprep.subr.mxu0 0.0
        %5206 = vmatpush1.msra.mxu0 0.0
        %5207 = vmatprep.subr.mxu0 0.0
        %5208 = vmatpush1.msra.mxu0 0.0
        %5209 = vmatprep.subr.mxu0 0.0
        %5210 = vmatpush1.msra.mxu0 0.0
        %5211 = vmatprep.subr.mxu0 0.0
        %5212 = vmatpush1.msra.mxu0 0.0
        %5213 = vmatprep.subr.mxu0 0.0
        %5214 = vmatpush1.msra.mxu0 0.0
        %5215 = vmatprep.subr.mxu0 0.0
        %5216 = vmatpush1.msra.mxu0 0.0
        %5217 = vmatprep.subr.mxu0 0.0
        %5218 = vmatpush1.msra.mxu0 0.0
        %5219 = vmatprep.subr.mxu0 0.0
        %5220 = vmatpush1.msra.mxu0 0.0
        %5221 = vmatprep.mubr.f32.mxu0 0.0
        %5222 = vmatmul.mubr.f32.gmra.mrb[0].mxu0 %v5155
        %v5223 = vpop.f32.mrb[0].mxu0
        %v5224 = vadd.f32 0.0, %v5223
        %v5225 = vpop.f32.mrb[0].mxu0
        %5226 = vdwg.mxu0
        %v5227 = vmul.f32 %v5224, %v5150
        %5229 = vrot.lane.b32.xlu0 %v5227, 28
        %v5230 = vpop.permute.xlu0 %5229
        %5232 = vst.msk [vmem:[#allocation3] sm:$0xff] %vm2054, %v5230
        %v5233 = vld [vmem:[#allocation3] sm:$0xff]
        %s5234 = scalar_lea.vmem %s5, 32
        %v5235 = vld [vmem:[%s5234] sm:$0xff]
        %v5236 = vld [vmem:[%s5234 + $0x8] sm:$0xff]
        %v5237 = vld [vmem:[%s5234 + $0x10] sm:$0xff]
        %v5238 = vld [vmem:[%s5234 + $0x18] sm:$0xff]
        %s5239 = scalar_lea.vmem %s6, 1
        %v5240 = vld [vmem:[%s5239] sm:$0x1]
        %v5242 = vlaneseq
        %v5243 = vshrl.u32 %v5242, 7
        %v5244 = vsub.s32 0, %v5243
        %v5245 = vrot.slane %v5240, %v5244
        %v5248 = vsel %vm585, %v5233, 0
        %5250 = vmatprep.subr.mxu0 0.0
        %5251 = vmatpush1.msra.mxu0 %v5235
        %5252 = vmatprep.subr.mxu0 0.0
        %5253 = vmatpush1.msra.mxu0 %v5236
        %5254 = vmatprep.subr.mxu0 0.0
        %5255 = vmatpush1.msra.mxu0 %v5237
        %5256 = vmatprep.subr.mxu0 0.0
        %5257 = vmatpush1.msra.mxu0 %v5238
        %5258 = vmatprep.subr.mxu0 0.0
        %5259 = vmatpush1.msra.mxu0 0.0
        %5260 = vmatprep.subr.mxu0 0.0
        %5261 = vmatpush1.msra.mxu0 0.0
        %5262 = vmatprep.subr.mxu0 0.0
        %5263 = vmatpush1.msra.mxu0 0.0
        %5264 = vmatprep.subr.mxu0 0.0
        %5265 = vmatpush1.msra.mxu0 0.0
        %5266 = vmatprep.subr.mxu0 0.0
        %5267 = vmatpush1.msra.mxu0 0.0
        %5268 = vmatprep.subr.mxu0 0.0
        %5269 = vmatpush1.msra.mxu0 0.0
        %5270 = vmatprep.subr.mxu0 0.0
        %5271 = vmatpush1.msra.mxu0 0.0
        %5272 = vmatprep.subr.mxu0 0.0
        %5273 = vmatpush1.msra.mxu0 0.0
        %5274 = vmatprep.subr.mxu0 0.0
        %5275 = vmatpush1.msra.mxu0 0.0
        %5276 = vmatprep.subr.mxu0 0.0
        %5277 = vmatpush1.msra.mxu0 0.0
        %5278 = vmatprep.subr.mxu0 0.0
        %5279 = vmatpush1.msra.mxu0 0.0
        %5280 = vmatprep.subr.mxu0 0.0
        %5281 = vmatpush1.msra.mxu0 0.0
        %5282 = vmatprep.subr.mxu0 0.0
        %5283 = vmatpush1.msra.mxu0 0.0
        %5284 = vmatprep.subr.mxu0 0.0
        %5285 = vmatpush1.msra.mxu0 0.0
        %5286 = vmatprep.subr.mxu0 0.0
        %5287 = vmatpush1.msra.mxu0 0.0
        %5288 = vmatprep.subr.mxu0 0.0
        %5289 = vmatpush1.msra.mxu0 0.0
        %5290 = vmatprep.subr.mxu0 0.0
        %5291 = vmatpush1.msra.mxu0 0.0
        %5292 = vmatprep.subr.mxu0 0.0
        %5293 = vmatpush1.msra.mxu0 0.0
        %5294 = vmatprep.subr.mxu0 0.0
        %5295 = vmatpush1.msra.mxu0 0.0
        %5296 = vmatprep.subr.mxu0 0.0
        %5297 = vmatpush1.msra.mxu0 0.0
        %5298 = vmatprep.subr.mxu0 0.0
        %5299 = vmatpush1.msra.mxu0 0.0
        %5300 = vmatprep.subr.mxu0 0.0
        %5301 = vmatpush1.msra.mxu0 0.0
        %5302 = vmatprep.subr.mxu0 0.0
        %5303 = vmatpush1.msra.mxu0 0.0
        %5304 = vmatprep.subr.mxu0 0.0
        %5305 = vmatpush1.msra.mxu0 0.0
        %5306 = vmatprep.subr.mxu0 0.0
        %5307 = vmatpush1.msra.mxu0 0.0
        %5308 = vmatprep.subr.mxu0 0.0
        %5309 = vmatpush1.msra.mxu0 0.0
        %5310 = vmatprep.subr.mxu0 0.0
        %5311 = vmatpush1.msra.mxu0 0.0
        %5312 = vmatprep.subr.mxu0 0.0
        %5313 = vmatpush1.msra.mxu0 0.0
        %5314 = vmatprep.mubr.f32.mxu0 0.0
        %5315 = vmatmul.mubr.f32.gmra.mrb[0].mxu0 %v5248
        %v5316 = vpop.f32.mrb[0].mxu0
        %v5317 = vadd.f32 %v5245, %v5316
        %v5318 = vpop.f32.mrb[0].mxu0
        %5319 = vdwg.mxu0
        %v5320 = vadd.f32 %v3759, %v5317
        %s5321 = scalar_lea.vmem %s11, 1
        %v5322 = vld [vmem:[%s5321] sm:$0x1]
        %s5323 = scalar_lea.vmem %s12, 1
        %v5324 = vld [vmem:[%s5323] sm:$0x1]
        %v5325 = vsel %vm585, %v5320, 0.0
        %5326 = vadd.xlane.f32.xlu0 %v5325
        %v5327 = vpop.xlane.xlu0 %5326
        %v5328 = vmul.f32 %v5327, %v2147
        %v5329 = vsub.f32 %v5320, %v5328
        %v5330 = vmul.f32 %v5329, %v5329
        %v5331 = vsel %vm585, %v5330, 0.0
        %5332 = vadd.xlane.f32.xlu0 %v5331
        %v5333 = vpop.xlane.xlu0 %5332
        %v5334 = vmul.f32 %v5333, %v2147
        %v5335 = vadd.f32 %v5334, 1e-05
        %v5336 = vrsqrt.pop %v5335
        %v5337 = vmul.f32 %v5329, %v5336
        %v5339 = vlaneseq
        %v5340 = vshrl.u32 %v5339, 7
        %v5341 = vsub.s32 0, %v5340
        %v5342 = vrot.slane %v5322, %v5341
        %v5344 = vmul.f32 %v5337, %v5342
        %v5346 = vlaneseq
        %v5347 = vshrl.u32 %v5346, 7
        %v5348 = vsub.s32 0, %v5347
        %v5349 = vrot.slane %v5324, %v5348
        %v5351 = vadd.f32 %v5344, %v5349
        %s5352 = scalar_lea.vmem %s7, 512
        %v5353 = vld [vmem:[%s5352] sm:$0xff]
        %v5354 = vld [vmem:[%s5352 + $0x8] sm:$0xff]
        %v5355 = vld [vmem:[%s5352 + $0x10] sm:$0xff]
        %v5356 = vld [vmem:[%s5352 + $0x18] sm:$0xff]
        %v5357 = vld [vmem:[%s5352 + $0x20] sm:$0xff]
        %v5358 = vld [vmem:[%s5352 + $0x28] sm:$0xff]
        %v5359 = vld [vmem:[%s5352 + $0x30] sm:$0xff]
        %v5360 = vld [vmem:[%s5352 + $0x38] sm:$0xff]
        %v5361 = vld [vmem:[%s5352 + $0x40] sm:$0xff]
        %v5362 = vld [vmem:[%s5352 + $0x48] sm:$0xff]
        %v5363 = vld [vmem:[%s5352 + $0x50] sm:$0xff]
        %v5364 = vld [vmem:[%s5352 + $0x58] sm:$0xff]
        %v5365 = vld [vmem:[%s5352 + $0x60] sm:$0xff]
        %v5366 = vld [vmem:[%s5352 + $0x68] sm:$0xff]
        %v5367 = vld [vmem:[%s5352 + $0x70] sm:$0xff]
        %v5368 = vld [vmem:[%s5352 + $0x78] sm:$0xff]
        %v5369 = vld [vmem:[%s5352 + $0x80] sm:$0xff]
        %v5370 = vld [vmem:[%s5352 + $0x88] sm:$0xff]
        %v5371 = vld [vmem:[%s5352 + $0x90] sm:$0xff]
        %v5372 = vld [vmem:[%s5352 + $0x98] sm:$0xff]
        %v5373 = vld [vmem:[%s5352 + $0xa0] sm:$0xff]
        %v5374 = vld [vmem:[%s5352 + $0xa8] sm:$0xff]
        %v5375 = vld [vmem:[%s5352 + $0xb0] sm:$0xff]
        %v5376 = vld [vmem:[%s5352 + $0xb8] sm:$0xff]
        %v5377 = vld [vmem:[%s5352 + $0xc0] sm:$0xff]
        %v5378 = vld [vmem:[%s5352 + $0xc8] sm:$0xff]
        %v5379 = vld [vmem:[%s5352 + $0xd0] sm:$0xff]
        %v5380 = vld [vmem:[%s5352 + $0xd8] sm:$0xff]
        %v5381 = vld [vmem:[%s5352 + $0xe0] sm:$0xff]
        %v5382 = vld [vmem:[%s5352 + $0xe8] sm:$0xff]
        %v5383 = vld [vmem:[%s5352 + $0xf0] sm:$0xff]
        %v5384 = vld [vmem:[%s5352 + $0xf8] sm:$0xff]
        %v5385 = vld [vmem:[%s5352 + $0x100] sm:$0xff]
        %v5386 = vld [vmem:[%s5352 + $0x108] sm:$0xff]
        %v5387 = vld [vmem:[%s5352 + $0x110] sm:$0xff]
        %v5388 = vld [vmem:[%s5352 + $0x118] sm:$0xff]
        %v5389 = vld [vmem:[%s5352 + $0x120] sm:$0xff]
        %v5390 = vld [vmem:[%s5352 + $0x128] sm:$0xff]
        %v5391 = vld [vmem:[%s5352 + $0x130] sm:$0xff]
        %v5392 = vld [vmem:[%s5352 + $0x138] sm:$0xff]
        %v5393 = vld [vmem:[%s5352 + $0x140] sm:$0xff]
        %v5394 = vld [vmem:[%s5352 + $0x148] sm:$0xff]
        %v5395 = vld [vmem:[%s5352 + $0x150] sm:$0xff]
        %v5396 = vld [vmem:[%s5352 + $0x158] sm:$0xff]
        %v5397 = vld [vmem:[%s5352 + $0x160] sm:$0xff]
        %v5398 = vld [vmem:[%s5352 + $0x168] sm:$0xff]
        %v5399 = vld [vmem:[%s5352 + $0x170] sm:$0xff]
        %v5400 = vld [vmem:[%s5352 + $0x178] sm:$0xff]
        %v5401 = vld [vmem:[%s5352 + $0x180] sm:$0xff]
        %v5402 = vld [vmem:[%s5352 + $0x188] sm:$0xff]
        %v5403 = vld [vmem:[%s5352 + $0x190] sm:$0xff]
        %v5404 = vld [vmem:[%s5352 + $0x198] sm:$0xff]
        %v5405 = vld [vmem:[%s5352 + $0x1a0] sm:$0xff]
        %v5406 = vld [vmem:[%s5352 + $0x1a8] sm:$0xff]
        %v5407 = vld [vmem:[%s5352 + $0x1b0] sm:$0xff]
        %v5408 = vld [vmem:[%s5352 + $0x1b8] sm:$0xff]
        %v5409 = vld [vmem:[%s5352 + $0x1c0] sm:$0xff]
        %v5410 = vld [vmem:[%s5352 + $0x1c8] sm:$0xff]
        %v5411 = vld [vmem:[%s5352 + $0x1d0] sm:$0xff]
        %v5412 = vld [vmem:[%s5352 + $0x1d8] sm:$0xff]
        %v5413 = vld [vmem:[%s5352 + $0x1e0] sm:$0xff]
        %v5414 = vld [vmem:[%s5352 + $0x1e8] sm:$0xff]
        %v5415 = vld [vmem:[%s5352 + $0x1f0] sm:$0xff]
        %v5416 = vld [vmem:[%s5352 + $0x1f8] sm:$0xff]
        %s5417 = scalar_lea.vmem %s8, 16
        %v5418 = vld [vmem:[%s5417] sm:$0xff]
        %v5419 = vld [vmem:[%s5417 + $0x8] sm:$0xff]
        %v5422 = vlaneseq
        %v5423 = vshrl.u32 %v5422, 7
        %v5424 = vsub.s32 0, %v5423
        %v5425 = vrot.slane %v5418, %v5424
        %v5426 = vlaneseq
        %v5427 = vshrl.u32 %v5426, 7
        %v5428 = vsub.s32 1, %v5427
        %v5429 = vrot.slane %v5418, %v5428
        %v5430 = vlaneseq
        %v5431 = vshrl.u32 %v5430, 7
        %v5432 = vsub.s32 2, %v5431
        %v5433 = vrot.slane %v5418, %v5432
        %v5434 = vlaneseq
        %v5435 = vshrl.u32 %v5434, 7
        %v5436 = vsub.s32 3, %v5435
        %v5437 = vrot.slane %v5418, %v5436
        %v5438 = vlaneseq
        %v5439 = vshrl.u32 %v5438, 7
        %v5440 = vsub.s32 4, %v5439
        %v5441 = vrot.slane %v5418, %v5440
        %v5442 = vlaneseq
        %v5443 = vshrl.u32 %v5442, 7
        %v5444 = vsub.s32 5, %v5443
        %v5445 = vrot.slane %v5418, %v5444
        %v5446 = vlaneseq
        %v5447 = vshrl.u32 %v5446, 7
        %v5448 = vsub.s32 6, %v5447
        %v5449 = vrot.slane %v5418, %v5448
        %v5450 = vlaneseq
        %v5451 = vshrl.u32 %v5450, 7
        %v5452 = vsub.s32 7, %v5451
        %v5453 = vrot.slane %v5418, %v5452
        %v5454 = vlaneseq
        %v5455 = vshrl.u32 %v5454, 7
        %v5456 = vsub.s32 0, %v5455
        %v5457 = vrot.slane %v5419, %v5456
        %v5458 = vlaneseq
        %v5459 = vshrl.u32 %v5458, 7
        %v5460 = vsub.s32 1, %v5459
        %v5461 = vrot.slane %v5419, %v5460
        %v5462 = vlaneseq
        %v5463 = vshrl.u32 %v5462, 7
        %v5464 = vsub.s32 2, %v5463
        %v5465 = vrot.slane %v5419, %v5464
        %v5466 = vlaneseq
        %v5467 = vshrl.u32 %v5466, 7
        %v5468 = vsub.s32 3, %v5467
        %v5469 = vrot.slane %v5419, %v5468
        %v5470 = vlaneseq
        %v5471 = vshrl.u32 %v5470, 7
        %v5472 = vsub.s32 4, %v5471
        %v5473 = vrot.slane %v5419, %v5472
        %v5474 = vlaneseq
        %v5475 = vshrl.u32 %v5474, 7
        %v5476 = vsub.s32 5, %v5475
        %v5477 = vrot.slane %v5419, %v5476
        %v5478 = vlaneseq
        %v5479 = vshrl.u32 %v5478, 7
        %v5480 = vsub.s32 6, %v5479
        %v5481 = vrot.slane %v5419, %v5480
        %v5482 = vlaneseq
        %v5483 = vshrl.u32 %v5482, 7
        %v5484 = vsub.s32 7, %v5483
        %v5485 = vrot.slane %v5419, %v5484
        %v5503 = vsel %vm585, %v5351, 0
        %5505 = vmatprep.subr.mxu0 %v5354
        %5506 = vmatpush1.msra.mxu0 %v5353
        %5507 = vmatprep.subr.mxu0 %v5370
        %5508 = vmatpush1.msra.mxu0 %v5369
        %5509 = vmatprep.subr.mxu0 %v5386
        %5510 = vmatpush1.msra.mxu0 %v5385
        %5511 = vmatprep.subr.mxu0 %v5402
        %5512 = vmatpush1.msra.mxu0 %v5401
        %5513 = vmatprep.subr.mxu0 0.0
        %5514 = vmatpush1.msra.mxu0 0.0
        %5515 = vmatprep.subr.mxu0 0.0
        %5516 = vmatpush1.msra.mxu0 0.0
        %5517 = vmatprep.subr.mxu0 0.0
        %5518 = vmatpush1.msra.mxu0 0.0
        %5519 = vmatprep.subr.mxu0 0.0
        %5520 = vmatpush1.msra.mxu0 0.0
        %5521 = vmatprep.subr.mxu0 0.0
        %5522 = vmatpush1.msra.mxu0 0.0
        %5523 = vmatprep.subr.mxu0 0.0
        %5524 = vmatpush1.msra.mxu0 0.0
        %5525 = vmatprep.subr.mxu0 0.0
        %5526 = vmatpush1.msra.mxu0 0.0
        %5527 = vmatprep.subr.mxu0 0.0
        %5528 = vmatpush1.msra.mxu0 0.0
        %5529 = vmatprep.subr.mxu0 0.0
        %5530 = vmatpush1.msra.mxu0 0.0
        %5531 = vmatprep.subr.mxu0 0.0
        %5532 = vmatpush1.msra.mxu0 0.0
        %5533 = vmatprep.subr.mxu0 0.0
        %5534 = vmatpush1.msra.mxu0 0.0
        %5535 = vmatprep.subr.mxu0 0.0
        %5536 = vmatpush1.msra.mxu0 0.0
        %5537 = vmatprep.subr.mxu0 0.0
        %5538 = vmatpush1.msra.mxu0 0.0
        %5539 = vmatprep.subr.mxu0 0.0
        %5540 = vmatpush1.msra.mxu0 0.0
        %5541 = vmatprep.subr.mxu0 0.0
        %5542 = vmatpush1.msra.mxu0 0.0
        %5543 = vmatprep.subr.mxu0 0.0
        %5544 = vmatpush1.msra.mxu0 0.0
        %5545 = vmatprep.subr.mxu0 0.0
        %5546 = vmatpush1.msra.mxu0 0.0
        %5547 = vmatprep.subr.mxu0 0.0
        %5548 = vmatpush1.msra.mxu0 0.0
        %5549 = vmatprep.subr.mxu0 0.0
        %5550 = vmatpush1.msra.mxu0 0.0
        %5551 = vmatprep.subr.mxu0 0.0
        %5552 = vmatpush1.msra.mxu0 0.0
        %5553 = vmatprep.subr.mxu0 0.0
        %5554 = vmatpush1.msra.mxu0 0.0
        %5555 = vmatprep.subr.mxu0 0.0
        %5556 = vmatpush1.msra.mxu0 0.0
        %5557 = vmatprep.subr.mxu0 0.0
        %5558 = vmatpush1.msra.mxu0 0.0
        %5559 = vmatprep.subr.mxu0 0.0
        %5560 = vmatpush1.msra.mxu0 0.0
        %5561 = vmatprep.subr.mxu0 0.0
        %5562 = vmatpush1.msra.mxu0 0.0
        %5563 = vmatprep.subr.mxu0 0.0
        %5564 = vmatpush1.msra.mxu0 0.0
        %5565 = vmatprep.subr.mxu0 0.0
        %5566 = vmatpush1.msra.mxu0 0.0
        %5567 = vmatprep.subr.mxu0 0.0
        %5568 = vmatpush1.msra.mxu0 0.0
        %5569 = vmatprep.mubr.f32.mxu0 0.0
        %5570 = vmatmul.mubr.f32.gmra.mrb[0].mxu0 %v5503
        %v5571 = vpop.f32.mrb[0].mxu0
        %v5572 = vadd.f32 %v5425, %v5571
        %v5573 = vpop.f32.mrb[0].mxu0
        %v5574 = vadd.f32 %v5429, %v5573
        %5575 = vdwg.mxu0
        %5576 = vmatprep.subr.mxu0 %v5356
        %5577 = vmatpush1.msra.mxu0 %v5355
        %5578 = vmatprep.subr.mxu0 %v5372
        %5579 = vmatpush1.msra.mxu0 %v5371
        %5580 = vmatprep.subr.mxu0 %v5388
        %5581 = vmatpush1.msra.mxu0 %v5387
        %5582 = vmatprep.subr.mxu0 %v5404
        %5583 = vmatpush1.msra.mxu0 %v5403
        %5584 = vmatprep.subr.mxu0 0.0
        %5585 = vmatpush1.msra.mxu0 0.0
        %5586 = vmatprep.subr.mxu0 0.0
        %5587 = vmatpush1.msra.mxu0 0.0
        %5588 = vmatprep.subr.mxu0 0.0
        %5589 = vmatpush1.msra.mxu0 0.0
        %5590 = vmatprep.subr.mxu0 0.0
        %5591 = vmatpush1.msra.mxu0 0.0
        %5592 = vmatprep.subr.mxu0 0.0
        %5593 = vmatpush1.msra.mxu0 0.0
        %5594 = vmatprep.subr.mxu0 0.0
        %5595 = vmatpush1.msra.mxu0 0.0
        %5596 = vmatprep.subr.mxu0 0.0
        %5597 = vmatpush1.msra.mxu0 0.0
        %5598 = vmatprep.subr.mxu0 0.0
        %5599 = vmatpush1.msra.mxu0 0.0
        %5600 = vmatprep.subr.mxu0 0.0
        %5601 = vmatpush1.msra.mxu0 0.0
        %5602 = vmatprep.subr.mxu0 0.0
        %5603 = vmatpush1.msra.mxu0 0.0
        %5604 = vmatprep.subr.mxu0 0.0
        %5605 = vmatpush1.msra.mxu0 0.0
        %5606 = vmatprep.subr.mxu0 0.0
        %5607 = vmatpush1.msra.mxu0 0.0
        %5608 = vmatprep.subr.mxu0 0.0
        %5609 = vmatpush1.msra.mxu0 0.0
        %5610 = vmatprep.subr.mxu0 0.0
        %5611 = vmatpush1.msra.mxu0 0.0
        %5612 = vmatprep.subr.mxu0 0.0
        %5613 = vmatpush1.msra.mxu0 0.0
        %5614 = vmatprep.subr.mxu0 0.0
        %5615 = vmatpush1.msra.mxu0 0.0
        %5616 = vmatprep.subr.mxu0 0.0
        %5617 = vmatpush1.msra.mxu0 0.0
        %5618 = vmatprep.subr.mxu0 0.0
        %5619 = vmatpush1.msra.mxu0 0.0
        %5620 = vmatprep.subr.mxu0 0.0
        %5621 = vmatpush1.msra.mxu0 0.0
        %5622 = vmatprep.subr.mxu0 0.0
        %5623 = vmatpush1.msra.mxu0 0.0
        %5624 = vmatprep.subr.mxu0 0.0
        %5625 = vmatpush1.msra.mxu0 0.0
        %5626 = vmatprep.subr.mxu0 0.0
        %5627 = vmatpush1.msra.mxu0 0.0
        %5628 = vmatprep.subr.mxu0 0.0
        %5629 = vmatpush1.msra.mxu0 0.0
        %5630 = vmatprep.subr.mxu0 0.0
        %5631 = vmatpush1.msra.mxu0 0.0
        %5632 = vmatprep.subr.mxu0 0.0
        %5633 = vmatpush1.msra.mxu0 0.0
        %5634 = vmatprep.subr.mxu0 0.0
        %5635 = vmatpush1.msra.mxu0 0.0
        %5636 = vmatprep.subr.mxu0 0.0
        %5637 = vmatpush1.msra.mxu0 0.0
        %5638 = vmatprep.subr.mxu0 0.0
        %5639 = vmatpush1.msra.mxu0 0.0
        %5640 = vmatprep.mubr.f32.mxu0 0.0
        %5641 = vmatmul.mubr.f32.gmra.mrb[0].mxu0 %v5503
        %v5642 = vpop.f32.mrb[0].mxu0
        %v5643 = vadd.f32 %v5433, %v5642
        %v5644 = vpop.f32.mrb[0].mxu0
        %v5645 = vadd.f32 %v5437, %v5644
        %5646 = vdwg.mxu0
        %5647 = vmatprep.subr.mxu0 %v5358
        %5648 = vmatpush1.msra.mxu0 %v5357
        %5649 = vmatprep.subr.mxu0 %v5374
        %5650 = vmatpush1.msra.mxu0 %v5373
        %5651 = vmatprep.subr.mxu0 %v5390
        %5652 = vmatpush1.msra.mxu0 %v5389
        %5653 = vmatprep.subr.mxu0 %v5406
        %5654 = vmatpush1.msra.mxu0 %v5405
        %5655 = vmatprep.subr.mxu0 0.0
        %5656 = vmatpush1.msra.mxu0 0.0
        %5657 = vmatprep.subr.mxu0 0.0
        %5658 = vmatpush1.msra.mxu0 0.0
        %5659 = vmatprep.subr.mxu0 0.0
        %5660 = vmatpush1.msra.mxu0 0.0
        %5661 = vmatprep.subr.mxu0 0.0
        %5662 = vmatpush1.msra.mxu0 0.0
        %5663 = vmatprep.subr.mxu0 0.0
        %5664 = vmatpush1.msra.mxu0 0.0
        %5665 = vmatprep.subr.mxu0 0.0
        %5666 = vmatpush1.msra.mxu0 0.0
        %5667 = vmatprep.subr.mxu0 0.0
        %5668 = vmatpush1.msra.mxu0 0.0
        %5669 = vmatprep.subr.mxu0 0.0
        %5670 = vmatpush1.msra.mxu0 0.0
        %5671 = vmatprep.subr.mxu0 0.0
        %5672 = vmatpush1.msra.mxu0 0.0
        %5673 = vmatprep.subr.mxu0 0.0
        %5674 = vmatpush1.msra.mxu0 0.0
        %5675 = vmatprep.subr.mxu0 0.0
        %5676 = vmatpush1.msra.mxu0 0.0
        %5677 = vmatprep.subr.mxu0 0.0
        %5678 = vmatpush1.msra.mxu0 0.0
        %5679 = vmatprep.subr.mxu0 0.0
        %5680 = vmatpush1.msra.mxu0 0.0
        %5681 = vmatprep.subr.mxu0 0.0
        %5682 = vmatpush1.msra.mxu0 0.0
        %5683 = vmatprep.subr.mxu0 0.0
        %5684 = vmatpush1.msra.mxu0 0.0
        %5685 = vmatprep.subr.mxu0 0.0
        %5686 = vmatpush1.msra.mxu0 0.0
        %5687 = vmatprep.subr.mxu0 0.0
        %5688 = vmatpush1.msra.mxu0 0.0
        %5689 = vmatprep.subr.mxu0 0.0
        %5690 = vmatpush1.msra.mxu0 0.0
        %5691 = vmatprep.subr.mxu0 0.0
        %5692 = vmatpush1.msra.mxu0 0.0
        %5693 = vmatprep.subr.mxu0 0.0
        %5694 = vmatpush1.msra.mxu0 0.0
        %5695 = vmatprep.subr.mxu0 0.0
        %5696 = vmatpush1.msra.mxu0 0.0
        %5697 = vmatprep.subr.mxu0 0.0
        %5698 = vmatpush1.msra.mxu0 0.0
        %5699 = vmatprep.subr.mxu0 0.0
        %5700 = vmatpush1.msra.mxu0 0.0
        %5701 = vmatprep.subr.mxu0 0.0
        %5702 = vmatpush1.msra.mxu0 0.0
        %5703 = vmatprep.subr.mxu0 0.0
        %5704 = vmatpush1.msra.mxu0 0.0
        %5705 = vmatprep.subr.mxu0 0.0
        %5706 = vmatpush1.msra.mxu0 0.0
        %5707 = vmatprep.subr.mxu0 0.0
        %5708 = vmatpush1.msra.mxu0 0.0
        %5709 = vmatprep.subr.mxu0 0.0
        %5710 = vmatpush1.msra.mxu0 0.0
        %5711 = vmatprep.mubr.f32.mxu0 0.0
        %5712 = vmatmul.mubr.f32.gmra.mrb[0].mxu0 %v5503
        %v5713 = vpop.f32.mrb[0].mxu0
        %v5714 = vadd.f32 %v5441, %v5713
        %v5715 = vpop.f32.mrb[0].mxu0
        %v5716 = vadd.f32 %v5445, %v5715
        %5717 = vdwg.mxu0
        %5718 = vmatprep.subr.mxu0 %v5360
        %5719 = vmatpush1.msra.mxu0 %v5359
        %5720 = vmatprep.subr.mxu0 %v5376
        %5721 = vmatpush1.msra.mxu0 %v5375
        %5722 = vmatprep.subr.mxu0 %v5392
        %5723 = vmatpush1.msra.mxu0 %v5391
        %5724 = vmatprep.subr.mxu0 %v5408
        %5725 = vmatpush1.msra.mxu0 %v5407
        %5726 = vmatprep.subr.mxu0 0.0
        %5727 = vmatpush1.msra.mxu0 0.0
        %5728 = vmatprep.subr.mxu0 0.0
        %5729 = vmatpush1.msra.mxu0 0.0
        %5730 = vmatprep.subr.mxu0 0.0
        %5731 = vmatpush1.msra.mxu0 0.0
        %5732 = vmatprep.subr.mxu0 0.0
        %5733 = vmatpush1.msra.mxu0 0.0
        %5734 = vmatprep.subr.mxu0 0.0
        %5735 = vmatpush1.msra.mxu0 0.0
        %5736 = vmatprep.subr.mxu0 0.0
        %5737 = vmatpush1.msra.mxu0 0.0
        %5738 = vmatprep.subr.mxu0 0.0
        %5739 = vmatpush1.msra.mxu0 0.0
        %5740 = vmatprep.subr.mxu0 0.0
        %5741 = vmatpush1.msra.mxu0 0.0
        %5742 = vmatprep.subr.mxu0 0.0
        %5743 = vmatpush1.msra.mxu0 0.0
        %5744 = vmatprep.subr.mxu0 0.0
        %5745 = vmatpush1.msra.mxu0 0.0
        %5746 = vmatprep.subr.mxu0 0.0
        %5747 = vmatpush1.msra.mxu0 0.0
        %5748 = vmatprep.subr.mxu0 0.0
        %5749 = vmatpush1.msra.mxu0 0.0
        %5750 = vmatprep.subr.mxu0 0.0
        %5751 = vmatpush1.msra.mxu0 0.0
        %5752 = vmatprep.subr.mxu0 0.0
        %5753 = vmatpush1.msra.mxu0 0.0
        %5754 = vmatprep.subr.mxu0 0.0
        %5755 = vmatpush1.msra.mxu0 0.0
        %5756 = vmatprep.subr.mxu0 0.0
        %5757 = vmatpush1.msra.mxu0 0.0
        %5758 = vmatprep.subr.mxu0 0.0
        %5759 = vmatpush1.msra.mxu0 0.0
        %5760 = vmatprep.subr.mxu0 0.0
        %5761 = vmatpush1.msra.mxu0 0.0
        %5762 = vmatprep.subr.mxu0 0.0
        %5763 = vmatpush1.msra.mxu0 0.0
        %5764 = vmatprep.subr.mxu0 0.0
        %5765 = vmatpush1.msra.mxu0 0.0
        %5766 = vmatprep.subr.mxu0 0.0
        %5767 = vmatpush1.msra.mxu0 0.0
        %5768 = vmatprep.subr.mxu0 0.0
        %5769 = vmatpush1.msra.mxu0 0.0
        %5770 = vmatprep.subr.mxu0 0.0
        %5771 = vmatpush1.msra.mxu0 0.0
        %5772 = vmatprep.subr.mxu0 0.0
        %5773 = vmatpush1.msra.mxu0 0.0
        %5774 = vmatprep.subr.mxu0 0.0
        %5775 = vmatpush1.msra.mxu0 0.0
        %5776 = vmatprep.subr.mxu0 0.0
        %5777 = vmatpush1.msra.mxu0 0.0
        %5778 = vmatprep.subr.mxu0 0.0
        %5779 = vmatpush1.msra.mxu0 0.0
        %5780 = vmatprep.subr.mxu0 0.0
        %5781 = vmatpush1.msra.mxu0 0.0
        %5782 = vmatprep.mubr.f32.mxu0 0.0
        %5783 = vmatmul.mubr.f32.gmra.mrb[0].mxu0 %v5503
        %v5784 = vpop.f32.mrb[0].mxu0
        %v5785 = vadd.f32 %v5449, %v5784
        %v5786 = vpop.f32.mrb[0].mxu0
        %v5787 = vadd.f32 %v5453, %v5786
        %5788 = vdwg.mxu0
        %5789 = vmatprep.subr.mxu0 %v5362
        %5790 = vmatpush1.msra.mxu0 %v5361
        %5791 = vmatprep.subr.mxu0 %v5378
        %5792 = vmatpush1.msra.mxu0 %v5377
        %5793 = vmatprep.subr.mxu0 %v5394
        %5794 = vmatpush1.msra.mxu0 %v5393
        %5795 = vmatprep.subr.mxu0 %v5410
        %5796 = vmatpush1.msra.mxu0 %v5409
        %5797 = vmatprep.subr.mxu0 0.0
        %5798 = vmatpush1.msra.mxu0 0.0
        %5799 = vmatprep.subr.mxu0 0.0
        %5800 = vmatpush1.msra.mxu0 0.0
        %5801 = vmatprep.subr.mxu0 0.0
        %5802 = vmatpush1.msra.mxu0 0.0
        %5803 = vmatprep.subr.mxu0 0.0
        %5804 = vmatpush1.msra.mxu0 0.0
        %5805 = vmatprep.subr.mxu0 0.0
        %5806 = vmatpush1.msra.mxu0 0.0
        %5807 = vmatprep.subr.mxu0 0.0
        %5808 = vmatpush1.msra.mxu0 0.0
        %5809 = vmatprep.subr.mxu0 0.0
        %5810 = vmatpush1.msra.mxu0 0.0
        %5811 = vmatprep.subr.mxu0 0.0
        %5812 = vmatpush1.msra.mxu0 0.0
        %5813 = vmatprep.subr.mxu0 0.0
        %5814 = vmatpush1.msra.mxu0 0.0
        %5815 = vmatprep.subr.mxu0 0.0
        %5816 = vmatpush1.msra.mxu0 0.0
        %5817 = vmatprep.subr.mxu0 0.0
        %5818 = vmatpush1.msra.mxu0 0.0
        %5819 = vmatprep.subr.mxu0 0.0
        %5820 = vmatpush1.msra.mxu0 0.0
        %5821 = vmatprep.subr.mxu0 0.0
        %5822 = vmatpush1.msra.mxu0 0.0
        %5823 = vmatprep.subr.mxu0 0.0
        %5824 = vmatpush1.msra.mxu0 0.0
        %5825 = vmatprep.subr.mxu0 0.0
        %5826 = vmatpush1.msra.mxu0 0.0
        %5827 = vmatprep.subr.mxu0 0.0
        %5828 = vmatpush1.msra.mxu0 0.0
        %5829 = vmatprep.subr.mxu0 0.0
        %5830 = vmatpush1.msra.mxu0 0.0
        %5831 = vmatprep.subr.mxu0 0.0
        %5832 = vmatpush1.msra.mxu0 0.0
        %5833 = vmatprep.subr.mxu0 0.0
        %5834 = vmatpush1.msra.mxu0 0.0
        %5835 = vmatprep.subr.mxu0 0.0
        %5836 = vmatpush1.msra.mxu0 0.0
        %5837 = vmatprep.subr.mxu0 0.0
        %5838 = vmatpush1.msra.mxu0 0.0
        %5839 = vmatprep.subr.mxu0 0.0
        %5840 = vmatpush1.msra.mxu0 0.0
        %5841 = vmatprep.subr.mxu0 0.0
        %5842 = vmatpush1.msra.mxu0 0.0
        %5843 = vmatprep.subr.mxu0 0.0
        %5844 = vmatpush1.msra.mxu0 0.0
        %5845 = vmatprep.subr.mxu0 0.0
        %5846 = vmatpush1.msra.mxu0 0.0
        %5847 = vmatprep.subr.mxu0 0.0
        %5848 = vmatpush1.msra.mxu0 0.0
        %5849 = vmatprep.subr.mxu0 0.0
        %5850 = vmatpush1.msra.mxu0 0.0
        %5851 = vmatprep.subr.mxu0 0.0
        %5852 = vmatpush1.msra.mxu0 0.0
        %5853 = vmatprep.mubr.f32.mxu0 0.0
        %5854 = vmatmul.mubr.f32.gmra.mrb[0].mxu0 %v5503
        %v5855 = vpop.f32.mrb[0].mxu0
        %v5856 = vadd.f32 %v5457, %v5855
        %v5857 = vpop.f32.mrb[0].mxu0
        %v5858 = vadd.f32 %v5461, %v5857
        %5859 = vdwg.mxu0
        %5860 = vmatprep.subr.mxu0 %v5364
        %5861 = vmatpush1.msra.mxu0 %v5363
        %5862 = vmatprep.subr.mxu0 %v5380
        %5863 = vmatpush1.msra.mxu0 %v5379
        %5864 = vmatprep.subr.mxu0 %v5396
        %5865 = vmatpush1.msra.mxu0 %v5395
        %5866 = vmatprep.subr.mxu0 %v5412
        %5867 = vmatpush1.msra.mxu0 %v5411
        %5868 = vmatprep.subr.mxu0 0.0
        %5869 = vmatpush1.msra.mxu0 0.0
        %5870 = vmatprep.subr.mxu0 0.0
        %5871 = vmatpush1.msra.mxu0 0.0
        %5872 = vmatprep.subr.mxu0 0.0
        %5873 = vmatpush1.msra.mxu0 0.0
        %5874 = vmatprep.subr.mxu0 0.0
        %5875 = vmatpush1.msra.mxu0 0.0
        %5876 = vmatprep.subr.mxu0 0.0
        %5877 = vmatpush1.msra.mxu0 0.0
        %5878 = vmatprep.subr.mxu0 0.0
        %5879 = vmatpush1.msra.mxu0 0.0
        %5880 = vmatprep.subr.mxu0 0.0
        %5881 = vmatpush1.msra.mxu0 0.0
        %5882 = vmatprep.subr.mxu0 0.0
        %5883 = vmatpush1.msra.mxu0 0.0
        %5884 = vmatprep.subr.mxu0 0.0
        %5885 = vmatpush1.msra.mxu0 0.0
        %5886 = vmatprep.subr.mxu0 0.0
        %5887 = vmatpush1.msra.mxu0 0.0
        %5888 = vmatprep.subr.mxu0 0.0
        %5889 = vmatpush1.msra.mxu0 0.0
        %5890 = vmatprep.subr.mxu0 0.0
        %5891 = vmatpush1.msra.mxu0 0.0
        %5892 = vmatprep.subr.mxu0 0.0
        %5893 = vmatpush1.msra.mxu0 0.0
        %5894 = vmatprep.subr.mxu0 0.0
        %5895 = vmatpush1.msra.mxu0 0.0
        %5896 = vmatprep.subr.mxu0 0.0
        %5897 = vmatpush1.msra.mxu0 0.0
        %5898 = vmatprep.subr.mxu0 0.0
        %5899 = vmatpush1.msra.mxu0 0.0
        %5900 = vmatprep.subr.mxu0 0.0
        %5901 = vmatpush1.msra.mxu0 0.0
        %5902 = vmatprep.subr.mxu0 0.0
        %5903 = vmatpush1.msra.mxu0 0.0
        %5904 = vmatprep.subr.mxu0 0.0
        %5905 = vmatpush1.msra.mxu0 0.0
        %5906 = vmatprep.subr.mxu0 0.0
        %5907 = vmatpush1.msra.mxu0 0.0
        %5908 = vmatprep.subr.mxu0 0.0
        %5909 = vmatpush1.msra.mxu0 0.0
        %5910 = vmatprep.subr.mxu0 0.0
        %5911 = vmatpush1.msra.mxu0 0.0
        %5912 = vmatprep.subr.mxu0 0.0
        %5913 = vmatpush1.msra.mxu0 0.0
        %5914 = vmatprep.subr.mxu0 0.0
        %5915 = vmatpush1.msra.mxu0 0.0
        %5916 = vmatprep.subr.mxu0 0.0
        %5917 = vmatpush1.msra.mxu0 0.0
        %5918 = vmatprep.subr.mxu0 0.0
        %5919 = vmatpush1.msra.mxu0 0.0
        %5920 = vmatprep.subr.mxu0 0.0
        %5921 = vmatpush1.msra.mxu0 0.0
        %5922 = vmatprep.subr.mxu0 0.0
        %5923 = vmatpush1.msra.mxu0 0.0
        %5924 = vmatprep.mubr.f32.mxu0 0.0
        %5925 = vmatmul.mubr.f32.gmra.mrb[0].mxu0 %v5503
        %v5926 = vpop.f32.mrb[0].mxu0
        %v5927 = vadd.f32 %v5465, %v5926
        %v5928 = vpop.f32.mrb[0].mxu0
        %v5929 = vadd.f32 %v5469, %v5928
        %5930 = vdwg.mxu0
        %5931 = vmatprep.subr.mxu0 %v5366
        %5932 = vmatpush1.msra.mxu0 %v5365
        %5933 = vmatprep.subr.mxu0 %v5382
        %5934 = vmatpush1.msra.mxu0 %v5381
        %5935 = vmatprep.subr.mxu0 %v5398
        %5936 = vmatpush1.msra.mxu0 %v5397
        %5937 = vmatprep.subr.mxu0 %v5414
        %5938 = vmatpush1.msra.mxu0 %v5413
        %5939 = vmatprep.subr.mxu0 0.0
        %5940 = vmatpush1.msra.mxu0 0.0
        %5941 = vmatprep.subr.mxu0 0.0
        %5942 = vmatpush1.msra.mxu0 0.0
        %5943 = vmatprep.subr.mxu0 0.0
        %5944 = vmatpush1.msra.mxu0 0.0
        %5945 = vmatprep.subr.mxu0 0.0
        %5946 = vmatpush1.msra.mxu0 0.0
        %5947 = vmatprep.subr.mxu0 0.0
        %5948 = vmatpush1.msra.mxu0 0.0
        %5949 = vmatprep.subr.mxu0 0.0
        %5950 = vmatpush1.msra.mxu0 0.0
        %5951 = vmatprep.subr.mxu0 0.0
        %5952 = vmatpush1.msra.mxu0 0.0
        %5953 = vmatprep.subr.mxu0 0.0
        %5954 = vmatpush1.msra.mxu0 0.0
        %5955 = vmatprep.subr.mxu0 0.0
        %5956 = vmatpush1.msra.mxu0 0.0
        %5957 = vmatprep.subr.mxu0 0.0
        %5958 = vmatpush1.msra.mxu0 0.0
        %5959 = vmatprep.subr.mxu0 0.0
        %5960 = vmatpush1.msra.mxu0 0.0
        %5961 = vmatprep.subr.mxu0 0.0
        %5962 = vmatpush1.msra.mxu0 0.0
        %5963 = vmatprep.subr.mxu0 0.0
        %5964 = vmatpush1.msra.mxu0 0.0
        %5965 = vmatprep.subr.mxu0 0.0
        %5966 = vmatpush1.msra.mxu0 0.0
        %5967 = vmatprep.subr.mxu0 0.0
        %5968 = vmatpush1.msra.mxu0 0.0
        %5969 = vmatprep.subr.mxu0 0.0
        %5970 = vmatpush1.msra.mxu0 0.0
        %5971 = vmatprep.subr.mxu0 0.0
        %5972 = vmatpush1.msra.mxu0 0.0
        %5973 = vmatprep.subr.mxu0 0.0
        %5974 = vmatpush1.msra.mxu0 0.0
        %5975 = vmatprep.subr.mxu0 0.0
        %5976 = vmatpush1.msra.mxu0 0.0
        %5977 = vmatprep.subr.mxu0 0.0
        %5978 = vmatpush1.msra.mxu0 0.0
        %5979 = vmatprep.subr.mxu0 0.0
        %5980 = vmatpush1.msra.mxu0 0.0
        %5981 = vmatprep.subr.mxu0 0.0
        %5982 = vmatpush1.msra.mxu0 0.0
        %5983 = vmatprep.subr.mxu0 0.0
        %5984 = vmatpush1.msra.mxu0 0.0
        %5985 = vmatprep.subr.mxu0 0.0
        %5986 = vmatpush1.msra.mxu0 0.0
        %5987 = vmatprep.subr.mxu0 0.0
        %5988 = vmatpush1.msra.mxu0 0.0
        %5989 = vmatprep.subr.mxu0 0.0
        %5990 = vmatpush1.msra.mxu0 0.0
        %5991 = vmatprep.subr.mxu0 0.0
        %5992 = vmatpush1.msra.mxu0 0.0
        %5993 = vmatprep.subr.mxu0 0.0
        %5994 = vmatpush1.msra.mxu0 0.0
        %5995 = vmatprep.mubr.f32.mxu0 0.0
        %5996 = vmatmul.mubr.f32.gmra.mrb[0].mxu0 %v5503
        %v5997 = vpop.f32.mrb[0].mxu0
        %v5998 = vadd.f32 %v5473, %v5997
        %v5999 = vpop.f32.mrb[0].mxu0
        %v6000 = vadd.f32 %v5477, %v5999
        %6001 = vdwg.mxu0
        %6002 = vmatprep.subr.mxu0 %v5368
        %6003 = vmatpush1.msra.mxu0 %v5367
        %6004 = vmatprep.subr.mxu0 %v5384
        %6005 = vmatpush1.msra.mxu0 %v5383
        %6006 = vmatprep.subr.mxu0 %v5400
        %6007 = vmatpush1.msra.mxu0 %v5399
        %6008 = vmatprep.subr.mxu0 %v5416
        %6009 = vmatpush1.msra.mxu0 %v5415
        %6010 = vmatprep.subr.mxu0 0.0
        %6011 = vmatpush1.msra.mxu0 0.0
        %6012 = vmatprep.subr.mxu0 0.0
        %6013 = vmatpush1.msra.mxu0 0.0
        %6014 = vmatprep.subr.mxu0 0.0
        %6015 = vmatpush1.msra.mxu0 0.0
        %6016 = vmatprep.subr.mxu0 0.0
        %6017 = vmatpush1.msra.mxu0 0.0
        %6018 = vmatprep.subr.mxu0 0.0
        %6019 = vmatpush1.msra.mxu0 0.0
        %6020 = vmatprep.subr.mxu0 0.0
        %6021 = vmatpush1.msra.mxu0 0.0
        %6022 = vmatprep.subr.mxu0 0.0
        %6023 = vmatpush1.msra.mxu0 0.0
        %6024 = vmatprep.subr.mxu0 0.0
        %6025 = vmatpush1.msra.mxu0 0.0
        %6026 = vmatprep.subr.mxu0 0.0
        %6027 = vmatpush1.msra.mxu0 0.0
        %6028 = vmatprep.subr.mxu0 0.0
        %6029 = vmatpush1.msra.mxu0 0.0
        %6030 = vmatprep.subr.mxu0 0.0
        %6031 = vmatpush1.msra.mxu0 0.0
        %6032 = vmatprep.subr.mxu0 0.0
        %6033 = vmatpush1.msra.mxu0 0.0
        %6034 = vmatprep.subr.mxu0 0.0
        %6035 = vmatpush1.msra.mxu0 0.0
        %6036 = vmatprep.subr.mxu0 0.0
        %6037 = vmatpush1.msra.mxu0 0.0
        %6038 = vmatprep.subr.mxu0 0.0
        %6039 = vmatpush1.msra.mxu0 0.0
        %6040 = vmatprep.subr.mxu0 0.0
        %6041 = vmatpush1.msra.mxu0 0.0
        %6042 = vmatprep.subr.mxu0 0.0
        %6043 = vmatpush1.msra.mxu0 0.0
        %6044 = vmatprep.subr.mxu0 0.0
        %6045 = vmatpush1.msra.mxu0 0.0
        %6046 = vmatprep.subr.mxu0 0.0
        %6047 = vmatpush1.msra.mxu0 0.0
        %6048 = vmatprep.subr.mxu0 0.0
        %6049 = vmatpush1.msra.mxu0 0.0
        %6050 = vmatprep.subr.mxu0 0.0
        %6051 = vmatpush1.msra.mxu0 0.0
        %6052 = vmatprep.subr.mxu0 0.0
        %6053 = vmatpush1.msra.mxu0 0.0
        %6054 = vmatprep.subr.mxu0 0.0
        %6055 = vmatpush1.msra.mxu0 0.0
        %6056 = vmatprep.subr.mxu0 0.0
        %6057 = vmatpush1.msra.mxu0 0.0
        %6058 = vmatprep.subr.mxu0 0.0
        %6059 = vmatpush1.msra.mxu0 0.0
        %6060 = vmatprep.subr.mxu0 0.0
        %6061 = vmatpush1.msra.mxu0 0.0
        %6062 = vmatprep.subr.mxu0 0.0
        %6063 = vmatpush1.msra.mxu0 0.0
        %6064 = vmatprep.subr.mxu0 0.0
        %6065 = vmatpush1.msra.mxu0 0.0
        %6066 = vmatprep.mubr.f32.mxu0 0.0
        %6067 = vmatmul.mubr.f32.gmra.mrb[0].mxu0 %v5503
        %v6068 = vpop.f32.mrb[0].mxu0
        %v6069 = vadd.f32 %v5481, %v6068
        %v6070 = vpop.f32.mrb[0].mxu0
        %v6071 = vadd.f32 %v5485, %v6070
        %6072 = vdwg.mxu0
        %v6073 = vmax.f32 %v5572, 0.0
        %v6074 = vmax.f32 %v5574, 0.0
        %v6075 = vmax.f32 %v5643, 0.0
        %v6076 = vmax.f32 %v5645, 0.0
        %v6077 = vmax.f32 %v5714, 0.0
        %v6078 = vmax.f32 %v5716, 0.0
        %v6079 = vmax.f32 %v5785, 0.0
        %v6080 = vmax.f32 %v5787, 0.0
        %v6081 = vmax.f32 %v5856, 0.0
        %v6082 = vmax.f32 %v5858, 0.0
        %v6083 = vmax.f32 %v5927, 0.0
        %v6084 = vmax.f32 %v5929, 0.0
        %v6085 = vmax.f32 %v5998, 0.0
        %v6086 = vmax.f32 %v6000, 0.0
        %v6087 = vmax.f32 %v6069, 0.0
        %v6088 = vmax.f32 %v6071, 0.0
        %s6089 = scalar_lea.vmem %s9, 2048
        %v6090 = vld [vmem:[%s6089] sm:$0xff]
        %v6091 = vld [vmem:[%s6089 + $0x8] sm:$0xff]
        %v6092 = vld [vmem:[%s6089 + $0x10] sm:$0xff]
        %v6093 = vld [vmem:[%s6089 + $0x18] sm:$0xff]
        %v6094 = vld [vmem:[%s6089 + $0x20] sm:$0xff]
        %v6095 = vld [vmem:[%s6089 + $0x28] sm:$0xff]
        %v6096 = vld [vmem:[%s6089 + $0x30] sm:$0xff]
        %v6097 = vld [vmem:[%s6089 + $0x38] sm:$0xff]
        %v6098 = vld [vmem:[%s6089 + $0x40] sm:$0xff]
        %v6099 = vld [vmem:[%s6089 + $0x48] sm:$0xff]
        %v6100 = vld [vmem:[%s6089 + $0x50] sm:$0xff]
        %v6101 = vld [vmem:[%s6089 + $0x58] sm:$0xff]
        %v6102 = vld [vmem:[%s6089 + $0x60] sm:$0xff]
        %v6103 = vld [vmem:[%s6089 + $0x68] sm:$0xff]
        %v6104 = vld [vmem:[%s6089 + $0x70] sm:$0xff]
        %v6105 = vld [vmem:[%s6089 + $0x78] sm:$0xff]
        %v6106 = vld [vmem:[%s6089 + $0x80] sm:$0xff]
        %v6107 = vld [vmem:[%s6089 + $0x88] sm:$0xff]
        %v6108 = vld [vmem:[%s6089 + $0x90] sm:$0xff]
        %v6109 = vld [vmem:[%s6089 + $0x98] sm:$0xff]
        %v6110 = vld [vmem:[%s6089 + $0xa0] sm:$0xff]
        %v6111 = vld [vmem:[%s6089 + $0xa8] sm:$0xff]
        %v6112 = vld [vmem:[%s6089 + $0xb0] sm:$0xff]
        %v6113 = vld [vmem:[%s6089 + $0xb8] sm:$0xff]
        %v6114 = vld [vmem:[%s6089 + $0xc0] sm:$0xff]
        %v6115 = vld [vmem:[%s6089 + $0xc8] sm:$0xff]
        %v6116 = vld [vmem:[%s6089 + $0xd0] sm:$0xff]
        %v6117 = vld [vmem:[%s6089 + $0xd8] sm:$0xff]
        %v6118 = vld [vmem:[%s6089 + $0xe0] sm:$0xff]
        %v6119 = vld [vmem:[%s6089 + $0xe8] sm:$0xff]
        %v6120 = vld [vmem:[%s6089 + $0xf0] sm:$0xff]
        %v6121 = vld [vmem:[%s6089 + $0xf8] sm:$0xff]
        %v6122 = vld [vmem:[%s6089 + $0x100] sm:$0xff]
        %v6123 = vld [vmem:[%s6089 + $0x108] sm:$0xff]
        %v6124 = vld [vmem:[%s6089 + $0x110] sm:$0xff]
        %v6125 = vld [vmem:[%s6089 + $0x118] sm:$0xff]
        %v6126 = vld [vmem:[%s6089 + $0x120] sm:$0xff]
        %v6127 = vld [vmem:[%s6089 + $0x128] sm:$0xff]
        %v6128 = vld [vmem:[%s6089 + $0x130] sm:$0xff]
        %v6129 = vld [vmem:[%s6089 + $0x138] sm:$0xff]
        %v6130 = vld [vmem:[%s6089 + $0x140] sm:$0xff]
        %v6131 = vld [vmem:[%s6089 + $0x148] sm:$0xff]
        %v6132 = vld [vmem:[%s6089 + $0x150] sm:$0xff]
        %v6133 = vld [vmem:[%s6089 + $0x158] sm:$0xff]
        %v6134 = vld [vmem:[%s6089 + $0x160] sm:$0xff]
        %v6135 = vld [vmem:[%s6089 + $0x168] sm:$0xff]
        %v6136 = vld [vmem:[%s6089 + $0x170] sm:$0xff]
        %v6137 = vld [vmem:[%s6089 + $0x178] sm:$0xff]
        %v6138 = vld [vmem:[%s6089 + $0x180] sm:$0xff]
        %v6139 = vld [vmem:[%s6089 + $0x188] sm:$0xff]
        %v6140 = vld [vmem:[%s6089 + $0x190] sm:$0xff]
        %v6141 = vld [vmem:[%s6089 + $0x198] sm:$0xff]
        %v6142 = vld [vmem:[%s6089 + $0x1a0] sm:$0xff]
        %v6143 = vld [vmem:[%s6089 + $0x1a8] sm:$0xff]
        %v6144 = vld [vmem:[%s6089 + $0x1b0] sm:$0xff]
        %v6145 = vld [vmem:[%s6089 + $0x1b8] sm:$0xff]
        %v6146 = vld [vmem:[%s6089 + $0x1c0] sm:$0xff]
        %v6147 = vld [vmem:[%s6089 + $0x1c8] sm:$0xff]
        %v6148 = vld [vmem:[%s6089 + $0x1d0] sm:$0xff]
        %v6149 = vld [vmem:[%s6089 + $0x1d8] sm:$0xff]
        %v6150 = vld [vmem:[%s6089 + $0x1e0] sm:$0xff]
        %v6151 = vld [vmem:[%s6089 + $0x1e8] sm:$0xff]
        %v6152 = vld [vmem:[%s6089 + $0x1f0] sm:$0xff]
        %v6153 = vld [vmem:[%s6089 + $0x1f8] sm:$0xff]
        %v6154 = vld [vmem:[%s6089 + $0x200] sm:$0xff]
        %v6155 = vld [vmem:[%s6089 + $0x208] sm:$0xff]
        %v6156 = vld [vmem:[%s6089 + $0x210] sm:$0xff]
        %v6157 = vld [vmem:[%s6089 + $0x218] sm:$0xff]
        %v6158 = vld [vmem:[%s6089 + $0x220] sm:$0xff]
        %v6159 = vld [vmem:[%s6089 + $0x228] sm:$0xff]
        %v6160 = vld [vmem:[%s6089 + $0x230] sm:$0xff]
        %v6161 = vld [vmem:[%s6089 + $0x238] sm:$0xff]
        %v6162 = vld [vmem:[%s6089 + $0x240] sm:$0xff]
        %v6163 = vld [vmem:[%s6089 + $0x248] sm:$0xff]
        %v6164 = vld [vmem:[%s6089 + $0x250] sm:$0xff]
        %v6165 = vld [vmem:[%s6089 + $0x258] sm:$0xff]
        %v6166 = vld [vmem:[%s6089 + $0x260] sm:$0xff]
        %v6167 = vld [vmem:[%s6089 + $0x268] sm:$0xff]
        %v6168 = vld [vmem:[%s6089 + $0x270] sm:$0xff]
        %v6169 = vld [vmem:[%s6089 + $0x278] sm:$0xff]
        %v6170 = vld [vmem:[%s6089 + $0x280] sm:$0xff]
        %v6171 = vld [vmem:[%s6089 + $0x288] sm:$0xff]
        %v6172 = vld [vmem:[%s6089 + $0x290] sm:$0xff]
        %v6173 = vld [vmem:[%s6089 + $0x298] sm:$0xff]
        %v6174 = vld [vmem:[%s6089 + $0x2a0] sm:$0xff]
        %v6175 = vld [vmem:[%s6089 + $0x2a8] sm:$0xff]
        %v6176 = vld [vmem:[%s6089 + $0x2b0] sm:$0xff]
        %v6177 = vld [vmem:[%s6089 + $0x2b8] sm:$0xff]
        %v6178 = vld [vmem:[%s6089 + $0x2c0] sm:$0xff]
        %v6179 = vld [vmem:[%s6089 + $0x2c8] sm:$0xff]
        %v6180 = vld [vmem:[%s6089 + $0x2d0] sm:$0xff]
        %v6181 = vld [vmem:[%s6089 + $0x2d8] sm:$0xff]
        %v6182 = vld [vmem:[%s6089 + $0x2e0] sm:$0xff]
        %v6183 = vld [vmem:[%s6089 + $0x2e8] sm:$0xff]
        %v6184 = vld [vmem:[%s6089 + $0x2f0] sm:$0xff]
        %v6185 = vld [vmem:[%s6089 + $0x2f8] sm:$0xff]
        %v6186 = vld [vmem:[%s6089 + $0x300] sm:$0xff]
        %v6187 = vld [vmem:[%s6089 + $0x308] sm:$0xff]
        %v6188 = vld [vmem:[%s6089 + $0x310] sm:$0xff]
        %v6189 = vld [vmem:[%s6089 + $0x318] sm:$0xff]
        %v6190 = vld [vmem:[%s6089 + $0x320] sm:$0xff]
        %v6191 = vld [vmem:[%s6089 + $0x328] sm:$0xff]
        %v6192 = vld [vmem:[%s6089 + $0x330] sm:$0xff]
        %v6193 = vld [vmem:[%s6089 + $0x338] sm:$0xff]
        %v6194 = vld [vmem:[%s6089 + $0x340] sm:$0xff]
        %v6195 = vld [vmem:[%s6089 + $0x348] sm:$0xff]
        %v6196 = vld [vmem:[%s6089 + $0x350] sm:$0xff]
        %v6197 = vld [vmem:[%s6089 + $0x358] sm:$0xff]
        %v6198 = vld [vmem:[%s6089 + $0x360] sm:$0xff]
        %v6199 = vld [vmem:[%s6089 + $0x368] sm:$0xff]
        %v6200 = vld [vmem:[%s6089 + $0x370] sm:$0xff]
        %v6201 = vld [vmem:[%s6089 + $0x378] sm:$0xff]
        %v6202 = vld [vmem:[%s6089 + $0x380] sm:$0xff]
        %v6203 = vld [vmem:[%s6089 + $0x388] sm:$0xff]
        %v6204 = vld [vmem:[%s6089 + $0x390] sm:$0xff]
        %v6205 = vld [vmem:[%s6089 + $0x398] sm:$0xff]
        %v6206 = vld [vmem:[%s6089 + $0x3a0] sm:$0xff]
        %v6207 = vld [vmem:[%s6089 + $0x3a8] sm:$0xff]
        %v6208 = vld [vmem:[%s6089 + $0x3b0] sm:$0xff]
        %v6209 = vld [vmem:[%s6089 + $0x3b8] sm:$0xff]
        %v6210 = vld [vmem:[%s6089 + $0x3c0] sm:$0xff]
        %v6211 = vld [vmem:[%s6089 + $0x3c8] sm:$0xff]
        %v6212 = vld [vmem:[%s6089 + $0x3d0] sm:$0xff]
        %v6213 = vld [vmem:[%s6089 + $0x3d8] sm:$0xff]
        %v6214 = vld [vmem:[%s6089 + $0x3e0] sm:$0xff]
        %v6215 = vld [vmem:[%s6089 + $0x3e8] sm:$0xff]
        %v6216 = vld [vmem:[%s6089 + $0x3f0] sm:$0xff]
        %v6217 = vld [vmem:[%s6089 + $0x3f8] sm:$0xff]
        %v6218 = vld [vmem:[%s6089 + $0x400] sm:$0xff]
        %v6219 = vld [vmem:[%s6089 + $0x408] sm:$0xff]
        %v6220 = vld [vmem:[%s6089 + $0x410] sm:$0xff]
        %v6221 = vld [vmem:[%s6089 + $0x418] sm:$0xff]
        %v6222 = vld [vmem:[%s6089 + $0x420] sm:$0xff]
        %v6223 = vld [vmem:[%s6089 + $0x428] sm:$0xff]
        %v6224 = vld [vmem:[%s6089 + $0x430] sm:$0xff]
        %v6225 = vld [vmem:[%s6089 + $0x438] sm:$0xff]
        %v6226 = vld [vmem:[%s6089 + $0x440] sm:$0xff]
        %v6227 = vld [vmem:[%s6089 + $0x448] sm:$0xff]
        %v6228 = vld [vmem:[%s6089 + $0x450] sm:$0xff]
        %v6229 = vld [vmem:[%s6089 + $0x458] sm:$0xff]
        %v6230 = vld [vmem:[%s6089 + $0x460] sm:$0xff]
        %v6231 = vld [vmem:[%s6089 + $0x468] sm:$0xff]
        %v6232 = vld [vmem:[%s6089 + $0x470] sm:$0xff]
        %v6233 = vld [vmem:[%s6089 + $0x478] sm:$0xff]
        %v6234 = vld [vmem:[%s6089 + $0x480] sm:$0xff]
        %v6235 = vld [vmem:[%s6089 + $0x488] sm:$0xff]
        %v6236 = vld [vmem:[%s6089 + $0x490] sm:$0xff]
        %v6237 = vld [vmem:[%s6089 + $0x498] sm:$0xff]
        %v6238 = vld [vmem:[%s6089 + $0x4a0] sm:$0xff]
        %v6239 = vld [vmem:[%s6089 + $0x4a8] sm:$0xff]
        %v6240 = vld [vmem:[%s6089 + $0x4b0] sm:$0xff]
        %v6241 = vld [vmem:[%s6089 + $0x4b8] sm:$0xff]
        %v6242 = vld [vmem:[%s6089 + $0x4c0] sm:$0xff]
        %v6243 = vld [vmem:[%s6089 + $0x4c8] sm:$0xff]
        %v6244 = vld [vmem:[%s6089 + $0x4d0] sm:$0xff]
        %v6245 = vld [vmem:[%s6089 + $0x4d8] sm:$0xff]
        %v6246 = vld [vmem:[%s6089 + $0x4e0] sm:$0xff]
        %v6247 = vld [vmem:[%s6089 + $0x4e8] sm:$0xff]
        %v6248 = vld [vmem:[%s6089 + $0x4f0] sm:$0xff]
        %v6249 = vld [vmem:[%s6089 + $0x4f8] sm:$0xff]
        %v6250 = vld [vmem:[%s6089 + $0x500] sm:$0xff]
        %v6251 = vld [vmem:[%s6089 + $0x508] sm:$0xff]
        %v6252 = vld [vmem:[%s6089 + $0x510] sm:$0xff]
        %v6253 = vld [vmem:[%s6089 + $0x518] sm:$0xff]
        %v6254 = vld [vmem:[%s6089 + $0x520] sm:$0xff]
        %v6255 = vld [vmem:[%s6089 + $0x528] sm:$0xff]
        %v6256 = vld [vmem:[%s6089 + $0x530] sm:$0xff]
        %v6257 = vld [vmem:[%s6089 + $0x538] sm:$0xff]
        %v6258 = vld [vmem:[%s6089 + $0x540] sm:$0xff]
        %v6259 = vld [vmem:[%s6089 + $0x548] sm:$0xff]
        %v6260 = vld [vmem:[%s6089 + $0x550] sm:$0xff]
        %v6261 = vld [vmem:[%s6089 + $0x558] sm:$0xff]
        %v6262 = vld [vmem:[%s6089 + $0x560] sm:$0xff]
        %v6263 = vld [vmem:[%s6089 + $0x568] sm:$0xff]
        %v6264 = vld [vmem:[%s6089 + $0x570] sm:$0xff]
        %v6265 = vld [vmem:[%s6089 + $0x578] sm:$0xff]
        %v6266 = vld [vmem:[%s6089 + $0x580] sm:$0xff]
        %v6267 = vld [vmem:[%s6089 + $0x588] sm:$0xff]
        %v6268 = vld [vmem:[%s6089 + $0x590] sm:$0xff]
        %v6269 = vld [vmem:[%s6089 + $0x598] sm:$0xff]
        %v6270 = vld [vmem:[%s6089 + $0x5a0] sm:$0xff]
        %v6271 = vld [vmem:[%s6089 + $0x5a8] sm:$0xff]
        %v6272 = vld [vmem:[%s6089 + $0x5b0] sm:$0xff]
        %v6273 = vld [vmem:[%s6089 + $0x5b8] sm:$0xff]
        %v6274 = vld [vmem:[%s6089 + $0x5c0] sm:$0xff]
        %v6275 = vld [vmem:[%s6089 + $0x5c8] sm:$0xff]
        %v6276 = vld [vmem:[%s6089 + $0x5d0] sm:$0xff]
        %v6277 = vld [vmem:[%s6089 + $0x5d8] sm:$0xff]
        %v6278 = vld [vmem:[%s6089 + $0x5e0] sm:$0xff]
        %v6279 = vld [vmem:[%s6089 + $0x5e8] sm:$0xff]
        %v6280 = vld [vmem:[%s6089 + $0x5f0] sm:$0xff]
        %v6281 = vld [vmem:[%s6089 + $0x5f8] sm:$0xff]
        %v6282 = vld [vmem:[%s6089 + $0x600] sm:$0xff]
        %v6283 = vld [vmem:[%s6089 + $0x608] sm:$0xff]
        %v6284 = vld [vmem:[%s6089 + $0x610] sm:$0xff]
        %v6285 = vld [vmem:[%s6089 + $0x618] sm:$0xff]
        %v6286 = vld [vmem:[%s6089 + $0x620] sm:$0xff]
        %v6287 = vld [vmem:[%s6089 + $0x628] sm:$0xff]
        %v6288 = vld [vmem:[%s6089 + $0x630] sm:$0xff]
        %v6289 = vld [vmem:[%s6089 + $0x638] sm:$0xff]
        %v6290 = vld [vmem:[%s6089 + $0x640] sm:$0xff]
        %v6291 = vld [vmem:[%s6089 + $0x648] sm:$0xff]
        %v6292 = vld [vmem:[%s6089 + $0x650] sm:$0xff]
        %v6293 = vld [vmem:[%s6089 + $0x658] sm:$0xff]
        %v6294 = vld [vmem:[%s6089 + $0x660] sm:$0xff]
        %v6295 = vld [vmem:[%s6089 + $0x668] sm:$0xff]
        %v6296 = vld [vmem:[%s6089 + $0x670] sm:$0xff]
        %v6297 = vld [vmem:[%s6089 + $0x678] sm:$0xff]
        %v6298 = vld [vmem:[%s6089 + $0x680] sm:$0xff]
        %v6299 = vld [vmem:[%s6089 + $0x688] sm:$0xff]
        %v6300 = vld [vmem:[%s6089 + $0x690] sm:$0xff]
        %v6301 = vld [vmem:[%s6089 + $0x698] sm:$0xff]
        %v6302 = vld [vmem:[%s6089 + $0x6a0] sm:$0xff]
        %v6303 = vld [vmem:[%s6089 + $0x6a8] sm:$0xff]
        %v6304 = vld [vmem:[%s6089 + $0x6b0] sm:$0xff]
        %v6305 = vld [vmem:[%s6089 + $0x6b8] sm:$0xff]
        %v6306 = vld [vmem:[%s6089 + $0x6c0] sm:$0xff]
        %v6307 = vld [vmem:[%s6089 + $0x6c8] sm:$0xff]
        %v6308 = vld [vmem:[%s6089 + $0x6d0] sm:$0xff]
        %v6309 = vld [vmem:[%s6089 + $0x6d8] sm:$0xff]
        %v6310 = vld [vmem:[%s6089 + $0x6e0] sm:$0xff]
        %v6311 = vld [vmem:[%s6089 + $0x6e8] sm:$0xff]
        %v6312 = vld [vmem:[%s6089 + $0x6f0] sm:$0xff]
        %v6313 = vld [vmem:[%s6089 + $0x6f8] sm:$0xff]
        %v6314 = vld [vmem:[%s6089 + $0x700] sm:$0xff]
        %v6315 = vld [vmem:[%s6089 + $0x708] sm:$0xff]
        %v6316 = vld [vmem:[%s6089 + $0x710] sm:$0xff]
        %v6317 = vld [vmem:[%s6089 + $0x718] sm:$0xff]
        %v6318 = vld [vmem:[%s6089 + $0x720] sm:$0xff]
        %v6319 = vld [vmem:[%s6089 + $0x728] sm:$0xff]
        %v6320 = vld [vmem:[%s6089 + $0x730] sm:$0xff]
        %v6321 = vld [vmem:[%s6089 + $0x738] sm:$0xff]
        %v6322 = vld [vmem:[%s6089 + $0x740] sm:$0xff]
        %v6323 = vld [vmem:[%s6089 + $0x748] sm:$0xff]
        %v6324 = vld [vmem:[%s6089 + $0x750] sm:$0xff]
        %v6325 = vld [vmem:[%s6089 + $0x758] sm:$0xff]
        %v6326 = vld [vmem:[%s6089 + $0x760] sm:$0xff]
        %v6327 = vld [vmem:[%s6089 + $0x768] sm:$0xff]
        %v6328 = vld [vmem:[%s6089 + $0x770] sm:$0xff]
        %v6329 = vld [vmem:[%s6089 + $0x778] sm:$0xff]
        %v6330 = vld [vmem:[%s6089 + $0x780] sm:$0xff]
        %v6331 = vld [vmem:[%s6089 + $0x788] sm:$0xff]
        %v6332 = vld [vmem:[%s6089 + $0x790] sm:$0xff]
        %v6333 = vld [vmem:[%s6089 + $0x798] sm:$0xff]
        %v6334 = vld [vmem:[%s6089 + $0x7a0] sm:$0xff]
        %v6335 = vld [vmem:[%s6089 + $0x7a8] sm:$0xff]
        %v6336 = vld [vmem:[%s6089 + $0x7b0] sm:$0xff]
        %v6337 = vld [vmem:[%s6089 + $0x7b8] sm:$0xff]
        %v6338 = vld [vmem:[%s6089 + $0x7c0] sm:$0xff]
        %v6339 = vld [vmem:[%s6089 + $0x7c8] sm:$0xff]
        %v6340 = vld [vmem:[%s6089 + $0x7d0] sm:$0xff]
        %v6341 = vld [vmem:[%s6089 + $0x7d8] sm:$0xff]
        %v6342 = vld [vmem:[%s6089 + $0x7e0] sm:$0xff]
        %v6343 = vld [vmem:[%s6089 + $0x7e8] sm:$0xff]
        %v6344 = vld [vmem:[%s6089 + $0x7f0] sm:$0xff]
        %v6345 = vld [vmem:[%s6089 + $0x7f8] sm:$0xff]
        %s6346 = scalar_lea.vmem %s10, 1
        %v6347 = vld [vmem:[%s6346] sm:$0x1]
        %v6349 = vlaneseq
        %v6350 = vshrl.u32 %v6349, 7
        %v6351 = vsub.s32 0, %v6350
        %v6352 = vrot.slane %v6347, %v6351
        %6354 = vmatprep.subr.mxu0 0.0
        %6355 = vmatpush1.msra.mxu0 %v6090
        %6356 = vmatprep.subr.mxu0 0.0
        %6357 = vmatpush1.msra.mxu0 %v6091
        %6358 = vmatprep.subr.mxu0 0.0
        %6359 = vmatpush1.msra.mxu0 %v6092
        %6360 = vmatprep.subr.mxu0 0.0
        %6361 = vmatpush1.msra.mxu0 %v6093
        %6362 = vmatprep.subr.mxu0 0.0
        %6363 = vmatpush1.msra.mxu0 %v6094
        %6364 = vmatprep.subr.mxu0 0.0
        %6365 = vmatpush1.msra.mxu0 %v6095
        %6366 = vmatprep.subr.mxu0 0.0
        %6367 = vmatpush1.msra.mxu0 %v6096
        %6368 = vmatprep.subr.mxu0 0.0
        %6369 = vmatpush1.msra.mxu0 %v6097
        %6370 = vmatprep.subr.mxu0 0.0
        %6371 = vmatpush1.msra.mxu0 %v6098
        %6372 = vmatprep.subr.mxu0 0.0
        %6373 = vmatpush1.msra.mxu0 %v6099
        %6374 = vmatprep.subr.mxu0 0.0
        %6375 = vmatpush1.msra.mxu0 %v6100
        %6376 = vmatprep.subr.mxu0 0.0
        %6377 = vmatpush1.msra.mxu0 %v6101
        %6378 = vmatprep.subr.mxu0 0.0
        %6379 = vmatpush1.msra.mxu0 %v6102
        %6380 = vmatprep.subr.mxu0 0.0
        %6381 = vmatpush1.msra.mxu0 %v6103
        %6382 = vmatprep.subr.mxu0 0.0
        %6383 = vmatpush1.msra.mxu0 %v6104
        %6384 = vmatprep.subr.mxu0 0.0
        %6385 = vmatpush1.msra.mxu0 %v6105
        %6386 = vmatprep.subr.mxu0 0.0
        %6387 = vmatpush1.msra.mxu0 %v6106
        %6388 = vmatprep.subr.mxu0 0.0
        %6389 = vmatpush1.msra.mxu0 %v6107
        %6390 = vmatprep.subr.mxu0 0.0
        %6391 = vmatpush1.msra.mxu0 %v6108
        %6392 = vmatprep.subr.mxu0 0.0
        %6393 = vmatpush1.msra.mxu0 %v6109
        %6394 = vmatprep.subr.mxu0 0.0
        %6395 = vmatpush1.msra.mxu0 %v6110
        %6396 = vmatprep.subr.mxu0 0.0
        %6397 = vmatpush1.msra.mxu0 %v6111
        %6398 = vmatprep.subr.mxu0 0.0
        %6399 = vmatpush1.msra.mxu0 %v6112
        %6400 = vmatprep.subr.mxu0 0.0
        %6401 = vmatpush1.msra.mxu0 %v6113
        %6402 = vmatprep.subr.mxu0 0.0
        %6403 = vmatpush1.msra.mxu0 %v6114
        %6404 = vmatprep.subr.mxu0 0.0
        %6405 = vmatpush1.msra.mxu0 %v6115
        %6406 = vmatprep.subr.mxu0 0.0
        %6407 = vmatpush1.msra.mxu0 %v6116
        %6408 = vmatprep.subr.mxu0 0.0
        %6409 = vmatpush1.msra.mxu0 %v6117
        %6410 = vmatprep.subr.mxu0 0.0
        %6411 = vmatpush1.msra.mxu0 %v6118
        %6412 = vmatprep.subr.mxu0 0.0
        %6413 = vmatpush1.msra.mxu0 %v6119
        %6414 = vmatprep.subr.mxu0 0.0
        %6415 = vmatpush1.msra.mxu0 %v6120
        %6416 = vmatprep.subr.mxu0 0.0
        %6417 = vmatpush1.msra.mxu0 %v6121
        %6418 = vmatprep.mubr.f32.mxu0 %v6074
        %6419 = vmatmul.mubr.f32.gmra.mrb[0].mxu0 %v6073
        %v6420 = vpop.f32.mrb[0].mxu0
        %v6421 = vadd.f32 %v6352, %v6420
        %v6422 = vpop.f32.mrb[0].mxu0
        %6423 = vdwg.mxu0
        %6424 = vmatprep.subr.mxu0 0.0
        %6425 = vmatpush1.msra.mxu0 %v6122
        %6426 = vmatprep.subr.mxu0 0.0
        %6427 = vmatpush1.msra.mxu0 %v6123
        %6428 = vmatprep.subr.mxu0 0.0
        %6429 = vmatpush1.msra.mxu0 %v6124
        %6430 = vmatprep.subr.mxu0 0.0
        %6431 = vmatpush1.msra.mxu0 %v6125
        %6432 = vmatprep.subr.mxu0 0.0
        %6433 = vmatpush1.msra.mxu0 %v6126
        %6434 = vmatprep.subr.mxu0 0.0
        %6435 = vmatpush1.msra.mxu0 %v6127
        %6436 = vmatprep.subr.mxu0 0.0
        %6437 = vmatpush1.msra.mxu0 %v6128
        %6438 = vmatprep.subr.mxu0 0.0
        %6439 = vmatpush1.msra.mxu0 %v6129
        %6440 = vmatprep.subr.mxu0 0.0
        %6441 = vmatpush1.msra.mxu0 %v6130
        %6442 = vmatprep.subr.mxu0 0.0
        %6443 = vmatpush1.msra.mxu0 %v6131
        %6444 = vmatprep.subr.mxu0 0.0
        %6445 = vmatpush1.msra.mxu0 %v6132
        %6446 = vmatprep.subr.mxu0 0.0
        %6447 = vmatpush1.msra.mxu0 %v6133
        %6448 = vmatprep.subr.mxu0 0.0
        %6449 = vmatpush1.msra.mxu0 %v6134
        %6450 = vmatprep.subr.mxu0 0.0
        %6451 = vmatpush1.msra.mxu0 %v6135
        %6452 = vmatprep.subr.mxu0 0.0
        %6453 = vmatpush1.msra.mxu0 %v6136
        %6454 = vmatprep.subr.mxu0 0.0
        %6455 = vmatpush1.msra.mxu0 %v6137
        %6456 = vmatprep.subr.mxu0 0.0
        %6457 = vmatpush1.msra.mxu0 %v6138
        %6458 = vmatprep.subr.mxu0 0.0
        %6459 = vmatpush1.msra.mxu0 %v6139
        %6460 = vmatprep.subr.mxu0 0.0
        %6461 = vmatpush1.msra.mxu0 %v6140
        %6462 = vmatprep.subr.mxu0 0.0
        %6463 = vmatpush1.msra.mxu0 %v6141
        %6464 = vmatprep.subr.mxu0 0.0
        %6465 = vmatpush1.msra.mxu0 %v6142
        %6466 = vmatprep.subr.mxu0 0.0
        %6467 = vmatpush1.msra.mxu0 %v6143
        %6468 = vmatprep.subr.mxu0 0.0
        %6469 = vmatpush1.msra.mxu0 %v6144
        %6470 = vmatprep.subr.mxu0 0.0
        %6471 = vmatpush1.msra.mxu0 %v6145
        %6472 = vmatprep.subr.mxu0 0.0
        %6473 = vmatpush1.msra.mxu0 %v6146
        %6474 = vmatprep.subr.mxu0 0.0
        %6475 = vmatpush1.msra.mxu0 %v6147
        %6476 = vmatprep.subr.mxu0 0.0
        %6477 = vmatpush1.msra.mxu0 %v6148
        %6478 = vmatprep.subr.mxu0 0.0
        %6479 = vmatpush1.msra.mxu0 %v6149
        %6480 = vmatprep.subr.mxu0 0.0
        %6481 = vmatpush1.msra.mxu0 %v6150
        %6482 = vmatprep.subr.mxu0 0.0
        %6483 = vmatpush1.msra.mxu0 %v6151
        %6484 = vmatprep.subr.mxu0 0.0
        %6485 = vmatpush1.msra.mxu0 %v6152
        %6486 = vmatprep.subr.mxu0 0.0
        %6487 = vmatpush1.msra.mxu0 %v6153
        %6488 = vmatprep.mubr.f32.mxu0 %v6076
        %6489 = vmatmul.mubr.f32.gmra.mrb[0].mxu0 %v6075
        %v6490 = vpop.f32.mrb[0].mxu0
        %v6491 = vadd.f32 %v6421, %v6490
        %v6492 = vpop.f32.mrb[0].mxu0
        %6493 = vdwg.mxu0
        %6494 = vmatprep.subr.mxu0 0.0
        %6495 = vmatpush1.msra.mxu0 %v6154
        %6496 = vmatprep.subr.mxu0 0.0
        %6497 = vmatpush1.msra.mxu0 %v6155
        %6498 = vmatprep.subr.mxu0 0.0
        %6499 = vmatpush1.msra.mxu0 %v6156
        %6500 = vmatprep.subr.mxu0 0.0
        %6501 = vmatpush1.msra.mxu0 %v6157
        %6502 = vmatprep.subr.mxu0 0.0
        %6503 = vmatpush1.msra.mxu0 %v6158
        %6504 = vmatprep.subr.mxu0 0.0
        %6505 = vmatpush1.msra.mxu0 %v6159
        %6506 = vmatprep.subr.mxu0 0.0
        %6507 = vmatpush1.msra.mxu0 %v6160
        %6508 = vmatprep.subr.mxu0 0.0
        %6509 = vmatpush1.msra.mxu0 %v6161
        %6510 = vmatprep.subr.mxu0 0.0
        %6511 = vmatpush1.msra.mxu0 %v6162
        %6512 = vmatprep.subr.mxu0 0.0
        %6513 = vmatpush1.msra.mxu0 %v6163
        %6514 = vmatprep.subr.mxu0 0.0
        %6515 = vmatpush1.msra.mxu0 %v6164
        %6516 = vmatprep.subr.mxu0 0.0
        %6517 = vmatpush1.msra.mxu0 %v6165
        %6518 = vmatprep.subr.mxu0 0.0
        %6519 = vmatpush1.msra.mxu0 %v6166
        %6520 = vmatprep.subr.mxu0 0.0
        %6521 = vmatpush1.msra.mxu0 %v6167
        %6522 = vmatprep.subr.mxu0 0.0
        %6523 = vmatpush1.msra.mxu0 %v6168
        %6524 = vmatprep.subr.mxu0 0.0
        %6525 = vmatpush1.msra.mxu0 %v6169
        %6526 = vmatprep.subr.mxu0 0.0
        %6527 = vmatpush1.msra.mxu0 %v6170
        %6528 = vmatprep.subr.mxu0 0.0
        %6529 = vmatpush1.msra.mxu0 %v6171
        %6530 = vmatprep.subr.mxu0 0.0
        %6531 = vmatpush1.msra.mxu0 %v6172
        %6532 = vmatprep.subr.mxu0 0.0
        %6533 = vmatpush1.msra.mxu0 %v6173
        %6534 = vmatprep.subr.mxu0 0.0
        %6535 = vmatpush1.msra.mxu0 %v6174
        %6536 = vmatprep.subr.mxu0 0.0
        %6537 = vmatpush1.msra.mxu0 %v6175
        %6538 = vmatprep.subr.mxu0 0.0
        %6539 = vmatpush1.msra.mxu0 %v6176
        %6540 = vmatprep.subr.mxu0 0.0
        %6541 = vmatpush1.msra.mxu0 %v6177
        %6542 = vmatprep.subr.mxu0 0.0
        %6543 = vmatpush1.msra.mxu0 %v6178
        %6544 = vmatprep.subr.mxu0 0.0
        %6545 = vmatpush1.msra.mxu0 %v6179
        %6546 = vmatprep.subr.mxu0 0.0
        %6547 = vmatpush1.msra.mxu0 %v6180
        %6548 = vmatprep.subr.mxu0 0.0
        %6549 = vmatpush1.msra.mxu0 %v6181
        %6550 = vmatprep.subr.mxu0 0.0
        %6551 = vmatpush1.msra.mxu0 %v6182
        %6552 = vmatprep.subr.mxu0 0.0
        %6553 = vmatpush1.msra.mxu0 %v6183
        %6554 = vmatprep.subr.mxu0 0.0
        %6555 = vmatpush1.msra.mxu0 %v6184
        %6556 = vmatprep.subr.mxu0 0.0
        %6557 = vmatpush1.msra.mxu0 %v6185
        %6558 = vmatprep.mubr.f32.mxu0 %v6078
        %6559 = vmatmul.mubr.f32.gmra.mrb[0].mxu0 %v6077
        %v6560 = vpop.f32.mrb[0].mxu0
        %v6561 = vadd.f32 %v6491, %v6560
        %v6562 = vpop.f32.mrb[0].mxu0
        %6563 = vdwg.mxu0
        %6564 = vmatprep.subr.mxu0 0.0
        %6565 = vmatpush1.msra.mxu0 %v6186
        %6566 = vmatprep.subr.mxu0 0.0
        %6567 = vmatpush1.msra.mxu0 %v6187
        %6568 = vmatprep.subr.mxu0 0.0
        %6569 = vmatpush1.msra.mxu0 %v6188
        %6570 = vmatprep.subr.mxu0 0.0
        %6571 = vmatpush1.msra.mxu0 %v6189
        %6572 = vmatprep.subr.mxu0 0.0
        %6573 = vmatpush1.msra.mxu0 %v6190
        %6574 = vmatprep.subr.mxu0 0.0
        %6575 = vmatpush1.msra.mxu0 %v6191
        %6576 = vmatprep.subr.mxu0 0.0
        %6577 = vmatpush1.msra.mxu0 %v6192
        %6578 = vmatprep.subr.mxu0 0.0
        %6579 = vmatpush1.msra.mxu0 %v6193
        %6580 = vmatprep.subr.mxu0 0.0
        %6581 = vmatpush1.msra.mxu0 %v6194
        %6582 = vmatprep.subr.mxu0 0.0
        %6583 = vmatpush1.msra.mxu0 %v6195
        %6584 = vmatprep.subr.mxu0 0.0
        %6585 = vmatpush1.msra.mxu0 %v6196
        %6586 = vmatprep.subr.mxu0 0.0
        %6587 = vmatpush1.msra.mxu0 %v6197
        %6588 = vmatprep.subr.mxu0 0.0
        %6589 = vmatpush1.msra.mxu0 %v6198
        %6590 = vmatprep.subr.mxu0 0.0
        %6591 = vmatpush1.msra.mxu0 %v6199
        %6592 = vmatprep.subr.mxu0 0.0
        %6593 = vmatpush1.msra.mxu0 %v6200
        %6594 = vmatprep.subr.mxu0 0.0
        %6595 = vmatpush1.msra.mxu0 %v6201
        %6596 = vmatprep.subr.mxu0 0.0
        %6597 = vmatpush1.msra.mxu0 %v6202
        %6598 = vmatprep.subr.mxu0 0.0
        %6599 = vmatpush1.msra.mxu0 %v6203
        %6600 = vmatprep.subr.mxu0 0.0
        %6601 = vmatpush1.msra.mxu0 %v6204
        %6602 = vmatprep.subr.mxu0 0.0
        %6603 = vmatpush1.msra.mxu0 %v6205
        %6604 = vmatprep.subr.mxu0 0.0
        %6605 = vmatpush1.msra.mxu0 %v6206
        %6606 = vmatprep.subr.mxu0 0.0
        %6607 = vmatpush1.msra.mxu0 %v6207
        %6608 = vmatprep.subr.mxu0 0.0
        %6609 = vmatpush1.msra.mxu0 %v6208
        %6610 = vmatprep.subr.mxu0 0.0
        %6611 = vmatpush1.msra.mxu0 %v6209
        %6612 = vmatprep.subr.mxu0 0.0
        %6613 = vmatpush1.msra.mxu0 %v6210
        %6614 = vmatprep.subr.mxu0 0.0
        %6615 = vmatpush1.msra.mxu0 %v6211
        %6616 = vmatprep.subr.mxu0 0.0
        %6617 = vmatpush1.msra.mxu0 %v6212
        %6618 = vmatprep.subr.mxu0 0.0
        %6619 = vmatpush1.msra.mxu0 %v6213
        %6620 = vmatprep.subr.mxu0 0.0
        %6621 = vmatpush1.msra.mxu0 %v6214
        %6622 = vmatprep.subr.mxu0 0.0
        %6623 = vmatpush1.msra.mxu0 %v6215
        %6624 = vmatprep.subr.mxu0 0.0
        %6625 = vmatpush1.msra.mxu0 %v6216
        %6626 = vmatprep.subr.mxu0 0.0
        %6627 = vmatpush1.msra.mxu0 %v6217
        %6628 = vmatprep.mubr.f32.mxu0 %v6080
        %6629 = vmatmul.mubr.f32.gmra.mrb[0].mxu0 %v6079
        %v6630 = vpop.f32.mrb[0].mxu0
        %v6631 = vadd.f32 %v6561, %v6630
        %v6632 = vpop.f32.mrb[0].mxu0
        %6633 = vdwg.mxu0
        %6634 = vmatprep.subr.mxu0 0.0
        %6635 = vmatpush1.msra.mxu0 %v6218
        %6636 = vmatprep.subr.mxu0 0.0
        %6637 = vmatpush1.msra.mxu0 %v6219
        %6638 = vmatprep.subr.mxu0 0.0
        %6639 = vmatpush1.msra.mxu0 %v6220
        %6640 = vmatprep.subr.mxu0 0.0
        %6641 = vmatpush1.msra.mxu0 %v6221
        %6642 = vmatprep.subr.mxu0 0.0
        %6643 = vmatpush1.msra.mxu0 %v6222
        %6644 = vmatprep.subr.mxu0 0.0
        %6645 = vmatpush1.msra.mxu0 %v6223
        %6646 = vmatprep.subr.mxu0 0.0
        %6647 = vmatpush1.msra.mxu0 %v6224
        %6648 = vmatprep.subr.mxu0 0.0
        %6649 = vmatpush1.msra.mxu0 %v6225
        %6650 = vmatprep.subr.mxu0 0.0
        %6651 = vmatpush1.msra.mxu0 %v6226
        %6652 = vmatprep.subr.mxu0 0.0
        %6653 = vmatpush1.msra.mxu0 %v6227
        %6654 = vmatprep.subr.mxu0 0.0
        %6655 = vmatpush1.msra.mxu0 %v6228
        %6656 = vmatprep.subr.mxu0 0.0
        %6657 = vmatpush1.msra.mxu0 %v6229
        %6658 = vmatprep.subr.mxu0 0.0
        %6659 = vmatpush1.msra.mxu0 %v6230
        %6660 = vmatprep.subr.mxu0 0.0
        %6661 = vmatpush1.msra.mxu0 %v6231
        %6662 = vmatprep.subr.mxu0 0.0
        %6663 = vmatpush1.msra.mxu0 %v6232
        %6664 = vmatprep.subr.mxu0 0.0
        %6665 = vmatpush1.msra.mxu0 %v6233
        %6666 = vmatprep.subr.mxu0 0.0
        %6667 = vmatpush1.msra.mxu0 %v6234
        %6668 = vmatprep.subr.mxu0 0.0
        %6669 = vmatpush1.msra.mxu0 %v6235
        %6670 = vmatprep.subr.mxu0 0.0
        %6671 = vmatpush1.msra.mxu0 %v6236
        %6672 = vmatprep.subr.mxu0 0.0
        %6673 = vmatpush1.msra.mxu0 %v6237
        %6674 = vmatprep.subr.mxu0 0.0
        %6675 = vmatpush1.msra.mxu0 %v6238
        %6676 = vmatprep.subr.mxu0 0.0
        %6677 = vmatpush1.msra.mxu0 %v6239
        %6678 = vmatprep.subr.mxu0 0.0
        %6679 = vmatpush1.msra.mxu0 %v6240
        %6680 = vmatprep.subr.mxu0 0.0
        %6681 = vmatpush1.msra.mxu0 %v6241
        %6682 = vmatprep.subr.mxu0 0.0
        %6683 = vmatpush1.msra.mxu0 %v6242
        %6684 = vmatprep.subr.mxu0 0.0
        %6685 = vmatpush1.msra.mxu0 %v6243
        %6686 = vmatprep.subr.mxu0 0.0
        %6687 = vmatpush1.msra.mxu0 %v6244
        %6688 = vmatprep.subr.mxu0 0.0
        %6689 = vmatpush1.msra.mxu0 %v6245
        %6690 = vmatprep.subr.mxu0 0.0
        %6691 = vmatpush1.msra.mxu0 %v6246
        %6692 = vmatprep.subr.mxu0 0.0
        %6693 = vmatpush1.msra.mxu0 %v6247
        %6694 = vmatprep.subr.mxu0 0.0
        %6695 = vmatpush1.msra.mxu0 %v6248
        %6696 = vmatprep.subr.mxu0 0.0
        %6697 = vmatpush1.msra.mxu0 %v6249
        %6698 = vmatprep.mubr.f32.mxu0 %v6082
        %6699 = vmatmul.mubr.f32.gmra.mrb[0].mxu0 %v6081
        %v6700 = vpop.f32.mrb[0].mxu0
        %v6701 = vadd.f32 %v6631, %v6700
        %v6702 = vpop.f32.mrb[0].mxu0
        %6703 = vdwg.mxu0
        %6704 = vmatprep.subr.mxu0 0.0
        %6705 = vmatpush1.msra.mxu0 %v6250
        %6706 = vmatprep.subr.mxu0 0.0
        %6707 = vmatpush1.msra.mxu0 %v6251
        %6708 = vmatprep.subr.mxu0 0.0
        %6709 = vmatpush1.msra.mxu0 %v6252
        %6710 = vmatprep.subr.mxu0 0.0
        %6711 = vmatpush1.msra.mxu0 %v6253
        %6712 = vmatprep.subr.mxu0 0.0
        %6713 = vmatpush1.msra.mxu0 %v6254
        %6714 = vmatprep.subr.mxu0 0.0
        %6715 = vmatpush1.msra.mxu0 %v6255
        %6716 = vmatprep.subr.mxu0 0.0
        %6717 = vmatpush1.msra.mxu0 %v6256
        %6718 = vmatprep.subr.mxu0 0.0
        %6719 = vmatpush1.msra.mxu0 %v6257
        %6720 = vmatprep.subr.mxu0 0.0
        %6721 = vmatpush1.msra.mxu0 %v6258
        %6722 = vmatprep.subr.mxu0 0.0
        %6723 = vmatpush1.msra.mxu0 %v6259
        %6724 = vmatprep.subr.mxu0 0.0
        %6725 = vmatpush1.msra.mxu0 %v6260
        %6726 = vmatprep.subr.mxu0 0.0
        %6727 = vmatpush1.msra.mxu0 %v6261
        %6728 = vmatprep.subr.mxu0 0.0
        %6729 = vmatpush1.msra.mxu0 %v6262
        %6730 = vmatprep.subr.mxu0 0.0
        %6731 = vmatpush1.msra.mxu0 %v6263
        %6732 = vmatprep.subr.mxu0 0.0
        %6733 = vmatpush1.msra.mxu0 %v6264
        %6734 = vmatprep.subr.mxu0 0.0
        %6735 = vmatpush1.msra.mxu0 %v6265
        %6736 = vmatprep.subr.mxu0 0.0
        %6737 = vmatpush1.msra.mxu0 %v6266
        %6738 = vmatprep.subr.mxu0 0.0
        %6739 = vmatpush1.msra.mxu0 %v6267
        %6740 = vmatprep.subr.mxu0 0.0
        %6741 = vmatpush1.msra.mxu0 %v6268
        %6742 = vmatprep.subr.mxu0 0.0
        %6743 = vmatpush1.msra.mxu0 %v6269
        %6744 = vmatprep.subr.mxu0 0.0
        %6745 = vmatpush1.msra.mxu0 %v6270
        %6746 = vmatprep.subr.mxu0 0.0
        %6747 = vmatpush1.msra.mxu0 %v6271
        %6748 = vmatprep.subr.mxu0 0.0
        %6749 = vmatpush1.msra.mxu0 %v6272
        %6750 = vmatprep.subr.mxu0 0.0
        %6751 = vmatpush1.msra.mxu0 %v6273
        %6752 = vmatprep.subr.mxu0 0.0
        %6753 = vmatpush1.msra.mxu0 %v6274
        %6754 = vmatprep.subr.mxu0 0.0
        %6755 = vmatpush1.msra.mxu0 %v6275
        %6756 = vmatprep.subr.mxu0 0.0
        %6757 = vmatpush1.msra.mxu0 %v6276
        %6758 = vmatprep.subr.mxu0 0.0
        %6759 = vmatpush1.msra.mxu0 %v6277
        %6760 = vmatprep.subr.mxu0 0.0
        %6761 = vmatpush1.msra.mxu0 %v6278
        %6762 = vmatprep.subr.mxu0 0.0
        %6763 = vmatpush1.msra.mxu0 %v6279
        %6764 = vmatprep.subr.mxu0 0.0
        %6765 = vmatpush1.msra.mxu0 %v6280
        %6766 = vmatprep.subr.mxu0 0.0
        %6767 = vmatpush1.msra.mxu0 %v6281
        %6768 = vmatprep.mubr.f32.mxu0 %v6084
        %6769 = vmatmul.mubr.f32.gmra.mrb[0].mxu0 %v6083
        %v6770 = vpop.f32.mrb[0].mxu0
        %v6771 = vadd.f32 %v6701, %v6770
        %v6772 = vpop.f32.mrb[0].mxu0
        %6773 = vdwg.mxu0
        %6774 = vmatprep.subr.mxu0 0.0
        %6775 = vmatpush1.msra.mxu0 %v6282
        %6776 = vmatprep.subr.mxu0 0.0
        %6777 = vmatpush1.msra.mxu0 %v6283
        %6778 = vmatprep.subr.mxu0 0.0
        %6779 = vmatpush1.msra.mxu0 %v6284
        %6780 = vmatprep.subr.mxu0 0.0
        %6781 = vmatpush1.msra.mxu0 %v6285
        %6782 = vmatprep.subr.mxu0 0.0
        %6783 = vmatpush1.msra.mxu0 %v6286
        %6784 = vmatprep.subr.mxu0 0.0
        %6785 = vmatpush1.msra.mxu0 %v6287
        %6786 = vmatprep.subr.mxu0 0.0
        %6787 = vmatpush1.msra.mxu0 %v6288
        %6788 = vmatprep.subr.mxu0 0.0
        %6789 = vmatpush1.msra.mxu0 %v6289
        %6790 = vmatprep.subr.mxu0 0.0
        %6791 = vmatpush1.msra.mxu0 %v6290
        %6792 = vmatprep.subr.mxu0 0.0
        %6793 = vmatpush1.msra.mxu0 %v6291
        %6794 = vmatprep.subr.mxu0 0.0
        %6795 = vmatpush1.msra.mxu0 %v6292
        %6796 = vmatprep.subr.mxu0 0.0
        %6797 = vmatpush1.msra.mxu0 %v6293
        %6798 = vmatprep.subr.mxu0 0.0
        %6799 = vmatpush1.msra.mxu0 %v6294
        %6800 = vmatprep.subr.mxu0 0.0
        %6801 = vmatpush1.msra.mxu0 %v6295
        %6802 = vmatprep.subr.mxu0 0.0
        %6803 = vmatpush1.msra.mxu0 %v6296
        %6804 = vmatprep.subr.mxu0 0.0
        %6805 = vmatpush1.msra.mxu0 %v6297
        %6806 = vmatprep.subr.mxu0 0.0
        %6807 = vmatpush1.msra.mxu0 %v6298
        %6808 = vmatprep.subr.mxu0 0.0
        %6809 = vmatpush1.msra.mxu0 %v6299
        %6810 = vmatprep.subr.mxu0 0.0
        %6811 = vmatpush1.msra.mxu0 %v6300
        %6812 = vmatprep.subr.mxu0 0.0
        %6813 = vmatpush1.msra.mxu0 %v6301
        %6814 = vmatprep.subr.mxu0 0.0
        %6815 = vmatpush1.msra.mxu0 %v6302
        %6816 = vmatprep.subr.mxu0 0.0
        %6817 = vmatpush1.msra.mxu0 %v6303
        %6818 = vmatprep.subr.mxu0 0.0
        %6819 = vmatpush1.msra.mxu0 %v6304
        %6820 = vmatprep.subr.mxu0 0.0
        %6821 = vmatpush1.msra.mxu0 %v6305
        %6822 = vmatprep.subr.mxu0 0.0
        %6823 = vmatpush1.msra.mxu0 %v6306
        %6824 = vmatprep.subr.mxu0 0.0
        %6825 = vmatpush1.msra.mxu0 %v6307
        %6826 = vmatprep.subr.mxu0 0.0
        %6827 = vmatpush1.msra.mxu0 %v6308
        %6828 = vmatprep.subr.mxu0 0.0
        %6829 = vmatpush1.msra.mxu0 %v6309
        %6830 = vmatprep.subr.mxu0 0.0
        %6831 = vmatpush1.msra.mxu0 %v6310
        %6832 = vmatprep.subr.mxu0 0.0
        %6833 = vmatpush1.msra.mxu0 %v6311
        %6834 = vmatprep.subr.mxu0 0.0
        %6835 = vmatpush1.msra.mxu0 %v6312
        %6836 = vmatprep.subr.mxu0 0.0
        %6837 = vmatpush1.msra.mxu0 %v6313
        %6838 = vmatprep.mubr.f32.mxu0 %v6086
        %6839 = vmatmul.mubr.f32.gmra.mrb[0].mxu0 %v6085
        %v6840 = vpop.f32.mrb[0].mxu0
        %v6841 = vadd.f32 %v6771, %v6840
        %v6842 = vpop.f32.mrb[0].mxu0
        %6843 = vdwg.mxu0
        %6844 = vmatprep.subr.mxu0 0.0
        %6845 = vmatpush1.msra.mxu0 %v6314
        %6846 = vmatprep.subr.mxu0 0.0
        %6847 = vmatpush1.msra.mxu0 %v6315
        %6848 = vmatprep.subr.mxu0 0.0
        %6849 = vmatpush1.msra.mxu0 %v6316
        %6850 = vmatprep.subr.mxu0 0.0
        %6851 = vmatpush1.msra.mxu0 %v6317
        %6852 = vmatprep.subr.mxu0 0.0
        %6853 = vmatpush1.msra.mxu0 %v6318
        %6854 = vmatprep.subr.mxu0 0.0
        %6855 = vmatpush1.msra.mxu0 %v6319
        %6856 = vmatprep.subr.mxu0 0.0
        %6857 = vmatpush1.msra.mxu0 %v6320
        %6858 = vmatprep.subr.mxu0 0.0
        %6859 = vmatpush1.msra.mxu0 %v6321
        %6860 = vmatprep.subr.mxu0 0.0
        %6861 = vmatpush1.msra.mxu0 %v6322
        %6862 = vmatprep.subr.mxu0 0.0
        %6863 = vmatpush1.msra.mxu0 %v6323
        %6864 = vmatprep.subr.mxu0 0.0
        %6865 = vmatpush1.msra.mxu0 %v6324
        %6866 = vmatprep.subr.mxu0 0.0
        %6867 = vmatpush1.msra.mxu0 %v6325
        %6868 = vmatprep.subr.mxu0 0.0
        %6869 = vmatpush1.msra.mxu0 %v6326
        %6870 = vmatprep.subr.mxu0 0.0
        %6871 = vmatpush1.msra.mxu0 %v6327
        %6872 = vmatprep.subr.mxu0 0.0
        %6873 = vmatpush1.msra.mxu0 %v6328
        %6874 = vmatprep.subr.mxu0 0.0
        %6875 = vmatpush1.msra.mxu0 %v6329
        %6876 = vmatprep.subr.mxu0 0.0
        %6877 = vmatpush1.msra.mxu0 %v6330
        %6878 = vmatprep.subr.mxu0 0.0
        %6879 = vmatpush1.msra.mxu0 %v6331
        %6880 = vmatprep.subr.mxu0 0.0
        %6881 = vmatpush1.msra.mxu0 %v6332
        %6882 = vmatprep.subr.mxu0 0.0
        %6883 = vmatpush1.msra.mxu0 %v6333
        %6884 = vmatprep.subr.mxu0 0.0
        %6885 = vmatpush1.msra.mxu0 %v6334
        %6886 = vmatprep.subr.mxu0 0.0
        %6887 = vmatpush1.msra.mxu0 %v6335
        %6888 = vmatprep.subr.mxu0 0.0
        %6889 = vmatpush1.msra.mxu0 %v6336
        %6890 = vmatprep.subr.mxu0 0.0
        %6891 = vmatpush1.msra.mxu0 %v6337
        %6892 = vmatprep.subr.mxu0 0.0
        %6893 = vmatpush1.msra.mxu0 %v6338
        %6894 = vmatprep.subr.mxu0 0.0
        %6895 = vmatpush1.msra.mxu0 %v6339
        %6896 = vmatprep.subr.mxu0 0.0
        %6897 = vmatpush1.msra.mxu0 %v6340
        %6898 = vmatprep.subr.mxu0 0.0
        %6899 = vmatpush1.msra.mxu0 %v6341
        %6900 = vmatprep.subr.mxu0 0.0
        %6901 = vmatpush1.msra.mxu0 %v6342
        %6902 = vmatprep.subr.mxu0 0.0
        %6903 = vmatpush1.msra.mxu0 %v6343
        %6904 = vmatprep.subr.mxu0 0.0
        %6905 = vmatpush1.msra.mxu0 %v6344
        %6906 = vmatprep.subr.mxu0 0.0
        %6907 = vmatpush1.msra.mxu0 %v6345
        %6908 = vmatprep.mubr.f32.mxu0 %v6088
        %6909 = vmatmul.mubr.f32.gmra.mrb[0].mxu0 %v6087
        %v6910 = vpop.f32.mrb[0].mxu0
        %v6911 = vadd.f32 %v6841, %v6910
        %v6912 = vpop.f32.mrb[0].mxu0
        %6913 = vdwg.mxu0
        %v6914 = vadd.f32 %v5351, %v6911
        %s6915 = scalar_lea.vmem %s13, 1
        %v6916 = vld [vmem:[%s6915] sm:$0x1]
        %s6917 = scalar_lea.vmem %s14, 1
        %v6918 = vld [vmem:[%s6917] sm:$0x1]
        %v6919 = vsel %vm585, %v6914, 0.0
        %6920 = vadd.xlane.f32.xlu0 %v6919
        %v6921 = vpop.xlane.xlu0 %6920
        %v6922 = vmul.f32 %v6921, %v2147
        %v6923 = vsub.f32 %v6914, %v6922
        %v6924 = vmul.f32 %v6923, %v6923
        %v6925 = vsel %vm585, %v6924, 0.0
        %6926 = vadd.xlane.f32.xlu0 %v6925
        %v6927 = vpop.xlane.xlu0 %6926
        %v6928 = vmul.f32 %v6927, %v2147
        %v6929 = vadd.f32 %v6928, 1e-05
        %v6930 = vrsqrt.pop %v6929
        %v6931 = vmul.f32 %v6923, %v6930
        %v6933 = vlaneseq
        %v6934 = vshrl.u32 %v6933, 7
        %v6935 = vsub.s32 0, %v6934
        %v6936 = vrot.slane %v6916, %v6935
        %v6938 = vmul.f32 %v6931, %v6936
        %v6940 = vlaneseq
        %v6941 = vshrl.u32 %v6940, 7
        %v6942 = vsub.s32 0, %v6941
        %v6943 = vrot.slane %v6918, %v6942
        %v6945 = vadd.f32 %v6938, %v6943
        %6946 = vst.msk [vmem:[%s485] sm:$0xff] %vm585, %v6945
        %s6947 = sand.u32 %s357, 1
        %s6948 = scalar_lea.sflag [#allocation5], %s6947
        %s6949 = sand.u32 %s357, 1
        %s6950 = smul.addr %s6949, 8
        %s6951 = scalar_lea.vmem [#allocation4], %s6950
        // Predicated region
        $region81: #{tpu_custom_call.1} parent=79 // pred_check
          %p6952 = pneg %p367
        $region82: #{tpu_custom_call.1} parent=79 // pred_check_branch
          %6954 = sbr.rel (%p6952) target = $region84
        $region83: #{tpu_custom_call.1} parent=79 // pred_region
          %s6956 = ssub.s32 128, 128
          %6957 = vsyncadd %s6948, %s6956
          %s6958 = smul.addr %s29, 128
          %s6959 = scalar_lea.hbm %s15, %s6958
          %s6961 = sshll.u32 %s6951, 4
          %s6962 = int_to_ptr.vmem [resolvable:$true] %s6961
          %6964 = dma.vmem_to_hbm [thread:$0]  %s6962, 128, %s6959, %s6948
        $region84: #{tpu_custom_call.1} parent=79 // pred_fallthru
          _
      $region80: #{tpu_custom_call.1} parent=5 // pred_fallthru
        _
      %p6965 = scmp.le.s32.totalorder 2, %s24
      // Predicated region
      $region85: #{tpu_custom_call.1} parent=5 // pred_check
        %p6966 = pneg %p6965
      $region86: #{tpu_custom_call.1} parent=5 // pred_check_branch
        %6968 = sbr.rel (%p6966) target = $region88
      $region87: #{tpu_custom_call.1} parent=5 // pred_region
        %s6969 = ssub.s32 %s24, 2
        // Predicated region
        $region89: #{tpu_custom_call.1} parent=87 // pred_check
          %p6970 = pneg %p373
        $region90: #{tpu_custom_call.1} parent=87 // pred_check_branch
          %6972 = sbr.rel (%p6970) target = $region92
        $region91: #{tpu_custom_call.1} parent=87 // pred_region
          %s6973 = sand.u32 %s358, 1
          %s6974 = scalar_lea.sflag [#allocation5], %s6973
          %s6975 = sand.u32 %s358, 1
          %s6976 = smul.addr %s6975, 8
          %s6977 = scalar_lea.vmem [#allocation4], %s6976
          %6978 = dma.done %s6974, 128
        $region92: #{tpu_custom_call.1} parent=87 // pred_fallthru
          _
      $region88: #{tpu_custom_call.1} parent=5 // pred_fallthru
        _
    $region6: #{tpu_custom_call.1} parent=1 // loop_footer
      %s28 = sadd.s32 1, %s24
    $region7: #{tpu_custom_call.1} parent=1 // loop_footer_branch
      %23 = sbr.rel target = $region3
    $region8: #{tpu_custom_call.1} parent=1 // loop_exit
      _
    %6979 = vsyncpa [#allocation5], 1
    %s6980 = scalar_lea.sflag [#allocation5], 1
    %6981 = vsyncpa %s6980, 1

</llo_original>
